<compile_context>
chip_gen: v6e
topology: v6e:2x2x1
jax: 0.10.0
libtpu: 0.0.40
codegen_flags: <defaults>
</compile_context>

<pallas_src>
import functools

import jax
import jax.numpy as jnp
from jax.experimental import pallas as pl
from jax.experimental.pallas import tpu as pltpu

EPS = 1e-5
LANE = 128
ROW_TILE_TARGET = 1024


def _round_up(x, m):
    return ((x + m - 1) // m) * m


def _pick_row_tile(m, target=ROW_TILE_TARGET):
    """Largest divisor of m that is <= target and a multiple of 8 (else m)."""
    if m <= target:
        return m
    for d in range(target, 7, -1):
        if m % d == 0 and d % 8 == 0:
            return d
    return m  # fallback: full extent is always a legal block


def _cparams(semantics):
    return pltpu.CompilerParams(dimension_semantics=semantics,
                                vmem_limit_bytes=48 * 1024 * 1024)


def _bn_scale_shift(stats_ref, g_ref, b_ref, inv_m):
    """Per-channel BN scale/shift from accumulated (sum, sumsq) batch stats."""
    mean = stats_ref[0:1, :] * inv_m
    var = jnp.maximum(stats_ref[1:2, :] * inv_m - mean * mean, 0.0)
    scale = jax.lax.rsqrt(var + EPS) * g_ref[...]
    shift = b_ref[...] - mean * scale
    return scale, shift


# ---------------------------------------------------------------------------
# Kernels
# ---------------------------------------------------------------------------
def _conv1_kernel(x_ref, w1_ref, h1_ref, s1_ref):
    """h1 = x @ w1 (pre-BN); accumulate per-channel sum / sumsq of h1."""
    @pl.when(pl.program_id(0) == 0)
    def _init():
        s1_ref[...] = jnp.zeros_like(s1_ref)

    h = jnp.dot(x_ref[...], w1_ref[...], preferred_element_type=jnp.float32)
    h1_ref[...] = h.astype(h1_ref.dtype)
    s1_ref[0:1, :] += jnp.sum(h, axis=0, keepdims=True)
    s1_ref[1:2, :] += jnp.sum(h * h, axis=0, keepdims=True)


def _conv2_kernel(h1_ref, s1_ref, g1_ref, b1_ref, w2_ref, h2_ref, s2_ref,
                  ypad_ref, *, hh, ww, ho, wo, stride, inv_m1):
    """Fused BN1+ReLU apply + 3x3 conv as 9 accumulated matmuls + h2 stats.

    One image per grid step; the BN1-normalized activation only ever lives in
    a zero-padded VMEM scratch (no im2col, no normalized tensor in HBM).
    """
    @pl.when(pl.program_id(0) == 0)
    def _init():
        s2_ref[...] = jnp.zeros_like(s2_ref)
        ypad_ref[...] = jnp.zeros_like(ypad_ref)  # zero halo, stays zero

    scale, shift = _bn_scale_shift(s1_ref, g1_ref, b1_ref, inv_m1)
    y = jnp.maximum(h1_ref[...].astype(jnp.float32) * scale + shift, 0.0)
    ypad_ref[1:hh + 1, 1:ww + 1, :] = y.astype(ypad_ref.dtype)

    cp = w2_ref.shape[-1]
    ypv = ypad_ref[...]
    hspan = (ho - 1) * stride + 1
    wspan = (wo - 1) * stride + 1
    acc = jnp.zeros((ho * wo, cp), jnp.float32)
    for k in range(9):
        ky, kx = divmod(k, 3)
        # TODO(synk): stride > 1 uses a strided lax.slice on the VMEM value;
        #             stride == 1 (the common case) is a contiguous slice.
        tap = jax.lax.slice(ypv, (ky, kx, 0),
                            (ky + hspan, kx + wspan, cp),
                            (stride, stride, 1))
        acc = acc + jnp.dot(tap.reshape(ho * wo, cp), w2_ref[k],
                            preferred_element_type=jnp.float32)

    h2_ref[...] = acc.astype(h2_ref.dtype)
    s2_ref[0:1, :] += jnp.sum(acc, axis=0, keepdims=True)
    s2_ref[1:2, :] += jnp.sum(acc * acc, axis=0, keepdims=True)


def _conv3_proj_kernel(h2_ref, s2_ref, g2_ref, b2_ref, w3_ref, xs_ref, ws_ref,
                       h3_ref, hs_ref, s3_ref, ss_ref, *, inv_m2):
    """BN2+ReLU apply fused with conv3 and the projection-shortcut conv."""
    @pl.when(pl.program_id(0) == 0)
    def _init():
        s3_ref[...] = jnp.zeros_like(s3_ref)
        ss_ref[...] = jnp.zeros_like(ss_ref)

    scale, shift = _bn_scale_shift(s2_ref, g2_ref, b2_ref, inv_m2)
    y2 = jnp.maximum(h2_ref[...].astype(jnp.float32) * scale + shift, 0.0)

    h3 = jnp.dot(y2.astype(w3_ref.dtype), w3_ref[...],
                 preferred_element_type=jnp.float32)
    hs = jnp.dot(xs_ref[...], ws_ref[...], preferred_element_type=jnp.float32)

    h3_ref[...] = h3.astype(h3_ref.dtype)
    hs_ref[...] = hs.astype(hs_ref.dtype)
    s3_ref[0:1, :] += jnp.sum(h3, axis=0, keepdims=True)
    s3_ref[1:2, :] += jnp.sum(h3 * h3, axis=0, keepdims=True)
    ss_ref[0:1, :] += jnp.sum(hs, axis=0, keepdims=True)
    ss_ref[1:2, :] += jnp.sum(hs * hs, axis=0, keepdims=True)


def _conv3_id_kernel(h2_ref, s2_ref, g2_ref, b2_ref, w3_ref,
                     h3_ref, s3_ref, *, inv_m2):
    """BN2+ReLU apply fused with conv3 (identity-shortcut variant)."""
    @pl.when(pl.program_id(0) == 0)
    def _init():
        s3_ref[...] = jnp.zeros_like(s3_ref)

    scale, shift = _bn_scale_shift(s2_ref, g2_ref, b2_ref, inv_m2)
    y2 = jnp.maximum(h2_ref[...].astype(jnp.float32) * scale + shift, 0.0)
    h3 = jnp.dot(y2.astype(w3_ref.dtype), w3_ref[...],
                 preferred_element_type=jnp.float32)
    h3_ref[...] = h3.astype(h3_ref.dtype)
    s3_ref[0:1, :] += jnp.sum(h3, axis=0, keepdims=True)
    s3_ref[1:2, :] += jnp.sum(h3 * h3, axis=0, keepdims=True)


def _final_proj_kernel(h3_ref, s3_ref, g3_ref, b3_ref,
                       hs_ref, ss_ref, gs_ref, bs_ref, o_ref, *, inv_m2):
    """out = relu(BN3(h3) + BNs(hs)) -- lane-dense streaming pass."""
    sc3, sh3 = _bn_scale_shift(s3_ref, g3_ref, b3_ref, inv_m2)
    scs, shs = _bn_scale_shift(ss_ref, gs_ref, bs_ref, inv_m2)
    a = h3_ref[...].astype(jnp.float32) * sc3 + sh3
    b = hs_ref[...].astype(jnp.float32) * scs + shs
    o_ref[...] = jnp.maximum(a + b, 0.0).astype(o_ref.dtype)


def _final_id_kernel(h3_ref, s3_ref, g3_ref, b3_ref, xs_ref, o_ref, *, inv_m2):
    """out = relu(BN3(h3) + x) -- identity shortcut."""
    sc3, sh3 = _bn_scale_shift(s3_ref, g3_ref, b3_ref, inv_m2)
    a = h3_ref[...].astype(jnp.float32) * sc3 + sh3
    o_ref[...] = jnp.maximum(a + xs_ref[...].astype(jnp.float32),
                             0.0).astype(o_ref.dtype)


# ---------------------------------------------------------------------------
# pallas_call wrappers (gridded, auto-pipelined)
# ---------------------------------------------------------------------------
def _conv1_call(x2d, w1, tm):
    m, cin_p = x2d.shape
    pp = w1.shape[1]
    return pl.pallas_call(
        _conv1_kernel,
        grid=(m // tm,),
        in_specs=[
            pl.BlockSpec((tm, cin_p), lambda i: (i, 0)),
            pl.BlockSpec((cin_p, pp), lambda i: (0, 0)),
        ],
        out_specs=(
            pl.BlockSpec((tm, pp), lambda i: (i, 0)),
            pl.BlockSpec((2, pp), lambda i: (0, 0)),       # stats accumulator
        ),
        out_shape=(
            jax.ShapeDtypeStruct((m, pp), x2d.dtype),
            jax.ShapeDtypeStruct((2, pp), jnp.float32),
        ),
        compiler_params=_cparams(("arbitrary",)),
    )(x2d, w1)


def _conv2_call(h1_4d, s1, g1, b1, w2, stride):
    n, hh, ww, pp = h1_4d.shape
    ho = (hh + 2 - 3) // stride + 1
    wo = (ww + 2 - 3) // stride + 1
    inv_m1 = 1.0 / float(n * hh * ww)
    kern = functools.partial(_conv2_kernel, hh=hh, ww=ww, ho=ho, wo=wo,
                             stride=stride, inv_m1=inv_m1)
    h2, s2 = pl.pallas_call(
        kern,
        grid=(n,),
        in_specs=[
            pl.BlockSpec((None, hh, ww, pp), lambda i: (i, 0, 0, 0)),
            pl.BlockSpec((2, pp), lambda i: (0, 0)),
            pl.BlockSpec((1, pp), lambda i: (0, 0)),
            pl.BlockSpec((1, pp), lambda i: (0, 0)),
            pl.BlockSpec((9, pp, pp), lambda i: (0, 0, 0)),
        ],
        out_specs=(
            pl.BlockSpec((None, ho * wo, pp), lambda i: (i, 0, 0)),
            pl.BlockSpec((2, pp), lambda i: (0, 0)),       # stats accumulator
        ),
        out_shape=(
            jax.ShapeDtypeStruct((n, ho * wo, pp), h1_4d.dtype),
            jax.ShapeDtypeStruct((2, pp), jnp.float32),
        ),
        scratch_shapes=[pltpu.VMEM((hh + 2, ww + 2, pp), h1_4d.dtype)],
        compiler_params=_cparams(("arbitrary",)),
    )(h1_4d, s1, g1, b1, w2)
    return h2.reshape(n * ho * wo, pp), s2, ho, wo


def _conv3_proj_call(h2, s2, g2, b2, w3, xs, ws, tm, inv_m2):
    m2, pp = h2.shape
    c4p = w3.shape[1]
    cin_p = xs.shape[1]
    kern = functools.partial(_conv3_proj_kernel, inv_m2=inv_m2)
    return pl.pallas_call(
        kern,
        grid=(m2 // tm,),
        in_specs=[
            pl.BlockSpec((tm, pp), lambda i: (i, 0)),
            pl.BlockSpec((2, pp), lambda i: (0, 0)),
            pl.BlockSpec((1, pp), lambda i: (0, 0)),
            pl.BlockSpec((1, pp), lambda i: (0, 0)),
            pl.BlockSpec((pp, c4p), lambda i: (0, 0)),
            pl.BlockSpec((tm, cin_p), lambda i: (i, 0)),
            pl.BlockSpec((cin_p, c4p), lambda i: (0, 0)),
        ],
        out_specs=(
            pl.BlockSpec((tm, c4p), lambda i: (i, 0)),
            pl.BlockSpec((tm, c4p), lambda i: (i, 0)),
            pl.BlockSpec((2, c4p), lambda i: (0, 0)),
            pl.BlockSpec((2, c4p), lambda i: (0, 0)),
        ),
        out_shape=(
            jax.ShapeDtypeStruct((m2, c4p), h2.dtype),
            jax.ShapeDtypeStruct((m2, c4p), h2.dtype),
            jax.ShapeDtypeStruct((2, c4p), jnp.float32),
            jax.ShapeDtypeStruct((2, c4p), jnp.float32),
        ),
        compiler_params=_cparams(("arbitrary",)),
    )(h2, s2, g2, b2, w3, xs, ws)


def _conv3_id_call(h2, s2, g2, b2, w3, tm, inv_m2):
    m2, pp = h2.shape
    c4p = w3.shape[1]
    kern = functools.partial(_conv3_id_kernel, inv_m2=inv_m2)
    return pl.pallas_call(
        kern,
        grid=(m2 // tm,),
        in_specs=[
            pl.BlockSpec((tm, pp), lambda i: (i, 0)),
            pl.BlockSpec((2, pp), lambda i: (0, 0)),
            pl.BlockSpec((1, pp), lambda i: (0, 0)),
            pl.BlockSpec((1, pp), lambda i: (0, 0)),
            pl.BlockSpec((pp, c4p), lambda i: (0, 0)),
        ],
        out_specs=(
            pl.BlockSpec((tm, c4p), lambda i: (i, 0)),
            pl.BlockSpec((2, c4p), lambda i: (0, 0)),
        ),
        out_shape=(
            jax.ShapeDtypeStruct((m2, c4p), h2.dtype),
            jax.ShapeDtypeStruct((2, c4p), jnp.float32),
        ),
        compiler_params=_cparams(("arbitrary",)),
    )(h2, s2, g2, b2, w3)


def _final_proj_call(h3, s3, g3, b3, hs, ss, gs, bs, tm, inv_m2):
    m2, c4p = h3.shape
    kern = functools.partial(_final_proj_kernel, inv_m2=inv_m2)
    return pl.pallas_call(
        kern,
        grid=(m2 // tm,),
        in_specs=[
            pl.BlockSpec((tm, c4p), lambda i: (i, 0)),
            pl.BlockSpec((2, c4p), lambda i: (0, 0)),
            pl.BlockSpec((1, c4p), lambda i: (0, 0)),
            pl.BlockSpec((1, c4p), lambda i: (0, 0)),
            pl.BlockSpec((tm, c4p), lambda i: (i, 0)),
            pl.BlockSpec((2, c4p), lambda i: (0, 0)),
            pl.BlockSpec((1, c4p), lambda i: (0, 0)),
            pl.BlockSpec((1, c4p), lambda i: (0, 0)),
        ],
        out_specs=pl.BlockSpec((tm, c4p), lambda i: (i, 0)),
        out_shape=jax.ShapeDtypeStruct((m2, c4p), jnp.float32),
        compiler_params=_cparams(("parallel",)),
    )(h3, s3, g3, b3, hs, ss, gs, bs)


def _final_id_call(h3, s3, g3, b3, xs, tm, inv_m2):
    m2, c4p = h3.shape
    kern = functools.partial(_final_id_kernel, inv_m2=inv_m2)
    return pl.pallas_call(
        kern,
        grid=(m2 // tm,),
        in_specs=[
            pl.BlockSpec((tm, c4p), lambda i: (i, 0)),
            pl.BlockSpec((2, c4p), lambda i: (0, 0)),
            pl.BlockSpec((1, c4p), lambda i: (0, 0)),
            pl.BlockSpec((1, c4p), lambda i: (0, 0)),
            pl.BlockSpec((tm, c4p), lambda i: (i, 0)),
        ],
        out_specs=pl.BlockSpec((tm, c4p), lambda i: (i, 0)),
        out_shape=jax.ShapeDtypeStruct((m2, c4p), jnp.float32),
        compiler_params=_cparams(("parallel",)),
    )(h3, s3, g3, b3, xs)


# ---------------------------------------------------------------------------
# Parameter prep (PyTorch layout -> padded, lane-dense kernel layout)
# ---------------------------------------------------------------------------
def prepare_params(tp, in_planes, planes, stride, compute_dtype=jnp.bfloat16):
    exp = 4
    cin_p = _round_up(in_planes, LANE)
    pp = _round_up(planes, LANE)
    c4p = _round_up(exp * planes, LANE)

    def pad2(a, r, c):
        return jnp.pad(a, ((0, r - a.shape[0]), (0, c - a.shape[1])))

    def padv(v, c):
        return jnp.pad(v, (0, c - v.shape[0])).reshape(1, c).astype(jnp.float32)

    w2 = jnp.transpose(tp["w2"], (2, 3, 1, 0)).reshape(9, planes, planes)
    w2 = jnp.pad(w2, ((0, 0), (0, pp - planes), (0, pp - planes)))

    kp = {
        "w1": pad2(tp["w1"][:, :, 0, 0].T, cin_p, pp).astype(compute_dtype),
        "w2": w2.astype(compute_dtype),
        "w3": pad2(tp["w3"][:, :, 0, 0].T, pp, c4p).astype(compute_dtype),
        "g1": padv(tp["g1"], pp), "b1": padv(tp["b1"], pp),
        "g2": padv(tp["g2"], pp), "b2": padv(tp["b2"], pp),
        "g3": padv(tp["g3"], c4p), "b3": padv(tp["b3"], c4p),
    }
    if stride != 1 or in_planes != exp * planes:
        kp["ws"] = pad2(tp["ws"][:, :, 0, 0].T, cin_p, c4p).astype(compute_dtype)
        kp["gs"] = padv(tp["gs"], c4p)
        kp["bs"] = padv(tp["bs"], c4p)
    return kp


# ---------------------------------------------------------------------------
# Forward
# ---------------------------------------------------------------------------
@functools.partial(jax.jit, static_argnames=("planes", "stride", "compute_dtype"))
def bottleneck_forward(x_nchw, params, *, planes, stride=1,
                       compute_dtype=jnp.bfloat16):
    n, cin, hh, ww = x_nchw.shape
    cout = 4 * planes
    cin_p = params["w1"].shape[0]
    pp = params["w1"].shape[1]
    c4p = params["w3"].shape[1]

    x = jnp.transpose(x_nchw, (0, 2, 3, 1))                        # NCHW->NHWC
    x = jnp.pad(x, ((0, 0), (0, 0), (0, 0), (0, cin_p - cin)))
    x = x.astype(compute_dtype)

    m1 = n * hh * ww
    tm1 = _pick_row_tile(m1)
    h1, s1 = _conv1_call(x.reshape(m1, cin_p), params["w1"], tm1)

    h2, s2, ho, wo = _conv2_call(h1.reshape(n, hh, ww, pp), s1,
                                 params["g1"], params["b1"], params["w2"],
                                 stride)

    m2 = n * ho * wo
    tm2 = _pick_row_tile(m2)
    inv_m2 = 1.0 / float(m2)

    if stride == 1:
        xs = x.reshape(m1, cin_p)          # no gather needed
    else:
        # TODO(synk): for stride > 1 the shortcut spatial subsample is an XLA
        #             strided slice in the wrapper rather than in-kernel.
        xs = x[:, ::stride, ::stride, :].reshape(m2, cin_p)

    if "ws" in params:
        h3, hs, s3, ss = _conv3_proj_call(h2, s2, params["g2"], params["b2"],
                                          params["w3"], xs, params["ws"],
                                          tm2, inv_m2)
        out = _final_proj_call(h3, s3, params["g3"], params["b3"],
                               hs, ss, params["gs"], params["bs"], tm2, inv_m2)
    else:
        h3, s3 = _conv3_id_call(h2, s2, params["g2"], params["b2"],
                                params["w3"], tm2, inv_m2)
        out = _final_id_call(h3, s3, params["g3"], params["b3"], xs, tm2,
                             inv_m2)

    out = out.reshape(n, ho, wo, c4p)[:, :, :, :cout]
    return jnp.transpose(out, (0, 3, 1, 2))                        # NHWC->NCHW


# ---------------------------------------------------------------------------
# Pure-JAX reference (independent: lax.conv, NCHW, training-mode BN)
# ---------------------------------------------------------------------------
def ref_forward(x, tp, stride, has_proj):
    def bn(hh, g, b):
        mean = hh.mean(axis=(0, 2, 3), keepdims=True)
        var = ((hh - mean) ** 2).mean(axis=(0, 2, 3), keepdims=True)
        return ((hh - mean) * jax.lax.rsqrt(var + EPS)
                * g.reshape(1, -1, 1, 1) + b.reshape(1, -1, 1, 1))

    def conv(xx, ww, s, p):
        return jax.lax.conv_general_dilated(
            xx, ww, (s, s), [(p, p), (p, p)],
            dimension_numbers=("NCHW", "OIHW", "NCHW"))

    out = jax.nn.relu(bn(conv(x, tp["w1"], 1, 0), tp["g1"], tp["b1"]))
    out = jax.nn.relu(bn(conv(out, tp["w2"], stride, 1), tp["g2"], tp["b2"]))
    out = bn(conv(out, tp["w3"], 1, 0), tp["g3"], tp["b3"])
    sc = bn(conv(x, tp["ws"], stride, 0), tp["gs"], tp["bs"]) if has_proj else x
    return jax.nn.relu(out + sc)


# ---------------------------------------------------------------------------
if __name__ == "__main__":
    def make_torch_params(key, in_planes, planes):
        exp = 4
        ks = jax.random.split(key, 12)
        return {
            "w1": jax.random.normal(ks[0], (planes, in_planes, 1, 1), jnp.float32) * 0.3,
            "w2": jax.random.normal(ks[1], (planes, planes, 3, 3), jnp.float32) * 0.1,
            "w3": jax.random.normal(ks[2], (exp * planes, planes, 1, 1), jnp.float32) * 0.2,
            "ws": jax.random.normal(ks[3], (exp * planes, in_planes, 1, 1), jnp.float32) * 0.2,
            "g1": 1.0 + 0.1 * jax.random.normal(ks[4], (planes,), jnp.float32),
            "b1": 0.1 * jax.random.normal(ks[5], (planes,), jnp.float32),
            "g2": 1.0 + 0.1 * jax.random.normal(ks[6], (planes,), jnp.float32),
            "b2": 0.1 * jax.random.normal(ks[7], (planes,), jnp.float32),
            "g3": 1.0 + 0.1 * jax.random.normal(ks[8], (exp * planes,), jnp.float32),
            "b3": 0.1 * jax.random.normal(ks[9], (exp * planes,), jnp.float32),
            "gs": 1.0 + 0.1 * jax.random.normal(ks[10], (exp * planes,), jnp.float32),
            "bs": 0.1 * jax.random.normal(ks[11], (exp * planes,), jnp.float32),
        }

    key = jax.random.PRNGKey(0)
    n, h, w = 2, 16, 16

    cases = [
        (4, 4, 1),    # projection shortcut (in_planes != 4 * planes)
        (16, 4, 1),   # identity shortcut   (in_planes == 4 * planes)
    ]

    for idx, (in_planes, planes, stride) in enumerate(cases):
        kparam, kx = jax.random.split(jax.random.fold_in(key, idx))
        tp = make_torch_params(kparam, in_planes, planes)
        has_proj = (stride != 1) or (in_planes != 4 * planes)
        x = jax.random.normal(kx, (n, in_planes, h, w), jnp.float32)

        ref = jax.block_until_ready(ref_forward(x, tp, stride, has_proj))

        # f32 compute path: tight numerical check against the reference.
        kp32 = prepare_params(tp, in_planes, planes, stride, jnp.float32)
        out32 = jax.block_until_ready(
            bottleneck_forward(x, kp32, planes=planes, stride=stride,
                               compute_dtype=jnp.float32))
        assert out32.shape == ref.shape, (out32.shape, ref.shape)
        err32 = float(jnp.max(jnp.abs(out32 - ref)))
        assert err32 < 2e-3, f"f32 case {idx}: max abs err {err32}"

        # bf16 compute path (performance default): loose check.
        kp16 = prepare_params(tp, in_planes, planes, stride, jnp.bfloat16)
        out16 = jax.block_until_ready(
            bottleneck_forward(x, kp16, planes=planes, stride=stride,
                               compute_dtype=jnp.bfloat16))
        assert bool(jnp.all(jnp.isfinite(out16))), f"bf16 case {idx}: non-finite"
        err16 = float(jnp.max(jnp.abs(out16 - ref)))
        assert err16 < 0.3, f"bf16 case {idx}: max abs err {err16}"

    print("KERNEL_OK")
</pallas_src>

<mosaic_0001>
module attributes {stable_mosaic.version = 11 : i64} {
  func.func @_conv1_kernel(%arg0: i32, %arg1: memref<512x128xf32, #tpu.memory_space<vmem>>, %arg2: memref<128x128xf32, #tpu.memory_space<vmem>>, %arg3: memref<512x128xf32, #tpu.memory_space<vmem>>, %arg4: memref<2x128xf32, #tpu.memory_space<vmem>>) attributes {dimension_semantics = [#tpu.dimension_semantics<arbitrary>], iteration_bounds = array<i64: 1>, scalar_prefetch = 0 : i64, scratch_operands = 0 : i64, tpu.core_type = #tpu.core_type<tc>, window_params = [{transform_indices = @transform_0, window_bounds = array<i64: 512, 128>}, {pipeline_mode = #tpu.pipeline_mode<synchronous>, transform_indices = @transform_1, window_bounds = array<i64: 128, 128>}, {transform_indices = @transform_2, window_bounds = array<i64: 512, 128>}, {pipeline_mode = #tpu.pipeline_mode<synchronous>, transform_indices = @transform_3, window_bounds = array<i64: 2, 128>}]} {
    %c0_i32 = arith.constant 0 : i32
    %0 = arith.cmpi eq, %arg0, %c0_i32 : i32
    %1 = arith.extui %0 : i1 to i32
    %c0_i32_0 = arith.constant 0 : i32
    %2 = arith.cmpi ne, %1, %c0_i32_0 : i32
    scf.if %2 {
      %cst_15 = arith.constant 0.000000e+00 : f32
      %18 = vector.broadcast %cst_15 : f32 to vector<2x128xf32>
      %c0_16 = arith.constant 0 : index
      %c0_17 = arith.constant 0 : index
      %19 = vector.load %arg4[%c0_16, %c0_17] : memref<2x128xf32, #tpu.memory_space<vmem>>, vector<2x128xf32>
      tpu.vector_store %arg4[%c0_16, %c0_17], %18 {strides = array<i32>} : memref<2x128xf32, #tpu.memory_space<vmem>>, vector<2x128xf32>,
    } else {
    }
    %c0 = arith.constant 0 : index
    %c0_1 = arith.constant 0 : index
    %3 = vector.load %arg1[%c0, %c0_1] : memref<512x128xf32, #tpu.memory_space<vmem>>, vector<512x128xf32>
    %c0_2 = arith.constant 0 : index
    %c0_3 = arith.constant 0 : index
    %4 = vector.load %arg2[%c0_2, %c0_3] : memref<128x128xf32, #tpu.memory_space<vmem>>, vector<128x128xf32>
    %cst = arith.constant dense<0.000000e+00> : vector<512x128xf32>
    %5 = tpu.matmul %3, %4, %cst {dimension_numbers = #tpu.dot_dimension_numbers<[1], [0], [0], [1], [0, 0, 1, 1], [], []>} : vector<512x128xf32>, vector<128x128xf32>, vector<512x128xf32> -> vector<512x128xf32>
    %c0_4 = arith.constant 0 : index
    %c0_5 = arith.constant 0 : index
    %6 = vector.load %arg3[%c0_4, %c0_5] : memref<512x128xf32, #tpu.memory_space<vmem>>, vector<512x128xf32>
    tpu.vector_store %arg3[%c0_4, %c0_5], %5 {strides = array<i32>} : memref<512x128xf32, #tpu.memory_space<vmem>>, vector<512x128xf32>,
    %c0_6 = arith.constant 0 : index
    %c0_7 = arith.constant 0 : index
    %7 = vector.load %arg4[%c0_6, %c0_7] : memref<2x128xf32, #tpu.memory_space<vmem>>, vector<1x128xf32>
    %cst_8 = arith.constant dense<0.000000e+00> : vector<128xf32>
    %8 = vector.multi_reduction <add>, %5, %cst_8 [0] : vector<512x128xf32> to vector<128xf32>
    %9 = vector.shape_cast %8 : vector<128xf32> to vector<1x128xf32>
    %10 = arith.addf %7, %9 : vector<1x128xf32>
    %c0_9 = arith.constant 0 : index
    %c0_10 = arith.constant 0 : index
    %11 = vector.load %arg4[%c0_9, %c0_10] : memref<2x128xf32, #tpu.memory_space<vmem>>, vector<1x128xf32>
    tpu.vector_store %arg4[%c0_9, %c0_10], %10 {strides = array<i32>} : memref<2x128xf32, #tpu.memory_space<vmem>>, vector<1x128xf32>,
    %c1 = arith.constant 1 : index
    %c0_11 = arith.constant 0 : index
    %12 = vector.load %arg4[%c1, %c0_11] : memref<2x128xf32, #tpu.memory_space<vmem>>, vector<1x128xf32>
    %13 = arith.mulf %5, %5 : vector<512x128xf32>
    %cst_12 = arith.constant dense<0.000000e+00> : vector<128xf32>
    %14 = vector.multi_reduction <add>, %13, %cst_12 [0] : vector<512x128xf32> to vector<128xf32>
    %15 = vector.shape_cast %14 : vector<128xf32> to vector<1x128xf32>
    %16 = arith.addf %12, %15 : vector<1x128xf32>
    %c1_13 = arith.constant 1 : index
    %c0_14 = arith.constant 0 : index
    %17 = vector.load %arg4[%c1_13, %c0_14] : memref<2x128xf32, #tpu.memory_space<vmem>>, vector<1x128xf32>
    tpu.vector_store %arg4[%c1_13, %c0_14], %16 {strides = array<i32>} : memref<2x128xf32, #tpu.memory_space<vmem>>, vector<1x128xf32>,
    return
  }
  func.func @transform_0(%arg0: i32) -> (i32, i32) {
    %c0_i32 = arith.constant 0 : i32
    %c0_i32_0 = arith.constant 0 : i32
    return %arg0, %c0_i32 : i32, i32
  }
  func.func @transform_1(%arg0: i32) -> (i32, i32) {
    %c0_i32 = arith.constant 0 : i32
    %c0_i32_0 = arith.constant 0 : i32
    %c0_i32_1 = arith.constant 0 : i32
    return %c0_i32, %c0_i32_0 : i32, i32
  }
  func.func @transform_2(%arg0: i32) -> (i32, i32) {
    %c0_i32 = arith.constant 0 : i32
    %c0_i32_0 = arith.constant 0 : i32
    return %arg0, %c0_i32 : i32, i32
  }
  func.func @transform_3(%arg0: i32) -> (i32, i32) {
    %c0_i32 = arith.constant 0 : i32
    %c0_i32_0 = arith.constant 0 : i32
    %c0_i32_1 = arith.constant 0 : i32
    return %c0_i32, %c0_i32_0 : i32, i32
  }
}

module attributes {stable_mosaic.version = 11 : i64} {
  func.func @_conv2_kernel(%arg0: i32, %arg1: memref<1x16x16x128xf32, #tpu.memory_space<vmem>>, %arg2: memref<2x128xf32, #tpu.memory_space<vmem>>, %arg3: memref<1x128xf32, #tpu.memory_space<vmem>>, %arg4: memref<1x128xf32, #tpu.memory_space<vmem>>, %arg5: memref<9x128x128xf32, #tpu.memory_space<vmem>>, %arg6: memref<1x256x128xf32, #tpu.memory_space<vmem>>, %arg7: memref<2x128xf32, #tpu.memory_space<vmem>>, %arg8: memref<18x18x128xf32, #tpu.memory_space<vmem>>) attributes {dimension_semantics = [#tpu.dimension_semantics<arbitrary>], iteration_bounds = array<i64: 2>, scalar_prefetch = 0 : i64, scratch_operands = 1 : i64, tpu.core_type = #tpu.core_type<tc>, window_params = [{transform_indices = @transform_0, window_bounds = array<i64: 1, 16, 16, 128>}, {pipeline_mode = #tpu.pipeline_mode<synchronous>, transform_indices = @transform_1, window_bounds = array<i64: 2, 128>}, {pipeline_mode = #tpu.pipeline_mode<synchronous>, transform_indices = @transform_2, window_bounds = array<i64: 1, 128>}, {pipeline_mode = #tpu.pipeline_mode<synchronous>, transform_indices = @transform_3, window_bounds = array<i64: 1, 128>}, {pipeline_mode = #tpu.pipeline_mode<synchronous>, transform_indices = @transform_4, window_bounds = array<i64: 9, 128, 128>}, {transform_indices = @transform_5, window_bounds = array<i64: 1, 256, 128>}, {pipeline_mode = #tpu.pipeline_mode<synchronous>, transform_indices = @transform_6, window_bounds = array<i64: 2, 128>}]} {
    %c0_i32 = arith.constant 0 : i32
    %0 = arith.cmpi eq, %arg0, %c0_i32 : i32
    %1 = arith.extui %0 : i1 to i32
    %c0_i32_0 = arith.constant 0 : i32
    %2 = arith.cmpi ne, %1, %c0_i32_0 : i32
    scf.if %2 {
      %cst_64 = arith.constant 0.000000e+00 : f32
      %102 = vector.broadcast %cst_64 : f32 to vector<2x128xf32>
      %c0_65 = arith.constant 0 : index
      %c0_66 = arith.constant 0 : index
      %103 = vector.load %arg7[%c0_65, %c0_66] : memref<2x128xf32, #tpu.memory_space<vmem>>, vector<2x128xf32>
      tpu.vector_store %arg7[%c0_65, %c0_66], %102 {strides = array<i32>} : memref<2x128xf32, #tpu.memory_space<vmem>>, vector<2x128xf32>,
      %cst_67 = arith.constant 0.000000e+00 : f32
      %104 = vector.broadcast %cst_67 : f32 to vector<18x18x128xf32>
      %c0_68 = arith.constant 0 : index
      %c0_69 = arith.constant 0 : index
      %c0_70 = arith.constant 0 : index
      %105 = vector.load %arg8[%c0_68, %c0_69, %c0_70] : memref<18x18x128xf32, #tpu.memory_space<vmem>>, vector<18x18x128xf32>
      tpu.vector_store %arg8[%c0_68, %c0_69, %c0_70], %104 {strides = array<i32>} : memref<18x18x128xf32, #tpu.memory_space<vmem>>, vector<18x18x128xf32>,
    } else {
    }
    %c0 = arith.constant 0 : index
    %c0_1 = arith.constant 0 : index
    %3 = vector.load %arg2[%c0, %c0_1] : memref<2x128xf32, #tpu.memory_space<vmem>>, vector<1x128xf32>
    %cst = arith.constant 0.001953125 : f32
    %4 = vector.broadcast %cst : f32 to vector<1x128xf32>
    %5 = arith.mulf %3, %4 : vector<1x128xf32>
    %c1 = arith.constant 1 : index
    %c0_2 = arith.constant 0 : index
    %6 = vector.load %arg2[%c1, %c0_2] : memref<2x128xf32, #tpu.memory_space<vmem>>, vector<1x128xf32>
    %cst_3 = arith.constant 0.001953125 : f32
    %7 = vector.broadcast %cst_3 : f32 to vector<1x128xf32>
    %8 = arith.mulf %6, %7 : vector<1x128xf32>
    %9 = arith.mulf %5, %5 : vector<1x128xf32>
    %10 = arith.subf %8, %9 : vector<1x128xf32>
    %cst_4 = arith.constant 0.000000e+00 : f32
    %11 = vector.broadcast %cst_4 : f32 to vector<1x128xf32>
    %12 = arith.maximumf %10, %11 : vector<1x128xf32>
    %cst_5 = arith.constant 9.99999974E-6 : f32
    %13 = vector.broadcast %cst_5 : f32 to vector<1x128xf32>
    %14 = arith.addf %12, %13 : vector<1x128xf32>
    %15 = math.rsqrt %14 : vector<1x128xf32>
    %c0_6 = arith.constant 0 : index
    %c0_7 = arith.constant 0 : index
    %16 = vector.load %arg3[%c0_6, %c0_7] : memref<1x128xf32, #tpu.memory_space<vmem>>, vector<1x128xf32>
    %17 = arith.mulf %15, %16 : vector<1x128xf32>
    %c0_8 = arith.constant 0 : index
    %c0_9 = arith.constant 0 : index
    %18 = vector.load %arg4[%c0_8, %c0_9] : memref<1x128xf32, #tpu.memory_space<vmem>>, vector<1x128xf32>
    %19 = arith.mulf %5, %17 : vector<1x128xf32>
    %20 = arith.subf %18, %19 : vector<1x128xf32>
    %c0_10 = arith.constant 0 : index
    %c0_11 = arith.constant 0 : index
    %c0_12 = arith.constant 0 : index
    %c0_13 = arith.constant 0 : index
    %21 = vector.load %arg1[%c0_10, %c0_11, %c0_12, %c0_13] : memref<1x16x16x128xf32, #tpu.memory_space<vmem>>, vector<1x16x16x128xf32>
    %22 = vector.shape_cast %21 : vector<1x16x16x128xf32> to vector<16x16x128xf32>
    %23 = vector.shape_cast %17 : vector<1x128xf32> to vector<1x1x128xf32>
    %24 = vector.broadcast %23 : vector<1x1x128xf32> to vector<16x16x128xf32>
    %25 = arith.mulf %22, %24 : vector<16x16x128xf32>
    %26 = vector.shape_cast %20 : vector<1x128xf32> to vector<1x1x128xf32>
    %27 = vector.broadcast %26 : vector<1x1x128xf32> to vector<16x16x128xf32>
    %28 = arith.addf %25, %27 : vector<16x16x128xf32>
    %cst_14 = arith.constant 0.000000e+00 : f32
    %29 = vector.broadcast %cst_14 : f32 to vector<16x16x128xf32>
    %30 = arith.maximumf %28, %29 : vector<16x16x128xf32>
    %c1_15 = arith.constant 1 : index
    %c1_16 = arith.constant 1 : index
    %c0_17 = arith.constant 0 : index
    %31 = vector.load %arg8[%c1_15, %c1_16, %c0_17] : memref<18x18x128xf32, #tpu.memory_space<vmem>>, vector<16x16x128xf32>
    tpu.vector_store %arg8[%c1_15, %c1_16, %c0_17], %30 {strides = array<i32>} : memref<18x18x128xf32, #tpu.memory_space<vmem>>, vector<16x16x128xf32>,
    %c0_18 = arith.constant 0 : index
    %c0_19 = arith.constant 0 : index
    %c0_20 = arith.constant 0 : index
    %32 = vector.load %arg8[%c0_18, %c0_19, %c0_20] : memref<18x18x128xf32, #tpu.memory_space<vmem>>, vector<18x18x128xf32>
    %cst_21 = arith.constant 0.000000e+00 : f32
    %33 = vector.broadcast %cst_21 : f32 to vector<256x128xf32>
    %34 = vector.extract_strided_slice %32 {offsets = [0, 0, 0], sizes = [16, 16, 128], strides = [1, 1, 1]} : vector<18x18x128xf32> to vector<16x16x128xf32>
    %35 = vector.shape_cast %34 : vector<16x16x128xf32> to vector<256x128xf32>
    %c0_22 = arith.constant 0 : index
    %c0_23 = arith.constant 0 : index
    %c0_24 = arith.constant 0 : index
    %36 = vector.load %arg5[%c0_22, %c0_23, %c0_24] : memref<9x128x128xf32, #tpu.memory_space<vmem>>, vector<1x128x128xf32>
    %37 = vector.shape_cast %36 : vector<1x128x128xf32> to vector<128x128xf32>
    %cst_25 = arith.constant dense<0.000000e+00> : vector<256x128xf32>
    %38 = tpu.matmul %35, %37, %cst_25 {dimension_numbers = #tpu.dot_dimension_numbers<[1], [0], [0], [1], [0, 0, 1, 1], [], []>} : vector<256x128xf32>, vector<128x128xf32>, vector<256x128xf32> -> vector<256x128xf32>
    %39 = arith.addf %33, %38 : vector<256x128xf32>
    %40 = vector.extract_strided_slice %32 {offsets = [0, 1, 0], sizes = [16, 16, 128], strides = [1, 1, 1]} : vector<18x18x128xf32> to vector<16x16x128xf32>
    %41 = vector.shape_cast %40 : vector<16x16x128xf32> to vector<256x128xf32>
    %c1_26 = arith.constant 1 : index
    %c0_27 = arith.constant 0 : index
    %c0_28 = arith.constant 0 : index
    %42 = vector.load %arg5[%c1_26, %c0_27, %c0_28] : memref<9x128x128xf32, #tpu.memory_space<vmem>>, vector<1x128x128xf32>
    %43 = vector.shape_cast %42 : vector<1x128x128xf32> to vector<128x128xf32>
    %cst_29 = arith.constant dense<0.000000e+00> : vector<256x128xf32>
    %44 = tpu.matmul %41, %43, %cst_29 {dimension_numbers = #tpu.dot_dimension_numbers<[1], [0], [0], [1], [0, 0, 1, 1], [], []>} : vector<256x128xf32>, vector<128x128xf32>, vector<256x128xf32> -> vector<256x128xf32>
    %45 = arith.addf %39, %44 : vector<256x128xf32>
    %46 = vector.extract_strided_slice %32 {offsets = [0, 2, 0], sizes = [16, 16, 128], strides = [1, 1, 1]} : vector<18x18x128xf32> to vector<16x16x128xf32>
    %47 = vector.shape_cast %46 : vector<16x16x128xf32> to vector<256x128xf32>
    %c2 = arith.constant 2 : index
    %c0_30 = arith.constant 0 : index
    %c0_31 = arith.constant 0 : index
    %48 = vector.load %arg5[%c2, %c0_30, %c0_31] : memref<9x128x128xf32, #tpu.memory_space<vmem>>, vector<1x128x128xf32>
    %49 = vector.shape_cast %48 : vector<1x128x128xf32> to vector<128x128xf32>
    %cst_32 = arith.constant dense<0.000000e+00> : vector<256x128xf32>
    %50 = tpu.matmul %47, %49, %cst_32 {dimension_numbers = #tpu.dot_dimension_numbers<[1], [0], [0], [1], [0, 0, 1, 1], [], []>} : vector<256x128xf32>, vector<128x128xf32>, vector<256x128xf32> -> vector<256x128xf32>
    %51 = arith.addf %45, %50 : vector<256x128xf32>
    %52 = vector.extract_strided_slice %32 {offsets = [1, 0, 0], sizes = [16, 16, 128], strides = [1, 1, 1]} : vector<18x18x128xf32> to vector<16x16x128xf32>
    %53 = vector.shape_cast %52 : vector<16x16x128xf32> to vector<256x128xf32>
    %c3 = arith.constant 3 : index
    %c0_33 = arith.constant 0 : index
    %c0_34 = arith.constant 0 : index
    %54 = vector.load %arg5[%c3, %c0_33, %c0_34] : memref<9x128x128xf32, #tpu.memory_space<vmem>>, vector<1x128x128xf32>
    %55 = vector.shape_cast %54 : vector<1x128x128xf32> to vector<128x128xf32>
    %cst_35 = arith.constant dense<0.000000e+00> : vector<256x128xf32>
    %56 = tpu.matmul %53, %55, %cst_35 {dimension_numbers = #tpu.dot_dimension_numbers<[1], [0], [0], [1], [0, 0, 1, 1], [], []>} : vector<256x128xf32>, vector<128x128xf32>, vector<256x128xf32> -> vector<256x128xf32>
    %57 = arith.addf %51, %56 : vector<256x128xf32>
    %58 = vector.extract_strided_slice %32 {offsets = [1, 1, 0], sizes = [16, 16, 128], strides = [1, 1, 1]} : vector<18x18x128xf32> to vector<16x16x128xf32>
    %59 = vector.shape_cast %58 : vector<16x16x128xf32> to vector<256x128xf32>
    %c4 = arith.constant 4 : index
    %c0_36 = arith.constant 0 : index
    %c0_37 = arith.constant 0 : index
    %60 = vector.load %arg5[%c4, %c0_36, %c0_37] : memref<9x128x128xf32, #tpu.memory_space<vmem>>, vector<1x128x128xf32>
    %61 = vector.shape_cast %60 : vector<1x128x128xf32> to vector<128x128xf32>
    %cst_38 = arith.constant dense<0.000000e+00> : vector<256x128xf32>
    %62 = tpu.matmul %59, %61, %cst_38 {dimension_numbers = #tpu.dot_dimension_numbers<[1], [0], [0], [1], [0, 0, 1, 1], [], []>} : vector<256x128xf32>, vector<128x128xf32>, vector<256x128xf32> -> vector<256x128xf32>
    %63 = arith.addf %57, %62 : vector<256x128xf32>
    %64 = vector.extract_strided_slice %32 {offsets = [1, 2, 0], sizes = [16, 16, 128], strides = [1, 1, 1]} : vector<18x18x128xf32> to vector<16x16x128xf32>
    %65 = vector.shape_cast %64 : vector<16x16x128xf32> to vector<256x128xf32>
    %c5 = arith.constant 5 : index
    %c0_39 = arith.constant 0 : index
    %c0_40 = arith.constant 0 : index
    %66 = vector.load %arg5[%c5, %c0_39, %c0_40] : memref<9x128x128xf32, #tpu.memory_space<vmem>>, vector<1x128x128xf32>
    %67 = vector.shape_cast %66 : vector<1x128x128xf32> to vector<128x128xf32>
    %cst_41 = arith.constant dense<0.000000e+00> : vector<256x128xf32>
    %68 = tpu.matmul %65, %67, %cst_41 {dimension_numbers = #tpu.dot_dimension_numbers<[1], [0], [0], [1], [0, 0, 1, 1], [], []>} : vector<256x128xf32>, vector<128x128xf32>, vector<256x128xf32> -> vector<256x128xf32>
    %69 = arith.addf %63, %68 : vector<256x128xf32>
    %70 = vector.extract_strided_slice %32 {offsets = [2, 0, 0], sizes = [16, 16, 128], strides = [1, 1, 1]} : vector<18x18x128xf32> to vector<16x16x128xf32>
    %71 = vector.shape_cast %70 : vector<16x16x128xf32> to vector<256x128xf32>
    %c6 = arith.constant 6 : index
    %c0_42 = arith.constant 0 : index
    %c0_43 = arith.constant 0 : index
    %72 = vector.load %arg5[%c6, %c0_42, %c0_43] : memref<9x128x128xf32, #tpu.memory_space<vmem>>, vector<1x128x128xf32>
    %73 = vector.shape_cast %72 : vector<1x128x128xf32> to vector<128x128xf32>
    %cst_44 = arith.constant dense<0.000000e+00> : vector<256x128xf32>
    %74 = tpu.matmul %71, %73, %cst_44 {dimension_numbers = #tpu.dot_dimension_numbers<[1], [0], [0], [1], [0, 0, 1, 1], [], []>} : vector<256x128xf32>, vector<128x128xf32>, vector<256x128xf32> -> vector<256x128xf32>
    %75 = arith.addf %69, %74 : vector<256x128xf32>
    %76 = vector.extract_strided_slice %32 {offsets = [2, 1, 0], sizes = [16, 16, 128], strides = [1, 1, 1]} : vector<18x18x128xf32> to vector<16x16x128xf32>
    %77 = vector.shape_cast %76 : vector<16x16x128xf32> to vector<256x128xf32>
    %c7 = arith.constant 7 : index
    %c0_45 = arith.constant 0 : index
    %c0_46 = arith.constant 0 : index
    %78 = vector.load %arg5[%c7, %c0_45, %c0_46] : memref<9x128x128xf32, #tpu.memory_space<vmem>>, vector<1x128x128xf32>
    %79 = vector.shape_cast %78 : vector<1x128x128xf32> to vector<128x128xf32>
    %cst_47 = arith.constant dense<0.000000e+00> : vector<256x128xf32>
    %80 = tpu.matmul %77, %79, %cst_47 {dimension_numbers = #tpu.dot_dimension_numbers<[1], [0], [0], [1], [0, 0, 1, 1], [], []>} : vector<256x128xf32>, vector<128x128xf32>, vector<256x128xf32> -> vector<256x128xf32>
    %81 = arith.addf %75, %80 : vector<256x128xf32>
    %82 = vector.extract_strided_slice %32 {offsets = [2, 2, 0], sizes = [16, 16, 128], strides = [1, 1, 1]} : vector<18x18x128xf32> to vector<16x16x128xf32>
    %83 = vector.shape_cast %82 : vector<16x16x128xf32> to vector<256x128xf32>
    %c8 = arith.constant 8 : index
    %c0_48 = arith.constant 0 : index
    %c0_49 = arith.constant 0 : index
    %84 = vector.load %arg5[%c8, %c0_48, %c0_49] : memref<9x128x128xf32, #tpu.memory_space<vmem>>, vector<1x128x128xf32>
    %85 = vector.shape_cast %84 : vector<1x128x128xf32> to vector<128x128xf32>
    %cst_50 = arith.constant dense<0.000000e+00> : vector<256x128xf32>
    %86 = tpu.matmul %83, %85, %cst_50 {dimension_numbers = #tpu.dot_dimension_numbers<[1], [0], [0], [1], [0, 0, 1, 1], [], []>} : vector<256x128xf32>, vector<128x128xf32>, vector<256x128xf32> -> vector<256x128xf32>
    %87 = arith.addf %81, %86 : vector<256x128xf32>
    %c0_51 = arith.constant 0 : index
    %c0_52 = arith.constant 0 : index
    %c0_53 = arith.constant 0 : index
    %88 = vector.load %arg6[%c0_51, %c0_52, %c0_53] : memref<1x256x128xf32, #tpu.memory_space<vmem>>, vector<1x256x128xf32>
    %89 = vector.shape_cast %88 : vector<1x256x128xf32> to vector<256x128xf32>
    %90 = vector.shape_cast %87 : vector<256x128xf32> to vector<1x256x128xf32>
    tpu.vector_store %arg6[%c0_51, %c0_52, %c0_53], %90 {strides = array<i32>} : memref<1x256x128xf32, #tpu.memory_space<vmem>>, vector<1x256x128xf32>,
    %c0_54 = arith.constant 0 : index
    %c0_55 = arith.constant 0 : index
    %91 = vector.load %arg7[%c0_54, %c0_55] : memref<2x128xf32, #tpu.memory_space<vmem>>, vector<1x128xf32>
    %cst_56 = arith.constant dense<0.000000e+00> : vector<128xf32>
    %92 = vector.multi_reduction <add>, %87, %cst_56 [0] : vector<256x128xf32> to vector<128xf32>
    %93 = vector.shape_cast %92 : vector<128xf32> to vector<1x128xf32>
    %94 = arith.addf %91, %93 : vector<1x128xf32>
    %c0_57 = arith.constant 0 : index
    %c0_58 = arith.constant 0 : index
    %95 = vector.load %arg7[%c0_57, %c0_58] : memref<2x128xf32, #tpu.memory_space<vmem>>, vector<1x128xf32>
    tpu.vector_store %arg7[%c0_57, %c0_58], %94 {strides = array<i32>} : memref<2x128xf32, #tpu.memory_space<vmem>>, vector<1x128xf32>,
    %c1_59 = arith.constant 1 : index
    %c0_60 = arith.constant 0 : index
    %96 = vector.load %arg7[%c1_59, %c0_60] : memref<2x128xf32, #tpu.memory_space<vmem>>, vector<1x128xf32>
    %97 = arith.mulf %87, %87 : vector<256x128xf32>
    %cst_61 = arith.constant dense<0.000000e+00> : vector<128xf32>
    %98 = vector.multi_reduction <add>, %97, %cst_61 [0] : vector<256x128xf32> to vector<128xf32>
    %99 = vector.shape_cast %98 : vector<128xf32> to vector<1x128xf32>
    %100 = arith.addf %96, %99 : vector<1x128xf32>
    %c1_62 = arith.constant 1 : index
    %c0_63 = arith.constant 0 : index
    %101 = vector.load %arg7[%c1_62, %c0_63] : memref<2x128xf32, #tpu.memory_space<vmem>>, vector<1x128xf32>
    tpu.vector_store %arg7[%c1_62, %c0_63], %100 {strides = array<i32>} : memref<2x128xf32, #tpu.memory_space<vmem>>, vector<1x128xf32>,
    return
  }
  func.func @transform_0(%arg0: i32) -> (i32, i32, i32, i32) {
    %c0_i32 = arith.constant 0 : i32
    %c0_i32_0 = arith.constant 0 : i32
    %c0_i32_1 = arith.constant 0 : i32
    %c0_i32_2 = arith.constant 0 : i32
    return %arg0, %c0_i32, %c0_i32_0, %c0_i32_1 : i32, i32, i32, i32
  }
  func.func @transform_1(%arg0: i32) -> (i32, i32) {
    %c0_i32 = arith.constant 0 : i32
    %c0_i32_0 = arith.constant 0 : i32
    %c0_i32_1 = arith.constant 0 : i32
    return %c0_i32, %c0_i32_0 : i32, i32
  }
  func.func @transform_2(%arg0: i32) -> (i32, i32) {
    %c0_i32 = arith.constant 0 : i32
    %c0_i32_0 = arith.constant 0 : i32
    %c0_i32_1 = arith.constant 0 : i32
    return %c0_i32, %c0_i32_0 : i32, i32
  }
  func.func @transform_3(%arg0: i32) -> (i32, i32) {
    %c0_i32 = arith.constant 0 : i32
    %c0_i32_0 = arith.constant 0 : i32
    %c0_i32_1 = arith.constant 0 : i32
    return %c0_i32, %c0_i32_0 : i32, i32
  }
  func.func @transform_4(%arg0: i32) -> (i32, i32, i32) {
    %c0_i32 = arith.constant 0 : i32
    %c0_i32_0 = arith.constant 0 : i32
    %c0_i32_1 = arith.constant 0 : i32
    %c0_i32_2 = arith.constant 0 : i32
    return %c0_i32, %c0_i32_0, %c0_i32_1 : i32, i32, i32
  }
  func.func @transform_5(%arg0: i32) -> (i32, i32, i32) {
    %c0_i32 = arith.constant 0 : i32
    %c0_i32_0 = arith.constant 0 : i32
    %c0_i32_1 = arith.constant 0 : i32
    return %arg0, %c0_i32, %c0_i32_0 : i32, i32, i32
  }
  func.func @transform_6(%arg0: i32) -> (i32, i32) {
    %c0_i32 = arith.constant 0 : i32
    %c0_i32_0 = arith.constant 0 : i32
    %c0_i32_1 = arith.constant 0 : i32
    return %c0_i32, %c0_i32_0 : i32, i32
  }
}

module attributes {stable_mosaic.version = 11 : i64} {
  func.func @_conv3_proj_kernel(%arg0: i32, %arg1: memref<512x128xf32, #tpu.memory_space<vmem>>, %arg2: memref<2x128xf32, #tpu.memory_space<vmem>>, %arg3: memref<1x128xf32, #tpu.memory_space<vmem>>, %arg4: memref<1x128xf32, #tpu.memory_space<vmem>>, %arg5: memref<128x128xf32, #tpu.memory_space<vmem>>, %arg6: memref<512x128xf32, #tpu.memory_space<vmem>>, %arg7: memref<128x128xf32, #tpu.memory_space<vmem>>, %arg8: memref<512x128xf32, #tpu.memory_space<vmem>>, %arg9: memref<512x128xf32, #tpu.memory_space<vmem>>, %arg10: memref<2x128xf32, #tpu.memory_space<vmem>>, %arg11: memref<2x128xf32, #tpu.memory_space<vmem>>) attributes {dimension_semantics = [#tpu.dimension_semantics<arbitrary>], iteration_bounds = array<i64: 1>, scalar_prefetch = 0 : i64, scratch_operands = 0 : i64, tpu.core_type = #tpu.core_type<tc>, window_params = [{transform_indices = @transform_0, window_bounds = array<i64: 512, 128>}, {pipeline_mode = #tpu.pipeline_mode<synchronous>, transform_indices = @transform_1, window_bounds = array<i64: 2, 128>}, {pipeline_mode = #tpu.pipeline_mode<synchronous>, transform_indices = @transform_2, window_bounds = array<i64: 1, 128>}, {pipeline_mode = #tpu.pipeline_mode<synchronous>, transform_indices = @transform_3, window_bounds = array<i64: 1, 128>}, {pipeline_mode = #tpu.pipeline_mode<synchronous>, transform_indices = @transform_4, window_bounds = array<i64: 128, 128>}, {transform_indices = @transform_5, window_bounds = array<i64: 512, 128>}, {pipeline_mode = #tpu.pipeline_mode<synchronous>, transform_indices = @transform_6, window_bounds = array<i64: 128, 128>}, {transform_indices = @transform_7, window_bounds = array<i64: 512, 128>}, {transform_indices = @transform_8, window_bounds = array<i64: 512, 128>}, {pipeline_mode = #tpu.pipeline_mode<synchronous>, transform_indices = @transform_9, window_bounds = array<i64: 2, 128>}, {pipeline_mode = #tpu.pipeline_mode<synchronous>, transform_indices = @transform_10, window_bounds = array<i64: 2, 128>}]} {
    %c0_i32 = arith.constant 0 : i32
    %0 = arith.cmpi eq, %arg0, %c0_i32 : i32
    %1 = arith.extui %0 : i1 to i32
    %c0_i32_0 = arith.constant 0 : i32
    %2 = arith.cmpi ne, %1, %c0_i32_0 : i32
    scf.if %2 {
      %cst_45 = arith.constant 0.000000e+00 : f32
      %57 = vector.broadcast %cst_45 : f32 to vector<2x128xf32>
      %c0_46 = arith.constant 0 : index
      %c0_47 = arith.constant 0 : index
      %58 = vector.load %arg10[%c0_46, %c0_47] : memref<2x128xf32, #tpu.memory_space<vmem>>, vector<2x128xf32>
      tpu.vector_store %arg10[%c0_46, %c0_47], %57 {strides = array<i32>} : memref<2x128xf32, #tpu.memory_space<vmem>>, vector<2x128xf32>,
      %cst_48 = arith.constant 0.000000e+00 : f32
      %59 = vector.broadcast %cst_48 : f32 to vector<2x128xf32>
      %c0_49 = arith.constant 0 : index
      %c0_50 = arith.constant 0 : index
      %60 = vector.load %arg11[%c0_49, %c0_50] : memref<2x128xf32, #tpu.memory_space<vmem>>, vector<2x128xf32>
      tpu.vector_store %arg11[%c0_49, %c0_50], %59 {strides = array<i32>} : memref<2x128xf32, #tpu.memory_space<vmem>>, vector<2x128xf32>,
    } else {
    }
    %c0 = arith.constant 0 : index
    %c0_1 = arith.constant 0 : index
    %3 = vector.load %arg2[%c0, %c0_1] : memref<2x128xf32, #tpu.memory_space<vmem>>, vector<1x128xf32>
    %cst = arith.constant 0.001953125 : f32
    %4 = vector.broadcast %cst : f32 to vector<1x128xf32>
    %5 = arith.mulf %3, %4 : vector<1x128xf32>
    %c1 = arith.constant 1 : index
    %c0_2 = arith.constant 0 : index
    %6 = vector.load %arg2[%c1, %c0_2] : memref<2x128xf32, #tpu.memory_space<vmem>>, vector<1x128xf32>
    %cst_3 = arith.constant 0.001953125 : f32
    %7 = vector.broadcast %cst_3 : f32 to vector<1x128xf32>
    %8 = arith.mulf %6, %7 : vector<1x128xf32>
    %9 = arith.mulf %5, %5 : vector<1x128xf32>
    %10 = arith.subf %8, %9 : vector<1x128xf32>
    %cst_4 = arith.constant 0.000000e+00 : f32
    %11 = vector.broadcast %cst_4 : f32 to vector<1x128xf32>
    %12 = arith.maximumf %10, %11 : vector<1x128xf32>
    %cst_5 = arith.constant 9.99999974E-6 : f32
    %13 = vector.broadcast %cst_5 : f32 to vector<1x128xf32>
    %14 = arith.addf %12, %13 : vector<1x128xf32>
    %15 = math.rsqrt %14 : vector<1x128xf32>
    %c0_6 = arith.constant 0 : index
    %c0_7 = arith.constant 0 : index
    %16 = vector.load %arg3[%c0_6, %c0_7] : memref<1x128xf32, #tpu.memory_space<vmem>>, vector<1x128xf32>
    %17 = arith.mulf %15, %16 : vector<1x128xf32>
    %c0_8 = arith.constant 0 : index
    %c0_9 = arith.constant 0 : index
    %18 = vector.load %arg4[%c0_8, %c0_9] : memref<1x128xf32, #tpu.memory_space<vmem>>, vector<1x128xf32>
    %19 = arith.mulf %5, %17 : vector<1x128xf32>
    %20 = arith.subf %18, %19 : vector<1x128xf32>
    %c0_10 = arith.constant 0 : index
    %c0_11 = arith.constant 0 : index
    %21 = vector.load %arg1[%c0_10, %c0_11] : memref<512x128xf32, #tpu.memory_space<vmem>>, vector<512x128xf32>
    %22 = vector.broadcast %17 : vector<1x128xf32> to vector<512x128xf32>
    %23 = arith.mulf %21, %22 : vector<512x128xf32>
    %24 = vector.broadcast %20 : vector<1x128xf32> to vector<512x128xf32>
    %25 = arith.addf %23, %24 : vector<512x128xf32>
    %cst_12 = arith.constant 0.000000e+00 : f32
    %26 = vector.broadcast %cst_12 : f32 to vector<512x128xf32>
    %27 = arith.maximumf %25, %26 : vector<512x128xf32>
    %c0_13 = arith.constant 0 : index
    %c0_14 = arith.constant 0 : index
    %28 = vector.load %arg5[%c0_13, %c0_14] : memref<128x128xf32, #tpu.memory_space<vmem>>, vector<128x128xf32>
    %cst_15 = arith.constant dense<0.000000e+00> : vector<512x128xf32>
    %29 = tpu.matmul %27, %28, %cst_15 {dimension_numbers = #tpu.dot_dimension_numbers<[1], [0], [0], [1], [0, 0, 1, 1], [], []>} : vector<512x128xf32>, vector<128x128xf32>, vector<512x128xf32> -> vector<512x128xf32>
    %c0_16 = arith.constant 0 : index
    %c0_17 = arith.constant 0 : index
    %30 = vector.load %arg6[%c0_16, %c0_17] : memref<512x128xf32, #tpu.memory_space<vmem>>, vector<512x128xf32>
    %c0_18 = arith.constant 0 : index
    %c0_19 = arith.constant 0 : index
    %31 = vector.load %arg7[%c0_18, %c0_19] : memref<128x128xf32, #tpu.memory_space<vmem>>, vector<128x128xf32>
    %cst_20 = arith.constant dense<0.000000e+00> : vector<512x128xf32>
    %32 = tpu.matmul %30, %31, %cst_20 {dimension_numbers = #tpu.dot_dimension_numbers<[1], [0], [0], [1], [0, 0, 1, 1], [], []>} : vector<512x128xf32>, vector<128x128xf32>, vector<512x128xf32> -> vector<512x128xf32>
    %c0_21 = arith.constant 0 : index
    %c0_22 = arith.constant 0 : index
    %33 = vector.load %arg8[%c0_21, %c0_22] : memref<512x128xf32, #tpu.memory_space<vmem>>, vector<512x128xf32>
    tpu.vector_store %arg8[%c0_21, %c0_22], %29 {strides = array<i32>} : memref<512x128xf32, #tpu.memory_space<vmem>>, vector<512x128xf32>,
    %c0_23 = arith.constant 0 : index
    %c0_24 = arith.constant 0 : index
    %34 = vector.load %arg9[%c0_23, %c0_24] : memref<512x128xf32, #tpu.memory_space<vmem>>, vector<512x128xf32>
    tpu.vector_store %arg9[%c0_23, %c0_24], %32 {strides = array<i32>} : memref<512x128xf32, #tpu.memory_space<vmem>>, vector<512x128xf32>,
    %c0_25 = arith.constant 0 : index
    %c0_26 = arith.constant 0 : index
    %35 = vector.load %arg10[%c0_25, %c0_26] : memref<2x128xf32, #tpu.memory_space<vmem>>, vector<1x128xf32>
    %cst_27 = arith.constant dense<0.000000e+00> : vector<128xf32>
    %36 = vector.multi_reduction <add>, %29, %cst_27 [0] : vector<512x128xf32> to vector<128xf32>
    %37 = vector.shape_cast %36 : vector<128xf32> to vector<1x128xf32>
    %38 = arith.addf %35, %37 : vector<1x128xf32>
    %c0_28 = arith.constant 0 : index
    %c0_29 = arith.constant 0 : index
    %39 = vector.load %arg10[%c0_28, %c0_29] : memref<2x128xf32, #tpu.memory_space<vmem>>, vector<1x128xf32>
    tpu.vector_store %arg10[%c0_28, %c0_29], %38 {strides = array<i32>} : memref<2x128xf32, #tpu.memory_space<vmem>>, vector<1x128xf32>,
    %c1_30 = arith.constant 1 : index
    %c0_31 = arith.constant 0 : index
    %40 = vector.load %arg10[%c1_30, %c0_31] : memref<2x128xf32, #tpu.memory_space<vmem>>, vector<1x128xf32>
    %41 = arith.mulf %29, %29 : vector<512x128xf32>
    %cst_32 = arith.constant dense<0.000000e+00> : vector<128xf32>
    %42 = vector.multi_reduction <add>, %41, %cst_32 [0] : vector<512x128xf32> to vector<128xf32>
    %43 = vector.shape_cast %42 : vector<128xf32> to vector<1x128xf32>
    %44 = arith.addf %40, %43 : vector<1x128xf32>
    %c1_33 = arith.constant 1 : index
    %c0_34 = arith.constant 0 : index
    %45 = vector.load %arg10[%c1_33, %c0_34] : memref<2x128xf32, #tpu.memory_space<vmem>>, vector<1x128xf32>
    tpu.vector_store %arg10[%c1_33, %c0_34], %44 {strides = array<i32>} : memref<2x128xf32, #tpu.memory_space<vmem>>, vector<1x128xf32>,
    %c0_35 = arith.constant 0 : index
    %c0_36 = arith.constant 0 : index
    %46 = vector.load %arg11[%c0_35, %c0_36] : memref<2x128xf32, #tpu.memory_space<vmem>>, vector<1x128xf32>
    %cst_37 = arith.constant dense<0.000000e+00> : vector<128xf32>
    %47 = vector.multi_reduction <add>, %32, %cst_37 [0] : vector<512x128xf32> to vector<128xf32>
    %48 = vector.shape_cast %47 : vector<128xf32> to vector<1x128xf32>
    %49 = arith.addf %46, %48 : vector<1x128xf32>
    %c0_38 = arith.constant 0 : index
    %c0_39 = arith.constant 0 : index
    %50 = vector.load %arg11[%c0_38, %c0_39] : memref<2x128xf32, #tpu.memory_space<vmem>>, vector<1x128xf32>
    tpu.vector_store %arg11[%c0_38, %c0_39], %49 {strides = array<i32>} : memref<2x128xf32, #tpu.memory_space<vmem>>, vector<1x128xf32>,
    %c1_40 = arith.constant 1 : index
    %c0_41 = arith.constant 0 : index
    %51 = vector.load %arg11[%c1_40, %c0_41] : memref<2x128xf32, #tpu.memory_space<vmem>>, vector<1x128xf32>
    %52 = arith.mulf %32, %32 : vector<512x128xf32>
    %cst_42 = arith.constant dense<0.000000e+00> : vector<128xf32>
    %53 = vector.multi_reduction <add>, %52, %cst_42 [0] : vector<512x128xf32> to vector<128xf32>
    %54 = vector.shape_cast %53 : vector<128xf32> to vector<1x128xf32>
    %55 = arith.addf %51, %54 : vector<1x128xf32>
    %c1_43 = arith.constant 1 : index
    %c0_44 = arith.constant 0 : index
    %56 = vector.load %arg11[%c1_43, %c0_44] : memref<2x128xf32, #tpu.memory_space<vmem>>, vector<1x128xf32>
    tpu.vector_store %arg11[%c1_43, %c0_44], %55 {strides = array<i32>} : memref<2x128xf32, #tpu.memory_space<vmem>>, vector<1x128xf32>,
    return
  }
  func.func @transform_0(%arg0: i32) -> (i32, i32) {
    %c0_i32 = arith.constant 0 : i32
    %c0_i32_0 = arith.constant 0 : i32
    return %arg0, %c0_i32 : i32, i32
  }
  func.func @transform_1(%arg0: i32) -> (i32, i32) {
    %c0_i32 = arith.constant 0 : i32
    %c0_i32_0 = arith.constant 0 : i32
    %c0_i32_1 = arith.constant 0 : i32
    return %c0_i32, %c0_i32_0 : i32, i32
  }
  func.func @transform_2(%arg0: i32) -> (i32, i32) {
    %c0_i32 = arith.constant 0 : i32
    %c0_i32_0 = arith.constant 0 : i32
    %c0_i32_1 = arith.constant 0 : i32
    return %c0_i32, %c0_i32_0 : i32, i32
  }
  func.func @transform_3(%arg0: i32) -> (i32, i32) {
    %c0_i32 = arith.constant 0 : i32
    %c0_i32_0 = arith.constant 0 : i32
    %c0_i32_1 = arith.constant 0 : i32
    return %c0_i32, %c0_i32_0 : i32, i32
  }
  func.func @transform_4(%arg0: i32) -> (i32, i32) {
    %c0_i32 = arith.constant 0 : i32
    %c0_i32_0 = arith.constant 0 : i32
    %c0_i32_1 = arith.constant 0 : i32
    return %c0_i32, %c0_i32_0 : i32, i32
  }
  func.func @transform_5(%arg0: i32) -> (i32, i32) {
    %c0_i32 = arith.constant 0 : i32
    %c0_i32_0 = arith.constant 0 : i32
    return %arg0, %c0_i32 : i32, i32
  }
  func.func @transform_6(%arg0: i32) -> (i32, i32) {
    %c0_i32 = arith.constant 0 : i32
    %c0_i32_0 = arith.constant 0 : i32
    %c0_i32_1 = arith.constant 0 : i32
    return %c0_i32, %c0_i32_0 : i32, i32
  }
  func.func @transform_7(%arg0: i32) -> (i32, i32) {
    %c0_i32 = arith.constant 0 : i32
    %c0_i32_0 = arith.constant 0 : i32
    return %arg0, %c0_i32 : i32, i32
  }
  func.func @transform_8(%arg0: i32) -> (i32, i32) {
    %c0_i32 = arith.constant 0 : i32
    %c0_i32_0 = arith.constant 0 : i32
    return %arg0, %c0_i32 : i32, i32
  }
  func.func @transform_9(%arg0: i32) -> (i32, i32) {
    %c0_i32 = arith.constant 0 : i32
    %c0_i32_0 = arith.constant 0 : i32
    %c0_i32_1 = arith.constant 0 : i32
    return %c0_i32, %c0_i32_0 : i32, i32
  }
  func.func @transform_10(%arg0: i32) -> (i32, i32) {
    %c0_i32 = arith.constant 0 : i32
    %c0_i32_0 = arith.constant 0 : i32
    %c0_i32_1 = arith.constant 0 : i32
    return %c0_i32, %c0_i32_0 : i32, i32
  }
}

module attributes {stable_mosaic.version = 11 : i64} {
  func.func @_final_proj_kernel(%arg0: i32, %arg1: memref<512x128xf32, #tpu.memory_space<vmem>>, %arg2: memref<2x128xf32, #tpu.memory_space<vmem>>, %arg3: memref<1x128xf32, #tpu.memory_space<vmem>>, %arg4: memref<1x128xf32, #tpu.memory_space<vmem>>, %arg5: memref<512x128xf32, #tpu.memory_space<vmem>>, %arg6: memref<2x128xf32, #tpu.memory_space<vmem>>, %arg7: memref<1x128xf32, #tpu.memory_space<vmem>>, %arg8: memref<1x128xf32, #tpu.memory_space<vmem>>, %arg9: memref<512x128xf32, #tpu.memory_space<vmem>>) attributes {dimension_semantics = [#tpu.dimension_semantics<parallel>], iteration_bounds = array<i64: 1>, scalar_prefetch = 0 : i64, scratch_operands = 0 : i64, tpu.core_type = #tpu.core_type<tc>, window_params = [{transform_indices = @transform_0, window_bounds = array<i64: 512, 128>}, {pipeline_mode = #tpu.pipeline_mode<synchronous>, transform_indices = @transform_1, window_bounds = array<i64: 2, 128>}, {pipeline_mode = #tpu.pipeline_mode<synchronous>, transform_indices = @transform_2, window_bounds = array<i64: 1, 128>}, {pipeline_mode = #tpu.pipeline_mode<synchronous>, transform_indices = @transform_3, window_bounds = array<i64: 1, 128>}, {transform_indices = @transform_4, window_bounds = array<i64: 512, 128>}, {pipeline_mode = #tpu.pipeline_mode<synchronous>, transform_indices = @transform_5, window_bounds = array<i64: 2, 128>}, {pipeline_mode = #tpu.pipeline_mode<synchronous>, transform_indices = @transform_6, window_bounds = array<i64: 1, 128>}, {pipeline_mode = #tpu.pipeline_mode<synchronous>, transform_indices = @transform_7, window_bounds = array<i64: 1, 128>}, {transform_indices = @transform_8, window_bounds = array<i64: 512, 128>}]} {
    %c0 = arith.constant 0 : index
    %c0_0 = arith.constant 0 : index
    %0 = vector.load %arg2[%c0, %c0_0] : memref<2x128xf32, #tpu.memory_space<vmem>>, vector<1x128xf32>
    %cst = arith.constant 0.001953125 : f32
    %1 = vector.broadcast %cst : f32 to vector<1x128xf32>
    %2 = arith.mulf %0, %1 : vector<1x128xf32>
    %c1 = arith.constant 1 : index
    %c0_1 = arith.constant 0 : index
    %3 = vector.load %arg2[%c1, %c0_1] : memref<2x128xf32, #tpu.memory_space<vmem>>, vector<1x128xf32>
    %cst_2 = arith.constant 0.001953125 : f32
    %4 = vector.broadcast %cst_2 : f32 to vector<1x128xf32>
    %5 = arith.mulf %3, %4 : vector<1x128xf32>
    %6 = arith.mulf %2, %2 : vector<1x128xf32>
    %7 = arith.subf %5, %6 : vector<1x128xf32>
    %cst_3 = arith.constant 0.000000e+00 : f32
    %8 = vector.broadcast %cst_3 : f32 to vector<1x128xf32>
    %9 = arith.maximumf %7, %8 : vector<1x128xf32>
    %cst_4 = arith.constant 9.99999974E-6 : f32
    %10 = vector.broadcast %cst_4 : f32 to vector<1x128xf32>
    %11 = arith.addf %9, %10 : vector<1x128xf32>
    %12 = math.rsqrt %11 : vector<1x128xf32>
    %c0_5 = arith.constant 0 : index
    %c0_6 = arith.constant 0 : index
    %13 = vector.load %arg3[%c0_5, %c0_6] : memref<1x128xf32, #tpu.memory_space<vmem>>, vector<1x128xf32>
    %14 = arith.mulf %12, %13 : vector<1x128xf32>
    %c0_7 = arith.constant 0 : index
    %c0_8 = arith.constant 0 : index
    %15 = vector.load %arg4[%c0_7, %c0_8] : memref<1x128xf32, #tpu.memory_space<vmem>>, vector<1x128xf32>
    %16 = arith.mulf %2, %14 : vector<1x128xf32>
    %17 = arith.subf %15, %16 : vector<1x128xf32>
    %c0_9 = arith.constant 0 : index
    %c0_10 = arith.constant 0 : index
    %18 = vector.load %arg6[%c0_9, %c0_10] : memref<2x128xf32, #tpu.memory_space<vmem>>, vector<1x128xf32>
    %cst_11 = arith.constant 0.001953125 : f32
    %19 = vector.broadcast %cst_11 : f32 to vector<1x128xf32>
    %20 = arith.mulf %18, %19 : vector<1x128xf32>
    %c1_12 = arith.constant 1 : index
    %c0_13 = arith.constant 0 : index
    %21 = vector.load %arg6[%c1_12, %c0_13] : memref<2x128xf32, #tpu.memory_space<vmem>>, vector<1x128xf32>
    %cst_14 = arith.constant 0.001953125 : f32
    %22 = vector.broadcast %cst_14 : f32 to vector<1x128xf32>
    %23 = arith.mulf %21, %22 : vector<1x128xf32>
    %24 = arith.mulf %20, %20 : vector<1x128xf32>
    %25 = arith.subf %23, %24 : vector<1x128xf32>
    %cst_15 = arith.constant 0.000000e+00 : f32
    %26 = vector.broadcast %cst_15 : f32 to vector<1x128xf32>
    %27 = arith.maximumf %25, %26 : vector<1x128xf32>
    %cst_16 = arith.constant 9.99999974E-6 : f32
    %28 = vector.broadcast %cst_16 : f32 to vector<1x128xf32>
    %29 = arith.addf %27, %28 : vector<1x128xf32>
    %30 = math.rsqrt %29 : vector<1x128xf32>
    %c0_17 = arith.constant 0 : index
    %c0_18 = arith.constant 0 : index
    %31 = vector.load %arg7[%c0_17, %c0_18] : memref<1x128xf32, #tpu.memory_space<vmem>>, vector<1x128xf32>
    %32 = arith.mulf %30, %31 : vector<1x128xf32>
    %c0_19 = arith.constant 0 : index
    %c0_20 = arith.constant 0 : index
    %33 = vector.load %arg8[%c0_19, %c0_20] : memref<1x128xf32, #tpu.memory_space<vmem>>, vector<1x128xf32>
    %34 = arith.mulf %20, %32 : vector<1x128xf32>
    %35 = arith.subf %33, %34 : vector<1x128xf32>
    %c0_21 = arith.constant 0 : index
    %c0_22 = arith.constant 0 : index
    %36 = vector.load %arg1[%c0_21, %c0_22] : memref<512x128xf32, #tpu.memory_space<vmem>>, vector<512x128xf32>
    %37 = vector.broadcast %14 : vector<1x128xf32> to vector<512x128xf32>
    %38 = arith.mulf %36, %37 : vector<512x128xf32>
    %39 = vector.broadcast %17 : vector<1x128xf32> to vector<512x128xf32>
    %40 = arith.addf %38, %39 : vector<512x128xf32>
    %c0_23 = arith.constant 0 : index
    %c0_24 = arith.constant 0 : index
    %41 = vector.load %arg5[%c0_23, %c0_24] : memref<512x128xf32, #tpu.memory_space<vmem>>, vector<512x128xf32>
    %42 = vector.broadcast %32 : vector<1x128xf32> to vector<512x128xf32>
    %43 = arith.mulf %41, %42 : vector<512x128xf32>
    %44 = vector.broadcast %35 : vector<1x128xf32> to vector<512x128xf32>
    %45 = arith.addf %43, %44 : vector<512x128xf32>
    %46 = arith.addf %40, %45 : vector<512x128xf32>
    %cst_25 = arith.constant 0.000000e+00 : f32
    %47 = vector.broadcast %cst_25 : f32 to vector<512x128xf32>
    %48 = arith.maximumf %46, %47 : vector<512x128xf32>
    %c0_26 = arith.constant 0 : index
    %c0_27 = arith.constant 0 : index
    %49 = vector.load %arg9[%c0_26, %c0_27] : memref<512x128xf32, #tpu.memory_space<vmem>>, vector<512x128xf32>
    tpu.vector_store %arg9[%c0_26, %c0_27], %48 {strides = array<i32>} : memref<512x128xf32, #tpu.memory_space<vmem>>, vector<512x128xf32>,
    return
  }
  func.func @transform_0(%arg0: i32) -> (i32, i32) {
    %c0_i32 = arith.constant 0 : i32
    %c0_i32_0 = arith.constant 0 : i32
    return %arg0, %c0_i32 : i32, i32
  }
  func.func @transform_1(%arg0: i32) -> (i32, i32) {
    %c0_i32 = arith.constant 0 : i32
    %c0_i32_0 = arith.constant 0 : i32
    %c0_i32_1 = arith.constant 0 : i32
    return %c0_i32, %c0_i32_0 : i32, i32
  }
  func.func @transform_2(%arg0: i32) -> (i32, i32) {
    %c0_i32 = arith.constant 0 : i32
    %c0_i32_0 = arith.constant 0 : i32
    %c0_i32_1 = arith.constant 0 : i32
    return %c0_i32, %c0_i32_0 : i32, i32
  }
  func.func @transform_3(%arg0: i32) -> (i32, i32) {
    %c0_i32 = arith.constant 0 : i32
    %c0_i32_0 = arith.constant 0 : i32
    %c0_i32_1 = arith.constant 0 : i32
    return %c0_i32, %c0_i32_0 : i32, i32
  }
  func.func @transform_4(%arg0: i32) -> (i32, i32) {
    %c0_i32 = arith.constant 0 : i32
    %c0_i32_0 = arith.constant 0 : i32
    return %arg0, %c0_i32 : i32, i32
  }
  func.func @transform_5(%arg0: i32) -> (i32, i32) {
    %c0_i32 = arith.constant 0 : i32
    %c0_i32_0 = arith.constant 0 : i32
    %c0_i32_1 = arith.constant 0 : i32
    return %c0_i32, %c0_i32_0 : i32, i32
  }
  func.func @transform_6(%arg0: i32) -> (i32, i32) {
    %c0_i32 = arith.constant 0 : i32
    %c0_i32_0 = arith.constant 0 : i32
    %c0_i32_1 = arith.constant 0 : i32
    return %c0_i32, %c0_i32_0 : i32, i32
  }
  func.func @transform_7(%arg0: i32) -> (i32, i32) {
    %c0_i32 = arith.constant 0 : i32
    %c0_i32_0 = arith.constant 0 : i32
    %c0_i32_1 = arith.constant 0 : i32
    return %c0_i32, %c0_i32_0 : i32, i32
  }
  func.func @transform_8(%arg0: i32) -> (i32, i32) {
    %c0_i32 = arith.constant 0 : i32
    %c0_i32_0 = arith.constant 0 : i32
    return %arg0, %c0_i32 : i32, i32
  }
}

</mosaic_0001>

<llo_original>
// kernel: bottleneck_forward.4
$region0: #{bottleneck_forward.4}
  #allocation0 [shape = 'u32[]', space=smem, size = 0x4, offset = 0x4, fixed_abs, tag = 'smem constant byte address 0x4 - core index']
  #allocation1 [shape = 'u32[144,128]{1,0:T(1,128)}', space=vmem, size = 0x12000, scoped, tag = 'internal scratch']
  %s0 = inlined_call_operand.vmem [shape: f32[512,128], index: 0, kind: input, shape index: {}]
  %s1 = inlined_call_operand.vmem [shape: f32[128,128], index: 1, kind: input, shape index: {}]
  %s2 = inlined_call_operand.vmem [shape: f32[512,128], index: 2, kind: output, shape index: {0}]
  %s3 = inlined_call_operand.vmem [shape: f32[2,128], index: 3, kind: output, shape index: {1}]
  %4 = xla_tuple %s2, %s3
  %s5 = sld [smem:[#allocation0]]
  $region30: #{bottleneck_forward.4} parent=0
    _
  %s7 = ssub.s32 1, %s5
  %s8 = scalar_select 0, %s7, %s5
  // Predicated region
  $region2: #{bottleneck_forward.4} parent=0 // pred_check
    _
  $region3: #{bottleneck_forward.4} parent=0 // pred_check_branch
    %10 = sbr.rel (0) target = $region5
  $region4: #{bottleneck_forward.4} parent=0 // pred_region
    _
  $region5: #{bottleneck_forward.4} parent=0 // pred_fallthru
    _
  // Predicated region
  $region6: #{bottleneck_forward.4} parent=0 // pred_check
    _
  $region7: #{bottleneck_forward.4} parent=0 // pred_check_branch
    %12 = sbr.rel (0) target = $region9
  $region8: #{bottleneck_forward.4} parent=0 // pred_region
    _
  $region9: #{bottleneck_forward.4} parent=0 // pred_fallthru
    _
  %p13 = scmp.eq.s32.totalorder 0, 0
  // Predicated region
  $region10: #{bottleneck_forward.4} parent=0 // pred_check
    %p14 = pneg %p13
  $region11: #{bottleneck_forward.4} parent=0 // pred_check_branch
    %16 = sbr.rel (%p14) target = $region13
  $region12: #{bottleneck_forward.4} parent=0 // pred_region
    %17 = vst [vmem:[%s3] sm:$0x3] 0.0
  $region13: #{bottleneck_forward.4} parent=0 // pred_fallthru
    _
  %v18 = vld [vmem:[%s0] sm:$0xff]
  %v19 = vld [vmem:[%s0 + $0x8] sm:$0xff]
  %v20 = vld [vmem:[%s0 + $0x10] sm:$0xff]
  %v21 = vld [vmem:[%s0 + $0x18] sm:$0xff]
  %v22 = vld [vmem:[%s0 + $0x20] sm:$0xff]
  %v23 = vld [vmem:[%s0 + $0x28] sm:$0xff]
  %v24 = vld [vmem:[%s0 + $0x30] sm:$0xff]
  %v25 = vld [vmem:[%s0 + $0x38] sm:$0xff]
  %v26 = vld [vmem:[%s0 + $0x40] sm:$0xff]
  %v27 = vld [vmem:[%s0 + $0x48] sm:$0xff]
  %v28 = vld [vmem:[%s0 + $0x50] sm:$0xff]
  %v29 = vld [vmem:[%s0 + $0x58] sm:$0xff]
  %v30 = vld [vmem:[%s0 + $0x60] sm:$0xff]
  %v31 = vld [vmem:[%s0 + $0x68] sm:$0xff]
  %v32 = vld [vmem:[%s0 + $0x70] sm:$0xff]
  %v33 = vld [vmem:[%s0 + $0x78] sm:$0xff]
  %v34 = vld [vmem:[%s0 + $0x80] sm:$0xff]
  %v35 = vld [vmem:[%s0 + $0x88] sm:$0xff]
  %v36 = vld [vmem:[%s0 + $0x90] sm:$0xff]
  %v37 = vld [vmem:[%s0 + $0x98] sm:$0xff]
  %v38 = vld [vmem:[%s0 + $0xa0] sm:$0xff]
  %v39 = vld [vmem:[%s0 + $0xa8] sm:$0xff]
  %v40 = vld [vmem:[%s0 + $0xb0] sm:$0xff]
  %v41 = vld [vmem:[%s0 + $0xb8] sm:$0xff]
  %v42 = vld [vmem:[%s0 + $0xc0] sm:$0xff]
  %v43 = vld [vmem:[%s0 + $0xc8] sm:$0xff]
  %v44 = vld [vmem:[%s0 + $0xd0] sm:$0xff]
  %v45 = vld [vmem:[%s0 + $0xd8] sm:$0xff]
  %v46 = vld [vmem:[%s0 + $0xe0] sm:$0xff]
  %v47 = vld [vmem:[%s0 + $0xe8] sm:$0xff]
  %v48 = vld [vmem:[%s0 + $0xf0] sm:$0xff]
  %v49 = vld [vmem:[%s0 + $0xf8] sm:$0xff]
  %v50 = vld [vmem:[%s0 + $0x100] sm:$0xff]
  %v51 = vld [vmem:[%s0 + $0x108] sm:$0xff]
  %v52 = vld [vmem:[%s0 + $0x110] sm:$0xff]
  %v53 = vld [vmem:[%s0 + $0x118] sm:$0xff]
  %v54 = vld [vmem:[%s0 + $0x120] sm:$0xff]
  %v55 = vld [vmem:[%s0 + $0x128] sm:$0xff]
  %v56 = vld [vmem:[%s0 + $0x130] sm:$0xff]
  %v57 = vld [vmem:[%s0 + $0x138] sm:$0xff]
  %v58 = vld [vmem:[%s0 + $0x140] sm:$0xff]
  %v59 = vld [vmem:[%s0 + $0x148] sm:$0xff]
  %v60 = vld [vmem:[%s0 + $0x150] sm:$0xff]
  %v61 = vld [vmem:[%s0 + $0x158] sm:$0xff]
  %v62 = vld [vmem:[%s0 + $0x160] sm:$0xff]
  %v63 = vld [vmem:[%s0 + $0x168] sm:$0xff]
  %v64 = vld [vmem:[%s0 + $0x170] sm:$0xff]
  %v65 = vld [vmem:[%s0 + $0x178] sm:$0xff]
  %v66 = vld [vmem:[%s0 + $0x180] sm:$0xff]
  %v67 = vld [vmem:[%s0 + $0x188] sm:$0xff]
  %v68 = vld [vmem:[%s0 + $0x190] sm:$0xff]
  %v69 = vld [vmem:[%s0 + $0x198] sm:$0xff]
  %v70 = vld [vmem:[%s0 + $0x1a0] sm:$0xff]
  %v71 = vld [vmem:[%s0 + $0x1a8] sm:$0xff]
  %v72 = vld [vmem:[%s0 + $0x1b0] sm:$0xff]
  %v73 = vld [vmem:[%s0 + $0x1b8] sm:$0xff]
  %v74 = vld [vmem:[%s0 + $0x1c0] sm:$0xff]
  %v75 = vld [vmem:[%s0 + $0x1c8] sm:$0xff]
  %v76 = vld [vmem:[%s0 + $0x1d0] sm:$0xff]
  %v77 = vld [vmem:[%s0 + $0x1d8] sm:$0xff]
  %v78 = vld [vmem:[%s0 + $0x1e0] sm:$0xff]
  %v79 = vld [vmem:[%s0 + $0x1e8] sm:$0xff]
  %v80 = vld [vmem:[%s0 + $0x1f0] sm:$0xff]
  %v81 = vld [vmem:[%s0 + $0x1f8] sm:$0xff]
  %v82 = vld [vmem:[%s1] sm:$0xff]
  %v83 = vld [vmem:[%s1 + $0x8] sm:$0xff]
  %v84 = vld [vmem:[%s1 + $0x10] sm:$0xff]
  %v85 = vld [vmem:[%s1 + $0x18] sm:$0xff]
  %v86 = vld [vmem:[%s1 + $0x20] sm:$0xff]
  %v87 = vld [vmem:[%s1 + $0x28] sm:$0xff]
  %v88 = vld [vmem:[%s1 + $0x30] sm:$0xff]
  %v89 = vld [vmem:[%s1 + $0x38] sm:$0xff]
  %v90 = vld [vmem:[%s1 + $0x40] sm:$0xff]
  %v91 = vld [vmem:[%s1 + $0x48] sm:$0xff]
  %v92 = vld [vmem:[%s1 + $0x50] sm:$0xff]
  %v93 = vld [vmem:[%s1 + $0x58] sm:$0xff]
  %v94 = vld [vmem:[%s1 + $0x60] sm:$0xff]
  %v95 = vld [vmem:[%s1 + $0x68] sm:$0xff]
  %v96 = vld [vmem:[%s1 + $0x70] sm:$0xff]
  %v97 = vld [vmem:[%s1 + $0x78] sm:$0xff]
  %98 = vmatprep.subr.mxu0 0.0
  %99 = vmatpush1.msra.mxu0 %v97
  %100 = vmatprep.subr.mxu0 0.0
  %101 = vmatpush1.msra.mxu0 %v96
  %102 = vmatprep.subr.mxu0 0.0
  %103 = vmatpush1.msra.mxu0 %v95
  %104 = vmatprep.subr.mxu0 0.0
  %105 = vmatpush1.msra.mxu0 %v94
  %106 = vmatprep.subr.mxu0 0.0
  %107 = vmatpush1.msra.mxu0 %v93
  %108 = vmatprep.subr.mxu0 0.0
  %109 = vmatpush1.msra.mxu0 %v92
  %110 = vmatprep.subr.mxu0 0.0
  %111 = vmatpush1.msra.mxu0 %v91
  %112 = vmatprep.subr.mxu0 0.0
  %113 = vmatpush1.msra.mxu0 %v90
  %114 = vmatprep.subr.mxu0 0.0
  %115 = vmatpush1.msra.mxu0 %v89
  %116 = vmatprep.subr.mxu0 0.0
  %117 = vmatpush1.msra.mxu0 %v88
  %118 = vmatprep.subr.mxu0 0.0
  %119 = vmatpush1.msra.mxu0 %v87
  %120 = vmatprep.subr.mxu0 0.0
  %121 = vmatpush1.msra.mxu0 %v86
  %122 = vmatprep.subr.mxu0 0.0
  %123 = vmatpush1.msra.mxu0 %v85
  %124 = vmatprep.subr.mxu0 0.0
  %125 = vmatpush1.msra.mxu0 %v84
  %126 = vmatprep.subr.mxu0 0.0
  %127 = vmatpush1.msra.mxu0 %v83
  %128 = vmatprep.subr.mxu0 0.0
  %129 = vmatpush1.msra.mxu0 %v82
  %130 = vmatprep.subr.mxu0 0.0
  %131 = vmatpush2.msra.mxu0 0.0
  %132 = vmatprep.subr.mxu0 0.0
  %133 = vmatpush2.msra.mxu0 0.0
  %134 = vmatprep.subr.mxu0 0.0
  %135 = vmatpush2.msra.mxu0 0.0
  %136 = vmatprep.subr.mxu0 0.0
  %137 = vmatpush2.msra.mxu0 0.0
  %138 = vmatprep.subr.mxu0 0.0
  %139 = vmatpush2.msra.mxu0 0.0
  %140 = vmatprep.subr.mxu0 0.0
  %141 = vmatpush2.msra.mxu0 0.0
  %142 = vmatprep.subr.mxu0 0.0
  %143 = vmatpush2.msra.mxu0 0.0
  %144 = vmatprep.subr.mxu0 0.0
  %145 = vmatpush2.msra.mxu0 0.0
  %146 = vmatprep.subr.mxu0 0.0
  %147 = vmatpush2.msra.mxu0 0.0
  %148 = vmatprep.subr.mxu0 0.0
  %149 = vmatpush2.msra.mxu0 0.0
  %150 = vmatprep.subr.mxu0 0.0
  %151 = vmatpush2.msra.mxu0 0.0
  %152 = vmatprep.subr.mxu0 0.0
  %153 = vmatpush2.msra.mxu0 0.0
  %154 = vmatprep.subr.mxu0 0.0
  %155 = vmatpush2.msra.mxu0 0.0
  %156 = vmatprep.subr.mxu0 0.0
  %157 = vmatpush2.msra.mxu0 0.0
  %158 = vmatprep.subr.mxu0 0.0
  %159 = vmatpush2.msra.mxu0 0.0
  %160 = vmatprep.subr.mxu0 0.0
  %161 = vmatpush2.msra.mxu0 0.0
  %162 = vmatprep.mubr.f32.mxu0 0.0
  %163 = vmatmul.mubr.f32.gmra.mxu0 %v18
  %v164 = vpop.f32.mrf.mxu0
  %v165 = vadd.f32 0.0, %v164
  %v166 = vpop.f32.mrf.mxu0
  %167 = vmatprep.mubr.f32.mxu0 0.0
  %168 = vmatmul.mubr.f32.gmra.mxu0 %v19
  %v169 = vpop.f32.mrf.mxu0
  %v170 = vadd.f32 0.0, %v169
  %v171 = vpop.f32.mrf.mxu0
  %172 = vmatprep.mubr.f32.mxu0 0.0
  %173 = vmatmul.mubr.f32.gmra.mxu0 %v20
  %v174 = vpop.f32.mrf.mxu0
  %v175 = vadd.f32 0.0, %v174
  %v176 = vpop.f32.mrf.mxu0
  %177 = vmatprep.mubr.f32.mxu0 0.0
  %178 = vmatmul.mubr.f32.gmra.mxu0 %v21
  %v179 = vpop.f32.mrf.mxu0
  %v180 = vadd.f32 0.0, %v179
  %v181 = vpop.f32.mrf.mxu0
  %182 = vmatprep.mubr.f32.mxu0 0.0
  %183 = vmatmul.mubr.f32.gmra.mxu0 %v22
  %v184 = vpop.f32.mrf.mxu0
  %v185 = vadd.f32 0.0, %v184
  %v186 = vpop.f32.mrf.mxu0
  %187 = vmatprep.mubr.f32.mxu0 0.0
  %188 = vmatmul.mubr.f32.gmra.mxu0 %v23
  %v189 = vpop.f32.mrf.mxu0
  %v190 = vadd.f32 0.0, %v189
  %v191 = vpop.f32.mrf.mxu0
  %192 = vmatprep.mubr.f32.mxu0 0.0
  %193 = vmatmul.mubr.f32.gmra.mxu0 %v24
  %v194 = vpop.f32.mrf.mxu0
  %v195 = vadd.f32 0.0, %v194
  %v196 = vpop.f32.mrf.mxu0
  %197 = vmatprep.mubr.f32.mxu0 0.0
  %198 = vmatmul.mubr.f32.gmra.mxu0 %v25
  %v199 = vpop.f32.mrf.mxu0
  %v200 = vadd.f32 0.0, %v199
  %v201 = vpop.f32.mrf.mxu0
  %202 = vmatprep.mubr.f32.mxu0 0.0
  %203 = vmatmul.mubr.f32.gmra.mxu0 %v26
  %v204 = vpop.f32.mrf.mxu0
  %v205 = vadd.f32 0.0, %v204
  %v206 = vpop.f32.mrf.mxu0
  %207 = vmatprep.mubr.f32.mxu0 0.0
  %208 = vmatmul.mubr.f32.gmra.mxu0 %v27
  %v209 = vpop.f32.mrf.mxu0
  %v210 = vadd.f32 0.0, %v209
  %v211 = vpop.f32.mrf.mxu0
  %212 = vmatprep.mubr.f32.mxu0 0.0
  %213 = vmatmul.mubr.f32.gmra.mxu0 %v28
  %v214 = vpop.f32.mrf.mxu0
  %v215 = vadd.f32 0.0, %v214
  %v216 = vpop.f32.mrf.mxu0
  %217 = vmatprep.mubr.f32.mxu0 0.0
  %218 = vmatmul.mubr.f32.gmra.mxu0 %v29
  %v219 = vpop.f32.mrf.mxu0
  %v220 = vadd.f32 0.0, %v219
  %v221 = vpop.f32.mrf.mxu0
  %222 = vmatprep.mubr.f32.mxu0 0.0
  %223 = vmatmul.mubr.f32.gmra.mxu0 %v30
  %v224 = vpop.f32.mrf.mxu0
  %v225 = vadd.f32 0.0, %v224
  %v226 = vpop.f32.mrf.mxu0
  %227 = vmatprep.mubr.f32.mxu0 0.0
  %228 = vmatmul.mubr.f32.gmra.mxu0 %v31
  %v229 = vpop.f32.mrf.mxu0
  %v230 = vadd.f32 0.0, %v229
  %v231 = vpop.f32.mrf.mxu0
  %232 = vmatprep.mubr.f32.mxu0 0.0
  %233 = vmatmul.mubr.f32.gmra.mxu0 %v32
  %v234 = vpop.f32.mrf.mxu0
  %v235 = vadd.f32 0.0, %v234
  %v236 = vpop.f32.mrf.mxu0
  %237 = vmatprep.mubr.f32.mxu0 0.0
  %238 = vmatmul.mubr.f32.gmra.mxu0 %v33
  %v239 = vpop.f32.mrf.mxu0
  %v240 = vadd.f32 0.0, %v239
  %v241 = vpop.f32.mrf.mxu0
  %242 = vmatprep.mubr.f32.mxu0 0.0
  %243 = vmatmul.mubr.f32.gmra.mxu0 %v34
  %v244 = vpop.f32.mrf.mxu0
  %v245 = vadd.f32 0.0, %v244
  %v246 = vpop.f32.mrf.mxu0
  %247 = vmatprep.mubr.f32.mxu0 0.0
  %248 = vmatmul.mubr.f32.gmra.mxu0 %v35
  %v249 = vpop.f32.mrf.mxu0
  %v250 = vadd.f32 0.0, %v249
  %v251 = vpop.f32.mrf.mxu0
  %252 = vmatprep.mubr.f32.mxu0 0.0
  %253 = vmatmul.mubr.f32.gmra.mxu0 %v36
  %v254 = vpop.f32.mrf.mxu0
  %v255 = vadd.f32 0.0, %v254
  %v256 = vpop.f32.mrf.mxu0
  %257 = vmatprep.mubr.f32.mxu0 0.0
  %258 = vmatmul.mubr.f32.gmra.mxu0 %v37
  %v259 = vpop.f32.mrf.mxu0
  %v260 = vadd.f32 0.0, %v259
  %v261 = vpop.f32.mrf.mxu0
  %262 = vmatprep.mubr.f32.mxu0 0.0
  %263 = vmatmul.mubr.f32.gmra.mxu0 %v38
  %v264 = vpop.f32.mrf.mxu0
  %v265 = vadd.f32 0.0, %v264
  %v266 = vpop.f32.mrf.mxu0
  %267 = vmatprep.mubr.f32.mxu0 0.0
  %268 = vmatmul.mubr.f32.gmra.mxu0 %v39
  %v269 = vpop.f32.mrf.mxu0
  %v270 = vadd.f32 0.0, %v269
  %v271 = vpop.f32.mrf.mxu0
  %272 = vmatprep.mubr.f32.mxu0 0.0
  %273 = vmatmul.mubr.f32.gmra.mxu0 %v40
  %v274 = vpop.f32.mrf.mxu0
  %v275 = vadd.f32 0.0, %v274
  %v276 = vpop.f32.mrf.mxu0
  %277 = vmatprep.mubr.f32.mxu0 0.0
  %278 = vmatmul.mubr.f32.gmra.mxu0 %v41
  %v279 = vpop.f32.mrf.mxu0
  %v280 = vadd.f32 0.0, %v279
  %v281 = vpop.f32.mrf.mxu0
  %282 = vmatprep.mubr.f32.mxu0 0.0
  %283 = vmatmul.mubr.f32.gmra.mxu0 %v42
  %v284 = vpop.f32.mrf.mxu0
  %v285 = vadd.f32 0.0, %v284
  %v286 = vpop.f32.mrf.mxu0
  %287 = vmatprep.mubr.f32.mxu0 0.0
  %288 = vmatmul.mubr.f32.gmra.mxu0 %v43
  %v289 = vpop.f32.mrf.mxu0
  %v290 = vadd.f32 0.0, %v289
  %v291 = vpop.f32.mrf.mxu0
  %292 = vmatprep.mubr.f32.mxu0 0.0
  %293 = vmatmul.mubr.f32.gmra.mxu0 %v44
  %v294 = vpop.f32.mrf.mxu0
  %v295 = vadd.f32 0.0, %v294
  %v296 = vpop.f32.mrf.mxu0
  %297 = vmatprep.mubr.f32.mxu0 0.0
  %298 = vmatmul.mubr.f32.gmra.mxu0 %v45
  %v299 = vpop.f32.mrf.mxu0
  %v300 = vadd.f32 0.0, %v299
  %v301 = vpop.f32.mrf.mxu0
  %302 = vmatprep.mubr.f32.mxu0 0.0
  %303 = vmatmul.mubr.f32.gmra.mxu0 %v46
  %v304 = vpop.f32.mrf.mxu0
  %v305 = vadd.f32 0.0, %v304
  %v306 = vpop.f32.mrf.mxu0
  %307 = vmatprep.mubr.f32.mxu0 0.0
  %308 = vmatmul.mubr.f32.gmra.mxu0 %v47
  %v309 = vpop.f32.mrf.mxu0
  %v310 = vadd.f32 0.0, %v309
  %v311 = vpop.f32.mrf.mxu0
  %312 = vmatprep.mubr.f32.mxu0 0.0
  %313 = vmatmul.mubr.f32.gmra.mxu0 %v48
  %v314 = vpop.f32.mrf.mxu0
  %v315 = vadd.f32 0.0, %v314
  %v316 = vpop.f32.mrf.mxu0
  %317 = vmatprep.mubr.f32.mxu0 0.0
  %318 = vmatmul.mubr.f32.gmra.mxu0 %v49
  %v319 = vpop.f32.mrf.mxu0
  %v320 = vadd.f32 0.0, %v319
  %v321 = vpop.f32.mrf.mxu0
  %322 = vmatprep.mubr.f32.mxu0 0.0
  %323 = vmatmul.mubr.f32.gmra.mxu0 %v50
  %v324 = vpop.f32.mrf.mxu0
  %v325 = vadd.f32 0.0, %v324
  %v326 = vpop.f32.mrf.mxu0
  %327 = vmatprep.mubr.f32.mxu0 0.0
  %328 = vmatmul.mubr.f32.gmra.mxu0 %v51
  %v329 = vpop.f32.mrf.mxu0
  %v330 = vadd.f32 0.0, %v329
  %v331 = vpop.f32.mrf.mxu0
  %332 = vmatprep.mubr.f32.mxu0 0.0
  %333 = vmatmul.mubr.f32.gmra.mxu0 %v52
  %v334 = vpop.f32.mrf.mxu0
  %v335 = vadd.f32 0.0, %v334
  %v336 = vpop.f32.mrf.mxu0
  %337 = vmatprep.mubr.f32.mxu0 0.0
  %338 = vmatmul.mubr.f32.gmra.mxu0 %v53
  %v339 = vpop.f32.mrf.mxu0
  %v340 = vadd.f32 0.0, %v339
  %v341 = vpop.f32.mrf.mxu0
  %342 = vmatprep.mubr.f32.mxu0 0.0
  %343 = vmatmul.mubr.f32.gmra.mxu0 %v54
  %v344 = vpop.f32.mrf.mxu0
  %v345 = vadd.f32 0.0, %v344
  %v346 = vpop.f32.mrf.mxu0
  %347 = vmatprep.mubr.f32.mxu0 0.0
  %348 = vmatmul.mubr.f32.gmra.mxu0 %v55
  %v349 = vpop.f32.mrf.mxu0
  %v350 = vadd.f32 0.0, %v349
  %v351 = vpop.f32.mrf.mxu0
  %352 = vmatprep.mubr.f32.mxu0 0.0
  %353 = vmatmul.mubr.f32.gmra.mxu0 %v56
  %v354 = vpop.f32.mrf.mxu0
  %v355 = vadd.f32 0.0, %v354
  %v356 = vpop.f32.mrf.mxu0
  %357 = vmatprep.mubr.f32.mxu0 0.0
  %358 = vmatmul.mubr.f32.gmra.mxu0 %v57
  %v359 = vpop.f32.mrf.mxu0
  %v360 = vadd.f32 0.0, %v359
  %v361 = vpop.f32.mrf.mxu0
  %362 = vmatprep.mubr.f32.mxu0 0.0
  %363 = vmatmul.mubr.f32.gmra.mxu0 %v58
  %v364 = vpop.f32.mrf.mxu0
  %v365 = vadd.f32 0.0, %v364
  %v366 = vpop.f32.mrf.mxu0
  %367 = vmatprep.mubr.f32.mxu0 0.0
  %368 = vmatmul.mubr.f32.gmra.mxu0 %v59
  %v369 = vpop.f32.mrf.mxu0
  %v370 = vadd.f32 0.0, %v369
  %v371 = vpop.f32.mrf.mxu0
  %372 = vmatprep.mubr.f32.mxu0 0.0
  %373 = vmatmul.mubr.f32.gmra.mxu0 %v60
  %v374 = vpop.f32.mrf.mxu0
  %v375 = vadd.f32 0.0, %v374
  %v376 = vpop.f32.mrf.mxu0
  %377 = vmatprep.mubr.f32.mxu0 0.0
  %378 = vmatmul.mubr.f32.gmra.mxu0 %v61
  %v379 = vpop.f32.mrf.mxu0
  %v380 = vadd.f32 0.0, %v379
  %v381 = vpop.f32.mrf.mxu0
  %382 = vmatprep.mubr.f32.mxu0 0.0
  %383 = vmatmul.mubr.f32.gmra.mxu0 %v62
  %v384 = vpop.f32.mrf.mxu0
  %v385 = vadd.f32 0.0, %v384
  %v386 = vpop.f32.mrf.mxu0
  %387 = vmatprep.mubr.f32.mxu0 0.0
  %388 = vmatmul.mubr.f32.gmra.mxu0 %v63
  %v389 = vpop.f32.mrf.mxu0
  %v390 = vadd.f32 0.0, %v389
  %v391 = vpop.f32.mrf.mxu0
  %392 = vmatprep.mubr.f32.mxu0 0.0
  %393 = vmatmul.mubr.f32.gmra.mxu0 %v64
  %v394 = vpop.f32.mrf.mxu0
  %v395 = vadd.f32 0.0, %v394
  %v396 = vpop.f32.mrf.mxu0
  %397 = vmatprep.mubr.f32.mxu0 0.0
  %398 = vmatmul.mubr.f32.gmra.mxu0 %v65
  %v399 = vpop.f32.mrf.mxu0
  %v400 = vadd.f32 0.0, %v399
  %v401 = vpop.f32.mrf.mxu0
  %402 = vmatprep.mubr.f32.mxu0 0.0
  %403 = vmatmul.mubr.f32.gmra.mxu0 %v66
  %v404 = vpop.f32.mrf.mxu0
  %v405 = vadd.f32 0.0, %v404
  %v406 = vpop.f32.mrf.mxu0
  %407 = vmatprep.mubr.f32.mxu0 0.0
  %408 = vmatmul.mubr.f32.gmra.mxu0 %v67
  %v409 = vpop.f32.mrf.mxu0
  %v410 = vadd.f32 0.0, %v409
  %v411 = vpop.f32.mrf.mxu0
  %412 = vmatprep.mubr.f32.mxu0 0.0
  %413 = vmatmul.mubr.f32.gmra.mxu0 %v68
  %v414 = vpop.f32.mrf.mxu0
  %v415 = vadd.f32 0.0, %v414
  %v416 = vpop.f32.mrf.mxu0
  %417 = vmatprep.mubr.f32.mxu0 0.0
  %418 = vmatmul.mubr.f32.gmra.mxu0 %v69
  %v419 = vpop.f32.mrf.mxu0
  %v420 = vadd.f32 0.0, %v419
  %v421 = vpop.f32.mrf.mxu0
  %422 = vmatprep.mubr.f32.mxu0 0.0
  %423 = vmatmul.mubr.f32.gmra.mxu0 %v70
  %v424 = vpop.f32.mrf.mxu0
  %v425 = vadd.f32 0.0, %v424
  %v426 = vpop.f32.mrf.mxu0
  %427 = vmatprep.mubr.f32.mxu0 0.0
  %428 = vmatmul.mubr.f32.gmra.mxu0 %v71
  %v429 = vpop.f32.mrf.mxu0
  %v430 = vadd.f32 0.0, %v429
  %v431 = vpop.f32.mrf.mxu0
  %432 = vmatprep.mubr.f32.mxu0 0.0
  %433 = vmatmul.mubr.f32.gmra.mxu0 %v72
  %v434 = vpop.f32.mrf.mxu0
  %v435 = vadd.f32 0.0, %v434
  %v436 = vpop.f32.mrf.mxu0
  %437 = vmatprep.mubr.f32.mxu0 0.0
  %438 = vmatmul.mubr.f32.gmra.mxu0 %v73
  %v439 = vpop.f32.mrf.mxu0
  %v440 = vadd.f32 0.0, %v439
  %v441 = vpop.f32.mrf.mxu0
  %442 = vmatprep.mubr.f32.mxu0 0.0
  %443 = vmatmul.mubr.f32.gmra.mxu0 %v74
  %v444 = vpop.f32.mrf.mxu0
  %v445 = vadd.f32 0.0, %v444
  %v446 = vpop.f32.mrf.mxu0
  %447 = vmatprep.mubr.f32.mxu0 0.0
  %448 = vmatmul.mubr.f32.gmra.mxu0 %v75
  %v449 = vpop.f32.mrf.mxu0
  %v450 = vadd.f32 0.0, %v449
  %v451 = vpop.f32.mrf.mxu0
  %452 = vmatprep.mubr.f32.mxu0 0.0
  %453 = vmatmul.mubr.f32.gmra.mxu0 %v76
  %v454 = vpop.f32.mrf.mxu0
  %v455 = vadd.f32 0.0, %v454
  %v456 = vpop.f32.mrf.mxu0
  %457 = vmatprep.mubr.f32.mxu0 0.0
  %458 = vmatmul.mubr.f32.gmra.mxu0 %v77
  %v459 = vpop.f32.mrf.mxu0
  %v460 = vadd.f32 0.0, %v459
  %v461 = vpop.f32.mrf.mxu0
  %462 = vmatprep.mubr.f32.mxu0 0.0
  %463 = vmatmul.mubr.f32.gmra.mxu0 %v78
  %v464 = vpop.f32.mrf.mxu0
  %v465 = vadd.f32 0.0, %v464
  %v466 = vpop.f32.mrf.mxu0
  %467 = vmatprep.mubr.f32.mxu0 0.0
  %468 = vmatmul.mubr.f32.gmra.mxu0 %v79
  %v469 = vpop.f32.mrf.mxu0
  %v470 = vadd.f32 0.0, %v469
  %v471 = vpop.f32.mrf.mxu0
  %472 = vmatprep.mubr.f32.mxu0 0.0
  %473 = vmatmul.mubr.f32.gmra.mxu0 %v80
  %v474 = vpop.f32.mrf.mxu0
  %v475 = vadd.f32 0.0, %v474
  %v476 = vpop.f32.mrf.mxu0
  %477 = vmatprep.mubr.f32.mxu0 0.0
  %478 = vmatmul.mubr.f32.gmra.mxu0 %v81
  %v479 = vpop.f32.mrf.mxu0
  %v480 = vadd.f32 0.0, %v479
  %v481 = vpop.f32.mrf.mxu0
  %482 = vdwg.mxu0
  %483 = vst [vmem:[%s2] sm:$0xff] %v165
  %484 = vst [vmem:[%s2 + $0x8] sm:$0xff] %v170
  %485 = vst [vmem:[%s2 + $0x10] sm:$0xff] %v175
  %486 = vst [vmem:[%s2 + $0x18] sm:$0xff] %v180
  %487 = vst [vmem:[%s2 + $0x20] sm:$0xff] %v185
  %488 = vst [vmem:[%s2 + $0x28] sm:$0xff] %v190
  %489 = vst [vmem:[%s2 + $0x30] sm:$0xff] %v195
  %490 = vst [vmem:[%s2 + $0x38] sm:$0xff] %v200
  %491 = vst [vmem:[%s2 + $0x40] sm:$0xff] %v205
  %492 = vst [vmem:[%s2 + $0x48] sm:$0xff] %v210
  %493 = vst [vmem:[%s2 + $0x50] sm:$0xff] %v215
  %494 = vst [vmem:[%s2 + $0x58] sm:$0xff] %v220
  %495 = vst [vmem:[%s2 + $0x60] sm:$0xff] %v225
  %496 = vst [vmem:[%s2 + $0x68] sm:$0xff] %v230
  %497 = vst [vmem:[%s2 + $0x70] sm:$0xff] %v235
  %498 = vst [vmem:[%s2 + $0x78] sm:$0xff] %v240
  %499 = vst [vmem:[%s2 + $0x80] sm:$0xff] %v245
  %500 = vst [vmem:[%s2 + $0x88] sm:$0xff] %v250
  %501 = vst [vmem:[%s2 + $0x90] sm:$0xff] %v255
  %502 = vst [vmem:[%s2 + $0x98] sm:$0xff] %v260
  %503 = vst [vmem:[%s2 + $0xa0] sm:$0xff] %v265
  %504 = vst [vmem:[%s2 + $0xa8] sm:$0xff] %v270
  %505 = vst [vmem:[%s2 + $0xb0] sm:$0xff] %v275
  %506 = vst [vmem:[%s2 + $0xb8] sm:$0xff] %v280
  %507 = vst [vmem:[%s2 + $0xc0] sm:$0xff] %v285
  %508 = vst [vmem:[%s2 + $0xc8] sm:$0xff] %v290
  %509 = vst [vmem:[%s2 + $0xd0] sm:$0xff] %v295
  %510 = vst [vmem:[%s2 + $0xd8] sm:$0xff] %v300
  %511 = vst [vmem:[%s2 + $0xe0] sm:$0xff] %v305
  %512 = vst [vmem:[%s2 + $0xe8] sm:$0xff] %v310
  %513 = vst [vmem:[%s2 + $0xf0] sm:$0xff] %v315
  %514 = vst [vmem:[%s2 + $0xf8] sm:$0xff] %v320
  %515 = vst [vmem:[%s2 + $0x100] sm:$0xff] %v325
  %516 = vst [vmem:[%s2 + $0x108] sm:$0xff] %v330
  %517 = vst [vmem:[%s2 + $0x110] sm:$0xff] %v335
  %518 = vst [vmem:[%s2 + $0x118] sm:$0xff] %v340
  %519 = vst [vmem:[%s2 + $0x120] sm:$0xff] %v345
  %520 = vst [vmem:[%s2 + $0x128] sm:$0xff] %v350
  %521 = vst [vmem:[%s2 + $0x130] sm:$0xff] %v355
  %522 = vst [vmem:[%s2 + $0x138] sm:$0xff] %v360
  %523 = vst [vmem:[%s2 + $0x140] sm:$0xff] %v365
  %524 = vst [vmem:[%s2 + $0x148] sm:$0xff] %v370
  %525 = vst [vmem:[%s2 + $0x150] sm:$0xff] %v375
  %526 = vst [vmem:[%s2 + $0x158] sm:$0xff] %v380
  %527 = vst [vmem:[%s2 + $0x160] sm:$0xff] %v385
  %528 = vst [vmem:[%s2 + $0x168] sm:$0xff] %v390
  %529 = vst [vmem:[%s2 + $0x170] sm:$0xff] %v395
  %530 = vst [vmem:[%s2 + $0x178] sm:$0xff] %v400
  %531 = vst [vmem:[%s2 + $0x180] sm:$0xff] %v405
  %532 = vst [vmem:[%s2 + $0x188] sm:$0xff] %v410
  %533 = vst [vmem:[%s2 + $0x190] sm:$0xff] %v415
  %534 = vst [vmem:[%s2 + $0x198] sm:$0xff] %v420
  %535 = vst [vmem:[%s2 + $0x1a0] sm:$0xff] %v425
  %536 = vst [vmem:[%s2 + $0x1a8] sm:$0xff] %v430
  %537 = vst [vmem:[%s2 + $0x1b0] sm:$0xff] %v435
  %538 = vst [vmem:[%s2 + $0x1b8] sm:$0xff] %v440
  %539 = vst [vmem:[%s2 + $0x1c0] sm:$0xff] %v445
  %540 = vst [vmem:[%s2 + $0x1c8] sm:$0xff] %v450
  %541 = vst [vmem:[%s2 + $0x1d0] sm:$0xff] %v455
  %542 = vst [vmem:[%s2 + $0x1d8] sm:$0xff] %v460
  %543 = vst [vmem:[%s2 + $0x1e0] sm:$0xff] %v465
  %544 = vst [vmem:[%s2 + $0x1e8] sm:$0xff] %v470
  %545 = vst [vmem:[%s2 + $0x1f0] sm:$0xff] %v475
  %546 = vst [vmem:[%s2 + $0x1f8] sm:$0xff] %v480
  %v547 = vld [vmem:[%s3] sm:$0x1]
  %v548 = vadd.f32 %v165, %v170
  %v549 = vadd.f32 %v548, %v175
  %v550 = vadd.f32 %v549, %v180
  %v551 = vadd.f32 %v550, %v185
  %v552 = vadd.f32 %v551, %v190
  %v553 = vadd.f32 %v552, %v195
  %v554 = vadd.f32 %v553, %v200
  %v555 = vadd.f32 %v554, %v205
  %v556 = vadd.f32 %v555, %v210
  %v557 = vadd.f32 %v556, %v215
  %v558 = vadd.f32 %v557, %v220
  %v559 = vadd.f32 %v558, %v225
  %v560 = vadd.f32 %v559, %v230
  %v561 = vadd.f32 %v560, %v235
  %v562 = vadd.f32 %v561, %v240
  %v563 = vadd.f32 %v562, %v245
  %v564 = vadd.f32 %v563, %v250
  %v565 = vadd.f32 %v564, %v255
  %v566 = vadd.f32 %v565, %v260
  %v567 = vadd.f32 %v566, %v265
  %v568 = vadd.f32 %v567, %v270
  %v569 = vadd.f32 %v568, %v275
  %v570 = vadd.f32 %v569, %v280
  %v571 = vadd.f32 %v570, %v285
  %v572 = vadd.f32 %v571, %v290
  %v573 = vadd.f32 %v572, %v295
  %v574 = vadd.f32 %v573, %v300
  %v575 = vadd.f32 %v574, %v305
  %v576 = vadd.f32 %v575, %v310
  %v577 = vadd.f32 %v576, %v315
  %v578 = vadd.f32 %v577, %v320
  %v579 = vadd.f32 %v578, %v325
  %v580 = vadd.f32 %v579, %v330
  %v581 = vadd.f32 %v580, %v335
  %v582 = vadd.f32 %v581, %v340
  %v583 = vadd.f32 %v582, %v345
  %v584 = vadd.f32 %v583, %v350
  %v585 = vadd.f32 %v584, %v355
  %v586 = vadd.f32 %v585, %v360
  %v587 = vadd.f32 %v586, %v365
  %v588 = vadd.f32 %v587, %v370
  %v589 = vadd.f32 %v588, %v375
  %v590 = vadd.f32 %v589, %v380
  %v591 = vadd.f32 %v590, %v385
  %v592 = vadd.f32 %v591, %v390
  %v593 = vadd.f32 %v592, %v395
  %v594 = vadd.f32 %v593, %v400
  %v595 = vadd.f32 %v594, %v405
  %v596 = vadd.f32 %v595, %v410
  %v597 = vadd.f32 %v596, %v415
  %v598 = vadd.f32 %v597, %v420
  %v599 = vadd.f32 %v598, %v425
  %v600 = vadd.f32 %v599, %v430
  %v601 = vadd.f32 %v600, %v435
  %v602 = vadd.f32 %v601, %v440
  %v603 = vadd.f32 %v602, %v445
  %v604 = vadd.f32 %v603, %v450
  %v605 = vadd.f32 %v604, %v455
  %v606 = vadd.f32 %v605, %v460
  %v607 = vadd.f32 %v606, %v465
  %v608 = vadd.f32 %v607, %v470
  %v609 = vadd.f32 %v608, %v475
  %v610 = vadd.f32 %v609, %v480
  %v611 = vrot.slane %v610, 4
  %v612 = vadd.f32 %v610, %v611
  %v613 = vrot.slane %v612, 2
  %v614 = vadd.f32 %v612, %v613
  %v615 = vrot.slane %v614, 1
  %v616 = vadd.f32 %v614, %v615
  %v617 = vadd.f32 %v547, %v616
  %618 = vst [vmem:[%s3] sm:$0x1] %v617
  %v619 = vld [vmem:[%s3 + $0x1] sm:$0x1]
  %v620 = vmul.f32 %v165, %v165
  %v621 = vmul.f32 %v170, %v170
  %v622 = vmul.f32 %v175, %v175
  %v623 = vmul.f32 %v180, %v180
  %v624 = vmul.f32 %v185, %v185
  %v625 = vmul.f32 %v190, %v190
  %v626 = vmul.f32 %v195, %v195
  %v627 = vmul.f32 %v200, %v200
  %v628 = vmul.f32 %v205, %v205
  %v629 = vmul.f32 %v210, %v210
  %v630 = vmul.f32 %v215, %v215
  %v631 = vmul.f32 %v220, %v220
  %v632 = vmul.f32 %v225, %v225
  %v633 = vmul.f32 %v230, %v230
  %v634 = vmul.f32 %v235, %v235
  %v635 = vmul.f32 %v240, %v240
  %v636 = vmul.f32 %v245, %v245
  %v637 = vmul.f32 %v250, %v250
  %v638 = vmul.f32 %v255, %v255
  %v639 = vmul.f32 %v260, %v260
  %v640 = vmul.f32 %v265, %v265
  %v641 = vmul.f32 %v270, %v270
  %v642 = vmul.f32 %v275, %v275
  %v643 = vmul.f32 %v280, %v280
  %v644 = vmul.f32 %v285, %v285
  %v645 = vmul.f32 %v290, %v290
  %v646 = vmul.f32 %v295, %v295
  %v647 = vmul.f32 %v300, %v300
  %v648 = vmul.f32 %v305, %v305
  %v649 = vmul.f32 %v310, %v310
  %v650 = vmul.f32 %v315, %v315
  %v651 = vmul.f32 %v320, %v320
  %v652 = vmul.f32 %v325, %v325
  %v653 = vmul.f32 %v330, %v330
  %v654 = vmul.f32 %v335, %v335
  %v655 = vmul.f32 %v340, %v340
  %v656 = vmul.f32 %v345, %v345
  %v657 = vmul.f32 %v350, %v350
  %v658 = vmul.f32 %v355, %v355
  %v659 = vmul.f32 %v360, %v360
  %v660 = vmul.f32 %v365, %v365
  %v661 = vmul.f32 %v370, %v370
  %v662 = vmul.f32 %v375, %v375
  %v663 = vmul.f32 %v380, %v380
  %v664 = vmul.f32 %v385, %v385
  %v665 = vmul.f32 %v390, %v390
  %v666 = vmul.f32 %v395, %v395
  %v667 = vmul.f32 %v400, %v400
  %v668 = vmul.f32 %v405, %v405
  %v669 = vmul.f32 %v410, %v410
  %v670 = vmul.f32 %v415, %v415
  %v671 = vmul.f32 %v420, %v420
  %v672 = vmul.f32 %v425, %v425
  %v673 = vmul.f32 %v430, %v430
  %v674 = vmul.f32 %v435, %v435
  %v675 = vmul.f32 %v440, %v440
  %v676 = vmul.f32 %v445, %v445
  %v677 = vmul.f32 %v450, %v450
  %v678 = vmul.f32 %v455, %v455
  %v679 = vmul.f32 %v460, %v460
  %v680 = vmul.f32 %v465, %v465
  %v681 = vmul.f32 %v470, %v470
  %v682 = vmul.f32 %v475, %v475
  %v683 = vmul.f32 %v480, %v480
  %v684 = vadd.f32 %v620, %v621
  %v685 = vadd.f32 %v684, %v622
  %v686 = vadd.f32 %v685, %v623
  %v687 = vadd.f32 %v686, %v624
  %v688 = vadd.f32 %v687, %v625
  %v689 = vadd.f32 %v688, %v626
  %v690 = vadd.f32 %v689, %v627
  %v691 = vadd.f32 %v690, %v628
  %v692 = vadd.f32 %v691, %v629
  %v693 = vadd.f32 %v692, %v630
  %v694 = vadd.f32 %v693, %v631
  %v695 = vadd.f32 %v694, %v632
  %v696 = vadd.f32 %v695, %v633
  %v697 = vadd.f32 %v696, %v634
  %v698 = vadd.f32 %v697, %v635
  %v699 = vadd.f32 %v698, %v636
  %v700 = vadd.f32 %v699, %v637
  %v701 = vadd.f32 %v700, %v638
  %v702 = vadd.f32 %v701, %v639
  %v703 = vadd.f32 %v702, %v640
  %v704 = vadd.f32 %v703, %v641
  %v705 = vadd.f32 %v704, %v642
  %v706 = vadd.f32 %v705, %v643
  %v707 = vadd.f32 %v706, %v644
  %v708 = vadd.f32 %v707, %v645
  %v709 = vadd.f32 %v708, %v646
  %v710 = vadd.f32 %v709, %v647
  %v711 = vadd.f32 %v710, %v648
  %v712 = vadd.f32 %v711, %v649
  %v713 = vadd.f32 %v712, %v650
  %v714 = vadd.f32 %v713, %v651
  %v715 = vadd.f32 %v714, %v652
  %v716 = vadd.f32 %v715, %v653
  %v717 = vadd.f32 %v716, %v654
  %v718 = vadd.f32 %v717, %v655
  %v719 = vadd.f32 %v718, %v656
  %v720 = vadd.f32 %v719, %v657
  %v721 = vadd.f32 %v720, %v658
  %v722 = vadd.f32 %v721, %v659
  %v723 = vadd.f32 %v722, %v660
  %v724 = vadd.f32 %v723, %v661
  %v725 = vadd.f32 %v724, %v662
  %v726 = vadd.f32 %v725, %v663
  %v727 = vadd.f32 %v726, %v664
  %v728 = vadd.f32 %v727, %v665
  %v729 = vadd.f32 %v728, %v666
  %v730 = vadd.f32 %v729, %v667
  %v731 = vadd.f32 %v730, %v668
  %v732 = vadd.f32 %v731, %v669
  %v733 = vadd.f32 %v732, %v670
  %v734 = vadd.f32 %v733, %v671
  %v735 = vadd.f32 %v734, %v672
  %v736 = vadd.f32 %v735, %v673
  %v737 = vadd.f32 %v736, %v674
  %v738 = vadd.f32 %v737, %v675
  %v739 = vadd.f32 %v738, %v676
  %v740 = vadd.f32 %v739, %v677
  %v741 = vadd.f32 %v740, %v678
  %v742 = vadd.f32 %v741, %v679
  %v743 = vadd.f32 %v742, %v680
  %v744 = vadd.f32 %v743, %v681
  %v745 = vadd.f32 %v744, %v682
  %v746 = vadd.f32 %v745, %v683
  %v747 = vrot.slane %v746, 4
  %v748 = vadd.f32 %v746, %v747
  %v749 = vrot.slane %v748, 2
  %v750 = vadd.f32 %v748, %v749
  %v751 = vrot.slane %v750, 1
  %v752 = vadd.f32 %v750, %v751
  %v753 = vadd.f32 %v619, %v752
  %754 = vst [vmem:[%s3 + $0x1] sm:$0x1] %v753
  // Predicated region
  $region14: #{bottleneck_forward.4} parent=0 // pred_check
    _
  $region15: #{bottleneck_forward.4} parent=0 // pred_check_branch
    %756 = sbr.rel (0) target = $region17
  $region16: #{bottleneck_forward.4} parent=0 // pred_region
    _
  $region17: #{bottleneck_forward.4} parent=0 // pred_fallthru
    _
  // Predicated region
  $region18: #{bottleneck_forward.4} parent=0 // pred_check
    _
  $region19: #{bottleneck_forward.4} parent=0 // pred_check_branch
    %758 = sbr.rel (0) target = $region21
  $region20: #{bottleneck_forward.4} parent=0 // pred_region
    _
  $region21: #{bottleneck_forward.4} parent=0 // pred_fallthru
    _
  // Predicated region
  $region22: #{bottleneck_forward.4} parent=0 // pred_check
    _
  $region23: #{bottleneck_forward.4} parent=0 // pred_check_branch
    %760 = sbr.rel (0) target = $region25
  $region24: #{bottleneck_forward.4} parent=0 // pred_region
    _
  $region25: #{bottleneck_forward.4} parent=0 // pred_fallthru
    _
  // Predicated region
  $region26: #{bottleneck_forward.4} parent=0 // pred_check
    _
  $region27: #{bottleneck_forward.4} parent=0 // pred_check_branch
    %762 = sbr.rel (0) target = $region29
  $region28: #{bottleneck_forward.4} parent=0 // pred_region
    _
  $region29: #{bottleneck_forward.4} parent=0 // pred_fallthru
    _

// kernel: bottleneck_forward.7
$region0: #{bottleneck_forward.7}
  #allocation0 [shape = 'u32[]', space=smem, size = 0x4, offset = 0x4, fixed_abs, tag = 'smem constant byte address 0x4 - core index']
  #allocation1 [shape = 'u32[144,128]{1,0:T(1,128)}', space=vmem, size = 0x12000, scoped, tag = 'internal scratch']
  %s0 = inlined_call_operand.vmem [shape: f32[512,128], index: 0, kind: input, shape index: {}]
  %s1 = inlined_call_operand.vmem [shape: f32[2,128], index: 1, kind: input, shape index: {}]
  %s2 = inlined_call_operand.vmem [shape: f32[1,128], index: 2, kind: input, shape index: {}]
  %s3 = inlined_call_operand.vmem [shape: f32[1,128], index: 3, kind: input, shape index: {}]
  %s4 = inlined_call_operand.vmem [shape: f32[512,128], index: 4, kind: input, shape index: {}]
  %s5 = inlined_call_operand.vmem [shape: f32[2,128], index: 5, kind: input, shape index: {}]
  %s6 = inlined_call_operand.vmem [shape: f32[1,128], index: 6, kind: input, shape index: {}]
  %s7 = inlined_call_operand.vmem [shape: f32[1,128], index: 7, kind: input, shape index: {}]
  %s8 = inlined_call_operand.vmem [shape: f32[512,128], index: 8, kind: output, shape index: {}]
  %s9 = sld [smem:[#allocation0]]
  $region42: #{bottleneck_forward.7} parent=0
    _
  %s11 = ssub.s32 1, %s9
  %s12 = scalar_select 0, %s11, %s9
  // Predicated region
  $region2: #{bottleneck_forward.7} parent=0 // pred_check
    _
  $region3: #{bottleneck_forward.7} parent=0 // pred_check_branch
    %14 = sbr.rel (0) target = $region5
  $region4: #{bottleneck_forward.7} parent=0 // pred_region
    _
  $region5: #{bottleneck_forward.7} parent=0 // pred_fallthru
    _
  // Predicated region
  $region6: #{bottleneck_forward.7} parent=0 // pred_check
    _
  $region7: #{bottleneck_forward.7} parent=0 // pred_check_branch
    %16 = sbr.rel (0) target = $region9
  $region8: #{bottleneck_forward.7} parent=0 // pred_region
    _
  $region9: #{bottleneck_forward.7} parent=0 // pred_fallthru
    _
  // Predicated region
  $region10: #{bottleneck_forward.7} parent=0 // pred_check
    _
  $region11: #{bottleneck_forward.7} parent=0 // pred_check_branch
    %18 = sbr.rel (0) target = $region13
  $region12: #{bottleneck_forward.7} parent=0 // pred_region
    _
  $region13: #{bottleneck_forward.7} parent=0 // pred_fallthru
    _
  // Predicated region
  $region14: #{bottleneck_forward.7} parent=0 // pred_check
    _
  $region15: #{bottleneck_forward.7} parent=0 // pred_check_branch
    %20 = sbr.rel (0) target = $region17
  $region16: #{bottleneck_forward.7} parent=0 // pred_region
    _
  $region17: #{bottleneck_forward.7} parent=0 // pred_fallthru
    _
  // Predicated region
  $region18: #{bottleneck_forward.7} parent=0 // pred_check
    _
  $region19: #{bottleneck_forward.7} parent=0 // pred_check_branch
    %22 = sbr.rel (0) target = $region21
  $region20: #{bottleneck_forward.7} parent=0 // pred_region
    _
  $region21: #{bottleneck_forward.7} parent=0 // pred_fallthru
    _
  // Predicated region
  $region22: #{bottleneck_forward.7} parent=0 // pred_check
    _
  $region23: #{bottleneck_forward.7} parent=0 // pred_check_branch
    %24 = sbr.rel (0) target = $region25
  $region24: #{bottleneck_forward.7} parent=0 // pred_region
    _
  $region25: #{bottleneck_forward.7} parent=0 // pred_fallthru
    _
  // Predicated region
  $region26: #{bottleneck_forward.7} parent=0 // pred_check
    _
  $region27: #{bottleneck_forward.7} parent=0 // pred_check_branch
    %26 = sbr.rel (0) target = $region29
  $region28: #{bottleneck_forward.7} parent=0 // pred_region
    _
  $region29: #{bottleneck_forward.7} parent=0 // pred_fallthru
    _
  // Predicated region
  $region30: #{bottleneck_forward.7} parent=0 // pred_check
    _
  $region31: #{bottleneck_forward.7} parent=0 // pred_check_branch
    %28 = sbr.rel (0) target = $region33
  $region32: #{bottleneck_forward.7} parent=0 // pred_region
    _
  $region33: #{bottleneck_forward.7} parent=0 // pred_fallthru
    _
  %v29 = vld [vmem:[%s1] sm:$0x1]
  %v30 = vmul.f32 %v29, 0.001953125
  %v31 = vld [vmem:[%s1 + $0x1] sm:$0x1]
  %v32 = vmul.f32 %v31, 0.001953125
  %v33 = vmul.f32 %v30, %v30
  %v34 = vsub.f32 %v32, %v33
  %v35 = vmax.f32 %v34, 0.0
  %v36 = vadd.f32 %v35, 1e-05
  %v37 = vrsqrt.pop %v36
  %v38 = vld [vmem:[%s2] sm:$0x1]
  %v39 = vmul.f32 %v37, %v38
  %v40 = vld [vmem:[%s3] sm:$0x1]
  %v41 = vmul.f32 %v30, %v39
  %v42 = vsub.f32 %v40, %v41
  %v43 = vld [vmem:[%s5] sm:$0x1]
  %v44 = vmul.f32 %v43, 0.001953125
  %v45 = vld [vmem:[%s5 + $0x1] sm:$0x1]
  %v46 = vmul.f32 %v45, 0.001953125
  %v47 = vmul.f32 %v44, %v44
  %v48 = vsub.f32 %v46, %v47
  %v49 = vmax.f32 %v48, 0.0
  %v50 = vadd.f32 %v49, 1e-05
  %v51 = vrsqrt.pop %v50
  %v52 = vld [vmem:[%s6] sm:$0x1]
  %v53 = vmul.f32 %v51, %v52
  %v54 = vld [vmem:[%s7] sm:$0x1]
  %v55 = vmul.f32 %v44, %v53
  %v56 = vsub.f32 %v54, %v55
  %v57 = vld [vmem:[%s0] sm:$0xff]
  %v58 = vld [vmem:[%s0 + $0x8] sm:$0xff]
  %v59 = vld [vmem:[%s0 + $0x10] sm:$0xff]
  %v60 = vld [vmem:[%s0 + $0x18] sm:$0xff]
  %v61 = vld [vmem:[%s0 + $0x20] sm:$0xff]
  %v62 = vld [vmem:[%s0 + $0x28] sm:$0xff]
  %v63 = vld [vmem:[%s0 + $0x30] sm:$0xff]
  %v64 = vld [vmem:[%s0 + $0x38] sm:$0xff]
  %v65 = vld [vmem:[%s0 + $0x40] sm:$0xff]
  %v66 = vld [vmem:[%s0 + $0x48] sm:$0xff]
  %v67 = vld [vmem:[%s0 + $0x50] sm:$0xff]
  %v68 = vld [vmem:[%s0 + $0x58] sm:$0xff]
  %v69 = vld [vmem:[%s0 + $0x60] sm:$0xff]
  %v70 = vld [vmem:[%s0 + $0x68] sm:$0xff]
  %v71 = vld [vmem:[%s0 + $0x70] sm:$0xff]
  %v72 = vld [vmem:[%s0 + $0x78] sm:$0xff]
  %v73 = vld [vmem:[%s0 + $0x80] sm:$0xff]
  %v74 = vld [vmem:[%s0 + $0x88] sm:$0xff]
  %v75 = vld [vmem:[%s0 + $0x90] sm:$0xff]
  %v76 = vld [vmem:[%s0 + $0x98] sm:$0xff]
  %v77 = vld [vmem:[%s0 + $0xa0] sm:$0xff]
  %v78 = vld [vmem:[%s0 + $0xa8] sm:$0xff]
  %v79 = vld [vmem:[%s0 + $0xb0] sm:$0xff]
  %v80 = vld [vmem:[%s0 + $0xb8] sm:$0xff]
  %v81 = vld [vmem:[%s0 + $0xc0] sm:$0xff]
  %v82 = vld [vmem:[%s0 + $0xc8] sm:$0xff]
  %v83 = vld [vmem:[%s0 + $0xd0] sm:$0xff]
  %v84 = vld [vmem:[%s0 + $0xd8] sm:$0xff]
  %v85 = vld [vmem:[%s0 + $0xe0] sm:$0xff]
  %v86 = vld [vmem:[%s0 + $0xe8] sm:$0xff]
  %v87 = vld [vmem:[%s0 + $0xf0] sm:$0xff]
  %v88 = vld [vmem:[%s0 + $0xf8] sm:$0xff]
  %v89 = vld [vmem:[%s0 + $0x100] sm:$0xff]
  %v90 = vld [vmem:[%s0 + $0x108] sm:$0xff]
  %v91 = vld [vmem:[%s0 + $0x110] sm:$0xff]
  %v92 = vld [vmem:[%s0 + $0x118] sm:$0xff]
  %v93 = vld [vmem:[%s0 + $0x120] sm:$0xff]
  %v94 = vld [vmem:[%s0 + $0x128] sm:$0xff]
  %v95 = vld [vmem:[%s0 + $0x130] sm:$0xff]
  %v96 = vld [vmem:[%s0 + $0x138] sm:$0xff]
  %v97 = vld [vmem:[%s0 + $0x140] sm:$0xff]
  %v98 = vld [vmem:[%s0 + $0x148] sm:$0xff]
  %v99 = vld [vmem:[%s0 + $0x150] sm:$0xff]
  %v100 = vld [vmem:[%s0 + $0x158] sm:$0xff]
  %v101 = vld [vmem:[%s0 + $0x160] sm:$0xff]
  %v102 = vld [vmem:[%s0 + $0x168] sm:$0xff]
  %v103 = vld [vmem:[%s0 + $0x170] sm:$0xff]
  %v104 = vld [vmem:[%s0 + $0x178] sm:$0xff]
  %v105 = vld [vmem:[%s0 + $0x180] sm:$0xff]
  %v106 = vld [vmem:[%s0 + $0x188] sm:$0xff]
  %v107 = vld [vmem:[%s0 + $0x190] sm:$0xff]
  %v108 = vld [vmem:[%s0 + $0x198] sm:$0xff]
  %v109 = vld [vmem:[%s0 + $0x1a0] sm:$0xff]
  %v110 = vld [vmem:[%s0 + $0x1a8] sm:$0xff]
  %v111 = vld [vmem:[%s0 + $0x1b0] sm:$0xff]
  %v112 = vld [vmem:[%s0 + $0x1b8] sm:$0xff]
  %v113 = vld [vmem:[%s0 + $0x1c0] sm:$0xff]
  %v114 = vld [vmem:[%s0 + $0x1c8] sm:$0xff]
  %v115 = vld [vmem:[%s0 + $0x1d0] sm:$0xff]
  %v116 = vld [vmem:[%s0 + $0x1d8] sm:$0xff]
  %v117 = vld [vmem:[%s0 + $0x1e0] sm:$0xff]
  %v118 = vld [vmem:[%s0 + $0x1e8] sm:$0xff]
  %v119 = vld [vmem:[%s0 + $0x1f0] sm:$0xff]
  %v120 = vld [vmem:[%s0 + $0x1f8] sm:$0xff]
  %v121 = vlaneseq
  %v122 = vshrl.u32 %v121, 7
  %v123 = vsub.s32 0, %v122
  %v124 = vrot.slane %v39, %v123
  %v125 = vmul.f32 %v57, %v124
  %v126 = vmul.f32 %v58, %v124
  %v127 = vmul.f32 %v59, %v124
  %v128 = vmul.f32 %v60, %v124
  %v129 = vmul.f32 %v61, %v124
  %v130 = vmul.f32 %v62, %v124
  %v131 = vmul.f32 %v63, %v124
  %v132 = vmul.f32 %v64, %v124
  %v133 = vmul.f32 %v65, %v124
  %v134 = vmul.f32 %v66, %v124
  %v135 = vmul.f32 %v67, %v124
  %v136 = vmul.f32 %v68, %v124
  %v137 = vmul.f32 %v69, %v124
  %v138 = vmul.f32 %v70, %v124
  %v139 = vmul.f32 %v71, %v124
  %v140 = vmul.f32 %v72, %v124
  %v141 = vmul.f32 %v73, %v124
  %v142 = vmul.f32 %v74, %v124
  %v143 = vmul.f32 %v75, %v124
  %v144 = vmul.f32 %v76, %v124
  %v145 = vmul.f32 %v77, %v124
  %v146 = vmul.f32 %v78, %v124
  %v147 = vmul.f32 %v79, %v124
  %v148 = vmul.f32 %v80, %v124
  %v149 = vmul.f32 %v81, %v124
  %v150 = vmul.f32 %v82, %v124
  %v151 = vmul.f32 %v83, %v124
  %v152 = vmul.f32 %v84, %v124
  %v153 = vmul.f32 %v85, %v124
  %v154 = vmul.f32 %v86, %v124
  %v155 = vmul.f32 %v87, %v124
  %v156 = vmul.f32 %v88, %v124
  %v157 = vmul.f32 %v89, %v124
  %v158 = vmul.f32 %v90, %v124
  %v159 = vmul.f32 %v91, %v124
  %v160 = vmul.f32 %v92, %v124
  %v161 = vmul.f32 %v93, %v124
  %v162 = vmul.f32 %v94, %v124
  %v163 = vmul.f32 %v95, %v124
  %v164 = vmul.f32 %v96, %v124
  %v165 = vmul.f32 %v97, %v124
  %v166 = vmul.f32 %v98, %v124
  %v167 = vmul.f32 %v99, %v124
  %v168 = vmul.f32 %v100, %v124
  %v169 = vmul.f32 %v101, %v124
  %v170 = vmul.f32 %v102, %v124
  %v171 = vmul.f32 %v103, %v124
  %v172 = vmul.f32 %v104, %v124
  %v173 = vmul.f32 %v105, %v124
  %v174 = vmul.f32 %v106, %v124
  %v175 = vmul.f32 %v107, %v124
  %v176 = vmul.f32 %v108, %v124
  %v177 = vmul.f32 %v109, %v124
  %v178 = vmul.f32 %v110, %v124
  %v179 = vmul.f32 %v111, %v124
  %v180 = vmul.f32 %v112, %v124
  %v181 = vmul.f32 %v113, %v124
  %v182 = vmul.f32 %v114, %v124
  %v183 = vmul.f32 %v115, %v124
  %v184 = vmul.f32 %v116, %v124
  %v185 = vmul.f32 %v117, %v124
  %v186 = vmul.f32 %v118, %v124
  %v187 = vmul.f32 %v119, %v124
  %v188 = vmul.f32 %v120, %v124
  %v190 = vlaneseq
  %v191 = vshrl.u32 %v190, 7
  %v192 = vsub.s32 0, %v191
  %v193 = vrot.slane %v42, %v192
  %v195 = vadd.f32 %v125, %v193
  %v196 = vadd.f32 %v126, %v193
  %v197 = vadd.f32 %v127, %v193
  %v198 = vadd.f32 %v128, %v193
  %v199 = vadd.f32 %v129, %v193
  %v200 = vadd.f32 %v130, %v193
  %v201 = vadd.f32 %v131, %v193
  %v202 = vadd.f32 %v132, %v193
  %v203 = vadd.f32 %v133, %v193
  %v204 = vadd.f32 %v134, %v193
  %v205 = vadd.f32 %v135, %v193
  %v206 = vadd.f32 %v136, %v193
  %v207 = vadd.f32 %v137, %v193
  %v208 = vadd.f32 %v138, %v193
  %v209 = vadd.f32 %v139, %v193
  %v210 = vadd.f32 %v140, %v193
  %v211 = vadd.f32 %v141, %v193
  %v212 = vadd.f32 %v142, %v193
  %v213 = vadd.f32 %v143, %v193
  %v214 = vadd.f32 %v144, %v193
  %v215 = vadd.f32 %v145, %v193
  %v216 = vadd.f32 %v146, %v193
  %v217 = vadd.f32 %v147, %v193
  %v218 = vadd.f32 %v148, %v193
  %v219 = vadd.f32 %v149, %v193
  %v220 = vadd.f32 %v150, %v193
  %v221 = vadd.f32 %v151, %v193
  %v222 = vadd.f32 %v152, %v193
  %v223 = vadd.f32 %v153, %v193
  %v224 = vadd.f32 %v154, %v193
  %v225 = vadd.f32 %v155, %v193
  %v226 = vadd.f32 %v156, %v193
  %v227 = vadd.f32 %v157, %v193
  %v228 = vadd.f32 %v158, %v193
  %v229 = vadd.f32 %v159, %v193
  %v230 = vadd.f32 %v160, %v193
  %v231 = vadd.f32 %v161, %v193
  %v232 = vadd.f32 %v162, %v193
  %v233 = vadd.f32 %v163, %v193
  %v234 = vadd.f32 %v164, %v193
  %v235 = vadd.f32 %v165, %v193
  %v236 = vadd.f32 %v166, %v193
  %v237 = vadd.f32 %v167, %v193
  %v238 = vadd.f32 %v168, %v193
  %v239 = vadd.f32 %v169, %v193
  %v240 = vadd.f32 %v170, %v193
  %v241 = vadd.f32 %v171, %v193
  %v242 = vadd.f32 %v172, %v193
  %v243 = vadd.f32 %v173, %v193
  %v244 = vadd.f32 %v174, %v193
  %v245 = vadd.f32 %v175, %v193
  %v246 = vadd.f32 %v176, %v193
  %v247 = vadd.f32 %v177, %v193
  %v248 = vadd.f32 %v178, %v193
  %v249 = vadd.f32 %v179, %v193
  %v250 = vadd.f32 %v180, %v193
  %v251 = vadd.f32 %v181, %v193
  %v252 = vadd.f32 %v182, %v193
  %v253 = vadd.f32 %v183, %v193
  %v254 = vadd.f32 %v184, %v193
  %v255 = vadd.f32 %v185, %v193
  %v256 = vadd.f32 %v186, %v193
  %v257 = vadd.f32 %v187, %v193
  %v258 = vadd.f32 %v188, %v193
  %v259 = vld [vmem:[%s4] sm:$0xff]
  %v260 = vld [vmem:[%s4 + $0x8] sm:$0xff]
  %v261 = vld [vmem:[%s4 + $0x10] sm:$0xff]
  %v262 = vld [vmem:[%s4 + $0x18] sm:$0xff]
  %v263 = vld [vmem:[%s4 + $0x20] sm:$0xff]
  %v264 = vld [vmem:[%s4 + $0x28] sm:$0xff]
  %v265 = vld [vmem:[%s4 + $0x30] sm:$0xff]
  %v266 = vld [vmem:[%s4 + $0x38] sm:$0xff]
  %v267 = vld [vmem:[%s4 + $0x40] sm:$0xff]
  %v268 = vld [vmem:[%s4 + $0x48] sm:$0xff]
  %v269 = vld [vmem:[%s4 + $0x50] sm:$0xff]
  %v270 = vld [vmem:[%s4 + $0x58] sm:$0xff]
  %v271 = vld [vmem:[%s4 + $0x60] sm:$0xff]
  %v272 = vld [vmem:[%s4 + $0x68] sm:$0xff]
  %v273 = vld [vmem:[%s4 + $0x70] sm:$0xff]
  %v274 = vld [vmem:[%s4 + $0x78] sm:$0xff]
  %v275 = vld [vmem:[%s4 + $0x80] sm:$0xff]
  %v276 = vld [vmem:[%s4 + $0x88] sm:$0xff]
  %v277 = vld [vmem:[%s4 + $0x90] sm:$0xff]
  %v278 = vld [vmem:[%s4 + $0x98] sm:$0xff]
  %v279 = vld [vmem:[%s4 + $0xa0] sm:$0xff]
  %v280 = vld [vmem:[%s4 + $0xa8] sm:$0xff]
  %v281 = vld [vmem:[%s4 + $0xb0] sm:$0xff]
  %v282 = vld [vmem:[%s4 + $0xb8] sm:$0xff]
  %v283 = vld [vmem:[%s4 + $0xc0] sm:$0xff]
  %v284 = vld [vmem:[%s4 + $0xc8] sm:$0xff]
  %v285 = vld [vmem:[%s4 + $0xd0] sm:$0xff]
  %v286 = vld [vmem:[%s4 + $0xd8] sm:$0xff]
  %v287 = vld [vmem:[%s4 + $0xe0] sm:$0xff]
  %v288 = vld [vmem:[%s4 + $0xe8] sm:$0xff]
  %v289 = vld [vmem:[%s4 + $0xf0] sm:$0xff]
  %v290 = vld [vmem:[%s4 + $0xf8] sm:$0xff]
  %v291 = vld [vmem:[%s4 + $0x100] sm:$0xff]
  %v292 = vld [vmem:[%s4 + $0x108] sm:$0xff]
  %v293 = vld [vmem:[%s4 + $0x110] sm:$0xff]
  %v294 = vld [vmem:[%s4 + $0x118] sm:$0xff]
  %v295 = vld [vmem:[%s4 + $0x120] sm:$0xff]
  %v296 = vld [vmem:[%s4 + $0x128] sm:$0xff]
  %v297 = vld [vmem:[%s4 + $0x130] sm:$0xff]
  %v298 = vld [vmem:[%s4 + $0x138] sm:$0xff]
  %v299 = vld [vmem:[%s4 + $0x140] sm:$0xff]
  %v300 = vld [vmem:[%s4 + $0x148] sm:$0xff]
  %v301 = vld [vmem:[%s4 + $0x150] sm:$0xff]
  %v302 = vld [vmem:[%s4 + $0x158] sm:$0xff]
  %v303 = vld [vmem:[%s4 + $0x160] sm:$0xff]
  %v304 = vld [vmem:[%s4 + $0x168] sm:$0xff]
  %v305 = vld [vmem:[%s4 + $0x170] sm:$0xff]
  %v306 = vld [vmem:[%s4 + $0x178] sm:$0xff]
  %v307 = vld [vmem:[%s4 + $0x180] sm:$0xff]
  %v308 = vld [vmem:[%s4 + $0x188] sm:$0xff]
  %v309 = vld [vmem:[%s4 + $0x190] sm:$0xff]
  %v310 = vld [vmem:[%s4 + $0x198] sm:$0xff]
  %v311 = vld [vmem:[%s4 + $0x1a0] sm:$0xff]
  %v312 = vld [vmem:[%s4 + $0x1a8] sm:$0xff]
  %v313 = vld [vmem:[%s4 + $0x1b0] sm:$0xff]
  %v314 = vld [vmem:[%s4 + $0x1b8] sm:$0xff]
  %v315 = vld [vmem:[%s4 + $0x1c0] sm:$0xff]
  %v316 = vld [vmem:[%s4 + $0x1c8] sm:$0xff]
  %v317 = vld [vmem:[%s4 + $0x1d0] sm:$0xff]
  %v318 = vld [vmem:[%s4 + $0x1d8] sm:$0xff]
  %v319 = vld [vmem:[%s4 + $0x1e0] sm:$0xff]
  %v320 = vld [vmem:[%s4 + $0x1e8] sm:$0xff]
  %v321 = vld [vmem:[%s4 + $0x1f0] sm:$0xff]
  %v322 = vld [vmem:[%s4 + $0x1f8] sm:$0xff]
  %v323 = vlaneseq
  %v324 = vshrl.u32 %v323, 7
  %v325 = vsub.s32 0, %v324
  %v326 = vrot.slane %v53, %v325
  %v327 = vmul.f32 %v259, %v326
  %v328 = vmul.f32 %v260, %v326
  %v329 = vmul.f32 %v261, %v326
  %v330 = vmul.f32 %v262, %v326
  %v331 = vmul.f32 %v263, %v326
  %v332 = vmul.f32 %v264, %v326
  %v333 = vmul.f32 %v265, %v326
  %v334 = vmul.f32 %v266, %v326
  %v335 = vmul.f32 %v267, %v326
  %v336 = vmul.f32 %v268, %v326
  %v337 = vmul.f32 %v269, %v326
  %v338 = vmul.f32 %v270, %v326
  %v339 = vmul.f32 %v271, %v326
  %v340 = vmul.f32 %v272, %v326
  %v341 = vmul.f32 %v273, %v326
  %v342 = vmul.f32 %v274, %v326
  %v343 = vmul.f32 %v275, %v326
  %v344 = vmul.f32 %v276, %v326
  %v345 = vmul.f32 %v277, %v326
  %v346 = vmul.f32 %v278, %v326
  %v347 = vmul.f32 %v279, %v326
  %v348 = vmul.f32 %v280, %v326
  %v349 = vmul.f32 %v281, %v326
  %v350 = vmul.f32 %v282, %v326
  %v351 = vmul.f32 %v283, %v326
  %v352 = vmul.f32 %v284, %v326
  %v353 = vmul.f32 %v285, %v326
  %v354 = vmul.f32 %v286, %v326
  %v355 = vmul.f32 %v287, %v326
  %v356 = vmul.f32 %v288, %v326
  %v357 = vmul.f32 %v289, %v326
  %v358 = vmul.f32 %v290, %v326
  %v359 = vmul.f32 %v291, %v326
  %v360 = vmul.f32 %v292, %v326
  %v361 = vmul.f32 %v293, %v326
  %v362 = vmul.f32 %v294, %v326
  %v363 = vmul.f32 %v295, %v326
  %v364 = vmul.f32 %v296, %v326
  %v365 = vmul.f32 %v297, %v326
  %v366 = vmul.f32 %v298, %v326
  %v367 = vmul.f32 %v299, %v326
  %v368 = vmul.f32 %v300, %v326
  %v369 = vmul.f32 %v301, %v326
  %v370 = vmul.f32 %v302, %v326
  %v371 = vmul.f32 %v303, %v326
  %v372 = vmul.f32 %v304, %v326
  %v373 = vmul.f32 %v305, %v326
  %v374 = vmul.f32 %v306, %v326
  %v375 = vmul.f32 %v307, %v326
  %v376 = vmul.f32 %v308, %v326
  %v377 = vmul.f32 %v309, %v326
  %v378 = vmul.f32 %v310, %v326
  %v379 = vmul.f32 %v311, %v326
  %v380 = vmul.f32 %v312, %v326
  %v381 = vmul.f32 %v313, %v326
  %v382 = vmul.f32 %v314, %v326
  %v383 = vmul.f32 %v315, %v326
  %v384 = vmul.f32 %v316, %v326
  %v385 = vmul.f32 %v317, %v326
  %v386 = vmul.f32 %v318, %v326
  %v387 = vmul.f32 %v319, %v326
  %v388 = vmul.f32 %v320, %v326
  %v389 = vmul.f32 %v321, %v326
  %v390 = vmul.f32 %v322, %v326
  %v392 = vlaneseq
  %v393 = vshrl.u32 %v392, 7
  %v394 = vsub.s32 0, %v393
  %v395 = vrot.slane %v56, %v394
  %v397 = vadd.f32 %v327, %v395
  %v398 = vadd.f32 %v328, %v395
  %v399 = vadd.f32 %v329, %v395
  %v400 = vadd.f32 %v330, %v395
  %v401 = vadd.f32 %v331, %v395
  %v402 = vadd.f32 %v332, %v395
  %v403 = vadd.f32 %v333, %v395
  %v404 = vadd.f32 %v334, %v395
  %v405 = vadd.f32 %v335, %v395
  %v406 = vadd.f32 %v336, %v395
  %v407 = vadd.f32 %v337, %v395
  %v408 = vadd.f32 %v338, %v395
  %v409 = vadd.f32 %v339, %v395
  %v410 = vadd.f32 %v340, %v395
  %v411 = vadd.f32 %v341, %v395
  %v412 = vadd.f32 %v342, %v395
  %v413 = vadd.f32 %v343, %v395
  %v414 = vadd.f32 %v344, %v395
  %v415 = vadd.f32 %v345, %v395
  %v416 = vadd.f32 %v346, %v395
  %v417 = vadd.f32 %v347, %v395
  %v418 = vadd.f32 %v348, %v395
  %v419 = vadd.f32 %v349, %v395
  %v420 = vadd.f32 %v350, %v395
  %v421 = vadd.f32 %v351, %v395
  %v422 = vadd.f32 %v352, %v395
  %v423 = vadd.f32 %v353, %v395
  %v424 = vadd.f32 %v354, %v395
  %v425 = vadd.f32 %v355, %v395
  %v426 = vadd.f32 %v356, %v395
  %v427 = vadd.f32 %v357, %v395
  %v428 = vadd.f32 %v358, %v395
  %v429 = vadd.f32 %v359, %v395
  %v430 = vadd.f32 %v360, %v395
  %v431 = vadd.f32 %v361, %v395
  %v432 = vadd.f32 %v362, %v395
  %v433 = vadd.f32 %v363, %v395
  %v434 = vadd.f32 %v364, %v395
  %v435 = vadd.f32 %v365, %v395
  %v436 = vadd.f32 %v366, %v395
  %v437 = vadd.f32 %v367, %v395
  %v438 = vadd.f32 %v368, %v395
  %v439 = vadd.f32 %v369, %v395
  %v440 = vadd.f32 %v370, %v395
  %v441 = vadd.f32 %v371, %v395
  %v442 = vadd.f32 %v372, %v395
  %v443 = vadd.f32 %v373, %v395
  %v444 = vadd.f32 %v374, %v395
  %v445 = vadd.f32 %v375, %v395
  %v446 = vadd.f32 %v376, %v395
  %v447 = vadd.f32 %v377, %v395
  %v448 = vadd.f32 %v378, %v395
  %v449 = vadd.f32 %v379, %v395
  %v450 = vadd.f32 %v380, %v395
  %v451 = vadd.f32 %v381, %v395
  %v452 = vadd.f32 %v382, %v395
  %v453 = vadd.f32 %v383, %v395
  %v454 = vadd.f32 %v384, %v395
  %v455 = vadd.f32 %v385, %v395
  %v456 = vadd.f32 %v386, %v395
  %v457 = vadd.f32 %v387, %v395
  %v458 = vadd.f32 %v388, %v395
  %v459 = vadd.f32 %v389, %v395
  %v460 = vadd.f32 %v390, %v395
  %v461 = vadd.f32 %v195, %v397
  %v462 = vadd.f32 %v196, %v398
  %v463 = vadd.f32 %v197, %v399
  %v464 = vadd.f32 %v198, %v400
  %v465 = vadd.f32 %v199, %v401
  %v466 = vadd.f32 %v200, %v402
  %v467 = vadd.f32 %v201, %v403
  %v468 = vadd.f32 %v202, %v404
  %v469 = vadd.f32 %v203, %v405
  %v470 = vadd.f32 %v204, %v406
  %v471 = vadd.f32 %v205, %v407
  %v472 = vadd.f32 %v206, %v408
  %v473 = vadd.f32 %v207, %v409
  %v474 = vadd.f32 %v208, %v410
  %v475 = vadd.f32 %v209, %v411
  %v476 = vadd.f32 %v210, %v412
  %v477 = vadd.f32 %v211, %v413
  %v478 = vadd.f32 %v212, %v414
  %v479 = vadd.f32 %v213, %v415
  %v480 = vadd.f32 %v214, %v416
  %v481 = vadd.f32 %v215, %v417
  %v482 = vadd.f32 %v216, %v418
  %v483 = vadd.f32 %v217, %v419
  %v484 = vadd.f32 %v218, %v420
  %v485 = vadd.f32 %v219, %v421
  %v486 = vadd.f32 %v220, %v422
  %v487 = vadd.f32 %v221, %v423
  %v488 = vadd.f32 %v222, %v424
  %v489 = vadd.f32 %v223, %v425
  %v490 = vadd.f32 %v224, %v426
  %v491 = vadd.f32 %v225, %v427
  %v492 = vadd.f32 %v226, %v428
  %v493 = vadd.f32 %v227, %v429
  %v494 = vadd.f32 %v228, %v430
  %v495 = vadd.f32 %v229, %v431
  %v496 = vadd.f32 %v230, %v432
  %v497 = vadd.f32 %v231, %v433
  %v498 = vadd.f32 %v232, %v434
  %v499 = vadd.f32 %v233, %v435
  %v500 = vadd.f32 %v234, %v436
  %v501 = vadd.f32 %v235, %v437
  %v502 = vadd.f32 %v236, %v438
  %v503 = vadd.f32 %v237, %v439
  %v504 = vadd.f32 %v238, %v440
  %v505 = vadd.f32 %v239, %v441
  %v506 = vadd.f32 %v240, %v442
  %v507 = vadd.f32 %v241, %v443
  %v508 = vadd.f32 %v242, %v444
  %v509 = vadd.f32 %v243, %v445
  %v510 = vadd.f32 %v244, %v446
  %v511 = vadd.f32 %v245, %v447
  %v512 = vadd.f32 %v246, %v448
  %v513 = vadd.f32 %v247, %v449
  %v514 = vadd.f32 %v248, %v450
  %v515 = vadd.f32 %v249, %v451
  %v516 = vadd.f32 %v250, %v452
  %v517 = vadd.f32 %v251, %v453
  %v518 = vadd.f32 %v252, %v454
  %v519 = vadd.f32 %v253, %v455
  %v520 = vadd.f32 %v254, %v456
  %v521 = vadd.f32 %v255, %v457
  %v522 = vadd.f32 %v256, %v458
  %v523 = vadd.f32 %v257, %v459
  %v524 = vadd.f32 %v258, %v460
  %v525 = vmax.f32 %v461, 0.0
  %v526 = vmax.f32 %v462, 0.0
  %v527 = vmax.f32 %v463, 0.0
  %v528 = vmax.f32 %v464, 0.0
  %v529 = vmax.f32 %v465, 0.0
  %v530 = vmax.f32 %v466, 0.0
  %v531 = vmax.f32 %v467, 0.0
  %v532 = vmax.f32 %v468, 0.0
  %v533 = vmax.f32 %v469, 0.0
  %v534 = vmax.f32 %v470, 0.0
  %v535 = vmax.f32 %v471, 0.0
  %v536 = vmax.f32 %v472, 0.0
  %v537 = vmax.f32 %v473, 0.0
  %v538 = vmax.f32 %v474, 0.0
  %v539 = vmax.f32 %v475, 0.0
  %v540 = vmax.f32 %v476, 0.0
  %v541 = vmax.f32 %v477, 0.0
  %v542 = vmax.f32 %v478, 0.0
  %v543 = vmax.f32 %v479, 0.0
  %v544 = vmax.f32 %v480, 0.0
  %v545 = vmax.f32 %v481, 0.0
  %v546 = vmax.f32 %v482, 0.0
  %v547 = vmax.f32 %v483, 0.0
  %v548 = vmax.f32 %v484, 0.0
  %v549 = vmax.f32 %v485, 0.0
  %v550 = vmax.f32 %v486, 0.0
  %v551 = vmax.f32 %v487, 0.0
  %v552 = vmax.f32 %v488, 0.0
  %v553 = vmax.f32 %v489, 0.0
  %v554 = vmax.f32 %v490, 0.0
  %v555 = vmax.f32 %v491, 0.0
  %v556 = vmax.f32 %v492, 0.0
  %v557 = vmax.f32 %v493, 0.0
  %v558 = vmax.f32 %v494, 0.0
  %v559 = vmax.f32 %v495, 0.0
  %v560 = vmax.f32 %v496, 0.0
  %v561 = vmax.f32 %v497, 0.0
  %v562 = vmax.f32 %v498, 0.0
  %v563 = vmax.f32 %v499, 0.0
  %v564 = vmax.f32 %v500, 0.0
  %v565 = vmax.f32 %v501, 0.0
  %v566 = vmax.f32 %v502, 0.0
  %v567 = vmax.f32 %v503, 0.0
  %v568 = vmax.f32 %v504, 0.0
  %v569 = vmax.f32 %v505, 0.0
  %v570 = vmax.f32 %v506, 0.0
  %v571 = vmax.f32 %v507, 0.0
  %v572 = vmax.f32 %v508, 0.0
  %v573 = vmax.f32 %v509, 0.0
  %v574 = vmax.f32 %v510, 0.0
  %v575 = vmax.f32 %v511, 0.0
  %v576 = vmax.f32 %v512, 0.0
  %v577 = vmax.f32 %v513, 0.0
  %v578 = vmax.f32 %v514, 0.0
  %v579 = vmax.f32 %v515, 0.0
  %v580 = vmax.f32 %v516, 0.0
  %v581 = vmax.f32 %v517, 0.0
  %v582 = vmax.f32 %v518, 0.0
  %v583 = vmax.f32 %v519, 0.0
  %v584 = vmax.f32 %v520, 0.0
  %v585 = vmax.f32 %v521, 0.0
  %v586 = vmax.f32 %v522, 0.0
  %v587 = vmax.f32 %v523, 0.0
  %v588 = vmax.f32 %v524, 0.0
  %589 = vst [vmem:[%s8] sm:$0xff] %v525
  %590 = vst [vmem:[%s8 + $0x8] sm:$0xff] %v526
  %591 = vst [vmem:[%s8 + $0x10] sm:$0xff] %v527
  %592 = vst [vmem:[%s8 + $0x18] sm:$0xff] %v528
  %593 = vst [vmem:[%s8 + $0x20] sm:$0xff] %v529
  %594 = vst [vmem:[%s8 + $0x28] sm:$0xff] %v530
  %595 = vst [vmem:[%s8 + $0x30] sm:$0xff] %v531
  %596 = vst [vmem:[%s8 + $0x38] sm:$0xff] %v532
  %597 = vst [vmem:[%s8 + $0x40] sm:$0xff] %v533
  %598 = vst [vmem:[%s8 + $0x48] sm:$0xff] %v534
  %599 = vst [vmem:[%s8 + $0x50] sm:$0xff] %v535
  %600 = vst [vmem:[%s8 + $0x58] sm:$0xff] %v536
  %601 = vst [vmem:[%s8 + $0x60] sm:$0xff] %v537
  %602 = vst [vmem:[%s8 + $0x68] sm:$0xff] %v538
  %603 = vst [vmem:[%s8 + $0x70] sm:$0xff] %v539
  %604 = vst [vmem:[%s8 + $0x78] sm:$0xff] %v540
  %605 = vst [vmem:[%s8 + $0x80] sm:$0xff] %v541
  %606 = vst [vmem:[%s8 + $0x88] sm:$0xff] %v542
  %607 = vst [vmem:[%s8 + $0x90] sm:$0xff] %v543
  %608 = vst [vmem:[%s8 + $0x98] sm:$0xff] %v544
  %609 = vst [vmem:[%s8 + $0xa0] sm:$0xff] %v545
  %610 = vst [vmem:[%s8 + $0xa8] sm:$0xff] %v546
  %611 = vst [vmem:[%s8 + $0xb0] sm:$0xff] %v547
  %612 = vst [vmem:[%s8 + $0xb8] sm:$0xff] %v548
  %613 = vst [vmem:[%s8 + $0xc0] sm:$0xff] %v549
  %614 = vst [vmem:[%s8 + $0xc8] sm:$0xff] %v550
  %615 = vst [vmem:[%s8 + $0xd0] sm:$0xff] %v551
  %616 = vst [vmem:[%s8 + $0xd8] sm:$0xff] %v552
  %617 = vst [vmem:[%s8 + $0xe0] sm:$0xff] %v553
  %618 = vst [vmem:[%s8 + $0xe8] sm:$0xff] %v554
  %619 = vst [vmem:[%s8 + $0xf0] sm:$0xff] %v555
  %620 = vst [vmem:[%s8 + $0xf8] sm:$0xff] %v556
  %621 = vst [vmem:[%s8 + $0x100] sm:$0xff] %v557
  %622 = vst [vmem:[%s8 + $0x108] sm:$0xff] %v558
  %623 = vst [vmem:[%s8 + $0x110] sm:$0xff] %v559
  %624 = vst [vmem:[%s8 + $0x118] sm:$0xff] %v560
  %625 = vst [vmem:[%s8 + $0x120] sm:$0xff] %v561
  %626 = vst [vmem:[%s8 + $0x128] sm:$0xff] %v562
  %627 = vst [vmem:[%s8 + $0x130] sm:$0xff] %v563
  %628 = vst [vmem:[%s8 + $0x138] sm:$0xff] %v564
  %629 = vst [vmem:[%s8 + $0x140] sm:$0xff] %v565
  %630 = vst [vmem:[%s8 + $0x148] sm:$0xff] %v566
  %631 = vst [vmem:[%s8 + $0x150] sm:$0xff] %v567
  %632 = vst [vmem:[%s8 + $0x158] sm:$0xff] %v568
  %633 = vst [vmem:[%s8 + $0x160] sm:$0xff] %v569
  %634 = vst [vmem:[%s8 + $0x168] sm:$0xff] %v570
  %635 = vst [vmem:[%s8 + $0x170] sm:$0xff] %v571
  %636 = vst [vmem:[%s8 + $0x178] sm:$0xff] %v572
  %637 = vst [vmem:[%s8 + $0x180] sm:$0xff] %v573
  %638 = vst [vmem:[%s8 + $0x188] sm:$0xff] %v574
  %639 = vst [vmem:[%s8 + $0x190] sm:$0xff] %v575
  %640 = vst [vmem:[%s8 + $0x198] sm:$0xff] %v576
  %641 = vst [vmem:[%s8 + $0x1a0] sm:$0xff] %v577
  %642 = vst [vmem:[%s8 + $0x1a8] sm:$0xff] %v578
  %643 = vst [vmem:[%s8 + $0x1b0] sm:$0xff] %v579
  %644 = vst [vmem:[%s8 + $0x1b8] sm:$0xff] %v580
  %645 = vst [vmem:[%s8 + $0x1c0] sm:$0xff] %v581
  %646 = vst [vmem:[%s8 + $0x1c8] sm:$0xff] %v582
  %647 = vst [vmem:[%s8 + $0x1d0] sm:$0xff] %v583
  %648 = vst [vmem:[%s8 + $0x1d8] sm:$0xff] %v584
  %649 = vst [vmem:[%s8 + $0x1e0] sm:$0xff] %v585
  %650 = vst [vmem:[%s8 + $0x1e8] sm:$0xff] %v586
  %651 = vst [vmem:[%s8 + $0x1f0] sm:$0xff] %v587
  %652 = vst [vmem:[%s8 + $0x1f8] sm:$0xff] %v588
  // Predicated region
  $region34: #{bottleneck_forward.7} parent=0 // pred_check
    _
  $region35: #{bottleneck_forward.7} parent=0 // pred_check_branch
    %654 = sbr.rel (0) target = $region37
  $region36: #{bottleneck_forward.7} parent=0 // pred_region
    _
  $region37: #{bottleneck_forward.7} parent=0 // pred_fallthru
    _
  // Predicated region
  $region38: #{bottleneck_forward.7} parent=0 // pred_check
    _
  $region39: #{bottleneck_forward.7} parent=0 // pred_check_branch
    %656 = sbr.rel (0) target = $region41
  $region40: #{bottleneck_forward.7} parent=0 // pred_region
    _
  $region41: #{bottleneck_forward.7} parent=0 // pred_fallthru
    _

// kernel: bottleneck_forward.6
$region0: #{bottleneck_forward.6}
  #allocation0 [shape = 'u32[]', space=smem, size = 0x4, offset = 0x4, fixed_abs, tag = 'smem constant byte address 0x4 - core index']
  #allocation1 [shape = 'u32[144,128]{1,0:T(1,128)}', space=vmem, size = 0x12000, scoped, tag = 'internal scratch']
  %s0 = inlined_call_operand.vmem [shape: f32[512,128], index: 0, kind: input, shape index: {}]
  %s1 = inlined_call_operand.vmem [shape: f32[2,128], index: 1, kind: input, shape index: {}]
  %s2 = inlined_call_operand.vmem [shape: f32[1,128], index: 2, kind: input, shape index: {}]
  %s3 = inlined_call_operand.vmem [shape: f32[1,128], index: 3, kind: input, shape index: {}]
  %s4 = inlined_call_operand.vmem [shape: f32[128,128], index: 4, kind: input, shape index: {}]
  %s5 = inlined_call_operand.vmem [shape: f32[512,128], index: 5, kind: input, shape index: {}]
  %s6 = inlined_call_operand.vmem [shape: f32[128,128], index: 6, kind: input, shape index: {}]
  %s7 = inlined_call_operand.vmem [shape: f32[512,128], index: 7, kind: output, shape index: {0}]
  %s8 = inlined_call_operand.vmem [shape: f32[512,128], index: 8, kind: output, shape index: {1}]
  %s9 = inlined_call_operand.vmem [shape: f32[2,128], index: 9, kind: output, shape index: {2}]
  %s10 = inlined_call_operand.vmem [shape: f32[2,128], index: 10, kind: output, shape index: {3}]
  %11 = xla_tuple %s7, %s8, %s9, %s10
  %s12 = sld [smem:[#allocation0]]
  $region66: #{bottleneck_forward.6} parent=0
    _
  %s14 = ssub.s32 1, %s12
  %s15 = scalar_select 0, %s14, %s12
  // Predicated region
  $region2: #{bottleneck_forward.6} parent=0 // pred_check
    _
  $region3: #{bottleneck_forward.6} parent=0 // pred_check_branch
    %17 = sbr.rel (0) target = $region5
  $region4: #{bottleneck_forward.6} parent=0 // pred_region
    _
  $region5: #{bottleneck_forward.6} parent=0 // pred_fallthru
    _
  // Predicated region
  $region6: #{bottleneck_forward.6} parent=0 // pred_check
    _
  $region7: #{bottleneck_forward.6} parent=0 // pred_check_branch
    %19 = sbr.rel (0) target = $region9
  $region8: #{bottleneck_forward.6} parent=0 // pred_region
    _
  $region9: #{bottleneck_forward.6} parent=0 // pred_fallthru
    _
  // Predicated region
  $region10: #{bottleneck_forward.6} parent=0 // pred_check
    _
  $region11: #{bottleneck_forward.6} parent=0 // pred_check_branch
    %21 = sbr.rel (0) target = $region13
  $region12: #{bottleneck_forward.6} parent=0 // pred_region
    _
  $region13: #{bottleneck_forward.6} parent=0 // pred_fallthru
    _
  // Predicated region
  $region14: #{bottleneck_forward.6} parent=0 // pred_check
    _
  $region15: #{bottleneck_forward.6} parent=0 // pred_check_branch
    %23 = sbr.rel (0) target = $region17
  $region16: #{bottleneck_forward.6} parent=0 // pred_region
    _
  $region17: #{bottleneck_forward.6} parent=0 // pred_fallthru
    _
  // Predicated region
  $region18: #{bottleneck_forward.6} parent=0 // pred_check
    _
  $region19: #{bottleneck_forward.6} parent=0 // pred_check_branch
    %25 = sbr.rel (0) target = $region21
  $region20: #{bottleneck_forward.6} parent=0 // pred_region
    _
  $region21: #{bottleneck_forward.6} parent=0 // pred_fallthru
    _
  // Predicated region
  $region22: #{bottleneck_forward.6} parent=0 // pred_check
    _
  $region23: #{bottleneck_forward.6} parent=0 // pred_check_branch
    %27 = sbr.rel (0) target = $region25
  $region24: #{bottleneck_forward.6} parent=0 // pred_region
    _
  $region25: #{bottleneck_forward.6} parent=0 // pred_fallthru
    _
  // Predicated region
  $region26: #{bottleneck_forward.6} parent=0 // pred_check
    _
  $region27: #{bottleneck_forward.6} parent=0 // pred_check_branch
    %29 = sbr.rel (0) target = $region29
  $region28: #{bottleneck_forward.6} parent=0 // pred_region
    _
  $region29: #{bottleneck_forward.6} parent=0 // pred_fallthru
    _
  %p30 = scmp.eq.s32.totalorder 0, 0
  // Predicated region
  $region30: #{bottleneck_forward.6} parent=0 // pred_check
    %p31 = pneg %p30
  $region31: #{bottleneck_forward.6} parent=0 // pred_check_branch
    %33 = sbr.rel (%p31) target = $region33
  $region32: #{bottleneck_forward.6} parent=0 // pred_region
    %34 = vst [vmem:[%s9] sm:$0x3] 0.0
    %35 = vst [vmem:[%s10] sm:$0x3] 0.0
  $region33: #{bottleneck_forward.6} parent=0 // pred_fallthru
    _
  %v36 = vld [vmem:[%s1] sm:$0x1]
  %v37 = vmul.f32 %v36, 0.001953125
  %v38 = vld [vmem:[%s1 + $0x1] sm:$0x1]
  %v39 = vmul.f32 %v38, 0.001953125
  %v40 = vmul.f32 %v37, %v37
  %v41 = vsub.f32 %v39, %v40
  %v42 = vmax.f32 %v41, 0.0
  %v43 = vadd.f32 %v42, 1e-05
  %v44 = vrsqrt.pop %v43
  %v45 = vld [vmem:[%s2] sm:$0x1]
  %v46 = vmul.f32 %v44, %v45
  %v47 = vld [vmem:[%s3] sm:$0x1]
  %v48 = vmul.f32 %v37, %v46
  %v49 = vsub.f32 %v47, %v48
  %v50 = vld [vmem:[%s0] sm:$0xff]
  %v51 = vld [vmem:[%s0 + $0x8] sm:$0xff]
  %v52 = vld [vmem:[%s0 + $0x10] sm:$0xff]
  %v53 = vld [vmem:[%s0 + $0x18] sm:$0xff]
  %v54 = vld [vmem:[%s0 + $0x20] sm:$0xff]
  %v55 = vld [vmem:[%s0 + $0x28] sm:$0xff]
  %v56 = vld [vmem:[%s0 + $0x30] sm:$0xff]
  %v57 = vld [vmem:[%s0 + $0x38] sm:$0xff]
  %v58 = vld [vmem:[%s0 + $0x40] sm:$0xff]
  %v59 = vld [vmem:[%s0 + $0x48] sm:$0xff]
  %v60 = vld [vmem:[%s0 + $0x50] sm:$0xff]
  %v61 = vld [vmem:[%s0 + $0x58] sm:$0xff]
  %v62 = vld [vmem:[%s0 + $0x60] sm:$0xff]
  %v63 = vld [vmem:[%s0 + $0x68] sm:$0xff]
  %v64 = vld [vmem:[%s0 + $0x70] sm:$0xff]
  %v65 = vld [vmem:[%s0 + $0x78] sm:$0xff]
  %v66 = vld [vmem:[%s0 + $0x80] sm:$0xff]
  %v67 = vld [vmem:[%s0 + $0x88] sm:$0xff]
  %v68 = vld [vmem:[%s0 + $0x90] sm:$0xff]
  %v69 = vld [vmem:[%s0 + $0x98] sm:$0xff]
  %v70 = vld [vmem:[%s0 + $0xa0] sm:$0xff]
  %v71 = vld [vmem:[%s0 + $0xa8] sm:$0xff]
  %v72 = vld [vmem:[%s0 + $0xb0] sm:$0xff]
  %v73 = vld [vmem:[%s0 + $0xb8] sm:$0xff]
  %v74 = vld [vmem:[%s0 + $0xc0] sm:$0xff]
  %v75 = vld [vmem:[%s0 + $0xc8] sm:$0xff]
  %v76 = vld [vmem:[%s0 + $0xd0] sm:$0xff]
  %v77 = vld [vmem:[%s0 + $0xd8] sm:$0xff]
  %v78 = vld [vmem:[%s0 + $0xe0] sm:$0xff]
  %v79 = vld [vmem:[%s0 + $0xe8] sm:$0xff]
  %v80 = vld [vmem:[%s0 + $0xf0] sm:$0xff]
  %v81 = vld [vmem:[%s0 + $0xf8] sm:$0xff]
  %v82 = vld [vmem:[%s0 + $0x100] sm:$0xff]
  %v83 = vld [vmem:[%s0 + $0x108] sm:$0xff]
  %v84 = vld [vmem:[%s0 + $0x110] sm:$0xff]
  %v85 = vld [vmem:[%s0 + $0x118] sm:$0xff]
  %v86 = vld [vmem:[%s0 + $0x120] sm:$0xff]
  %v87 = vld [vmem:[%s0 + $0x128] sm:$0xff]
  %v88 = vld [vmem:[%s0 + $0x130] sm:$0xff]
  %v89 = vld [vmem:[%s0 + $0x138] sm:$0xff]
  %v90 = vld [vmem:[%s0 + $0x140] sm:$0xff]
  %v91 = vld [vmem:[%s0 + $0x148] sm:$0xff]
  %v92 = vld [vmem:[%s0 + $0x150] sm:$0xff]
  %v93 = vld [vmem:[%s0 + $0x158] sm:$0xff]
  %v94 = vld [vmem:[%s0 + $0x160] sm:$0xff]
  %v95 = vld [vmem:[%s0 + $0x168] sm:$0xff]
  %v96 = vld [vmem:[%s0 + $0x170] sm:$0xff]
  %v97 = vld [vmem:[%s0 + $0x178] sm:$0xff]
  %v98 = vld [vmem:[%s0 + $0x180] sm:$0xff]
  %v99 = vld [vmem:[%s0 + $0x188] sm:$0xff]
  %v100 = vld [vmem:[%s0 + $0x190] sm:$0xff]
  %v101 = vld [vmem:[%s0 + $0x198] sm:$0xff]
  %v102 = vld [vmem:[%s0 + $0x1a0] sm:$0xff]
  %v103 = vld [vmem:[%s0 + $0x1a8] sm:$0xff]
  %v104 = vld [vmem:[%s0 + $0x1b0] sm:$0xff]
  %v105 = vld [vmem:[%s0 + $0x1b8] sm:$0xff]
  %v106 = vld [vmem:[%s0 + $0x1c0] sm:$0xff]
  %v107 = vld [vmem:[%s0 + $0x1c8] sm:$0xff]
  %v108 = vld [vmem:[%s0 + $0x1d0] sm:$0xff]
  %v109 = vld [vmem:[%s0 + $0x1d8] sm:$0xff]
  %v110 = vld [vmem:[%s0 + $0x1e0] sm:$0xff]
  %v111 = vld [vmem:[%s0 + $0x1e8] sm:$0xff]
  %v112 = vld [vmem:[%s0 + $0x1f0] sm:$0xff]
  %v113 = vld [vmem:[%s0 + $0x1f8] sm:$0xff]
  %v114 = vlaneseq
  %v115 = vshrl.u32 %v114, 7
  %v116 = vsub.s32 0, %v115
  %v117 = vrot.slane %v46, %v116
  %v118 = vmul.f32 %v50, %v117
  %v119 = vmul.f32 %v51, %v117
  %v120 = vmul.f32 %v52, %v117
  %v121 = vmul.f32 %v53, %v117
  %v122 = vmul.f32 %v54, %v117
  %v123 = vmul.f32 %v55, %v117
  %v124 = vmul.f32 %v56, %v117
  %v125 = vmul.f32 %v57, %v117
  %v126 = vmul.f32 %v58, %v117
  %v127 = vmul.f32 %v59, %v117
  %v128 = vmul.f32 %v60, %v117
  %v129 = vmul.f32 %v61, %v117
  %v130 = vmul.f32 %v62, %v117
  %v131 = vmul.f32 %v63, %v117
  %v132 = vmul.f32 %v64, %v117
  %v133 = vmul.f32 %v65, %v117
  %v134 = vmul.f32 %v66, %v117
  %v135 = vmul.f32 %v67, %v117
  %v136 = vmul.f32 %v68, %v117
  %v137 = vmul.f32 %v69, %v117
  %v138 = vmul.f32 %v70, %v117
  %v139 = vmul.f32 %v71, %v117
  %v140 = vmul.f32 %v72, %v117
  %v141 = vmul.f32 %v73, %v117
  %v142 = vmul.f32 %v74, %v117
  %v143 = vmul.f32 %v75, %v117
  %v144 = vmul.f32 %v76, %v117
  %v145 = vmul.f32 %v77, %v117
  %v146 = vmul.f32 %v78, %v117
  %v147 = vmul.f32 %v79, %v117
  %v148 = vmul.f32 %v80, %v117
  %v149 = vmul.f32 %v81, %v117
  %v150 = vmul.f32 %v82, %v117
  %v151 = vmul.f32 %v83, %v117
  %v152 = vmul.f32 %v84, %v117
  %v153 = vmul.f32 %v85, %v117
  %v154 = vmul.f32 %v86, %v117
  %v155 = vmul.f32 %v87, %v117
  %v156 = vmul.f32 %v88, %v117
  %v157 = vmul.f32 %v89, %v117
  %v158 = vmul.f32 %v90, %v117
  %v159 = vmul.f32 %v91, %v117
  %v160 = vmul.f32 %v92, %v117
  %v161 = vmul.f32 %v93, %v117
  %v162 = vmul.f32 %v94, %v117
  %v163 = vmul.f32 %v95, %v117
  %v164 = vmul.f32 %v96, %v117
  %v165 = vmul.f32 %v97, %v117
  %v166 = vmul.f32 %v98, %v117
  %v167 = vmul.f32 %v99, %v117
  %v168 = vmul.f32 %v100, %v117
  %v169 = vmul.f32 %v101, %v117
  %v170 = vmul.f32 %v102, %v117
  %v171 = vmul.f32 %v103, %v117
  %v172 = vmul.f32 %v104, %v117
  %v173 = vmul.f32 %v105, %v117
  %v174 = vmul.f32 %v106, %v117
  %v175 = vmul.f32 %v107, %v117
  %v176 = vmul.f32 %v108, %v117
  %v177 = vmul.f32 %v109, %v117
  %v178 = vmul.f32 %v110, %v117
  %v179 = vmul.f32 %v111, %v117
  %v180 = vmul.f32 %v112, %v117
  %v181 = vmul.f32 %v113, %v117
  %v183 = vlaneseq
  %v184 = vshrl.u32 %v183, 7
  %v185 = vsub.s32 0, %v184
  %v186 = vrot.slane %v49, %v185
  %v188 = vadd.f32 %v118, %v186
  %v189 = vadd.f32 %v119, %v186
  %v190 = vadd.f32 %v120, %v186
  %v191 = vadd.f32 %v121, %v186
  %v192 = vadd.f32 %v122, %v186
  %v193 = vadd.f32 %v123, %v186
  %v194 = vadd.f32 %v124, %v186
  %v195 = vadd.f32 %v125, %v186
  %v196 = vadd.f32 %v126, %v186
  %v197 = vadd.f32 %v127, %v186
  %v198 = vadd.f32 %v128, %v186
  %v199 = vadd.f32 %v129, %v186
  %v200 = vadd.f32 %v130, %v186
  %v201 = vadd.f32 %v131, %v186
  %v202 = vadd.f32 %v132, %v186
  %v203 = vadd.f32 %v133, %v186
  %v204 = vadd.f32 %v134, %v186
  %v205 = vadd.f32 %v135, %v186
  %v206 = vadd.f32 %v136, %v186
  %v207 = vadd.f32 %v137, %v186
  %v208 = vadd.f32 %v138, %v186
  %v209 = vadd.f32 %v139, %v186
  %v210 = vadd.f32 %v140, %v186
  %v211 = vadd.f32 %v141, %v186
  %v212 = vadd.f32 %v142, %v186
  %v213 = vadd.f32 %v143, %v186
  %v214 = vadd.f32 %v144, %v186
  %v215 = vadd.f32 %v145, %v186
  %v216 = vadd.f32 %v146, %v186
  %v217 = vadd.f32 %v147, %v186
  %v218 = vadd.f32 %v148, %v186
  %v219 = vadd.f32 %v149, %v186
  %v220 = vadd.f32 %v150, %v186
  %v221 = vadd.f32 %v151, %v186
  %v222 = vadd.f32 %v152, %v186
  %v223 = vadd.f32 %v153, %v186
  %v224 = vadd.f32 %v154, %v186
  %v225 = vadd.f32 %v155, %v186
  %v226 = vadd.f32 %v156, %v186
  %v227 = vadd.f32 %v157, %v186
  %v228 = vadd.f32 %v158, %v186
  %v229 = vadd.f32 %v159, %v186
  %v230 = vadd.f32 %v160, %v186
  %v231 = vadd.f32 %v161, %v186
  %v232 = vadd.f32 %v162, %v186
  %v233 = vadd.f32 %v163, %v186
  %v234 = vadd.f32 %v164, %v186
  %v235 = vadd.f32 %v165, %v186
  %v236 = vadd.f32 %v166, %v186
  %v237 = vadd.f32 %v167, %v186
  %v238 = vadd.f32 %v168, %v186
  %v239 = vadd.f32 %v169, %v186
  %v240 = vadd.f32 %v170, %v186
  %v241 = vadd.f32 %v171, %v186
  %v242 = vadd.f32 %v172, %v186
  %v243 = vadd.f32 %v173, %v186
  %v244 = vadd.f32 %v174, %v186
  %v245 = vadd.f32 %v175, %v186
  %v246 = vadd.f32 %v176, %v186
  %v247 = vadd.f32 %v177, %v186
  %v248 = vadd.f32 %v178, %v186
  %v249 = vadd.f32 %v179, %v186
  %v250 = vadd.f32 %v180, %v186
  %v251 = vadd.f32 %v181, %v186
  %v252 = vmax.f32 %v188, 0.0
  %v253 = vmax.f32 %v189, 0.0
  %v254 = vmax.f32 %v190, 0.0
  %v255 = vmax.f32 %v191, 0.0
  %v256 = vmax.f32 %v192, 0.0
  %v257 = vmax.f32 %v193, 0.0
  %v258 = vmax.f32 %v194, 0.0
  %v259 = vmax.f32 %v195, 0.0
  %v260 = vmax.f32 %v196, 0.0
  %v261 = vmax.f32 %v197, 0.0
  %v262 = vmax.f32 %v198, 0.0
  %v263 = vmax.f32 %v199, 0.0
  %v264 = vmax.f32 %v200, 0.0
  %v265 = vmax.f32 %v201, 0.0
  %v266 = vmax.f32 %v202, 0.0
  %v267 = vmax.f32 %v203, 0.0
  %v268 = vmax.f32 %v204, 0.0
  %v269 = vmax.f32 %v205, 0.0
  %v270 = vmax.f32 %v206, 0.0
  %v271 = vmax.f32 %v207, 0.0
  %v272 = vmax.f32 %v208, 0.0
  %v273 = vmax.f32 %v209, 0.0
  %v274 = vmax.f32 %v210, 0.0
  %v275 = vmax.f32 %v211, 0.0
  %v276 = vmax.f32 %v212, 0.0
  %v277 = vmax.f32 %v213, 0.0
  %v278 = vmax.f32 %v214, 0.0
  %v279 = vmax.f32 %v215, 0.0
  %v280 = vmax.f32 %v216, 0.0
  %v281 = vmax.f32 %v217, 0.0
  %v282 = vmax.f32 %v218, 0.0
  %v283 = vmax.f32 %v219, 0.0
  %v284 = vmax.f32 %v220, 0.0
  %v285 = vmax.f32 %v221, 0.0
  %v286 = vmax.f32 %v222, 0.0
  %v287 = vmax.f32 %v223, 0.0
  %v288 = vmax.f32 %v224, 0.0
  %v289 = vmax.f32 %v225, 0.0
  %v290 = vmax.f32 %v226, 0.0
  %v291 = vmax.f32 %v227, 0.0
  %v292 = vmax.f32 %v228, 0.0
  %v293 = vmax.f32 %v229, 0.0
  %v294 = vmax.f32 %v230, 0.0
  %v295 = vmax.f32 %v231, 0.0
  %v296 = vmax.f32 %v232, 0.0
  %v297 = vmax.f32 %v233, 0.0
  %v298 = vmax.f32 %v234, 0.0
  %v299 = vmax.f32 %v235, 0.0
  %v300 = vmax.f32 %v236, 0.0
  %v301 = vmax.f32 %v237, 0.0
  %v302 = vmax.f32 %v238, 0.0
  %v303 = vmax.f32 %v239, 0.0
  %v304 = vmax.f32 %v240, 0.0
  %v305 = vmax.f32 %v241, 0.0
  %v306 = vmax.f32 %v242, 0.0
  %v307 = vmax.f32 %v243, 0.0
  %v308 = vmax.f32 %v244, 0.0
  %v309 = vmax.f32 %v245, 0.0
  %v310 = vmax.f32 %v246, 0.0
  %v311 = vmax.f32 %v247, 0.0
  %v312 = vmax.f32 %v248, 0.0
  %v313 = vmax.f32 %v249, 0.0
  %v314 = vmax.f32 %v250, 0.0
  %v315 = vmax.f32 %v251, 0.0
  %v316 = vld [vmem:[%s4] sm:$0xff]
  %v317 = vld [vmem:[%s4 + $0x8] sm:$0xff]
  %v318 = vld [vmem:[%s4 + $0x10] sm:$0xff]
  %v319 = vld [vmem:[%s4 + $0x18] sm:$0xff]
  %v320 = vld [vmem:[%s4 + $0x20] sm:$0xff]
  %v321 = vld [vmem:[%s4 + $0x28] sm:$0xff]
  %v322 = vld [vmem:[%s4 + $0x30] sm:$0xff]
  %v323 = vld [vmem:[%s4 + $0x38] sm:$0xff]
  %v324 = vld [vmem:[%s4 + $0x40] sm:$0xff]
  %v325 = vld [vmem:[%s4 + $0x48] sm:$0xff]
  %v326 = vld [vmem:[%s4 + $0x50] sm:$0xff]
  %v327 = vld [vmem:[%s4 + $0x58] sm:$0xff]
  %v328 = vld [vmem:[%s4 + $0x60] sm:$0xff]
  %v329 = vld [vmem:[%s4 + $0x68] sm:$0xff]
  %v330 = vld [vmem:[%s4 + $0x70] sm:$0xff]
  %v331 = vld [vmem:[%s4 + $0x78] sm:$0xff]
  %332 = vmatprep.subr.mxu0 0.0
  %333 = vmatpush1.msra.mxu0 %v331
  %334 = vmatprep.subr.mxu0 0.0
  %335 = vmatpush1.msra.mxu0 %v330
  %336 = vmatprep.subr.mxu0 0.0
  %337 = vmatpush1.msra.mxu0 %v329
  %338 = vmatprep.subr.mxu0 0.0
  %339 = vmatpush1.msra.mxu0 %v328
  %340 = vmatprep.subr.mxu0 0.0
  %341 = vmatpush1.msra.mxu0 %v327
  %342 = vmatprep.subr.mxu0 0.0
  %343 = vmatpush1.msra.mxu0 %v326
  %344 = vmatprep.subr.mxu0 0.0
  %345 = vmatpush1.msra.mxu0 %v325
  %346 = vmatprep.subr.mxu0 0.0
  %347 = vmatpush1.msra.mxu0 %v324
  %348 = vmatprep.subr.mxu0 0.0
  %349 = vmatpush1.msra.mxu0 %v323
  %350 = vmatprep.subr.mxu0 0.0
  %351 = vmatpush1.msra.mxu0 %v322
  %352 = vmatprep.subr.mxu0 0.0
  %353 = vmatpush1.msra.mxu0 %v321
  %354 = vmatprep.subr.mxu0 0.0
  %355 = vmatpush1.msra.mxu0 %v320
  %356 = vmatprep.subr.mxu0 0.0
  %357 = vmatpush1.msra.mxu0 %v319
  %358 = vmatprep.subr.mxu0 0.0
  %359 = vmatpush1.msra.mxu0 %v318
  %360 = vmatprep.subr.mxu0 0.0
  %361 = vmatpush1.msra.mxu0 %v317
  %362 = vmatprep.subr.mxu0 0.0
  %363 = vmatpush1.msra.mxu0 %v316
  %364 = vmatprep.subr.mxu0 0.0
  %365 = vmatpush2.msra.mxu0 0.0
  %366 = vmatprep.subr.mxu0 0.0
  %367 = vmatpush2.msra.mxu0 0.0
  %368 = vmatprep.subr.mxu0 0.0
  %369 = vmatpush2.msra.mxu0 0.0
  %370 = vmatprep.subr.mxu0 0.0
  %371 = vmatpush2.msra.mxu0 0.0
  %372 = vmatprep.subr.mxu0 0.0
  %373 = vmatpush2.msra.mxu0 0.0
  %374 = vmatprep.subr.mxu0 0.0
  %375 = vmatpush2.msra.mxu0 0.0
  %376 = vmatprep.subr.mxu0 0.0
  %377 = vmatpush2.msra.mxu0 0.0
  %378 = vmatprep.subr.mxu0 0.0
  %379 = vmatpush2.msra.mxu0 0.0
  %380 = vmatprep.subr.mxu0 0.0
  %381 = vmatpush2.msra.mxu0 0.0
  %382 = vmatprep.subr.mxu0 0.0
  %383 = vmatpush2.msra.mxu0 0.0
  %384 = vmatprep.subr.mxu0 0.0
  %385 = vmatpush2.msra.mxu0 0.0
  %386 = vmatprep.subr.mxu0 0.0
  %387 = vmatpush2.msra.mxu0 0.0
  %388 = vmatprep.subr.mxu0 0.0
  %389 = vmatpush2.msra.mxu0 0.0
  %390 = vmatprep.subr.mxu0 0.0
  %391 = vmatpush2.msra.mxu0 0.0
  %392 = vmatprep.subr.mxu0 0.0
  %393 = vmatpush2.msra.mxu0 0.0
  %394 = vmatprep.subr.mxu0 0.0
  %395 = vmatpush2.msra.mxu0 0.0
  %396 = vmatprep.mubr.f32.mxu0 0.0
  %397 = vmatmul.mubr.f32.gmra.mxu0 %v252
  %v398 = vpop.f32.mrf.mxu0
  %v399 = vadd.f32 0.0, %v398
  %v400 = vpop.f32.mrf.mxu0
  %401 = vmatprep.mubr.f32.mxu0 0.0
  %402 = vmatmul.mubr.f32.gmra.mxu0 %v253
  %v403 = vpop.f32.mrf.mxu0
  %v404 = vadd.f32 0.0, %v403
  %v405 = vpop.f32.mrf.mxu0
  %406 = vmatprep.mubr.f32.mxu0 0.0
  %407 = vmatmul.mubr.f32.gmra.mxu0 %v254
  %v408 = vpop.f32.mrf.mxu0
  %v409 = vadd.f32 0.0, %v408
  %v410 = vpop.f32.mrf.mxu0
  %411 = vmatprep.mubr.f32.mxu0 0.0
  %412 = vmatmul.mubr.f32.gmra.mxu0 %v255
  %v413 = vpop.f32.mrf.mxu0
  %v414 = vadd.f32 0.0, %v413
  %v415 = vpop.f32.mrf.mxu0
  %416 = vmatprep.mubr.f32.mxu0 0.0
  %417 = vmatmul.mubr.f32.gmra.mxu0 %v256
  %v418 = vpop.f32.mrf.mxu0
  %v419 = vadd.f32 0.0, %v418
  %v420 = vpop.f32.mrf.mxu0
  %421 = vmatprep.mubr.f32.mxu0 0.0
  %422 = vmatmul.mubr.f32.gmra.mxu0 %v257
  %v423 = vpop.f32.mrf.mxu0
  %v424 = vadd.f32 0.0, %v423
  %v425 = vpop.f32.mrf.mxu0
  %426 = vmatprep.mubr.f32.mxu0 0.0
  %427 = vmatmul.mubr.f32.gmra.mxu0 %v258
  %v428 = vpop.f32.mrf.mxu0
  %v429 = vadd.f32 0.0, %v428
  %v430 = vpop.f32.mrf.mxu0
  %431 = vmatprep.mubr.f32.mxu0 0.0
  %432 = vmatmul.mubr.f32.gmra.mxu0 %v259
  %v433 = vpop.f32.mrf.mxu0
  %v434 = vadd.f32 0.0, %v433
  %v435 = vpop.f32.mrf.mxu0
  %436 = vmatprep.mubr.f32.mxu0 0.0
  %437 = vmatmul.mubr.f32.gmra.mxu0 %v260
  %v438 = vpop.f32.mrf.mxu0
  %v439 = vadd.f32 0.0, %v438
  %v440 = vpop.f32.mrf.mxu0
  %441 = vmatprep.mubr.f32.mxu0 0.0
  %442 = vmatmul.mubr.f32.gmra.mxu0 %v261
  %v443 = vpop.f32.mrf.mxu0
  %v444 = vadd.f32 0.0, %v443
  %v445 = vpop.f32.mrf.mxu0
  %446 = vmatprep.mubr.f32.mxu0 0.0
  %447 = vmatmul.mubr.f32.gmra.mxu0 %v262
  %v448 = vpop.f32.mrf.mxu0
  %v449 = vadd.f32 0.0, %v448
  %v450 = vpop.f32.mrf.mxu0
  %451 = vmatprep.mubr.f32.mxu0 0.0
  %452 = vmatmul.mubr.f32.gmra.mxu0 %v263
  %v453 = vpop.f32.mrf.mxu0
  %v454 = vadd.f32 0.0, %v453
  %v455 = vpop.f32.mrf.mxu0
  %456 = vmatprep.mubr.f32.mxu0 0.0
  %457 = vmatmul.mubr.f32.gmra.mxu0 %v264
  %v458 = vpop.f32.mrf.mxu0
  %v459 = vadd.f32 0.0, %v458
  %v460 = vpop.f32.mrf.mxu0
  %461 = vmatprep.mubr.f32.mxu0 0.0
  %462 = vmatmul.mubr.f32.gmra.mxu0 %v265
  %v463 = vpop.f32.mrf.mxu0
  %v464 = vadd.f32 0.0, %v463
  %v465 = vpop.f32.mrf.mxu0
  %466 = vmatprep.mubr.f32.mxu0 0.0
  %467 = vmatmul.mubr.f32.gmra.mxu0 %v266
  %v468 = vpop.f32.mrf.mxu0
  %v469 = vadd.f32 0.0, %v468
  %v470 = vpop.f32.mrf.mxu0
  %471 = vmatprep.mubr.f32.mxu0 0.0
  %472 = vmatmul.mubr.f32.gmra.mxu0 %v267
  %v473 = vpop.f32.mrf.mxu0
  %v474 = vadd.f32 0.0, %v473
  %v475 = vpop.f32.mrf.mxu0
  %476 = vmatprep.mubr.f32.mxu0 0.0
  %477 = vmatmul.mubr.f32.gmra.mxu0 %v268
  %v478 = vpop.f32.mrf.mxu0
  %v479 = vadd.f32 0.0, %v478
  %v480 = vpop.f32.mrf.mxu0
  %481 = vmatprep.mubr.f32.mxu0 0.0
  %482 = vmatmul.mubr.f32.gmra.mxu0 %v269
  %v483 = vpop.f32.mrf.mxu0
  %v484 = vadd.f32 0.0, %v483
  %v485 = vpop.f32.mrf.mxu0
  %486 = vmatprep.mubr.f32.mxu0 0.0
  %487 = vmatmul.mubr.f32.gmra.mxu0 %v270
  %v488 = vpop.f32.mrf.mxu0
  %v489 = vadd.f32 0.0, %v488
  %v490 = vpop.f32.mrf.mxu0
  %491 = vmatprep.mubr.f32.mxu0 0.0
  %492 = vmatmul.mubr.f32.gmra.mxu0 %v271
  %v493 = vpop.f32.mrf.mxu0
  %v494 = vadd.f32 0.0, %v493
  %v495 = vpop.f32.mrf.mxu0
  %496 = vmatprep.mubr.f32.mxu0 0.0
  %497 = vmatmul.mubr.f32.gmra.mxu0 %v272
  %v498 = vpop.f32.mrf.mxu0
  %v499 = vadd.f32 0.0, %v498
  %v500 = vpop.f32.mrf.mxu0
  %501 = vmatprep.mubr.f32.mxu0 0.0
  %502 = vmatmul.mubr.f32.gmra.mxu0 %v273
  %v503 = vpop.f32.mrf.mxu0
  %v504 = vadd.f32 0.0, %v503
  %v505 = vpop.f32.mrf.mxu0
  %506 = vmatprep.mubr.f32.mxu0 0.0
  %507 = vmatmul.mubr.f32.gmra.mxu0 %v274
  %v508 = vpop.f32.mrf.mxu0
  %v509 = vadd.f32 0.0, %v508
  %v510 = vpop.f32.mrf.mxu0
  %511 = vmatprep.mubr.f32.mxu0 0.0
  %512 = vmatmul.mubr.f32.gmra.mxu0 %v275
  %v513 = vpop.f32.mrf.mxu0
  %v514 = vadd.f32 0.0, %v513
  %v515 = vpop.f32.mrf.mxu0
  %516 = vmatprep.mubr.f32.mxu0 0.0
  %517 = vmatmul.mubr.f32.gmra.mxu0 %v276
  %v518 = vpop.f32.mrf.mxu0
  %v519 = vadd.f32 0.0, %v518
  %v520 = vpop.f32.mrf.mxu0
  %521 = vmatprep.mubr.f32.mxu0 0.0
  %522 = vmatmul.mubr.f32.gmra.mxu0 %v277
  %v523 = vpop.f32.mrf.mxu0
  %v524 = vadd.f32 0.0, %v523
  %v525 = vpop.f32.mrf.mxu0
  %526 = vmatprep.mubr.f32.mxu0 0.0
  %527 = vmatmul.mubr.f32.gmra.mxu0 %v278
  %v528 = vpop.f32.mrf.mxu0
  %v529 = vadd.f32 0.0, %v528
  %v530 = vpop.f32.mrf.mxu0
  %531 = vmatprep.mubr.f32.mxu0 0.0
  %532 = vmatmul.mubr.f32.gmra.mxu0 %v279
  %v533 = vpop.f32.mrf.mxu0
  %v534 = vadd.f32 0.0, %v533
  %v535 = vpop.f32.mrf.mxu0
  %536 = vmatprep.mubr.f32.mxu0 0.0
  %537 = vmatmul.mubr.f32.gmra.mxu0 %v280
  %v538 = vpop.f32.mrf.mxu0
  %v539 = vadd.f32 0.0, %v538
  %v540 = vpop.f32.mrf.mxu0
  %541 = vmatprep.mubr.f32.mxu0 0.0
  %542 = vmatmul.mubr.f32.gmra.mxu0 %v281
  %v543 = vpop.f32.mrf.mxu0
  %v544 = vadd.f32 0.0, %v543
  %v545 = vpop.f32.mrf.mxu0
  %546 = vmatprep.mubr.f32.mxu0 0.0
  %547 = vmatmul.mubr.f32.gmra.mxu0 %v282
  %v548 = vpop.f32.mrf.mxu0
  %v549 = vadd.f32 0.0, %v548
  %v550 = vpop.f32.mrf.mxu0
  %551 = vmatprep.mubr.f32.mxu0 0.0
  %552 = vmatmul.mubr.f32.gmra.mxu0 %v283
  %v553 = vpop.f32.mrf.mxu0
  %v554 = vadd.f32 0.0, %v553
  %v555 = vpop.f32.mrf.mxu0
  %556 = vmatprep.mubr.f32.mxu0 0.0
  %557 = vmatmul.mubr.f32.gmra.mxu0 %v284
  %v558 = vpop.f32.mrf.mxu0
  %v559 = vadd.f32 0.0, %v558
  %v560 = vpop.f32.mrf.mxu0
  %561 = vmatprep.mubr.f32.mxu0 0.0
  %562 = vmatmul.mubr.f32.gmra.mxu0 %v285
  %v563 = vpop.f32.mrf.mxu0
  %v564 = vadd.f32 0.0, %v563
  %v565 = vpop.f32.mrf.mxu0
  %566 = vmatprep.mubr.f32.mxu0 0.0
  %567 = vmatmul.mubr.f32.gmra.mxu0 %v286
  %v568 = vpop.f32.mrf.mxu0
  %v569 = vadd.f32 0.0, %v568
  %v570 = vpop.f32.mrf.mxu0
  %571 = vmatprep.mubr.f32.mxu0 0.0
  %572 = vmatmul.mubr.f32.gmra.mxu0 %v287
  %v573 = vpop.f32.mrf.mxu0
  %v574 = vadd.f32 0.0, %v573
  %v575 = vpop.f32.mrf.mxu0
  %576 = vmatprep.mubr.f32.mxu0 0.0
  %577 = vmatmul.mubr.f32.gmra.mxu0 %v288
  %v578 = vpop.f32.mrf.mxu0
  %v579 = vadd.f32 0.0, %v578
  %v580 = vpop.f32.mrf.mxu0
  %581 = vmatprep.mubr.f32.mxu0 0.0
  %582 = vmatmul.mubr.f32.gmra.mxu0 %v289
  %v583 = vpop.f32.mrf.mxu0
  %v584 = vadd.f32 0.0, %v583
  %v585 = vpop.f32.mrf.mxu0
  %586 = vmatprep.mubr.f32.mxu0 0.0
  %587 = vmatmul.mubr.f32.gmra.mxu0 %v290
  %v588 = vpop.f32.mrf.mxu0
  %v589 = vadd.f32 0.0, %v588
  %v590 = vpop.f32.mrf.mxu0
  %591 = vmatprep.mubr.f32.mxu0 0.0
  %592 = vmatmul.mubr.f32.gmra.mxu0 %v291
  %v593 = vpop.f32.mrf.mxu0
  %v594 = vadd.f32 0.0, %v593
  %v595 = vpop.f32.mrf.mxu0
  %596 = vmatprep.mubr.f32.mxu0 0.0
  %597 = vmatmul.mubr.f32.gmra.mxu0 %v292
  %v598 = vpop.f32.mrf.mxu0
  %v599 = vadd.f32 0.0, %v598
  %v600 = vpop.f32.mrf.mxu0
  %601 = vmatprep.mubr.f32.mxu0 0.0
  %602 = vmatmul.mubr.f32.gmra.mxu0 %v293
  %v603 = vpop.f32.mrf.mxu0
  %v604 = vadd.f32 0.0, %v603
  %v605 = vpop.f32.mrf.mxu0
  %606 = vmatprep.mubr.f32.mxu0 0.0
  %607 = vmatmul.mubr.f32.gmra.mxu0 %v294
  %v608 = vpop.f32.mrf.mxu0
  %v609 = vadd.f32 0.0, %v608
  %v610 = vpop.f32.mrf.mxu0
  %611 = vmatprep.mubr.f32.mxu0 0.0
  %612 = vmatmul.mubr.f32.gmra.mxu0 %v295
  %v613 = vpop.f32.mrf.mxu0
  %v614 = vadd.f32 0.0, %v613
  %v615 = vpop.f32.mrf.mxu0
  %616 = vmatprep.mubr.f32.mxu0 0.0
  %617 = vmatmul.mubr.f32.gmra.mxu0 %v296
  %v618 = vpop.f32.mrf.mxu0
  %v619 = vadd.f32 0.0, %v618
  %v620 = vpop.f32.mrf.mxu0
  %621 = vmatprep.mubr.f32.mxu0 0.0
  %622 = vmatmul.mubr.f32.gmra.mxu0 %v297
  %v623 = vpop.f32.mrf.mxu0
  %v624 = vadd.f32 0.0, %v623
  %v625 = vpop.f32.mrf.mxu0
  %626 = vmatprep.mubr.f32.mxu0 0.0
  %627 = vmatmul.mubr.f32.gmra.mxu0 %v298
  %v628 = vpop.f32.mrf.mxu0
  %v629 = vadd.f32 0.0, %v628
  %v630 = vpop.f32.mrf.mxu0
  %631 = vmatprep.mubr.f32.mxu0 0.0
  %632 = vmatmul.mubr.f32.gmra.mxu0 %v299
  %v633 = vpop.f32.mrf.mxu0
  %v634 = vadd.f32 0.0, %v633
  %v635 = vpop.f32.mrf.mxu0
  %636 = vmatprep.mubr.f32.mxu0 0.0
  %637 = vmatmul.mubr.f32.gmra.mxu0 %v300
  %v638 = vpop.f32.mrf.mxu0
  %v639 = vadd.f32 0.0, %v638
  %v640 = vpop.f32.mrf.mxu0
  %641 = vmatprep.mubr.f32.mxu0 0.0
  %642 = vmatmul.mubr.f32.gmra.mxu0 %v301
  %v643 = vpop.f32.mrf.mxu0
  %v644 = vadd.f32 0.0, %v643
  %v645 = vpop.f32.mrf.mxu0
  %646 = vmatprep.mubr.f32.mxu0 0.0
  %647 = vmatmul.mubr.f32.gmra.mxu0 %v302
  %v648 = vpop.f32.mrf.mxu0
  %v649 = vadd.f32 0.0, %v648
  %v650 = vpop.f32.mrf.mxu0
  %651 = vmatprep.mubr.f32.mxu0 0.0
  %652 = vmatmul.mubr.f32.gmra.mxu0 %v303
  %v653 = vpop.f32.mrf.mxu0
  %v654 = vadd.f32 0.0, %v653
  %v655 = vpop.f32.mrf.mxu0
  %656 = vmatprep.mubr.f32.mxu0 0.0
  %657 = vmatmul.mubr.f32.gmra.mxu0 %v304
  %v658 = vpop.f32.mrf.mxu0
  %v659 = vadd.f32 0.0, %v658
  %v660 = vpop.f32.mrf.mxu0
  %661 = vmatprep.mubr.f32.mxu0 0.0
  %662 = vmatmul.mubr.f32.gmra.mxu0 %v305
  %v663 = vpop.f32.mrf.mxu0
  %v664 = vadd.f32 0.0, %v663
  %v665 = vpop.f32.mrf.mxu0
  %666 = vmatprep.mubr.f32.mxu0 0.0
  %667 = vmatmul.mubr.f32.gmra.mxu0 %v306
  %v668 = vpop.f32.mrf.mxu0
  %v669 = vadd.f32 0.0, %v668
  %v670 = vpop.f32.mrf.mxu0
  %671 = vmatprep.mubr.f32.mxu0 0.0
  %672 = vmatmul.mubr.f32.gmra.mxu0 %v307
  %v673 = vpop.f32.mrf.mxu0
  %v674 = vadd.f32 0.0, %v673
  %v675 = vpop.f32.mrf.mxu0
  %676 = vmatprep.mubr.f32.mxu0 0.0
  %677 = vmatmul.mubr.f32.gmra.mxu0 %v308
  %v678 = vpop.f32.mrf.mxu0
  %v679 = vadd.f32 0.0, %v678
  %v680 = vpop.f32.mrf.mxu0
  %681 = vmatprep.mubr.f32.mxu0 0.0
  %682 = vmatmul.mubr.f32.gmra.mxu0 %v309
  %v683 = vpop.f32.mrf.mxu0
  %v684 = vadd.f32 0.0, %v683
  %v685 = vpop.f32.mrf.mxu0
  %686 = vmatprep.mubr.f32.mxu0 0.0
  %687 = vmatmul.mubr.f32.gmra.mxu0 %v310
  %v688 = vpop.f32.mrf.mxu0
  %v689 = vadd.f32 0.0, %v688
  %v690 = vpop.f32.mrf.mxu0
  %691 = vmatprep.mubr.f32.mxu0 0.0
  %692 = vmatmul.mubr.f32.gmra.mxu0 %v311
  %v693 = vpop.f32.mrf.mxu0
  %v694 = vadd.f32 0.0, %v693
  %v695 = vpop.f32.mrf.mxu0
  %696 = vmatprep.mubr.f32.mxu0 0.0
  %697 = vmatmul.mubr.f32.gmra.mxu0 %v312
  %v698 = vpop.f32.mrf.mxu0
  %v699 = vadd.f32 0.0, %v698
  %v700 = vpop.f32.mrf.mxu0
  %701 = vmatprep.mubr.f32.mxu0 0.0
  %702 = vmatmul.mubr.f32.gmra.mxu0 %v313
  %v703 = vpop.f32.mrf.mxu0
  %v704 = vadd.f32 0.0, %v703
  %v705 = vpop.f32.mrf.mxu0
  %706 = vmatprep.mubr.f32.mxu0 0.0
  %707 = vmatmul.mubr.f32.gmra.mxu0 %v314
  %v708 = vpop.f32.mrf.mxu0
  %v709 = vadd.f32 0.0, %v708
  %v710 = vpop.f32.mrf.mxu0
  %711 = vmatprep.mubr.f32.mxu0 0.0
  %712 = vmatmul.mubr.f32.gmra.mxu0 %v315
  %v713 = vpop.f32.mrf.mxu0
  %v714 = vadd.f32 0.0, %v713
  %v715 = vpop.f32.mrf.mxu0
  %716 = vdwg.mxu0
  %v717 = vld [vmem:[%s5] sm:$0xff]
  %v718 = vld [vmem:[%s5 + $0x8] sm:$0xff]
  %v719 = vld [vmem:[%s5 + $0x10] sm:$0xff]
  %v720 = vld [vmem:[%s5 + $0x18] sm:$0xff]
  %v721 = vld [vmem:[%s5 + $0x20] sm:$0xff]
  %v722 = vld [vmem:[%s5 + $0x28] sm:$0xff]
  %v723 = vld [vmem:[%s5 + $0x30] sm:$0xff]
  %v724 = vld [vmem:[%s5 + $0x38] sm:$0xff]
  %v725 = vld [vmem:[%s5 + $0x40] sm:$0xff]
  %v726 = vld [vmem:[%s5 + $0x48] sm:$0xff]
  %v727 = vld [vmem:[%s5 + $0x50] sm:$0xff]
  %v728 = vld [vmem:[%s5 + $0x58] sm:$0xff]
  %v729 = vld [vmem:[%s5 + $0x60] sm:$0xff]
  %v730 = vld [vmem:[%s5 + $0x68] sm:$0xff]
  %v731 = vld [vmem:[%s5 + $0x70] sm:$0xff]
  %v732 = vld [vmem:[%s5 + $0x78] sm:$0xff]
  %v733 = vld [vmem:[%s5 + $0x80] sm:$0xff]
  %v734 = vld [vmem:[%s5 + $0x88] sm:$0xff]
  %v735 = vld [vmem:[%s5 + $0x90] sm:$0xff]
  %v736 = vld [vmem:[%s5 + $0x98] sm:$0xff]
  %v737 = vld [vmem:[%s5 + $0xa0] sm:$0xff]
  %v738 = vld [vmem:[%s5 + $0xa8] sm:$0xff]
  %v739 = vld [vmem:[%s5 + $0xb0] sm:$0xff]
  %v740 = vld [vmem:[%s5 + $0xb8] sm:$0xff]
  %v741 = vld [vmem:[%s5 + $0xc0] sm:$0xff]
  %v742 = vld [vmem:[%s5 + $0xc8] sm:$0xff]
  %v743 = vld [vmem:[%s5 + $0xd0] sm:$0xff]
  %v744 = vld [vmem:[%s5 + $0xd8] sm:$0xff]
  %v745 = vld [vmem:[%s5 + $0xe0] sm:$0xff]
  %v746 = vld [vmem:[%s5 + $0xe8] sm:$0xff]
  %v747 = vld [vmem:[%s5 + $0xf0] sm:$0xff]
  %v748 = vld [vmem:[%s5 + $0xf8] sm:$0xff]
  %v749 = vld [vmem:[%s5 + $0x100] sm:$0xff]
  %v750 = vld [vmem:[%s5 + $0x108] sm:$0xff]
  %v751 = vld [vmem:[%s5 + $0x110] sm:$0xff]
  %v752 = vld [vmem:[%s5 + $0x118] sm:$0xff]
  %v753 = vld [vmem:[%s5 + $0x120] sm:$0xff]
  %v754 = vld [vmem:[%s5 + $0x128] sm:$0xff]
  %v755 = vld [vmem:[%s5 + $0x130] sm:$0xff]
  %v756 = vld [vmem:[%s5 + $0x138] sm:$0xff]
  %v757 = vld [vmem:[%s5 + $0x140] sm:$0xff]
  %v758 = vld [vmem:[%s5 + $0x148] sm:$0xff]
  %v759 = vld [vmem:[%s5 + $0x150] sm:$0xff]
  %v760 = vld [vmem:[%s5 + $0x158] sm:$0xff]
  %v761 = vld [vmem:[%s5 + $0x160] sm:$0xff]
  %v762 = vld [vmem:[%s5 + $0x168] sm:$0xff]
  %v763 = vld [vmem:[%s5 + $0x170] sm:$0xff]
  %v764 = vld [vmem:[%s5 + $0x178] sm:$0xff]
  %v765 = vld [vmem:[%s5 + $0x180] sm:$0xff]
  %v766 = vld [vmem:[%s5 + $0x188] sm:$0xff]
  %v767 = vld [vmem:[%s5 + $0x190] sm:$0xff]
  %v768 = vld [vmem:[%s5 + $0x198] sm:$0xff]
  %v769 = vld [vmem:[%s5 + $0x1a0] sm:$0xff]
  %v770 = vld [vmem:[%s5 + $0x1a8] sm:$0xff]
  %v771 = vld [vmem:[%s5 + $0x1b0] sm:$0xff]
  %v772 = vld [vmem:[%s5 + $0x1b8] sm:$0xff]
  %v773 = vld [vmem:[%s5 + $0x1c0] sm:$0xff]
  %v774 = vld [vmem:[%s5 + $0x1c8] sm:$0xff]
  %v775 = vld [vmem:[%s5 + $0x1d0] sm:$0xff]
  %v776 = vld [vmem:[%s5 + $0x1d8] sm:$0xff]
  %v777 = vld [vmem:[%s5 + $0x1e0] sm:$0xff]
  %v778 = vld [vmem:[%s5 + $0x1e8] sm:$0xff]
  %v779 = vld [vmem:[%s5 + $0x1f0] sm:$0xff]
  %v780 = vld [vmem:[%s5 + $0x1f8] sm:$0xff]
  %v781 = vld [vmem:[%s6] sm:$0xff]
  %v782 = vld [vmem:[%s6 + $0x8] sm:$0xff]
  %v783 = vld [vmem:[%s6 + $0x10] sm:$0xff]
  %v784 = vld [vmem:[%s6 + $0x18] sm:$0xff]
  %v785 = vld [vmem:[%s6 + $0x20] sm:$0xff]
  %v786 = vld [vmem:[%s6 + $0x28] sm:$0xff]
  %v787 = vld [vmem:[%s6 + $0x30] sm:$0xff]
  %v788 = vld [vmem:[%s6 + $0x38] sm:$0xff]
  %v789 = vld [vmem:[%s6 + $0x40] sm:$0xff]
  %v790 = vld [vmem:[%s6 + $0x48] sm:$0xff]
  %v791 = vld [vmem:[%s6 + $0x50] sm:$0xff]
  %v792 = vld [vmem:[%s6 + $0x58] sm:$0xff]
  %v793 = vld [vmem:[%s6 + $0x60] sm:$0xff]
  %v794 = vld [vmem:[%s6 + $0x68] sm:$0xff]
  %v795 = vld [vmem:[%s6 + $0x70] sm:$0xff]
  %v796 = vld [vmem:[%s6 + $0x78] sm:$0xff]
  %797 = vmatprep.subr.mxu0 0.0
  %798 = vmatpush1.msra.mxu0 %v796
  %799 = vmatprep.subr.mxu0 0.0
  %800 = vmatpush1.msra.mxu0 %v795
  %801 = vmatprep.subr.mxu0 0.0
  %802 = vmatpush1.msra.mxu0 %v794
  %803 = vmatprep.subr.mxu0 0.0
  %804 = vmatpush1.msra.mxu0 %v793
  %805 = vmatprep.subr.mxu0 0.0
  %806 = vmatpush1.msra.mxu0 %v792
  %807 = vmatprep.subr.mxu0 0.0
  %808 = vmatpush1.msra.mxu0 %v791
  %809 = vmatprep.subr.mxu0 0.0
  %810 = vmatpush1.msra.mxu0 %v790
  %811 = vmatprep.subr.mxu0 0.0
  %812 = vmatpush1.msra.mxu0 %v789
  %813 = vmatprep.subr.mxu0 0.0
  %814 = vmatpush1.msra.mxu0 %v788
  %815 = vmatprep.subr.mxu0 0.0
  %816 = vmatpush1.msra.mxu0 %v787
  %817 = vmatprep.subr.mxu0 0.0
  %818 = vmatpush1.msra.mxu0 %v786
  %819 = vmatprep.subr.mxu0 0.0
  %820 = vmatpush1.msra.mxu0 %v785
  %821 = vmatprep.subr.mxu0 0.0
  %822 = vmatpush1.msra.mxu0 %v784
  %823 = vmatprep.subr.mxu0 0.0
  %824 = vmatpush1.msra.mxu0 %v783
  %825 = vmatprep.subr.mxu0 0.0
  %826 = vmatpush1.msra.mxu0 %v782
  %827 = vmatprep.subr.mxu0 0.0
  %828 = vmatpush1.msra.mxu0 %v781
  %829 = vmatprep.subr.mxu0 0.0
  %830 = vmatpush2.msra.mxu0 0.0
  %831 = vmatprep.subr.mxu0 0.0
  %832 = vmatpush2.msra.mxu0 0.0
  %833 = vmatprep.subr.mxu0 0.0
  %834 = vmatpush2.msra.mxu0 0.0
  %835 = vmatprep.subr.mxu0 0.0
  %836 = vmatpush2.msra.mxu0 0.0
  %837 = vmatprep.subr.mxu0 0.0
  %838 = vmatpush2.msra.mxu0 0.0
  %839 = vmatprep.subr.mxu0 0.0
  %840 = vmatpush2.msra.mxu0 0.0
  %841 = vmatprep.subr.mxu0 0.0
  %842 = vmatpush2.msra.mxu0 0.0
  %843 = vmatprep.subr.mxu0 0.0
  %844 = vmatpush2.msra.mxu0 0.0
  %845 = vmatprep.subr.mxu0 0.0
  %846 = vmatpush2.msra.mxu0 0.0
  %847 = vmatprep.subr.mxu0 0.0
  %848 = vmatpush2.msra.mxu0 0.0
  %849 = vmatprep.subr.mxu0 0.0
  %850 = vmatpush2.msra.mxu0 0.0
  %851 = vmatprep.subr.mxu0 0.0
  %852 = vmatpush2.msra.mxu0 0.0
  %853 = vmatprep.subr.mxu0 0.0
  %854 = vmatpush2.msra.mxu0 0.0
  %855 = vmatprep.subr.mxu0 0.0
  %856 = vmatpush2.msra.mxu0 0.0
  %857 = vmatprep.subr.mxu0 0.0
  %858 = vmatpush2.msra.mxu0 0.0
  %859 = vmatprep.subr.mxu0 0.0
  %860 = vmatpush2.msra.mxu0 0.0
  %861 = vmatprep.mubr.f32.mxu0 0.0
  %862 = vmatmul.mubr.f32.gmra.mxu0 %v717
  %v863 = vpop.f32.mrf.mxu0
  %v864 = vadd.f32 0.0, %v863
  %v865 = vpop.f32.mrf.mxu0
  %866 = vmatprep.mubr.f32.mxu0 0.0
  %867 = vmatmul.mubr.f32.gmra.mxu0 %v718
  %v868 = vpop.f32.mrf.mxu0
  %v869 = vadd.f32 0.0, %v868
  %v870 = vpop.f32.mrf.mxu0
  %871 = vmatprep.mubr.f32.mxu0 0.0
  %872 = vmatmul.mubr.f32.gmra.mxu0 %v719
  %v873 = vpop.f32.mrf.mxu0
  %v874 = vadd.f32 0.0, %v873
  %v875 = vpop.f32.mrf.mxu0
  %876 = vmatprep.mubr.f32.mxu0 0.0
  %877 = vmatmul.mubr.f32.gmra.mxu0 %v720
  %v878 = vpop.f32.mrf.mxu0
  %v879 = vadd.f32 0.0, %v878
  %v880 = vpop.f32.mrf.mxu0
  %881 = vmatprep.mubr.f32.mxu0 0.0
  %882 = vmatmul.mubr.f32.gmra.mxu0 %v721
  %v883 = vpop.f32.mrf.mxu0
  %v884 = vadd.f32 0.0, %v883
  %v885 = vpop.f32.mrf.mxu0
  %886 = vmatprep.mubr.f32.mxu0 0.0
  %887 = vmatmul.mubr.f32.gmra.mxu0 %v722
  %v888 = vpop.f32.mrf.mxu0
  %v889 = vadd.f32 0.0, %v888
  %v890 = vpop.f32.mrf.mxu0
  %891 = vmatprep.mubr.f32.mxu0 0.0
  %892 = vmatmul.mubr.f32.gmra.mxu0 %v723
  %v893 = vpop.f32.mrf.mxu0
  %v894 = vadd.f32 0.0, %v893
  %v895 = vpop.f32.mrf.mxu0
  %896 = vmatprep.mubr.f32.mxu0 0.0
  %897 = vmatmul.mubr.f32.gmra.mxu0 %v724
  %v898 = vpop.f32.mrf.mxu0
  %v899 = vadd.f32 0.0, %v898
  %v900 = vpop.f32.mrf.mxu0
  %901 = vmatprep.mubr.f32.mxu0 0.0
  %902 = vmatmul.mubr.f32.gmra.mxu0 %v725
  %v903 = vpop.f32.mrf.mxu0
  %v904 = vadd.f32 0.0, %v903
  %v905 = vpop.f32.mrf.mxu0
  %906 = vmatprep.mubr.f32.mxu0 0.0
  %907 = vmatmul.mubr.f32.gmra.mxu0 %v726
  %v908 = vpop.f32.mrf.mxu0
  %v909 = vadd.f32 0.0, %v908
  %v910 = vpop.f32.mrf.mxu0
  %911 = vmatprep.mubr.f32.mxu0 0.0
  %912 = vmatmul.mubr.f32.gmra.mxu0 %v727
  %v913 = vpop.f32.mrf.mxu0
  %v914 = vadd.f32 0.0, %v913
  %v915 = vpop.f32.mrf.mxu0
  %916 = vmatprep.mubr.f32.mxu0 0.0
  %917 = vmatmul.mubr.f32.gmra.mxu0 %v728
  %v918 = vpop.f32.mrf.mxu0
  %v919 = vadd.f32 0.0, %v918
  %v920 = vpop.f32.mrf.mxu0
  %921 = vmatprep.mubr.f32.mxu0 0.0
  %922 = vmatmul.mubr.f32.gmra.mxu0 %v729
  %v923 = vpop.f32.mrf.mxu0
  %v924 = vadd.f32 0.0, %v923
  %v925 = vpop.f32.mrf.mxu0
  %926 = vmatprep.mubr.f32.mxu0 0.0
  %927 = vmatmul.mubr.f32.gmra.mxu0 %v730
  %v928 = vpop.f32.mrf.mxu0
  %v929 = vadd.f32 0.0, %v928
  %v930 = vpop.f32.mrf.mxu0
  %931 = vmatprep.mubr.f32.mxu0 0.0
  %932 = vmatmul.mubr.f32.gmra.mxu0 %v731
  %v933 = vpop.f32.mrf.mxu0
  %v934 = vadd.f32 0.0, %v933
  %v935 = vpop.f32.mrf.mxu0
  %936 = vmatprep.mubr.f32.mxu0 0.0
  %937 = vmatmul.mubr.f32.gmra.mxu0 %v732
  %v938 = vpop.f32.mrf.mxu0
  %v939 = vadd.f32 0.0, %v938
  %v940 = vpop.f32.mrf.mxu0
  %941 = vmatprep.mubr.f32.mxu0 0.0
  %942 = vmatmul.mubr.f32.gmra.mxu0 %v733
  %v943 = vpop.f32.mrf.mxu0
  %v944 = vadd.f32 0.0, %v943
  %v945 = vpop.f32.mrf.mxu0
  %946 = vmatprep.mubr.f32.mxu0 0.0
  %947 = vmatmul.mubr.f32.gmra.mxu0 %v734
  %v948 = vpop.f32.mrf.mxu0
  %v949 = vadd.f32 0.0, %v948
  %v950 = vpop.f32.mrf.mxu0
  %951 = vmatprep.mubr.f32.mxu0 0.0
  %952 = vmatmul.mubr.f32.gmra.mxu0 %v735
  %v953 = vpop.f32.mrf.mxu0
  %v954 = vadd.f32 0.0, %v953
  %v955 = vpop.f32.mrf.mxu0
  %956 = vmatprep.mubr.f32.mxu0 0.0
  %957 = vmatmul.mubr.f32.gmra.mxu0 %v736
  %v958 = vpop.f32.mrf.mxu0
  %v959 = vadd.f32 0.0, %v958
  %v960 = vpop.f32.mrf.mxu0
  %961 = vmatprep.mubr.f32.mxu0 0.0
  %962 = vmatmul.mubr.f32.gmra.mxu0 %v737
  %v963 = vpop.f32.mrf.mxu0
  %v964 = vadd.f32 0.0, %v963
  %v965 = vpop.f32.mrf.mxu0
  %966 = vmatprep.mubr.f32.mxu0 0.0
  %967 = vmatmul.mubr.f32.gmra.mxu0 %v738
  %v968 = vpop.f32.mrf.mxu0
  %v969 = vadd.f32 0.0, %v968
  %v970 = vpop.f32.mrf.mxu0
  %971 = vmatprep.mubr.f32.mxu0 0.0
  %972 = vmatmul.mubr.f32.gmra.mxu0 %v739
  %v973 = vpop.f32.mrf.mxu0
  %v974 = vadd.f32 0.0, %v973
  %v975 = vpop.f32.mrf.mxu0
  %976 = vmatprep.mubr.f32.mxu0 0.0
  %977 = vmatmul.mubr.f32.gmra.mxu0 %v740
  %v978 = vpop.f32.mrf.mxu0
  %v979 = vadd.f32 0.0, %v978
  %v980 = vpop.f32.mrf.mxu0
  %981 = vmatprep.mubr.f32.mxu0 0.0
  %982 = vmatmul.mubr.f32.gmra.mxu0 %v741
  %v983 = vpop.f32.mrf.mxu0
  %v984 = vadd.f32 0.0, %v983
  %v985 = vpop.f32.mrf.mxu0
  %986 = vmatprep.mubr.f32.mxu0 0.0
  %987 = vmatmul.mubr.f32.gmra.mxu0 %v742
  %v988 = vpop.f32.mrf.mxu0
  %v989 = vadd.f32 0.0, %v988
  %v990 = vpop.f32.mrf.mxu0
  %991 = vmatprep.mubr.f32.mxu0 0.0
  %992 = vmatmul.mubr.f32.gmra.mxu0 %v743
  %v993 = vpop.f32.mrf.mxu0
  %v994 = vadd.f32 0.0, %v993
  %v995 = vpop.f32.mrf.mxu0
  %996 = vmatprep.mubr.f32.mxu0 0.0
  %997 = vmatmul.mubr.f32.gmra.mxu0 %v744
  %v998 = vpop.f32.mrf.mxu0
  %v999 = vadd.f32 0.0, %v998
  %v1000 = vpop.f32.mrf.mxu0
  %1001 = vmatprep.mubr.f32.mxu0 0.0
  %1002 = vmatmul.mubr.f32.gmra.mxu0 %v745
  %v1003 = vpop.f32.mrf.mxu0
  %v1004 = vadd.f32 0.0, %v1003
  %v1005 = vpop.f32.mrf.mxu0
  %1006 = vmatprep.mubr.f32.mxu0 0.0
  %1007 = vmatmul.mubr.f32.gmra.mxu0 %v746
  %v1008 = vpop.f32.mrf.mxu0
  %v1009 = vadd.f32 0.0, %v1008
  %v1010 = vpop.f32.mrf.mxu0
  %1011 = vmatprep.mubr.f32.mxu0 0.0
  %1012 = vmatmul.mubr.f32.gmra.mxu0 %v747
  %v1013 = vpop.f32.mrf.mxu0
  %v1014 = vadd.f32 0.0, %v1013
  %v1015 = vpop.f32.mrf.mxu0
  %1016 = vmatprep.mubr.f32.mxu0 0.0
  %1017 = vmatmul.mubr.f32.gmra.mxu0 %v748
  %v1018 = vpop.f32.mrf.mxu0
  %v1019 = vadd.f32 0.0, %v1018
  %v1020 = vpop.f32.mrf.mxu0
  %1021 = vmatprep.mubr.f32.mxu0 0.0
  %1022 = vmatmul.mubr.f32.gmra.mxu0 %v749
  %v1023 = vpop.f32.mrf.mxu0
  %v1024 = vadd.f32 0.0, %v1023
  %v1025 = vpop.f32.mrf.mxu0
  %1026 = vmatprep.mubr.f32.mxu0 0.0
  %1027 = vmatmul.mubr.f32.gmra.mxu0 %v750
  %v1028 = vpop.f32.mrf.mxu0
  %v1029 = vadd.f32 0.0, %v1028
  %v1030 = vpop.f32.mrf.mxu0
  %1031 = vmatprep.mubr.f32.mxu0 0.0
  %1032 = vmatmul.mubr.f32.gmra.mxu0 %v751
  %v1033 = vpop.f32.mrf.mxu0
  %v1034 = vadd.f32 0.0, %v1033
  %v1035 = vpop.f32.mrf.mxu0
  %1036 = vmatprep.mubr.f32.mxu0 0.0
  %1037 = vmatmul.mubr.f32.gmra.mxu0 %v752
  %v1038 = vpop.f32.mrf.mxu0
  %v1039 = vadd.f32 0.0, %v1038
  %v1040 = vpop.f32.mrf.mxu0
  %1041 = vmatprep.mubr.f32.mxu0 0.0
  %1042 = vmatmul.mubr.f32.gmra.mxu0 %v753
  %v1043 = vpop.f32.mrf.mxu0
  %v1044 = vadd.f32 0.0, %v1043
  %v1045 = vpop.f32.mrf.mxu0
  %1046 = vmatprep.mubr.f32.mxu0 0.0
  %1047 = vmatmul.mubr.f32.gmra.mxu0 %v754
  %v1048 = vpop.f32.mrf.mxu0
  %v1049 = vadd.f32 0.0, %v1048
  %v1050 = vpop.f32.mrf.mxu0
  %1051 = vmatprep.mubr.f32.mxu0 0.0
  %1052 = vmatmul.mubr.f32.gmra.mxu0 %v755
  %v1053 = vpop.f32.mrf.mxu0
  %v1054 = vadd.f32 0.0, %v1053
  %v1055 = vpop.f32.mrf.mxu0
  %1056 = vmatprep.mubr.f32.mxu0 0.0
  %1057 = vmatmul.mubr.f32.gmra.mxu0 %v756
  %v1058 = vpop.f32.mrf.mxu0
  %v1059 = vadd.f32 0.0, %v1058
  %v1060 = vpop.f32.mrf.mxu0
  %1061 = vmatprep.mubr.f32.mxu0 0.0
  %1062 = vmatmul.mubr.f32.gmra.mxu0 %v757
  %v1063 = vpop.f32.mrf.mxu0
  %v1064 = vadd.f32 0.0, %v1063
  %v1065 = vpop.f32.mrf.mxu0
  %1066 = vmatprep.mubr.f32.mxu0 0.0
  %1067 = vmatmul.mubr.f32.gmra.mxu0 %v758
  %v1068 = vpop.f32.mrf.mxu0
  %v1069 = vadd.f32 0.0, %v1068
  %v1070 = vpop.f32.mrf.mxu0
  %1071 = vmatprep.mubr.f32.mxu0 0.0
  %1072 = vmatmul.mubr.f32.gmra.mxu0 %v759
  %v1073 = vpop.f32.mrf.mxu0
  %v1074 = vadd.f32 0.0, %v1073
  %v1075 = vpop.f32.mrf.mxu0
  %1076 = vmatprep.mubr.f32.mxu0 0.0
  %1077 = vmatmul.mubr.f32.gmra.mxu0 %v760
  %v1078 = vpop.f32.mrf.mxu0
  %v1079 = vadd.f32 0.0, %v1078
  %v1080 = vpop.f32.mrf.mxu0
  %1081 = vmatprep.mubr.f32.mxu0 0.0
  %1082 = vmatmul.mubr.f32.gmra.mxu0 %v761
  %v1083 = vpop.f32.mrf.mxu0
  %v1084 = vadd.f32 0.0, %v1083
  %v1085 = vpop.f32.mrf.mxu0
  %1086 = vmatprep.mubr.f32.mxu0 0.0
  %1087 = vmatmul.mubr.f32.gmra.mxu0 %v762
  %v1088 = vpop.f32.mrf.mxu0
  %v1089 = vadd.f32 0.0, %v1088
  %v1090 = vpop.f32.mrf.mxu0
  %1091 = vmatprep.mubr.f32.mxu0 0.0
  %1092 = vmatmul.mubr.f32.gmra.mxu0 %v763
  %v1093 = vpop.f32.mrf.mxu0
  %v1094 = vadd.f32 0.0, %v1093
  %v1095 = vpop.f32.mrf.mxu0
  %1096 = vmatprep.mubr.f32.mxu0 0.0
  %1097 = vmatmul.mubr.f32.gmra.mxu0 %v764
  %v1098 = vpop.f32.mrf.mxu0
  %v1099 = vadd.f32 0.0, %v1098
  %v1100 = vpop.f32.mrf.mxu0
  %1101 = vmatprep.mubr.f32.mxu0 0.0
  %1102 = vmatmul.mubr.f32.gmra.mxu0 %v765
  %v1103 = vpop.f32.mrf.mxu0
  %v1104 = vadd.f32 0.0, %v1103
  %v1105 = vpop.f32.mrf.mxu0
  %1106 = vmatprep.mubr.f32.mxu0 0.0
  %1107 = vmatmul.mubr.f32.gmra.mxu0 %v766
  %v1108 = vpop.f32.mrf.mxu0
  %v1109 = vadd.f32 0.0, %v1108
  %v1110 = vpop.f32.mrf.mxu0
  %1111 = vmatprep.mubr.f32.mxu0 0.0
  %1112 = vmatmul.mubr.f32.gmra.mxu0 %v767
  %v1113 = vpop.f32.mrf.mxu0
  %v1114 = vadd.f32 0.0, %v1113
  %v1115 = vpop.f32.mrf.mxu0
  %1116 = vmatprep.mubr.f32.mxu0 0.0
  %1117 = vmatmul.mubr.f32.gmra.mxu0 %v768
  %v1118 = vpop.f32.mrf.mxu0
  %v1119 = vadd.f32 0.0, %v1118
  %v1120 = vpop.f32.mrf.mxu0
  %1121 = vmatprep.mubr.f32.mxu0 0.0
  %1122 = vmatmul.mubr.f32.gmra.mxu0 %v769
  %v1123 = vpop.f32.mrf.mxu0
  %v1124 = vadd.f32 0.0, %v1123
  %v1125 = vpop.f32.mrf.mxu0
  %1126 = vmatprep.mubr.f32.mxu0 0.0
  %1127 = vmatmul.mubr.f32.gmra.mxu0 %v770
  %v1128 = vpop.f32.mrf.mxu0
  %v1129 = vadd.f32 0.0, %v1128
  %v1130 = vpop.f32.mrf.mxu0
  %1131 = vmatprep.mubr.f32.mxu0 0.0
  %1132 = vmatmul.mubr.f32.gmra.mxu0 %v771
  %v1133 = vpop.f32.mrf.mxu0
  %v1134 = vadd.f32 0.0, %v1133
  %v1135 = vpop.f32.mrf.mxu0
  %1136 = vmatprep.mubr.f32.mxu0 0.0
  %1137 = vmatmul.mubr.f32.gmra.mxu0 %v772
  %v1138 = vpop.f32.mrf.mxu0
  %v1139 = vadd.f32 0.0, %v1138
  %v1140 = vpop.f32.mrf.mxu0
  %1141 = vmatprep.mubr.f32.mxu0 0.0
  %1142 = vmatmul.mubr.f32.gmra.mxu0 %v773
  %v1143 = vpop.f32.mrf.mxu0
  %v1144 = vadd.f32 0.0, %v1143
  %v1145 = vpop.f32.mrf.mxu0
  %1146 = vmatprep.mubr.f32.mxu0 0.0
  %1147 = vmatmul.mubr.f32.gmra.mxu0 %v774
  %v1148 = vpop.f32.mrf.mxu0
  %v1149 = vadd.f32 0.0, %v1148
  %v1150 = vpop.f32.mrf.mxu0
  %1151 = vmatprep.mubr.f32.mxu0 0.0
  %1152 = vmatmul.mubr.f32.gmra.mxu0 %v775
  %v1153 = vpop.f32.mrf.mxu0
  %v1154 = vadd.f32 0.0, %v1153
  %v1155 = vpop.f32.mrf.mxu0
  %1156 = vmatprep.mubr.f32.mxu0 0.0
  %1157 = vmatmul.mubr.f32.gmra.mxu0 %v776
  %v1158 = vpop.f32.mrf.mxu0
  %v1159 = vadd.f32 0.0, %v1158
  %v1160 = vpop.f32.mrf.mxu0
  %1161 = vmatprep.mubr.f32.mxu0 0.0
  %1162 = vmatmul.mubr.f32.gmra.mxu0 %v777
  %v1163 = vpop.f32.mrf.mxu0
  %v1164 = vadd.f32 0.0, %v1163
  %v1165 = vpop.f32.mrf.mxu0
  %1166 = vmatprep.mubr.f32.mxu0 0.0
  %1167 = vmatmul.mubr.f32.gmra.mxu0 %v778
  %v1168 = vpop.f32.mrf.mxu0
  %v1169 = vadd.f32 0.0, %v1168
  %v1170 = vpop.f32.mrf.mxu0
  %1171 = vmatprep.mubr.f32.mxu0 0.0
  %1172 = vmatmul.mubr.f32.gmra.mxu0 %v779
  %v1173 = vpop.f32.mrf.mxu0
  %v1174 = vadd.f32 0.0, %v1173
  %v1175 = vpop.f32.mrf.mxu0
  %1176 = vmatprep.mubr.f32.mxu0 0.0
  %1177 = vmatmul.mubr.f32.gmra.mxu0 %v780
  %v1178 = vpop.f32.mrf.mxu0
  %v1179 = vadd.f32 0.0, %v1178
  %v1180 = vpop.f32.mrf.mxu0
  %1181 = vdwg.mxu0
  %1182 = vst [vmem:[%s7] sm:$0xff] %v399
  %1183 = vst [vmem:[%s7 + $0x8] sm:$0xff] %v404
  %1184 = vst [vmem:[%s7 + $0x10] sm:$0xff] %v409
  %1185 = vst [vmem:[%s7 + $0x18] sm:$0xff] %v414
  %1186 = vst [vmem:[%s7 + $0x20] sm:$0xff] %v419
  %1187 = vst [vmem:[%s7 + $0x28] sm:$0xff] %v424
  %1188 = vst [vmem:[%s7 + $0x30] sm:$0xff] %v429
  %1189 = vst [vmem:[%s7 + $0x38] sm:$0xff] %v434
  %1190 = vst [vmem:[%s7 + $0x40] sm:$0xff] %v439
  %1191 = vst [vmem:[%s7 + $0x48] sm:$0xff] %v444
  %1192 = vst [vmem:[%s7 + $0x50] sm:$0xff] %v449
  %1193 = vst [vmem:[%s7 + $0x58] sm:$0xff] %v454
  %1194 = vst [vmem:[%s7 + $0x60] sm:$0xff] %v459
  %1195 = vst [vmem:[%s7 + $0x68] sm:$0xff] %v464
  %1196 = vst [vmem:[%s7 + $0x70] sm:$0xff] %v469
  %1197 = vst [vmem:[%s7 + $0x78] sm:$0xff] %v474
  %1198 = vst [vmem:[%s7 + $0x80] sm:$0xff] %v479
  %1199 = vst [vmem:[%s7 + $0x88] sm:$0xff] %v484
  %1200 = vst [vmem:[%s7 + $0x90] sm:$0xff] %v489
  %1201 = vst [vmem:[%s7 + $0x98] sm:$0xff] %v494
  %1202 = vst [vmem:[%s7 + $0xa0] sm:$0xff] %v499
  %1203 = vst [vmem:[%s7 + $0xa8] sm:$0xff] %v504
  %1204 = vst [vmem:[%s7 + $0xb0] sm:$0xff] %v509
  %1205 = vst [vmem:[%s7 + $0xb8] sm:$0xff] %v514
  %1206 = vst [vmem:[%s7 + $0xc0] sm:$0xff] %v519
  %1207 = vst [vmem:[%s7 + $0xc8] sm:$0xff] %v524
  %1208 = vst [vmem:[%s7 + $0xd0] sm:$0xff] %v529
  %1209 = vst [vmem:[%s7 + $0xd8] sm:$0xff] %v534
  %1210 = vst [vmem:[%s7 + $0xe0] sm:$0xff] %v539
  %1211 = vst [vmem:[%s7 + $0xe8] sm:$0xff] %v544
  %1212 = vst [vmem:[%s7 + $0xf0] sm:$0xff] %v549
  %1213 = vst [vmem:[%s7 + $0xf8] sm:$0xff] %v554
  %1214 = vst [vmem:[%s7 + $0x100] sm:$0xff] %v559
  %1215 = vst [vmem:[%s7 + $0x108] sm:$0xff] %v564
  %1216 = vst [vmem:[%s7 + $0x110] sm:$0xff] %v569
  %1217 = vst [vmem:[%s7 + $0x118] sm:$0xff] %v574
  %1218 = vst [vmem:[%s7 + $0x120] sm:$0xff] %v579
  %1219 = vst [vmem:[%s7 + $0x128] sm:$0xff] %v584
  %1220 = vst [vmem:[%s7 + $0x130] sm:$0xff] %v589
  %1221 = vst [vmem:[%s7 + $0x138] sm:$0xff] %v594
  %1222 = vst [vmem:[%s7 + $0x140] sm:$0xff] %v599
  %1223 = vst [vmem:[%s7 + $0x148] sm:$0xff] %v604
  %1224 = vst [vmem:[%s7 + $0x150] sm:$0xff] %v609
  %1225 = vst [vmem:[%s7 + $0x158] sm:$0xff] %v614
  %1226 = vst [vmem:[%s7 + $0x160] sm:$0xff] %v619
  %1227 = vst [vmem:[%s7 + $0x168] sm:$0xff] %v624
  %1228 = vst [vmem:[%s7 + $0x170] sm:$0xff] %v629
  %1229 = vst [vmem:[%s7 + $0x178] sm:$0xff] %v634
  %1230 = vst [vmem:[%s7 + $0x180] sm:$0xff] %v639
  %1231 = vst [vmem:[%s7 + $0x188] sm:$0xff] %v644
  %1232 = vst [vmem:[%s7 + $0x190] sm:$0xff] %v649
  %1233 = vst [vmem:[%s7 + $0x198] sm:$0xff] %v654
  %1234 = vst [vmem:[%s7 + $0x1a0] sm:$0xff] %v659
  %1235 = vst [vmem:[%s7 + $0x1a8] sm:$0xff] %v664
  %1236 = vst [vmem:[%s7 + $0x1b0] sm:$0xff] %v669
  %1237 = vst [vmem:[%s7 + $0x1b8] sm:$0xff] %v674
  %1238 = vst [vmem:[%s7 + $0x1c0] sm:$0xff] %v679
  %1239 = vst [vmem:[%s7 + $0x1c8] sm:$0xff] %v684
  %1240 = vst [vmem:[%s7 + $0x1d0] sm:$0xff] %v689
  %1241 = vst [vmem:[%s7 + $0x1d8] sm:$0xff] %v694
  %1242 = vst [vmem:[%s7 + $0x1e0] sm:$0xff] %v699
  %1243 = vst [vmem:[%s7 + $0x1e8] sm:$0xff] %v704
  %1244 = vst [vmem:[%s7 + $0x1f0] sm:$0xff] %v709
  %1245 = vst [vmem:[%s7 + $0x1f8] sm:$0xff] %v714
  %1246 = vst [vmem:[%s8] sm:$0xff] %v864
  %1247 = vst [vmem:[%s8 + $0x8] sm:$0xff] %v869
  %1248 = vst [vmem:[%s8 + $0x10] sm:$0xff] %v874
  %1249 = vst [vmem:[%s8 + $0x18] sm:$0xff] %v879
  %1250 = vst [vmem:[%s8 + $0x20] sm:$0xff] %v884
  %1251 = vst [vmem:[%s8 + $0x28] sm:$0xff] %v889
  %1252 = vst [vmem:[%s8 + $0x30] sm:$0xff] %v894
  %1253 = vst [vmem:[%s8 + $0x38] sm:$0xff] %v899
  %1254 = vst [vmem:[%s8 + $0x40] sm:$0xff] %v904
  %1255 = vst [vmem:[%s8 + $0x48] sm:$0xff] %v909
  %1256 = vst [vmem:[%s8 + $0x50] sm:$0xff] %v914
  %1257 = vst [vmem:[%s8 + $0x58] sm:$0xff] %v919
  %1258 = vst [vmem:[%s8 + $0x60] sm:$0xff] %v924
  %1259 = vst [vmem:[%s8 + $0x68] sm:$0xff] %v929
  %1260 = vst [vmem:[%s8 + $0x70] sm:$0xff] %v934
  %1261 = vst [vmem:[%s8 + $0x78] sm:$0xff] %v939
  %1262 = vst [vmem:[%s8 + $0x80] sm:$0xff] %v944
  %1263 = vst [vmem:[%s8 + $0x88] sm:$0xff] %v949
  %1264 = vst [vmem:[%s8 + $0x90] sm:$0xff] %v954
  %1265 = vst [vmem:[%s8 + $0x98] sm:$0xff] %v959
  %1266 = vst [vmem:[%s8 + $0xa0] sm:$0xff] %v964
  %1267 = vst [vmem:[%s8 + $0xa8] sm:$0xff] %v969
  %1268 = vst [vmem:[%s8 + $0xb0] sm:$0xff] %v974
  %1269 = vst [vmem:[%s8 + $0xb8] sm:$0xff] %v979
  %1270 = vst [vmem:[%s8 + $0xc0] sm:$0xff] %v984
  %1271 = vst [vmem:[%s8 + $0xc8] sm:$0xff] %v989
  %1272 = vst [vmem:[%s8 + $0xd0] sm:$0xff] %v994
  %1273 = vst [vmem:[%s8 + $0xd8] sm:$0xff] %v999
  %1274 = vst [vmem:[%s8 + $0xe0] sm:$0xff] %v1004
  %1275 = vst [vmem:[%s8 + $0xe8] sm:$0xff] %v1009
  %1276 = vst [vmem:[%s8 + $0xf0] sm:$0xff] %v1014
  %1277 = vst [vmem:[%s8 + $0xf8] sm:$0xff] %v1019
  %1278 = vst [vmem:[%s8 + $0x100] sm:$0xff] %v1024
  %1279 = vst [vmem:[%s8 + $0x108] sm:$0xff] %v1029
  %1280 = vst [vmem:[%s8 + $0x110] sm:$0xff] %v1034
  %1281 = vst [vmem:[%s8 + $0x118] sm:$0xff] %v1039
  %1282 = vst [vmem:[%s8 + $0x120] sm:$0xff] %v1044
  %1283 = vst [vmem:[%s8 + $0x128] sm:$0xff] %v1049
  %1284 = vst [vmem:[%s8 + $0x130] sm:$0xff] %v1054
  %1285 = vst [vmem:[%s8 + $0x138] sm:$0xff] %v1059
  %1286 = vst [vmem:[%s8 + $0x140] sm:$0xff] %v1064
  %1287 = vst [vmem:[%s8 + $0x148] sm:$0xff] %v1069
  %1288 = vst [vmem:[%s8 + $0x150] sm:$0xff] %v1074
  %1289 = vst [vmem:[%s8 + $0x158] sm:$0xff] %v1079
  %1290 = vst [vmem:[%s8 + $0x160] sm:$0xff] %v1084
  %1291 = vst [vmem:[%s8 + $0x168] sm:$0xff] %v1089
  %1292 = vst [vmem:[%s8 + $0x170] sm:$0xff] %v1094
  %1293 = vst [vmem:[%s8 + $0x178] sm:$0xff] %v1099
  %1294 = vst [vmem:[%s8 + $0x180] sm:$0xff] %v1104
  %1295 = vst [vmem:[%s8 + $0x188] sm:$0xff] %v1109
  %1296 = vst [vmem:[%s8 + $0x190] sm:$0xff] %v1114
  %1297 = vst [vmem:[%s8 + $0x198] sm:$0xff] %v1119
  %1298 = vst [vmem:[%s8 + $0x1a0] sm:$0xff] %v1124
  %1299 = vst [vmem:[%s8 + $0x1a8] sm:$0xff] %v1129
  %1300 = vst [vmem:[%s8 + $0x1b0] sm:$0xff] %v1134
  %1301 = vst [vmem:[%s8 + $0x1b8] sm:$0xff] %v1139
  %1302 = vst [vmem:[%s8 + $0x1c0] sm:$0xff] %v1144
  %1303 = vst [vmem:[%s8 + $0x1c8] sm:$0xff] %v1149
  %1304 = vst [vmem:[%s8 + $0x1d0] sm:$0xff] %v1154
  %1305 = vst [vmem:[%s8 + $0x1d8] sm:$0xff] %v1159
  %1306 = vst [vmem:[%s8 + $0x1e0] sm:$0xff] %v1164
  %1307 = vst [vmem:[%s8 + $0x1e8] sm:$0xff] %v1169
  %1308 = vst [vmem:[%s8 + $0x1f0] sm:$0xff] %v1174
  %1309 = vst [vmem:[%s8 + $0x1f8] sm:$0xff] %v1179
  %v1310 = vld [vmem:[%s9] sm:$0x1]
  %v1311 = vadd.f32 %v399, %v404
  %v1312 = vadd.f32 %v1311, %v409
  %v1313 = vadd.f32 %v1312, %v414
  %v1314 = vadd.f32 %v1313, %v419
  %v1315 = vadd.f32 %v1314, %v424
  %v1316 = vadd.f32 %v1315, %v429
  %v1317 = vadd.f32 %v1316, %v434
  %v1318 = vadd.f32 %v1317, %v439
  %v1319 = vadd.f32 %v1318, %v444
  %v1320 = vadd.f32 %v1319, %v449
  %v1321 = vadd.f32 %v1320, %v454
  %v1322 = vadd.f32 %v1321, %v459
  %v1323 = vadd.f32 %v1322, %v464
  %v1324 = vadd.f32 %v1323, %v469
  %v1325 = vadd.f32 %v1324, %v474
  %v1326 = vadd.f32 %v1325, %v479
  %v1327 = vadd.f32 %v1326, %v484
  %v1328 = vadd.f32 %v1327, %v489
  %v1329 = vadd.f32 %v1328, %v494
  %v1330 = vadd.f32 %v1329, %v499
  %v1331 = vadd.f32 %v1330, %v504
  %v1332 = vadd.f32 %v1331, %v509
  %v1333 = vadd.f32 %v1332, %v514
  %v1334 = vadd.f32 %v1333, %v519
  %v1335 = vadd.f32 %v1334, %v524
  %v1336 = vadd.f32 %v1335, %v529
  %v1337 = vadd.f32 %v1336, %v534
  %v1338 = vadd.f32 %v1337, %v539
  %v1339 = vadd.f32 %v1338, %v544
  %v1340 = vadd.f32 %v1339, %v549
  %v1341 = vadd.f32 %v1340, %v554
  %v1342 = vadd.f32 %v1341, %v559
  %v1343 = vadd.f32 %v1342, %v564
  %v1344 = vadd.f32 %v1343, %v569
  %v1345 = vadd.f32 %v1344, %v574
  %v1346 = vadd.f32 %v1345, %v579
  %v1347 = vadd.f32 %v1346, %v584
  %v1348 = vadd.f32 %v1347, %v589
  %v1349 = vadd.f32 %v1348, %v594
  %v1350 = vadd.f32 %v1349, %v599
  %v1351 = vadd.f32 %v1350, %v604
  %v1352 = vadd.f32 %v1351, %v609
  %v1353 = vadd.f32 %v1352, %v614
  %v1354 = vadd.f32 %v1353, %v619
  %v1355 = vadd.f32 %v1354, %v624
  %v1356 = vadd.f32 %v1355, %v629
  %v1357 = vadd.f32 %v1356, %v634
  %v1358 = vadd.f32 %v1357, %v639
  %v1359 = vadd.f32 %v1358, %v644
  %v1360 = vadd.f32 %v1359, %v649
  %v1361 = vadd.f32 %v1360, %v654
  %v1362 = vadd.f32 %v1361, %v659
  %v1363 = vadd.f32 %v1362, %v664
  %v1364 = vadd.f32 %v1363, %v669
  %v1365 = vadd.f32 %v1364, %v674
  %v1366 = vadd.f32 %v1365, %v679
  %v1367 = vadd.f32 %v1366, %v684
  %v1368 = vadd.f32 %v1367, %v689
  %v1369 = vadd.f32 %v1368, %v694
  %v1370 = vadd.f32 %v1369, %v699
  %v1371 = vadd.f32 %v1370, %v704
  %v1372 = vadd.f32 %v1371, %v709
  %v1373 = vadd.f32 %v1372, %v714
  %v1374 = vrot.slane %v1373, 4
  %v1375 = vadd.f32 %v1373, %v1374
  %v1376 = vrot.slane %v1375, 2
  %v1377 = vadd.f32 %v1375, %v1376
  %v1378 = vrot.slane %v1377, 1
  %v1379 = vadd.f32 %v1377, %v1378
  %v1380 = vadd.f32 %v1310, %v1379
  %1381 = vst [vmem:[%s9] sm:$0x1] %v1380
  %v1382 = vld [vmem:[%s9 + $0x1] sm:$0x1]
  %v1383 = vmul.f32 %v399, %v399
  %v1384 = vmul.f32 %v404, %v404
  %v1385 = vmul.f32 %v409, %v409
  %v1386 = vmul.f32 %v414, %v414
  %v1387 = vmul.f32 %v419, %v419
  %v1388 = vmul.f32 %v424, %v424
  %v1389 = vmul.f32 %v429, %v429
  %v1390 = vmul.f32 %v434, %v434
  %v1391 = vmul.f32 %v439, %v439
  %v1392 = vmul.f32 %v444, %v444
  %v1393 = vmul.f32 %v449, %v449
  %v1394 = vmul.f32 %v454, %v454
  %v1395 = vmul.f32 %v459, %v459
  %v1396 = vmul.f32 %v464, %v464
  %v1397 = vmul.f32 %v469, %v469
  %v1398 = vmul.f32 %v474, %v474
  %v1399 = vmul.f32 %v479, %v479
  %v1400 = vmul.f32 %v484, %v484
  %v1401 = vmul.f32 %v489, %v489
  %v1402 = vmul.f32 %v494, %v494
  %v1403 = vmul.f32 %v499, %v499
  %v1404 = vmul.f32 %v504, %v504
  %v1405 = vmul.f32 %v509, %v509
  %v1406 = vmul.f32 %v514, %v514
  %v1407 = vmul.f32 %v519, %v519
  %v1408 = vmul.f32 %v524, %v524
  %v1409 = vmul.f32 %v529, %v529
  %v1410 = vmul.f32 %v534, %v534
  %v1411 = vmul.f32 %v539, %v539
  %v1412 = vmul.f32 %v544, %v544
  %v1413 = vmul.f32 %v549, %v549
  %v1414 = vmul.f32 %v554, %v554
  %v1415 = vmul.f32 %v559, %v559
  %v1416 = vmul.f32 %v564, %v564
  %v1417 = vmul.f32 %v569, %v569
  %v1418 = vmul.f32 %v574, %v574
  %v1419 = vmul.f32 %v579, %v579
  %v1420 = vmul.f32 %v584, %v584
  %v1421 = vmul.f32 %v589, %v589
  %v1422 = vmul.f32 %v594, %v594
  %v1423 = vmul.f32 %v599, %v599
  %v1424 = vmul.f32 %v604, %v604
  %v1425 = vmul.f32 %v609, %v609
  %v1426 = vmul.f32 %v614, %v614
  %v1427 = vmul.f32 %v619, %v619
  %v1428 = vmul.f32 %v624, %v624
  %v1429 = vmul.f32 %v629, %v629
  %v1430 = vmul.f32 %v634, %v634
  %v1431 = vmul.f32 %v639, %v639
  %v1432 = vmul.f32 %v644, %v644
  %v1433 = vmul.f32 %v649, %v649
  %v1434 = vmul.f32 %v654, %v654
  %v1435 = vmul.f32 %v659, %v659
  %v1436 = vmul.f32 %v664, %v664
  %v1437 = vmul.f32 %v669, %v669
  %v1438 = vmul.f32 %v674, %v674
  %v1439 = vmul.f32 %v679, %v679
  %v1440 = vmul.f32 %v684, %v684
  %v1441 = vmul.f32 %v689, %v689
  %v1442 = vmul.f32 %v694, %v694
  %v1443 = vmul.f32 %v699, %v699
  %v1444 = vmul.f32 %v704, %v704
  %v1445 = vmul.f32 %v709, %v709
  %v1446 = vmul.f32 %v714, %v714
  %v1447 = vadd.f32 %v1383, %v1384
  %v1448 = vadd.f32 %v1447, %v1385
  %v1449 = vadd.f32 %v1448, %v1386
  %v1450 = vadd.f32 %v1449, %v1387
  %v1451 = vadd.f32 %v1450, %v1388
  %v1452 = vadd.f32 %v1451, %v1389
  %v1453 = vadd.f32 %v1452, %v1390
  %v1454 = vadd.f32 %v1453, %v1391
  %v1455 = vadd.f32 %v1454, %v1392
  %v1456 = vadd.f32 %v1455, %v1393
  %v1457 = vadd.f32 %v1456, %v1394
  %v1458 = vadd.f32 %v1457, %v1395
  %v1459 = vadd.f32 %v1458, %v1396
  %v1460 = vadd.f32 %v1459, %v1397
  %v1461 = vadd.f32 %v1460, %v1398
  %v1462 = vadd.f32 %v1461, %v1399
  %v1463 = vadd.f32 %v1462, %v1400
  %v1464 = vadd.f32 %v1463, %v1401
  %v1465 = vadd.f32 %v1464, %v1402
  %v1466 = vadd.f32 %v1465, %v1403
  %v1467 = vadd.f32 %v1466, %v1404
  %v1468 = vadd.f32 %v1467, %v1405
  %v1469 = vadd.f32 %v1468, %v1406
  %v1470 = vadd.f32 %v1469, %v1407
  %v1471 = vadd.f32 %v1470, %v1408
  %v1472 = vadd.f32 %v1471, %v1409
  %v1473 = vadd.f32 %v1472, %v1410
  %v1474 = vadd.f32 %v1473, %v1411
  %v1475 = vadd.f32 %v1474, %v1412
  %v1476 = vadd.f32 %v1475, %v1413
  %v1477 = vadd.f32 %v1476, %v1414
  %v1478 = vadd.f32 %v1477, %v1415
  %v1479 = vadd.f32 %v1478, %v1416
  %v1480 = vadd.f32 %v1479, %v1417
  %v1481 = vadd.f32 %v1480, %v1418
  %v1482 = vadd.f32 %v1481, %v1419
  %v1483 = vadd.f32 %v1482, %v1420
  %v1484 = vadd.f32 %v1483, %v1421
  %v1485 = vadd.f32 %v1484, %v1422
  %v1486 = vadd.f32 %v1485, %v1423
  %v1487 = vadd.f32 %v1486, %v1424
  %v1488 = vadd.f32 %v1487, %v1425
  %v1489 = vadd.f32 %v1488, %v1426
  %v1490 = vadd.f32 %v1489, %v1427
  %v1491 = vadd.f32 %v1490, %v1428
  %v1492 = vadd.f32 %v1491, %v1429
  %v1493 = vadd.f32 %v1492, %v1430
  %v1494 = vadd.f32 %v1493, %v1431
  %v1495 = vadd.f32 %v1494, %v1432
  %v1496 = vadd.f32 %v1495, %v1433
  %v1497 = vadd.f32 %v1496, %v1434
  %v1498 = vadd.f32 %v1497, %v1435
  %v1499 = vadd.f32 %v1498, %v1436
  %v1500 = vadd.f32 %v1499, %v1437
  %v1501 = vadd.f32 %v1500, %v1438
  %v1502 = vadd.f32 %v1501, %v1439
  %v1503 = vadd.f32 %v1502, %v1440
  %v1504 = vadd.f32 %v1503, %v1441
  %v1505 = vadd.f32 %v1504, %v1442
  %v1506 = vadd.f32 %v1505, %v1443
  %v1507 = vadd.f32 %v1506, %v1444
  %v1508 = vadd.f32 %v1507, %v1445
  %v1509 = vadd.f32 %v1508, %v1446
  %v1510 = vrot.slane %v1509, 4
  %v1511 = vadd.f32 %v1509, %v1510
  %v1512 = vrot.slane %v1511, 2
  %v1513 = vadd.f32 %v1511, %v1512
  %v1514 = vrot.slane %v1513, 1
  %v1515 = vadd.f32 %v1513, %v1514
  %v1516 = vadd.f32 %v1382, %v1515
  %1517 = vst [vmem:[%s9 + $0x1] sm:$0x1] %v1516
  %v1518 = vld [vmem:[%s10] sm:$0x1]
  %v1519 = vadd.f32 %v864, %v869
  %v1520 = vadd.f32 %v1519, %v874
  %v1521 = vadd.f32 %v1520, %v879
  %v1522 = vadd.f32 %v1521, %v884
  %v1523 = vadd.f32 %v1522, %v889
  %v1524 = vadd.f32 %v1523, %v894
  %v1525 = vadd.f32 %v1524, %v899
  %v1526 = vadd.f32 %v1525, %v904
  %v1527 = vadd.f32 %v1526, %v909
  %v1528 = vadd.f32 %v1527, %v914
  %v1529 = vadd.f32 %v1528, %v919
  %v1530 = vadd.f32 %v1529, %v924
  %v1531 = vadd.f32 %v1530, %v929
  %v1532 = vadd.f32 %v1531, %v934
  %v1533 = vadd.f32 %v1532, %v939
  %v1534 = vadd.f32 %v1533, %v944
  %v1535 = vadd.f32 %v1534, %v949
  %v1536 = vadd.f32 %v1535, %v954
  %v1537 = vadd.f32 %v1536, %v959
  %v1538 = vadd.f32 %v1537, %v964
  %v1539 = vadd.f32 %v1538, %v969
  %v1540 = vadd.f32 %v1539, %v974
  %v1541 = vadd.f32 %v1540, %v979
  %v1542 = vadd.f32 %v1541, %v984
  %v1543 = vadd.f32 %v1542, %v989
  %v1544 = vadd.f32 %v1543, %v994
  %v1545 = vadd.f32 %v1544, %v999
  %v1546 = vadd.f32 %v1545, %v1004
  %v1547 = vadd.f32 %v1546, %v1009
  %v1548 = vadd.f32 %v1547, %v1014
  %v1549 = vadd.f32 %v1548, %v1019
  %v1550 = vadd.f32 %v1549, %v1024
  %v1551 = vadd.f32 %v1550, %v1029
  %v1552 = vadd.f32 %v1551, %v1034
  %v1553 = vadd.f32 %v1552, %v1039
  %v1554 = vadd.f32 %v1553, %v1044
  %v1555 = vadd.f32 %v1554, %v1049
  %v1556 = vadd.f32 %v1555, %v1054
  %v1557 = vadd.f32 %v1556, %v1059
  %v1558 = vadd.f32 %v1557, %v1064
  %v1559 = vadd.f32 %v1558, %v1069
  %v1560 = vadd.f32 %v1559, %v1074
  %v1561 = vadd.f32 %v1560, %v1079
  %v1562 = vadd.f32 %v1561, %v1084
  %v1563 = vadd.f32 %v1562, %v1089
  %v1564 = vadd.f32 %v1563, %v1094
  %v1565 = vadd.f32 %v1564, %v1099
  %v1566 = vadd.f32 %v1565, %v1104
  %v1567 = vadd.f32 %v1566, %v1109
  %v1568 = vadd.f32 %v1567, %v1114
  %v1569 = vadd.f32 %v1568, %v1119
  %v1570 = vadd.f32 %v1569, %v1124
  %v1571 = vadd.f32 %v1570, %v1129
  %v1572 = vadd.f32 %v1571, %v1134
  %v1573 = vadd.f32 %v1572, %v1139
  %v1574 = vadd.f32 %v1573, %v1144
  %v1575 = vadd.f32 %v1574, %v1149
  %v1576 = vadd.f32 %v1575, %v1154
  %v1577 = vadd.f32 %v1576, %v1159
  %v1578 = vadd.f32 %v1577, %v1164
  %v1579 = vadd.f32 %v1578, %v1169
  %v1580 = vadd.f32 %v1579, %v1174
  %v1581 = vadd.f32 %v1580, %v1179
  %v1582 = vrot.slane %v1581, 4
  %v1583 = vadd.f32 %v1581, %v1582
  %v1584 = vrot.slane %v1583, 2
  %v1585 = vadd.f32 %v1583, %v1584
  %v1586 = vrot.slane %v1585, 1
  %v1587 = vadd.f32 %v1585, %v1586
  %v1588 = vadd.f32 %v1518, %v1587
  %1589 = vst [vmem:[%s10] sm:$0x1] %v1588
  %v1590 = vld [vmem:[%s10 + $0x1] sm:$0x1]
  %v1591 = vmul.f32 %v864, %v864
  %v1592 = vmul.f32 %v869, %v869
  %v1593 = vmul.f32 %v874, %v874
  %v1594 = vmul.f32 %v879, %v879
  %v1595 = vmul.f32 %v884, %v884
  %v1596 = vmul.f32 %v889, %v889
  %v1597 = vmul.f32 %v894, %v894
  %v1598 = vmul.f32 %v899, %v899
  %v1599 = vmul.f32 %v904, %v904
  %v1600 = vmul.f32 %v909, %v909
  %v1601 = vmul.f32 %v914, %v914
  %v1602 = vmul.f32 %v919, %v919
  %v1603 = vmul.f32 %v924, %v924
  %v1604 = vmul.f32 %v929, %v929
  %v1605 = vmul.f32 %v934, %v934
  %v1606 = vmul.f32 %v939, %v939
  %v1607 = vmul.f32 %v944, %v944
  %v1608 = vmul.f32 %v949, %v949
  %v1609 = vmul.f32 %v954, %v954
  %v1610 = vmul.f32 %v959, %v959
  %v1611 = vmul.f32 %v964, %v964
  %v1612 = vmul.f32 %v969, %v969
  %v1613 = vmul.f32 %v974, %v974
  %v1614 = vmul.f32 %v979, %v979
  %v1615 = vmul.f32 %v984, %v984
  %v1616 = vmul.f32 %v989, %v989
  %v1617 = vmul.f32 %v994, %v994
  %v1618 = vmul.f32 %v999, %v999
  %v1619 = vmul.f32 %v1004, %v1004
  %v1620 = vmul.f32 %v1009, %v1009
  %v1621 = vmul.f32 %v1014, %v1014
  %v1622 = vmul.f32 %v1019, %v1019
  %v1623 = vmul.f32 %v1024, %v1024
  %v1624 = vmul.f32 %v1029, %v1029
  %v1625 = vmul.f32 %v1034, %v1034
  %v1626 = vmul.f32 %v1039, %v1039
  %v1627 = vmul.f32 %v1044, %v1044
  %v1628 = vmul.f32 %v1049, %v1049
  %v1629 = vmul.f32 %v1054, %v1054
  %v1630 = vmul.f32 %v1059, %v1059
  %v1631 = vmul.f32 %v1064, %v1064
  %v1632 = vmul.f32 %v1069, %v1069
  %v1633 = vmul.f32 %v1074, %v1074
  %v1634 = vmul.f32 %v1079, %v1079
  %v1635 = vmul.f32 %v1084, %v1084
  %v1636 = vmul.f32 %v1089, %v1089
  %v1637 = vmul.f32 %v1094, %v1094
  %v1638 = vmul.f32 %v1099, %v1099
  %v1639 = vmul.f32 %v1104, %v1104
  %v1640 = vmul.f32 %v1109, %v1109
  %v1641 = vmul.f32 %v1114, %v1114
  %v1642 = vmul.f32 %v1119, %v1119
  %v1643 = vmul.f32 %v1124, %v1124
  %v1644 = vmul.f32 %v1129, %v1129
  %v1645 = vmul.f32 %v1134, %v1134
  %v1646 = vmul.f32 %v1139, %v1139
  %v1647 = vmul.f32 %v1144, %v1144
  %v1648 = vmul.f32 %v1149, %v1149
  %v1649 = vmul.f32 %v1154, %v1154
  %v1650 = vmul.f32 %v1159, %v1159
  %v1651 = vmul.f32 %v1164, %v1164
  %v1652 = vmul.f32 %v1169, %v1169
  %v1653 = vmul.f32 %v1174, %v1174
  %v1654 = vmul.f32 %v1179, %v1179
  %v1655 = vadd.f32 %v1591, %v1592
  %v1656 = vadd.f32 %v1655, %v1593
  %v1657 = vadd.f32 %v1656, %v1594
  %v1658 = vadd.f32 %v1657, %v1595
  %v1659 = vadd.f32 %v1658, %v1596
  %v1660 = vadd.f32 %v1659, %v1597
  %v1661 = vadd.f32 %v1660, %v1598
  %v1662 = vadd.f32 %v1661, %v1599
  %v1663 = vadd.f32 %v1662, %v1600
  %v1664 = vadd.f32 %v1663, %v1601
  %v1665 = vadd.f32 %v1664, %v1602
  %v1666 = vadd.f32 %v1665, %v1603
  %v1667 = vadd.f32 %v1666, %v1604
  %v1668 = vadd.f32 %v1667, %v1605
  %v1669 = vadd.f32 %v1668, %v1606
  %v1670 = vadd.f32 %v1669, %v1607
  %v1671 = vadd.f32 %v1670, %v1608
  %v1672 = vadd.f32 %v1671, %v1609
  %v1673 = vadd.f32 %v1672, %v1610
  %v1674 = vadd.f32 %v1673, %v1611
  %v1675 = vadd.f32 %v1674, %v1612
  %v1676 = vadd.f32 %v1675, %v1613
  %v1677 = vadd.f32 %v1676, %v1614
  %v1678 = vadd.f32 %v1677, %v1615
  %v1679 = vadd.f32 %v1678, %v1616
  %v1680 = vadd.f32 %v1679, %v1617
  %v1681 = vadd.f32 %v1680, %v1618
  %v1682 = vadd.f32 %v1681, %v1619
  %v1683 = vadd.f32 %v1682, %v1620
  %v1684 = vadd.f32 %v1683, %v1621
  %v1685 = vadd.f32 %v1684, %v1622
  %v1686 = vadd.f32 %v1685, %v1623
  %v1687 = vadd.f32 %v1686, %v1624
  %v1688 = vadd.f32 %v1687, %v1625
  %v1689 = vadd.f32 %v1688, %v1626
  %v1690 = vadd.f32 %v1689, %v1627
  %v1691 = vadd.f32 %v1690, %v1628
  %v1692 = vadd.f32 %v1691, %v1629
  %v1693 = vadd.f32 %v1692, %v1630
  %v1694 = vadd.f32 %v1693, %v1631
  %v1695 = vadd.f32 %v1694, %v1632
  %v1696 = vadd.f32 %v1695, %v1633
  %v1697 = vadd.f32 %v1696, %v1634
  %v1698 = vadd.f32 %v1697, %v1635
  %v1699 = vadd.f32 %v1698, %v1636
  %v1700 = vadd.f32 %v1699, %v1637
  %v1701 = vadd.f32 %v1700, %v1638
  %v1702 = vadd.f32 %v1701, %v1639
  %v1703 = vadd.f32 %v1702, %v1640
  %v1704 = vadd.f32 %v1703, %v1641
  %v1705 = vadd.f32 %v1704, %v1642
  %v1706 = vadd.f32 %v1705, %v1643
  %v1707 = vadd.f32 %v1706, %v1644
  %v1708 = vadd.f32 %v1707, %v1645
  %v1709 = vadd.f32 %v1708, %v1646
  %v1710 = vadd.f32 %v1709, %v1647
  %v1711 = vadd.f32 %v1710, %v1648
  %v1712 = vadd.f32 %v1711, %v1649
  %v1713 = vadd.f32 %v1712, %v1650
  %v1714 = vadd.f32 %v1713, %v1651
  %v1715 = vadd.f32 %v1714, %v1652
  %v1716 = vadd.f32 %v1715, %v1653
  %v1717 = vadd.f32 %v1716, %v1654
  %v1718 = vrot.slane %v1717, 4
  %v1719 = vadd.f32 %v1717, %v1718
  %v1720 = vrot.slane %v1719, 2
  %v1721 = vadd.f32 %v1719, %v1720
  %v1722 = vrot.slane %v1721, 1
  %v1723 = vadd.f32 %v1721, %v1722
  %v1724 = vadd.f32 %v1590, %v1723
  %1725 = vst [vmem:[%s10 + $0x1] sm:$0x1] %v1724
  // Predicated region
  $region34: #{bottleneck_forward.6} parent=0 // pred_check
    _
  $region35: #{bottleneck_forward.6} parent=0 // pred_check_branch
    %1727 = sbr.rel (0) target = $region37
  $region36: #{bottleneck_forward.6} parent=0 // pred_region
    _
  $region37: #{bottleneck_forward.6} parent=0 // pred_fallthru
    _
  // Predicated region
  $region38: #{bottleneck_forward.6} parent=0 // pred_check
    _
  $region39: #{bottleneck_forward.6} parent=0 // pred_check_branch
    %1729 = sbr.rel (0) target = $region41
  $region40: #{bottleneck_forward.6} parent=0 // pred_region
    _
  $region41: #{bottleneck_forward.6} parent=0 // pred_fallthru
    _
  // Predicated region
  $region42: #{bottleneck_forward.6} parent=0 // pred_check
    _
  $region43: #{bottleneck_forward.6} parent=0 // pred_check_branch
    %1731 = sbr.rel (0) target = $region45
  $region44: #{bottleneck_forward.6} parent=0 // pred_region
    _
  $region45: #{bottleneck_forward.6} parent=0 // pred_fallthru
    _
  // Predicated region
  $region46: #{bottleneck_forward.6} parent=0 // pred_check
    _
  $region47: #{bottleneck_forward.6} parent=0 // pred_check_branch
    %1733 = sbr.rel (0) target = $region49
  $region48: #{bottleneck_forward.6} parent=0 // pred_region
    _
  $region49: #{bottleneck_forward.6} parent=0 // pred_fallthru
    _
  // Predicated region
  $region50: #{bottleneck_forward.6} parent=0 // pred_check
    _
  $region51: #{bottleneck_forward.6} parent=0 // pred_check_branch
    %1735 = sbr.rel (0) target = $region53
  $region52: #{bottleneck_forward.6} parent=0 // pred_region
    _
  $region53: #{bottleneck_forward.6} parent=0 // pred_fallthru
    _
  // Predicated region
  $region54: #{bottleneck_forward.6} parent=0 // pred_check
    _
  $region55: #{bottleneck_forward.6} parent=0 // pred_check_branch
    %1737 = sbr.rel (0) target = $region57
  $region56: #{bottleneck_forward.6} parent=0 // pred_region
    _
  $region57: #{bottleneck_forward.6} parent=0 // pred_fallthru
    _
  // Predicated region
  $region58: #{bottleneck_forward.6} parent=0 // pred_check
    _
  $region59: #{bottleneck_forward.6} parent=0 // pred_check_branch
    %1739 = sbr.rel (0) target = $region61
  $region60: #{bottleneck_forward.6} parent=0 // pred_region
    _
  $region61: #{bottleneck_forward.6} parent=0 // pred_fallthru
    _
  // Predicated region
  $region62: #{bottleneck_forward.6} parent=0 // pred_check
    _
  $region63: #{bottleneck_forward.6} parent=0 // pred_check_branch
    %1741 = sbr.rel (0) target = $region65
  $region64: #{bottleneck_forward.6} parent=0 // pred_region
    _
  $region65: #{bottleneck_forward.6} parent=0 // pred_fallthru
    _

// kernel: bottleneck_forward.5
$region0: #{bottleneck_forward.5}
  #allocation0 [shape = 'u32[]', space=smem, size = 0x4, offset = 0x4, fixed_abs, tag = 'smem constant byte address 0x4 - core index']
  #allocation1 [shape = 'u32[144,128]{1,0:T(1,128)}', space=vmem, size = 0x12000, scoped, tag = 'internal scratch']
  #allocation2 [shape = 'f32[18,18,128]{2,1,0:T(8,128)}', space=vmem, size = 0x36000, scoped, tag = 'scratch operand']
  %s0 = inlined_call_operand.vmem [shape: f32[2,16,16,128], index: 0, kind: input, shape index: {}]
  %s1 = inlined_call_operand.vmem [shape: f32[2,128], index: 1, kind: input, shape index: {}]
  %s2 = inlined_call_operand.vmem [shape: f32[1,128], index: 2, kind: input, shape index: {}]
  %s3 = inlined_call_operand.vmem [shape: f32[1,128], index: 3, kind: input, shape index: {}]
  %s4 = inlined_call_operand.vmem [shape: f32[9,128,128], index: 4, kind: input, shape index: {}]
  %s5 = inlined_call_operand.vmem [shape: f32[2,256,128], index: 5, kind: output, shape index: {0}]
  %s6 = inlined_call_operand.vmem [shape: f32[2,128], index: 6, kind: output, shape index: {1}]
  %7 = xla_tuple %s5, %s6
  %s8 = sld [smem:[#allocation0]]
  $region65: #{bottleneck_forward.5} parent=0
    _
  %s10 = ssub.s32 1, %s8
  %s11 = scalar_select 0, %s10, %s8
  loop: start=0, step=1, limit=4
  $region2: #{bottleneck_forward.5} parent=0 // loop_pre_header
    _
  $region3: #{bottleneck_forward.5} parent=0 // loop_header
    %s13 = sphi 0, %s17
    %p14 = scmp.ge.s32.totalorder %s13, 4
    %s23 = sphi 0, %s25
    %s26 = sphi 0, %s23
    %s27 = sphi 0, %s26
    %s43 = sphi 0, %s27
    %s47 = sphi 0, %s47
    %s49 = sphi 0, %s47
    %s50 = sphi 0, %s49
    %s64 = sphi 0, %s50
    %s68 = sphi 0, %s68
    %s70 = sphi 0, %s68
    %s71 = sphi 0, %s70
    %s85 = sphi 0, %s71
    %s89 = sphi 0, %s89
    %s91 = sphi 0, %s89
    %s92 = sphi 0, %s91
    %s106 = sphi 0, %s92
    %s110 = sphi 0, %s110
    %s112 = sphi 0, %s110
    %s113 = sphi 0, %s112
    %s127 = sphi 0, %s113
    %s133 = sphi 0, %s135
    %s136 = sphi 0, %s133
    %s137 = sphi 0, %s136
    %s153 = sphi 0, %s137
    %s157 = sphi 0, %s157
    %s159 = sphi 0, %s157
    %s160 = sphi 0, %s159
    %s174 = sphi 0, %s160
  $region4: #{bottleneck_forward.5} parent=0 // loop_header_branch
    %16 = sbr.rel (%p14) target = $region8
  $region5: #{bottleneck_forward.5} parent=0 // loop_body
    %s18 = ssub.s32 %s13, 1
    %s19 = ssub.s32 %s13, 2
    %s20 = sadd.s32 %s13, 1
    %s21 = ssub.s32 %s13, %s20
    %p22 = scmp.eq.s32.totalorder %s21, 0
    %s24 = sadd.s32 %s23, 1
    %s25 = scalar_select %p22, %s23, %s24
    %p28 = pneg %p22
    %p29 = scmp.eq.s32.totalorder %s13, 1
    %p30 = por %p28, %p29
    %p31 = scmp.ne.s32.totalorder %s23, %s26
    %p32 = scmp.eq.s32.totalorder %s13, 0
    %p33 = por %p31, %p32
    %p34 = scmp.ne.s32.totalorder %s23, %s26
    %p35 = scmp.eq.s32.totalorder %s18, 1
    %p36 = por %p34, %p35
    %p37 = scmp.ne.s32.totalorder %s26, %s27
    %p38 = scmp.eq.s32.totalorder %s18, 0
    %p39 = por %p37, %p38
    %p40 = scmp.ne.s32.totalorder %s26, %s27
    %p41 = scmp.eq.s32.totalorder %s19, 1
    %p42 = por %p40, %p41
    %p44 = scmp.ne.s32.totalorder %s27, %s43
    %p45 = scmp.eq.s32.totalorder %s19, 0
    %p46 = por %p44, %p45
    %s48 = sadd.s32 %s47, 1
    %p51 = scmp.eq.s32.totalorder %s13, 1
    %p52 = scmp.ne.s32.totalorder %s47, %s49
    %p53 = scmp.eq.s32.totalorder %s13, 0
    %p54 = por %p52, %p53
    %p55 = scmp.ne.s32.totalorder %s47, %s49
    %p56 = scmp.eq.s32.totalorder %s18, 1
    %p57 = por %p55, %p56
    %p58 = scmp.ne.s32.totalorder %s49, %s50
    %p59 = scmp.eq.s32.totalorder %s18, 0
    %p60 = por %p58, %p59
    %p61 = scmp.ne.s32.totalorder %s49, %s50
    %p62 = scmp.eq.s32.totalorder %s19, 1
    %p63 = por %p61, %p62
    %p65 = scmp.ne.s32.totalorder %s50, %s64
    %p66 = scmp.eq.s32.totalorder %s19, 0
    %p67 = por %p65, %p66
    %s69 = sadd.s32 %s68, 1
    %p72 = scmp.eq.s32.totalorder %s13, 1
    %p73 = scmp.ne.s32.totalorder %s68, %s70
    %p74 = scmp.eq.s32.totalorder %s13, 0
    %p75 = por %p73, %p74
    %p76 = scmp.ne.s32.totalorder %s68, %s70
    %p77 = scmp.eq.s32.totalorder %s18, 1
    %p78 = por %p76, %p77
    %p79 = scmp.ne.s32.totalorder %s70, %s71
    %p80 = scmp.eq.s32.totalorder %s18, 0
    %p81 = por %p79, %p80
    %p82 = scmp.ne.s32.totalorder %s70, %s71
    %p83 = scmp.eq.s32.totalorder %s19, 1
    %p84 = por %p82, %p83
    %p86 = scmp.ne.s32.totalorder %s71, %s85
    %p87 = scmp.eq.s32.totalorder %s19, 0
    %p88 = por %p86, %p87
    %s90 = sadd.s32 %s89, 1
    %p93 = scmp.eq.s32.totalorder %s13, 1
    %p94 = scmp.ne.s32.totalorder %s89, %s91
    %p95 = scmp.eq.s32.totalorder %s13, 0
    %p96 = por %p94, %p95
    %p97 = scmp.ne.s32.totalorder %s89, %s91
    %p98 = scmp.eq.s32.totalorder %s18, 1
    %p99 = por %p97, %p98
    %p100 = scmp.ne.s32.totalorder %s91, %s92
    %p101 = scmp.eq.s32.totalorder %s18, 0
    %p102 = por %p100, %p101
    %p103 = scmp.ne.s32.totalorder %s91, %s92
    %p104 = scmp.eq.s32.totalorder %s19, 1
    %p105 = por %p103, %p104
    %p107 = scmp.ne.s32.totalorder %s92, %s106
    %p108 = scmp.eq.s32.totalorder %s19, 0
    %p109 = por %p107, %p108
    %s111 = sadd.s32 %s110, 1
    %p114 = scmp.eq.s32.totalorder %s13, 1
    %p115 = scmp.ne.s32.totalorder %s110, %s112
    %p116 = scmp.eq.s32.totalorder %s13, 0
    %p117 = por %p115, %p116
    %p118 = scmp.ne.s32.totalorder %s110, %s112
    %p119 = scmp.eq.s32.totalorder %s18, 1
    %p120 = por %p118, %p119
    %p121 = scmp.ne.s32.totalorder %s112, %s113
    %p122 = scmp.eq.s32.totalorder %s18, 0
    %p123 = por %p121, %p122
    %p124 = scmp.ne.s32.totalorder %s112, %s113
    %p125 = scmp.eq.s32.totalorder %s19, 1
    %p126 = por %p124, %p125
    %p128 = scmp.ne.s32.totalorder %s113, %s127
    %p129 = scmp.eq.s32.totalorder %s19, 0
    %p130 = por %p128, %p129
    %s131 = ssub.s32 %s13, %s20
    %p132 = scmp.eq.s32.totalorder %s131, 0
    %s134 = sadd.s32 %s133, 1
    %s135 = scalar_select %p132, %s133, %s134
    %p138 = pneg %p132
    %p139 = scmp.eq.s32.totalorder %s13, 1
    %p140 = por %p138, %p139
    %p141 = scmp.ne.s32.totalorder %s133, %s136
    %p142 = scmp.eq.s32.totalorder %s13, 0
    %p143 = por %p141, %p142
    %p144 = scmp.ne.s32.totalorder %s133, %s136
    %p145 = scmp.eq.s32.totalorder %s18, 1
    %p146 = por %p144, %p145
    %p147 = scmp.ne.s32.totalorder %s136, %s137
    %p148 = scmp.eq.s32.totalorder %s18, 0
    %p149 = por %p147, %p148
    %p150 = scmp.ne.s32.totalorder %s136, %s137
    %p151 = scmp.eq.s32.totalorder %s19, 1
    %p152 = por %p150, %p151
    %p154 = scmp.ne.s32.totalorder %s137, %s153
    %p155 = scmp.eq.s32.totalorder %s19, 0
    %p156 = por %p154, %p155
    %s158 = sadd.s32 %s157, 1
    %p161 = scmp.eq.s32.totalorder %s13, 1
    %p162 = scmp.ne.s32.totalorder %s157, %s159
    %p163 = scmp.eq.s32.totalorder %s13, 0
    %p164 = por %p162, %p163
    %p165 = scmp.ne.s32.totalorder %s157, %s159
    %p166 = scmp.eq.s32.totalorder %s18, 1
    %p167 = por %p165, %p166
    %p168 = scmp.ne.s32.totalorder %s159, %s160
    %p169 = scmp.eq.s32.totalorder %s18, 0
    %p170 = por %p168, %p169
    %p171 = scmp.ne.s32.totalorder %s159, %s160
    %p172 = scmp.eq.s32.totalorder %s19, 1
    %p173 = por %p171, %p172
    %p175 = scmp.ne.s32.totalorder %s160, %s174
    %p176 = scmp.eq.s32.totalorder %s19, 0
    %p177 = por %p175, %p176
    %p178 = scmp.le.s32.totalorder 1, %s13
    %p179 = scmp.lt.s32.totalorder %s13, 3
    %p180 = pnand %p178, %p179
    %p181 = pneg %p180
    // Predicated region
    $region9: #{bottleneck_forward.5} parent=5 // pred_check
      _
    $region10: #{bottleneck_forward.5} parent=5 // pred_check_branch
      %183 = sbr.rel (%p180) target = $region12
    $region11: #{bottleneck_forward.5} parent=5 // pred_region
      %s184 = ssub.s32 %s13, 1
      // Predicated region
      $region13: #{bottleneck_forward.5} parent=11 // pred_check
        %p185 = pneg %p60
      $region14: #{bottleneck_forward.5} parent=11 // pred_check_branch
        %187 = sbr.rel (%p185) target = $region16
      $region15: #{bottleneck_forward.5} parent=11 // pred_region
        _
      $region16: #{bottleneck_forward.5} parent=11 // pred_fallthru
        _
      // Predicated region
      $region17: #{bottleneck_forward.5} parent=11 // pred_check
        %p188 = pneg %p81
      $region18: #{bottleneck_forward.5} parent=11 // pred_check_branch
        %190 = sbr.rel (%p188) target = $region20
      $region19: #{bottleneck_forward.5} parent=11 // pred_region
        _
      $region20: #{bottleneck_forward.5} parent=11 // pred_fallthru
        _
      // Predicated region
      $region21: #{bottleneck_forward.5} parent=11 // pred_check
        %p191 = pneg %p102
      $region22: #{bottleneck_forward.5} parent=11 // pred_check_branch
        %193 = sbr.rel (%p191) target = $region24
      $region23: #{bottleneck_forward.5} parent=11 // pred_region
        _
      $region24: #{bottleneck_forward.5} parent=11 // pred_fallthru
        _
      // Predicated region
      $region25: #{bottleneck_forward.5} parent=11 // pred_check
        %p194 = pneg %p123
      $region26: #{bottleneck_forward.5} parent=11 // pred_check_branch
        %196 = sbr.rel (%p194) target = $region28
      $region27: #{bottleneck_forward.5} parent=11 // pred_region
        _
      $region28: #{bottleneck_forward.5} parent=11 // pred_fallthru
        _
    $region12: #{bottleneck_forward.5} parent=5 // pred_fallthru
      _
    %p197 = scmp.lt.s32.totalorder %s13, 2
    // Predicated region
    $region29: #{bottleneck_forward.5} parent=5 // pred_check
      %p198 = pneg %p197
    $region30: #{bottleneck_forward.5} parent=5 // pred_check_branch
      %200 = sbr.rel (%p198) target = $region32
    $region31: #{bottleneck_forward.5} parent=5 // pred_region
      // Predicated region
      $region33: #{bottleneck_forward.5} parent=31 // pred_check
        %p201 = pneg %p33
      $region34: #{bottleneck_forward.5} parent=31 // pred_check_branch
        %203 = sbr.rel (%p201) target = $region36
      $region35: #{bottleneck_forward.5} parent=31 // pred_region
        %p204 = scmp.lt.s32.totalorder %s13, 1
        %s205 = scalar_select %p204, %s13, 1
        %s206 = smul.addr %s205, 32
        %s207 = smul.addr %s206, 8
        %s208 = scalar_lea.vmem %s0, %s207
      $region36: #{bottleneck_forward.5} parent=31 // pred_fallthru
        _
    $region32: #{bottleneck_forward.5} parent=5 // pred_fallthru
      _
    %p209 = scmp.le.s32.totalorder 1, %s13
    %p210 = scmp.lt.s32.totalorder %s13, 3
    %p211 = pnand %p209, %p210
    %p212 = pneg %p211
    // Predicated region
    $region37: #{bottleneck_forward.5} parent=5 // pred_check
      _
    $region38: #{bottleneck_forward.5} parent=5 // pred_check_branch
      %214 = sbr.rel (%p211) target = $region40
    $region39: #{bottleneck_forward.5} parent=5 // pred_region
      %s215 = ssub.s32 %s13, 1
      %p216 = scmp.lt.s32.totalorder %s18, 1
      %s217 = scalar_select %p216, %s18, 1
      %s218 = smul.addr %s217, 32
      %s219 = smul.addr %s218, 8
      %s220 = scalar_lea.vmem %s0, %s219
      %p221 = pneg %p39
      %p222 = pneg %p36
      %p223 = pneg %p60
      %p224 = pneg %p57
      %p225 = pneg %p81
      %p226 = pneg %p78
      %p227 = pneg %p102
      %p228 = pneg %p99
      %p229 = pneg %p123
      %p230 = pneg %p120
      %p231 = pneg %p149
      %p232 = pneg %p146
      %p233 = scmp.lt.s32.totalorder %s18, 1
      %s234 = scalar_select %p233, %s18, 1
      %s235 = smul.addr %s234, 32
      %s236 = smul.addr %s235, 8
      %s237 = scalar_lea.vmem %s5, %s236
      %p238 = pneg %p170
      %p239 = pneg %p167
      %p240 = scmp.lt.s32.totalorder %s18, 1
      %s241 = scalar_select %p240, %s18, 1
      %s242 = smul.addr %s241, 32
      %s243 = smul.addr %s242, 8
      %s244 = scalar_lea.vmem %s0, %s243
      %p245 = scmp.lt.s32.totalorder %s18, 1
      %s246 = scalar_select %p245, %s18, 1
      %s247 = smul.addr %s246, 32
      %s248 = smul.addr %s247, 8
      %s249 = scalar_lea.vmem %s5, %s248
      %p250 = scmp.eq.s32.totalorder %s18, 0
      // Predicated region
      $region41: #{bottleneck_forward.5} parent=39 // pred_check
        %p251 = pneg %p250
      $region42: #{bottleneck_forward.5} parent=39 // pred_check_branch
        %253 = sbr.rel (%p251) target = $region44
      $region43: #{bottleneck_forward.5} parent=39 // pred_region
        %254 = vst [vmem:[%s6] sm:$0x3] 0.0
        %255 = vst [vmem:[#allocation2] sm:$0xff] 0.0
        %256 = vst [vmem:[#allocation2 + $0x8] sm:$0xff] 0.0
        %257 = vst [vmem:[#allocation2 + $0x10] sm:$0x3] 0.0
        %258 = vst [vmem:[#allocation2 + $0x18] sm:$0xff] 0.0
        %259 = vst [vmem:[#allocation2 + $0x20] sm:$0xff] 0.0
        %260 = vst [vmem:[#allocation2 + $0x28] sm:$0x3] 0.0
        %261 = vst [vmem:[#allocation2 + $0x30] sm:$0xff] 0.0
        %262 = vst [vmem:[#allocation2 + $0x38] sm:$0xff] 0.0
        %263 = vst [vmem:[#allocation2 + $0x40] sm:$0x3] 0.0
        %264 = vst [vmem:[#allocation2 + $0x48] sm:$0xff] 0.0
        %265 = vst [vmem:[#allocation2 + $0x50] sm:$0xff] 0.0
        %266 = vst [vmem:[#allocation2 + $0x58] sm:$0x3] 0.0
        %267 = vst [vmem:[#allocation2 + $0x60] sm:$0xff] 0.0
        %268 = vst [vmem:[#allocation2 + $0x68] sm:$0xff] 0.0
        %269 = vst [vmem:[#allocation2 + $0x70] sm:$0x3] 0.0
        %270 = vst [vmem:[#allocation2 + $0x78] sm:$0xff] 0.0
        %271 = vst [vmem:[#allocation2 + $0x80] sm:$0xff] 0.0
        %272 = vst [vmem:[#allocation2 + $0x88] sm:$0x3] 0.0
        %273 = vst [vmem:[#allocation2 + $0x90] sm:$0xff] 0.0
        %274 = vst [vmem:[#allocation2 + $0x98] sm:$0xff] 0.0
        %275 = vst [vmem:[#allocation2 + $0xa0] sm:$0x3] 0.0
        %276 = vst [vmem:[#allocation2 + $0xa8] sm:$0xff] 0.0
        %277 = vst [vmem:[#allocation2 + $0xb0] sm:$0xff] 0.0
        %278 = vst [vmem:[#allocation2 + $0xb8] sm:$0x3] 0.0
        %279 = vst [vmem:[#allocation2 + $0xc0] sm:$0xff] 0.0
        %280 = vst [vmem:[#allocation2 + $0xc8] sm:$0xff] 0.0
        %281 = vst [vmem:[#allocation2 + $0xd0] sm:$0x3] 0.0
        %282 = vst [vmem:[#allocation2 + $0xd8] sm:$0xff] 0.0
        %283 = vst [vmem:[#allocation2 + $0xe0] sm:$0xff] 0.0
        %284 = vst [vmem:[#allocation2 + $0xe8] sm:$0x3] 0.0
        %285 = vst [vmem:[#allocation2 + $0xf0] sm:$0xff] 0.0
        %286 = vst [vmem:[#allocation2 + $0xf8] sm:$0xff] 0.0
        %287 = vst [vmem:[#allocation2 + $0x100] sm:$0x3] 0.0
        %288 = vst [vmem:[#allocation2 + $0x108] sm:$0xff] 0.0
        %289 = vst [vmem:[#allocation2 + $0x110] sm:$0xff] 0.0
        %290 = vst [vmem:[#allocation2 + $0x118] sm:$0x3] 0.0
        %291 = vst [vmem:[#allocation2 + $0x120] sm:$0xff] 0.0
        %292 = vst [vmem:[#allocation2 + $0x128] sm:$0xff] 0.0
        %293 = vst [vmem:[#allocation2 + $0x130] sm:$0x3] 0.0
        %294 = vst [vmem:[#allocation2 + $0x138] sm:$0xff] 0.0
        %295 = vst [vmem:[#allocation2 + $0x140] sm:$0xff] 0.0
        %296 = vst [vmem:[#allocation2 + $0x148] sm:$0x3] 0.0
        %297 = vst [vmem:[#allocation2 + $0x150] sm:$0xff] 0.0
        %298 = vst [vmem:[#allocation2 + $0x158] sm:$0xff] 0.0
        %299 = vst [vmem:[#allocation2 + $0x160] sm:$0x3] 0.0
        %300 = vst [vmem:[#allocation2 + $0x168] sm:$0xff] 0.0
        %301 = vst [vmem:[#allocation2 + $0x170] sm:$0xff] 0.0
        %302 = vst [vmem:[#allocation2 + $0x178] sm:$0x3] 0.0
        %303 = vst [vmem:[#allocation2 + $0x180] sm:$0xff] 0.0
        %304 = vst [vmem:[#allocation2 + $0x188] sm:$0xff] 0.0
        %305 = vst [vmem:[#allocation2 + $0x190] sm:$0x3] 0.0
        %306 = vst [vmem:[#allocation2 + $0x198] sm:$0xff] 0.0
        %307 = vst [vmem:[#allocation2 + $0x1a0] sm:$0xff] 0.0
        %308 = vst [vmem:[#allocation2 + $0x1a8] sm:$0x3] 0.0
      $region44: #{bottleneck_forward.5} parent=39 // pred_fallthru
        _
      %v309 = vld [vmem:[%s1] sm:$0x1]
      %v310 = vmul.f32 %v309, 0.001953125
      %v311 = vld [vmem:[%s1 + $0x1] sm:$0x1]
      %v312 = vmul.f32 %v311, 0.001953125
      %v313 = vmul.f32 %v310, %v310
      %v314 = vsub.f32 %v312, %v313
      %v315 = vmax.f32 %v314, 0.0
      %v316 = vadd.f32 %v315, 1e-05
      %v317 = vrsqrt.pop %v316
      %v318 = vld [vmem:[%s2] sm:$0x1]
      %v319 = vmul.f32 %v317, %v318
      %v320 = vld [vmem:[%s3] sm:$0x1]
      %v321 = vmul.f32 %v310, %v319
      %v322 = vsub.f32 %v320, %v321
      %v323 = vld [vmem:[%s244] sm:$0xff]
      %v324 = vld [vmem:[%s244 + $0x8] sm:$0xff]
      %v325 = vld [vmem:[%s244 + $0x10] sm:$0xff]
      %v326 = vld [vmem:[%s244 + $0x18] sm:$0xff]
      %v327 = vld [vmem:[%s244 + $0x20] sm:$0xff]
      %v328 = vld [vmem:[%s244 + $0x28] sm:$0xff]
      %v329 = vld [vmem:[%s244 + $0x30] sm:$0xff]
      %v330 = vld [vmem:[%s244 + $0x38] sm:$0xff]
      %v331 = vld [vmem:[%s244 + $0x40] sm:$0xff]
      %v332 = vld [vmem:[%s244 + $0x48] sm:$0xff]
      %v333 = vld [vmem:[%s244 + $0x50] sm:$0xff]
      %v334 = vld [vmem:[%s244 + $0x58] sm:$0xff]
      %v335 = vld [vmem:[%s244 + $0x60] sm:$0xff]
      %v336 = vld [vmem:[%s244 + $0x68] sm:$0xff]
      %v337 = vld [vmem:[%s244 + $0x70] sm:$0xff]
      %v338 = vld [vmem:[%s244 + $0x78] sm:$0xff]
      %v339 = vld [vmem:[%s244 + $0x80] sm:$0xff]
      %v340 = vld [vmem:[%s244 + $0x88] sm:$0xff]
      %v341 = vld [vmem:[%s244 + $0x90] sm:$0xff]
      %v342 = vld [vmem:[%s244 + $0x98] sm:$0xff]
      %v343 = vld [vmem:[%s244 + $0xa0] sm:$0xff]
      %v344 = vld [vmem:[%s244 + $0xa8] sm:$0xff]
      %v345 = vld [vmem:[%s244 + $0xb0] sm:$0xff]
      %v346 = vld [vmem:[%s244 + $0xb8] sm:$0xff]
      %v347 = vld [vmem:[%s244 + $0xc0] sm:$0xff]
      %v348 = vld [vmem:[%s244 + $0xc8] sm:$0xff]
      %v349 = vld [vmem:[%s244 + $0xd0] sm:$0xff]
      %v350 = vld [vmem:[%s244 + $0xd8] sm:$0xff]
      %v351 = vld [vmem:[%s244 + $0xe0] sm:$0xff]
      %v352 = vld [vmem:[%s244 + $0xe8] sm:$0xff]
      %v353 = vld [vmem:[%s244 + $0xf0] sm:$0xff]
      %v354 = vld [vmem:[%s244 + $0xf8] sm:$0xff]
      %v355 = vlaneseq
      %v356 = vshrl.u32 %v355, 7
      %v357 = vsub.s32 0, %v356
      %v358 = vrot.slane %v319, %v357
      %v359 = vmul.f32 %v323, %v358
      %v360 = vmul.f32 %v324, %v358
      %v361 = vmul.f32 %v325, %v358
      %v362 = vmul.f32 %v326, %v358
      %v363 = vmul.f32 %v327, %v358
      %v364 = vmul.f32 %v328, %v358
      %v365 = vmul.f32 %v329, %v358
      %v366 = vmul.f32 %v330, %v358
      %v367 = vmul.f32 %v331, %v358
      %v368 = vmul.f32 %v332, %v358
      %v369 = vmul.f32 %v333, %v358
      %v370 = vmul.f32 %v334, %v358
      %v371 = vmul.f32 %v335, %v358
      %v372 = vmul.f32 %v336, %v358
      %v373 = vmul.f32 %v337, %v358
      %v374 = vmul.f32 %v338, %v358
      %v375 = vmul.f32 %v339, %v358
      %v376 = vmul.f32 %v340, %v358
      %v377 = vmul.f32 %v341, %v358
      %v378 = vmul.f32 %v342, %v358
      %v379 = vmul.f32 %v343, %v358
      %v380 = vmul.f32 %v344, %v358
      %v381 = vmul.f32 %v345, %v358
      %v382 = vmul.f32 %v346, %v358
      %v383 = vmul.f32 %v347, %v358
      %v384 = vmul.f32 %v348, %v358
      %v385 = vmul.f32 %v349, %v358
      %v386 = vmul.f32 %v350, %v358
      %v387 = vmul.f32 %v351, %v358
      %v388 = vmul.f32 %v352, %v358
      %v389 = vmul.f32 %v353, %v358
      %v390 = vmul.f32 %v354, %v358
      %v392 = vlaneseq
      %v393 = vshrl.u32 %v392, 7
      %v394 = vsub.s32 0, %v393
      %v395 = vrot.slane %v322, %v394
      %v397 = vadd.f32 %v359, %v395
      %v398 = vadd.f32 %v360, %v395
      %v399 = vadd.f32 %v361, %v395
      %v400 = vadd.f32 %v362, %v395
      %v401 = vadd.f32 %v363, %v395
      %v402 = vadd.f32 %v364, %v395
      %v403 = vadd.f32 %v365, %v395
      %v404 = vadd.f32 %v366, %v395
      %v405 = vadd.f32 %v367, %v395
      %v406 = vadd.f32 %v368, %v395
      %v407 = vadd.f32 %v369, %v395
      %v408 = vadd.f32 %v370, %v395
      %v409 = vadd.f32 %v371, %v395
      %v410 = vadd.f32 %v372, %v395
      %v411 = vadd.f32 %v373, %v395
      %v412 = vadd.f32 %v374, %v395
      %v413 = vadd.f32 %v375, %v395
      %v414 = vadd.f32 %v376, %v395
      %v415 = vadd.f32 %v377, %v395
      %v416 = vadd.f32 %v378, %v395
      %v417 = vadd.f32 %v379, %v395
      %v418 = vadd.f32 %v380, %v395
      %v419 = vadd.f32 %v381, %v395
      %v420 = vadd.f32 %v382, %v395
      %v421 = vadd.f32 %v383, %v395
      %v422 = vadd.f32 %v384, %v395
      %v423 = vadd.f32 %v385, %v395
      %v424 = vadd.f32 %v386, %v395
      %v425 = vadd.f32 %v387, %v395
      %v426 = vadd.f32 %v388, %v395
      %v427 = vadd.f32 %v389, %v395
      %v428 = vadd.f32 %v390, %v395
      %v429 = vmax.f32 %v397, 0.0
      %v430 = vmax.f32 %v398, 0.0
      %v431 = vmax.f32 %v399, 0.0
      %v432 = vmax.f32 %v400, 0.0
      %v433 = vmax.f32 %v401, 0.0
      %v434 = vmax.f32 %v402, 0.0
      %v435 = vmax.f32 %v403, 0.0
      %v436 = vmax.f32 %v404, 0.0
      %v437 = vmax.f32 %v405, 0.0
      %v438 = vmax.f32 %v406, 0.0
      %v439 = vmax.f32 %v407, 0.0
      %v440 = vmax.f32 %v408, 0.0
      %v441 = vmax.f32 %v409, 0.0
      %v442 = vmax.f32 %v410, 0.0
      %v443 = vmax.f32 %v411, 0.0
      %v444 = vmax.f32 %v412, 0.0
      %v445 = vmax.f32 %v413, 0.0
      %v446 = vmax.f32 %v414, 0.0
      %v447 = vmax.f32 %v415, 0.0
      %v448 = vmax.f32 %v416, 0.0
      %v449 = vmax.f32 %v417, 0.0
      %v450 = vmax.f32 %v418, 0.0
      %v451 = vmax.f32 %v419, 0.0
      %v452 = vmax.f32 %v420, 0.0
      %v453 = vmax.f32 %v421, 0.0
      %v454 = vmax.f32 %v422, 0.0
      %v455 = vmax.f32 %v423, 0.0
      %v456 = vmax.f32 %v424, 0.0
      %v457 = vmax.f32 %v425, 0.0
      %v458 = vmax.f32 %v426, 0.0
      %v459 = vmax.f32 %v427, 0.0
      %v460 = vmax.f32 %v428, 0.0
      %s461 = scalar_lea.vmem [#allocation2], 24
      %462 = vst [vmem:[%s461 + $0x1] sm:$0xff] %v429
      %463 = vst [vmem:[%s461 + $0x9] sm:$0xff] %v430
      %464 = vst [vmem:[%s461 + $0x19] sm:$0xff] %v431
      %465 = vst [vmem:[%s461 + $0x21] sm:$0xff] %v432
      %466 = vst [vmem:[%s461 + $0x31] sm:$0xff] %v433
      %467 = vst [vmem:[%s461 + $0x39] sm:$0xff] %v434
      %468 = vst [vmem:[%s461 + $0x49] sm:$0xff] %v435
      %469 = vst [vmem:[%s461 + $0x51] sm:$0xff] %v436
      %470 = vst [vmem:[%s461 + $0x61] sm:$0xff] %v437
      %471 = vst [vmem:[%s461 + $0x69] sm:$0xff] %v438
      %472 = vst [vmem:[%s461 + $0x79] sm:$0xff] %v439
      %473 = vst [vmem:[%s461 + $0x81] sm:$0xff] %v440
      %474 = vst [vmem:[%s461 + $0x91] sm:$0xff] %v441
      %475 = vst [vmem:[%s461 + $0x99] sm:$0xff] %v442
      %476 = vst [vmem:[%s461 + $0xa9] sm:$0xff] %v443
      %477 = vst [vmem:[%s461 + $0xb1] sm:$0xff] %v444
      %478 = vst [vmem:[%s461 + $0xc1] sm:$0xff] %v445
      %479 = vst [vmem:[%s461 + $0xc9] sm:$0xff] %v446
      %480 = vst [vmem:[%s461 + $0xd9] sm:$0xff] %v447
      %481 = vst [vmem:[%s461 + $0xe1] sm:$0xff] %v448
      %482 = vst [vmem:[%s461 + $0xf1] sm:$0xff] %v449
      %483 = vst [vmem:[%s461 + $0xf9] sm:$0xff] %v450
      %484 = vst [vmem:[%s461 + $0x109] sm:$0xff] %v451
      %485 = vst [vmem:[%s461 + $0x111] sm:$0xff] %v452
      %486 = vst [vmem:[%s461 + $0x121] sm:$0xff] %v453
      %487 = vst [vmem:[%s461 + $0x129] sm:$0xff] %v454
      %488 = vst [vmem:[%s461 + $0x139] sm:$0xff] %v455
      %489 = vst [vmem:[%s461 + $0x141] sm:$0xff] %v456
      %490 = vst [vmem:[%s461 + $0x151] sm:$0xff] %v457
      %491 = vst [vmem:[%s461 + $0x159] sm:$0xff] %v458
      %492 = vst [vmem:[%s461 + $0x169] sm:$0xff] %v459
      %493 = vst [vmem:[%s461 + $0x171] sm:$0xff] %v460
      %v494 = vld [vmem:[#allocation2] sm:$0xff]
      %v495 = vld [vmem:[#allocation2 + $0x8] sm:$0xff]
      %v496 = vld [vmem:[#allocation2 + $0x10] sm:$0x3]
      %v497 = vld [vmem:[#allocation2 + $0x18] sm:$0xff]
      %v498 = vld [vmem:[#allocation2 + $0x20] sm:$0xff]
      %v499 = vld [vmem:[#allocation2 + $0x28] sm:$0x3]
      %v500 = vld [vmem:[#allocation2 + $0x30] sm:$0xff]
      %v501 = vld [vmem:[#allocation2 + $0x38] sm:$0xff]
      %v502 = vld [vmem:[#allocation2 + $0x40] sm:$0x3]
      %v503 = vld [vmem:[#allocation2 + $0x48] sm:$0xff]
      %v504 = vld [vmem:[#allocation2 + $0x50] sm:$0xff]
      %v505 = vld [vmem:[#allocation2 + $0x58] sm:$0x3]
      %v506 = vld [vmem:[#allocation2 + $0x60] sm:$0xff]
      %v507 = vld [vmem:[#allocation2 + $0x68] sm:$0xff]
      %v508 = vld [vmem:[#allocation2 + $0x70] sm:$0x3]
      %v509 = vld [vmem:[#allocation2 + $0x78] sm:$0xff]
      %v510 = vld [vmem:[#allocation2 + $0x80] sm:$0xff]
      %v511 = vld [vmem:[#allocation2 + $0x88] sm:$0x3]
      %v512 = vld [vmem:[#allocation2 + $0x90] sm:$0xff]
      %v513 = vld [vmem:[#allocation2 + $0x98] sm:$0xff]
      %v514 = vld [vmem:[#allocation2 + $0xa0] sm:$0x3]
      %v515 = vld [vmem:[#allocation2 + $0xa8] sm:$0xff]
      %v516 = vld [vmem:[#allocation2 + $0xb0] sm:$0xff]
      %v517 = vld [vmem:[#allocation2 + $0xb8] sm:$0x3]
      %v518 = vld [vmem:[#allocation2 + $0xc0] sm:$0xff]
      %v519 = vld [vmem:[#allocation2 + $0xc8] sm:$0xff]
      %v520 = vld [vmem:[#allocation2 + $0xd0] sm:$0x3]
      %v521 = vld [vmem:[#allocation2 + $0xd8] sm:$0xff]
      %v522 = vld [vmem:[#allocation2 + $0xe0] sm:$0xff]
      %v523 = vld [vmem:[#allocation2 + $0xe8] sm:$0x3]
      %v524 = vld [vmem:[#allocation2 + $0xf0] sm:$0xff]
      %v525 = vld [vmem:[#allocation2 + $0xf8] sm:$0xff]
      %v526 = vld [vmem:[#allocation2 + $0x100] sm:$0x3]
      %v527 = vld [vmem:[#allocation2 + $0x108] sm:$0xff]
      %v528 = vld [vmem:[#allocation2 + $0x110] sm:$0xff]
      %v529 = vld [vmem:[#allocation2 + $0x118] sm:$0x3]
      %v530 = vld [vmem:[#allocation2 + $0x120] sm:$0xff]
      %v531 = vld [vmem:[#allocation2 + $0x128] sm:$0xff]
      %v532 = vld [vmem:[#allocation2 + $0x130] sm:$0x3]
      %v533 = vld [vmem:[#allocation2 + $0x138] sm:$0xff]
      %v534 = vld [vmem:[#allocation2 + $0x140] sm:$0xff]
      %v535 = vld [vmem:[#allocation2 + $0x148] sm:$0x3]
      %v536 = vld [vmem:[#allocation2 + $0x150] sm:$0xff]
      %v537 = vld [vmem:[#allocation2 + $0x158] sm:$0xff]
      %v538 = vld [vmem:[#allocation2 + $0x160] sm:$0x3]
      %v539 = vld [vmem:[#allocation2 + $0x168] sm:$0xff]
      %v540 = vld [vmem:[#allocation2 + $0x170] sm:$0xff]
      %v541 = vld [vmem:[#allocation2 + $0x178] sm:$0x3]
      %v542 = vld [vmem:[#allocation2 + $0x180] sm:$0xff]
      %v543 = vld [vmem:[#allocation2 + $0x188] sm:$0xff]
      %v544 = vld [vmem:[#allocation2 + $0x190] sm:$0x3]
      %v545 = vld [vmem:[#allocation2 + $0x198] sm:$0xff]
      %v546 = vld [vmem:[#allocation2 + $0x1a0] sm:$0xff]
      %v547 = vld [vmem:[#allocation2 + $0x1a8] sm:$0x3]
      %v548 = vld [vmem:[%s4] sm:$0xff]
      %v549 = vld [vmem:[%s4 + $0x8] sm:$0xff]
      %v550 = vld [vmem:[%s4 + $0x10] sm:$0xff]
      %v551 = vld [vmem:[%s4 + $0x18] sm:$0xff]
      %v552 = vld [vmem:[%s4 + $0x20] sm:$0xff]
      %v553 = vld [vmem:[%s4 + $0x28] sm:$0xff]
      %v554 = vld [vmem:[%s4 + $0x30] sm:$0xff]
      %v555 = vld [vmem:[%s4 + $0x38] sm:$0xff]
      %v556 = vld [vmem:[%s4 + $0x40] sm:$0xff]
      %v557 = vld [vmem:[%s4 + $0x48] sm:$0xff]
      %v558 = vld [vmem:[%s4 + $0x50] sm:$0xff]
      %v559 = vld [vmem:[%s4 + $0x58] sm:$0xff]
      %v560 = vld [vmem:[%s4 + $0x60] sm:$0xff]
      %v561 = vld [vmem:[%s4 + $0x68] sm:$0xff]
      %v562 = vld [vmem:[%s4 + $0x70] sm:$0xff]
      %v563 = vld [vmem:[%s4 + $0x78] sm:$0xff]
      %vm612 = vcmask 1046528
      %v613 = vrot.slane %v494, 1
      %v614 = vrot.slane %v495, 1
      %v615 = vsel %vm612, %v613, %v614
      %v616 = vrot.slane %v496, 1
      %v617 = vsel %vm612, %v614, %v616
      %v618 = vrot.slane %v497, 1
      %v619 = vrot.slane %v498, 1
      %v620 = vsel %vm612, %v618, %v619
      %v621 = vrot.slane %v499, 1
      %v622 = vsel %vm612, %v619, %v621
      %v623 = vrot.slane %v500, 1
      %v624 = vrot.slane %v501, 1
      %v625 = vsel %vm612, %v623, %v624
      %v626 = vrot.slane %v502, 1
      %v627 = vsel %vm612, %v624, %v626
      %v628 = vrot.slane %v503, 1
      %v629 = vrot.slane %v504, 1
      %v630 = vsel %vm612, %v628, %v629
      %v631 = vrot.slane %v505, 1
      %v632 = vsel %vm612, %v629, %v631
      %v633 = vrot.slane %v506, 1
      %v634 = vrot.slane %v507, 1
      %v635 = vsel %vm612, %v633, %v634
      %v636 = vrot.slane %v508, 1
      %v637 = vsel %vm612, %v634, %v636
      %v638 = vrot.slane %v509, 1
      %v639 = vrot.slane %v510, 1
      %v640 = vsel %vm612, %v638, %v639
      %v641 = vrot.slane %v511, 1
      %v642 = vsel %vm612, %v639, %v641
      %v643 = vrot.slane %v512, 1
      %v644 = vrot.slane %v513, 1
      %v645 = vsel %vm612, %v643, %v644
      %v646 = vrot.slane %v514, 1
      %v647 = vsel %vm612, %v644, %v646
      %v648 = vrot.slane %v515, 1
      %v649 = vrot.slane %v516, 1
      %v650 = vsel %vm612, %v648, %v649
      %v651 = vrot.slane %v517, 1
      %v652 = vsel %vm612, %v649, %v651
      %v653 = vrot.slane %v518, 1
      %v654 = vrot.slane %v519, 1
      %v655 = vsel %vm612, %v653, %v654
      %v656 = vrot.slane %v520, 1
      %v657 = vsel %vm612, %v654, %v656
      %v658 = vrot.slane %v521, 1
      %v659 = vrot.slane %v522, 1
      %v660 = vsel %vm612, %v658, %v659
      %v661 = vrot.slane %v523, 1
      %v662 = vsel %vm612, %v659, %v661
      %v663 = vrot.slane %v524, 1
      %v664 = vrot.slane %v525, 1
      %v665 = vsel %vm612, %v663, %v664
      %v666 = vrot.slane %v526, 1
      %v667 = vsel %vm612, %v664, %v666
      %v668 = vrot.slane %v527, 1
      %v669 = vrot.slane %v528, 1
      %v670 = vsel %vm612, %v668, %v669
      %v671 = vrot.slane %v529, 1
      %v672 = vsel %vm612, %v669, %v671
      %v673 = vrot.slane %v530, 1
      %v674 = vrot.slane %v531, 1
      %v675 = vsel %vm612, %v673, %v674
      %v676 = vrot.slane %v532, 1
      %v677 = vsel %vm612, %v674, %v676
      %v678 = vrot.slane %v533, 1
      %v679 = vrot.slane %v534, 1
      %v680 = vsel %vm612, %v678, %v679
      %v681 = vrot.slane %v535, 1
      %v682 = vsel %vm612, %v679, %v681
      %v683 = vrot.slane %v536, 1
      %v684 = vrot.slane %v537, 1
      %v685 = vsel %vm612, %v683, %v684
      %v686 = vrot.slane %v538, 1
      %v687 = vsel %vm612, %v684, %v686
      %v688 = vrot.slane %v539, 1
      %v689 = vrot.slane %v540, 1
      %v690 = vsel %vm612, %v688, %v689
      %v691 = vrot.slane %v541, 1
      %v692 = vsel %vm612, %v689, %v691
      %s725 = scalar_lea.vmem %s4, 128
      %v726 = vld [vmem:[%s725] sm:$0xff]
      %v727 = vld [vmem:[%s725 + $0x8] sm:$0xff]
      %v728 = vld [vmem:[%s725 + $0x10] sm:$0xff]
      %v729 = vld [vmem:[%s725 + $0x18] sm:$0xff]
      %v730 = vld [vmem:[%s725 + $0x20] sm:$0xff]
      %v731 = vld [vmem:[%s725 + $0x28] sm:$0xff]
      %v732 = vld [vmem:[%s725 + $0x30] sm:$0xff]
      %v733 = vld [vmem:[%s725 + $0x38] sm:$0xff]
      %v734 = vld [vmem:[%s725 + $0x40] sm:$0xff]
      %v735 = vld [vmem:[%s725 + $0x48] sm:$0xff]
      %v736 = vld [vmem:[%s725 + $0x50] sm:$0xff]
      %v737 = vld [vmem:[%s725 + $0x58] sm:$0xff]
      %v738 = vld [vmem:[%s725 + $0x60] sm:$0xff]
      %v739 = vld [vmem:[%s725 + $0x68] sm:$0xff]
      %v740 = vld [vmem:[%s725 + $0x70] sm:$0xff]
      %v741 = vld [vmem:[%s725 + $0x78] sm:$0xff]
      %742 = vmatprep.subr.mxu0 0.0
      %743 = vmatpush1.msra.mxu0 %v741
      %744 = vmatprep.subr.mxu0 0.0
      %745 = vmatpush1.msra.mxu0 %v740
      %746 = vmatprep.subr.mxu0 0.0
      %747 = vmatpush1.msra.mxu0 %v739
      %748 = vmatprep.subr.mxu0 0.0
      %749 = vmatpush1.msra.mxu0 %v738
      %750 = vmatprep.subr.mxu0 0.0
      %751 = vmatpush1.msra.mxu0 %v737
      %752 = vmatprep.subr.mxu0 0.0
      %753 = vmatpush1.msra.mxu0 %v736
      %754 = vmatprep.subr.mxu0 0.0
      %755 = vmatpush1.msra.mxu0 %v735
      %756 = vmatprep.subr.mxu0 0.0
      %757 = vmatpush1.msra.mxu0 %v734
      %758 = vmatprep.subr.mxu0 0.0
      %759 = vmatpush1.msra.mxu0 %v733
      %760 = vmatprep.subr.mxu0 0.0
      %761 = vmatpush1.msra.mxu0 %v732
      %762 = vmatprep.subr.mxu0 0.0
      %763 = vmatpush1.msra.mxu0 %v731
      %764 = vmatprep.subr.mxu0 0.0
      %765 = vmatpush1.msra.mxu0 %v730
      %766 = vmatprep.subr.mxu0 0.0
      %767 = vmatpush1.msra.mxu0 %v729
      %768 = vmatprep.subr.mxu0 0.0
      %769 = vmatpush1.msra.mxu0 %v728
      %770 = vmatprep.subr.mxu0 0.0
      %771 = vmatpush1.msra.mxu0 %v727
      %772 = vmatprep.subr.mxu0 0.0
      %773 = vmatpush1.msra.mxu0 %v726
      %774 = vmatprep.subr.mxu0 0.0
      %775 = vmatpush2.msra.mxu0 0.0
      %776 = vmatprep.subr.mxu0 0.0
      %777 = vmatpush2.msra.mxu0 0.0
      %778 = vmatprep.subr.mxu0 0.0
      %779 = vmatpush2.msra.mxu0 0.0
      %780 = vmatprep.subr.mxu0 0.0
      %781 = vmatpush2.msra.mxu0 0.0
      %782 = vmatprep.subr.mxu0 0.0
      %783 = vmatpush2.msra.mxu0 0.0
      %784 = vmatprep.subr.mxu0 0.0
      %785 = vmatpush2.msra.mxu0 0.0
      %786 = vmatprep.subr.mxu0 0.0
      %787 = vmatpush2.msra.mxu0 0.0
      %788 = vmatprep.subr.mxu0 0.0
      %789 = vmatpush2.msra.mxu0 0.0
      %790 = vmatprep.subr.mxu0 0.0
      %791 = vmatpush2.msra.mxu0 0.0
      %792 = vmatprep.subr.mxu0 0.0
      %793 = vmatpush2.msra.mxu0 0.0
      %794 = vmatprep.subr.mxu0 0.0
      %795 = vmatpush2.msra.mxu0 0.0
      %796 = vmatprep.subr.mxu0 0.0
      %797 = vmatpush2.msra.mxu0 0.0
      %798 = vmatprep.subr.mxu0 0.0
      %799 = vmatpush2.msra.mxu0 0.0
      %800 = vmatprep.subr.mxu0 0.0
      %801 = vmatpush2.msra.mxu0 0.0
      %802 = vmatprep.subr.mxu0 0.0
      %803 = vmatpush2.msra.mxu0 0.0
      %804 = vmatprep.subr.mxu0 0.0
      %805 = vmatpush2.msra.mxu0 0.0
      %806 = vmatprep.mubr.f32.mxu0 0.0
      %807 = vmatmul.mubr.f32.gmra.mxu0 %v615
      %v808 = vpop.f32.mrf.mxu0
      %v809 = vadd.f32 0.0, %v808
      %v810 = vpop.f32.mrf.mxu0
      %811 = vmatprep.mubr.f32.mxu0 0.0
      %812 = vmatmul.mubr.f32.gmra.mxu0 %v617
      %v813 = vpop.f32.mrf.mxu0
      %v814 = vadd.f32 0.0, %v813
      %v815 = vpop.f32.mrf.mxu0
      %816 = vmatprep.mubr.f32.mxu0 0.0
      %817 = vmatmul.mubr.f32.gmra.mxu0 %v620
      %v818 = vpop.f32.mrf.mxu0
      %v819 = vadd.f32 0.0, %v818
      %v820 = vpop.f32.mrf.mxu0
      %821 = vmatprep.mubr.f32.mxu0 0.0
      %822 = vmatmul.mubr.f32.gmra.mxu0 %v622
      %v823 = vpop.f32.mrf.mxu0
      %v824 = vadd.f32 0.0, %v823
      %v825 = vpop.f32.mrf.mxu0
      %826 = vmatprep.mubr.f32.mxu0 0.0
      %827 = vmatmul.mubr.f32.gmra.mxu0 %v625
      %v828 = vpop.f32.mrf.mxu0
      %v829 = vadd.f32 0.0, %v828
      %v830 = vpop.f32.mrf.mxu0
      %831 = vmatprep.mubr.f32.mxu0 0.0
      %832 = vmatmul.mubr.f32.gmra.mxu0 %v627
      %v833 = vpop.f32.mrf.mxu0
      %v834 = vadd.f32 0.0, %v833
      %v835 = vpop.f32.mrf.mxu0
      %836 = vmatprep.mubr.f32.mxu0 0.0
      %837 = vmatmul.mubr.f32.gmra.mxu0 %v630
      %v838 = vpop.f32.mrf.mxu0
      %v839 = vadd.f32 0.0, %v838
      %v840 = vpop.f32.mrf.mxu0
      %841 = vmatprep.mubr.f32.mxu0 0.0
      %842 = vmatmul.mubr.f32.gmra.mxu0 %v632
      %v843 = vpop.f32.mrf.mxu0
      %v844 = vadd.f32 0.0, %v843
      %v845 = vpop.f32.mrf.mxu0
      %846 = vmatprep.mubr.f32.mxu0 0.0
      %847 = vmatmul.mubr.f32.gmra.mxu0 %v635
      %v848 = vpop.f32.mrf.mxu0
      %v849 = vadd.f32 0.0, %v848
      %v850 = vpop.f32.mrf.mxu0
      %851 = vmatprep.mubr.f32.mxu0 0.0
      %852 = vmatmul.mubr.f32.gmra.mxu0 %v637
      %v853 = vpop.f32.mrf.mxu0
      %v854 = vadd.f32 0.0, %v853
      %v855 = vpop.f32.mrf.mxu0
      %856 = vmatprep.mubr.f32.mxu0 0.0
      %857 = vmatmul.mubr.f32.gmra.mxu0 %v640
      %v858 = vpop.f32.mrf.mxu0
      %v859 = vadd.f32 0.0, %v858
      %v860 = vpop.f32.mrf.mxu0
      %861 = vmatprep.mubr.f32.mxu0 0.0
      %862 = vmatmul.mubr.f32.gmra.mxu0 %v642
      %v863 = vpop.f32.mrf.mxu0
      %v864 = vadd.f32 0.0, %v863
      %v865 = vpop.f32.mrf.mxu0
      %866 = vmatprep.mubr.f32.mxu0 0.0
      %867 = vmatmul.mubr.f32.gmra.mxu0 %v645
      %v868 = vpop.f32.mrf.mxu0
      %v869 = vadd.f32 0.0, %v868
      %v870 = vpop.f32.mrf.mxu0
      %871 = vmatprep.mubr.f32.mxu0 0.0
      %872 = vmatmul.mubr.f32.gmra.mxu0 %v647
      %v873 = vpop.f32.mrf.mxu0
      %v874 = vadd.f32 0.0, %v873
      %v875 = vpop.f32.mrf.mxu0
      %876 = vmatprep.mubr.f32.mxu0 0.0
      %877 = vmatmul.mubr.f32.gmra.mxu0 %v650
      %v878 = vpop.f32.mrf.mxu0
      %v879 = vadd.f32 0.0, %v878
      %v880 = vpop.f32.mrf.mxu0
      %881 = vmatprep.mubr.f32.mxu0 0.0
      %882 = vmatmul.mubr.f32.gmra.mxu0 %v652
      %v883 = vpop.f32.mrf.mxu0
      %v884 = vadd.f32 0.0, %v883
      %v885 = vpop.f32.mrf.mxu0
      %886 = vmatprep.mubr.f32.mxu0 0.0
      %887 = vmatmul.mubr.f32.gmra.mxu0 %v655
      %v888 = vpop.f32.mrf.mxu0
      %v889 = vadd.f32 0.0, %v888
      %v890 = vpop.f32.mrf.mxu0
      %891 = vmatprep.mubr.f32.mxu0 0.0
      %892 = vmatmul.mubr.f32.gmra.mxu0 %v657
      %v893 = vpop.f32.mrf.mxu0
      %v894 = vadd.f32 0.0, %v893
      %v895 = vpop.f32.mrf.mxu0
      %896 = vmatprep.mubr.f32.mxu0 0.0
      %897 = vmatmul.mubr.f32.gmra.mxu0 %v660
      %v898 = vpop.f32.mrf.mxu0
      %v899 = vadd.f32 0.0, %v898
      %v900 = vpop.f32.mrf.mxu0
      %901 = vmatprep.mubr.f32.mxu0 0.0
      %902 = vmatmul.mubr.f32.gmra.mxu0 %v662
      %v903 = vpop.f32.mrf.mxu0
      %v904 = vadd.f32 0.0, %v903
      %v905 = vpop.f32.mrf.mxu0
      %906 = vmatprep.mubr.f32.mxu0 0.0
      %907 = vmatmul.mubr.f32.gmra.mxu0 %v665
      %v908 = vpop.f32.mrf.mxu0
      %v909 = vadd.f32 0.0, %v908
      %v910 = vpop.f32.mrf.mxu0
      %911 = vmatprep.mubr.f32.mxu0 0.0
      %912 = vmatmul.mubr.f32.gmra.mxu0 %v667
      %v913 = vpop.f32.mrf.mxu0
      %v914 = vadd.f32 0.0, %v913
      %v915 = vpop.f32.mrf.mxu0
      %916 = vmatprep.mubr.f32.mxu0 0.0
      %917 = vmatmul.mubr.f32.gmra.mxu0 %v670
      %v918 = vpop.f32.mrf.mxu0
      %v919 = vadd.f32 0.0, %v918
      %v920 = vpop.f32.mrf.mxu0
      %921 = vmatprep.mubr.f32.mxu0 0.0
      %922 = vmatmul.mubr.f32.gmra.mxu0 %v672
      %v923 = vpop.f32.mrf.mxu0
      %v924 = vadd.f32 0.0, %v923
      %v925 = vpop.f32.mrf.mxu0
      %926 = vmatprep.mubr.f32.mxu0 0.0
      %927 = vmatmul.mubr.f32.gmra.mxu0 %v675
      %v928 = vpop.f32.mrf.mxu0
      %v929 = vadd.f32 0.0, %v928
      %v930 = vpop.f32.mrf.mxu0
      %931 = vmatprep.mubr.f32.mxu0 0.0
      %932 = vmatmul.mubr.f32.gmra.mxu0 %v677
      %v933 = vpop.f32.mrf.mxu0
      %v934 = vadd.f32 0.0, %v933
      %v935 = vpop.f32.mrf.mxu0
      %936 = vmatprep.mubr.f32.mxu0 0.0
      %937 = vmatmul.mubr.f32.gmra.mxu0 %v680
      %v938 = vpop.f32.mrf.mxu0
      %v939 = vadd.f32 0.0, %v938
      %v940 = vpop.f32.mrf.mxu0
      %941 = vmatprep.mubr.f32.mxu0 0.0
      %942 = vmatmul.mubr.f32.gmra.mxu0 %v682
      %v943 = vpop.f32.mrf.mxu0
      %v944 = vadd.f32 0.0, %v943
      %v945 = vpop.f32.mrf.mxu0
      %946 = vmatprep.mubr.f32.mxu0 0.0
      %947 = vmatmul.mubr.f32.gmra.mxu0 %v685
      %v948 = vpop.f32.mrf.mxu0
      %v949 = vadd.f32 0.0, %v948
      %v950 = vpop.f32.mrf.mxu0
      %951 = vmatprep.mubr.f32.mxu0 0.0
      %952 = vmatmul.mubr.f32.gmra.mxu0 %v687
      %v953 = vpop.f32.mrf.mxu0
      %v954 = vadd.f32 0.0, %v953
      %v955 = vpop.f32.mrf.mxu0
      %956 = vmatprep.mubr.f32.mxu0 0.0
      %957 = vmatmul.mubr.f32.gmra.mxu0 %v690
      %v958 = vpop.f32.mrf.mxu0
      %v959 = vadd.f32 0.0, %v958
      %v960 = vpop.f32.mrf.mxu0
      %961 = vmatprep.mubr.f32.mxu0 0.0
      %962 = vmatmul.mubr.f32.gmra.mxu0 %v692
      %v963 = vpop.f32.mrf.mxu0
      %v964 = vadd.f32 0.0, %v963
      %v965 = vpop.f32.mrf.mxu0
      %966 = vdwg.mxu0
      %967 = vmatprep.subr.mxu0 0.0
      %968 = vmatpush1.msra.mxu0 %v563
      %969 = vmatprep.subr.mxu0 0.0
      %970 = vmatpush1.msra.mxu0 %v562
      %971 = vmatprep.subr.mxu0 0.0
      %972 = vmatpush1.msra.mxu0 %v561
      %973 = vmatprep.subr.mxu0 0.0
      %974 = vmatpush1.msra.mxu0 %v560
      %975 = vmatprep.subr.mxu0 0.0
      %976 = vmatpush1.msra.mxu0 %v559
      %977 = vmatprep.subr.mxu0 0.0
      %978 = vmatpush1.msra.mxu0 %v558
      %979 = vmatprep.subr.mxu0 0.0
      %980 = vmatpush1.msra.mxu0 %v557
      %981 = vmatprep.subr.mxu0 0.0
      %982 = vmatpush1.msra.mxu0 %v556
      %983 = vmatprep.subr.mxu0 0.0
      %984 = vmatpush1.msra.mxu0 %v555
      %985 = vmatprep.subr.mxu0 0.0
      %986 = vmatpush1.msra.mxu0 %v554
      %987 = vmatprep.subr.mxu0 0.0
      %988 = vmatpush1.msra.mxu0 %v553
      %989 = vmatprep.subr.mxu0 0.0
      %990 = vmatpush1.msra.mxu0 %v552
      %991 = vmatprep.subr.mxu0 0.0
      %992 = vmatpush1.msra.mxu0 %v551
      %993 = vmatprep.subr.mxu0 0.0
      %994 = vmatpush1.msra.mxu0 %v550
      %995 = vmatprep.subr.mxu0 0.0
      %996 = vmatpush1.msra.mxu0 %v549
      %997 = vmatprep.subr.mxu0 0.0
      %998 = vmatpush1.msra.mxu0 %v548
      %999 = vmatprep.subr.mxu0 0.0
      %1000 = vmatpush2.msra.mxu0 0.0
      %1001 = vmatprep.subr.mxu0 0.0
      %1002 = vmatpush2.msra.mxu0 0.0
      %1003 = vmatprep.subr.mxu0 0.0
      %1004 = vmatpush2.msra.mxu0 0.0
      %1005 = vmatprep.subr.mxu0 0.0
      %1006 = vmatpush2.msra.mxu0 0.0
      %1007 = vmatprep.subr.mxu0 0.0
      %1008 = vmatpush2.msra.mxu0 0.0
      %1009 = vmatprep.subr.mxu0 0.0
      %1010 = vmatpush2.msra.mxu0 0.0
      %1011 = vmatprep.subr.mxu0 0.0
      %1012 = vmatpush2.msra.mxu0 0.0
      %1013 = vmatprep.subr.mxu0 0.0
      %1014 = vmatpush2.msra.mxu0 0.0
      %1015 = vmatprep.subr.mxu0 0.0
      %1016 = vmatpush2.msra.mxu0 0.0
      %1017 = vmatprep.subr.mxu0 0.0
      %1018 = vmatpush2.msra.mxu0 0.0
      %1019 = vmatprep.subr.mxu0 0.0
      %1020 = vmatpush2.msra.mxu0 0.0
      %1021 = vmatprep.subr.mxu0 0.0
      %1022 = vmatpush2.msra.mxu0 0.0
      %1023 = vmatprep.subr.mxu0 0.0
      %1024 = vmatpush2.msra.mxu0 0.0
      %1025 = vmatprep.subr.mxu0 0.0
      %1026 = vmatpush2.msra.mxu0 0.0
      %1027 = vmatprep.subr.mxu0 0.0
      %1028 = vmatpush2.msra.mxu0 0.0
      %1029 = vmatprep.subr.mxu0 0.0
      %1030 = vmatpush2.msra.mxu0 0.0
      %1031 = vmatprep.mubr.f32.mxu0 0.0
      %1032 = vmatmul.mubr.f32.gmra.mxu0 %v494
      %v1033 = vpop.f32.mrf.mxu0
      %v1034 = vadd.f32 %v809, %v1033
      %v1035 = vpop.f32.mrf.mxu0
      %1036 = vmatprep.mubr.f32.mxu0 0.0
      %1037 = vmatmul.mubr.f32.gmra.mxu0 %v495
      %v1038 = vpop.f32.mrf.mxu0
      %v1039 = vadd.f32 %v814, %v1038
      %v1040 = vpop.f32.mrf.mxu0
      %1041 = vmatprep.mubr.f32.mxu0 0.0
      %1042 = vmatmul.mubr.f32.gmra.mxu0 %v497
      %v1043 = vpop.f32.mrf.mxu0
      %v1044 = vadd.f32 %v819, %v1043
      %v1045 = vpop.f32.mrf.mxu0
      %1046 = vmatprep.mubr.f32.mxu0 0.0
      %1047 = vmatmul.mubr.f32.gmra.mxu0 %v498
      %v1048 = vpop.f32.mrf.mxu0
      %v1049 = vadd.f32 %v824, %v1048
      %v1050 = vpop.f32.mrf.mxu0
      %1051 = vmatprep.mubr.f32.mxu0 0.0
      %1052 = vmatmul.mubr.f32.gmra.mxu0 %v500
      %v1053 = vpop.f32.mrf.mxu0
      %v1054 = vadd.f32 %v829, %v1053
      %v1055 = vpop.f32.mrf.mxu0
      %1056 = vmatprep.mubr.f32.mxu0 0.0
      %1057 = vmatmul.mubr.f32.gmra.mxu0 %v501
      %v1058 = vpop.f32.mrf.mxu0
      %v1059 = vadd.f32 %v834, %v1058
      %v1060 = vpop.f32.mrf.mxu0
      %1061 = vmatprep.mubr.f32.mxu0 0.0
      %1062 = vmatmul.mubr.f32.gmra.mxu0 %v503
      %v1063 = vpop.f32.mrf.mxu0
      %v1064 = vadd.f32 %v839, %v1063
      %v1065 = vpop.f32.mrf.mxu0
      %1066 = vmatprep.mubr.f32.mxu0 0.0
      %1067 = vmatmul.mubr.f32.gmra.mxu0 %v504
      %v1068 = vpop.f32.mrf.mxu0
      %v1069 = vadd.f32 %v844, %v1068
      %v1070 = vpop.f32.mrf.mxu0
      %1071 = vmatprep.mubr.f32.mxu0 0.0
      %1072 = vmatmul.mubr.f32.gmra.mxu0 %v506
      %v1073 = vpop.f32.mrf.mxu0
      %v1074 = vadd.f32 %v849, %v1073
      %v1075 = vpop.f32.mrf.mxu0
      %1076 = vmatprep.mubr.f32.mxu0 0.0
      %1077 = vmatmul.mubr.f32.gmra.mxu0 %v507
      %v1078 = vpop.f32.mrf.mxu0
      %v1079 = vadd.f32 %v854, %v1078
      %v1080 = vpop.f32.mrf.mxu0
      %1081 = vmatprep.mubr.f32.mxu0 0.0
      %1082 = vmatmul.mubr.f32.gmra.mxu0 %v509
      %v1083 = vpop.f32.mrf.mxu0
      %v1084 = vadd.f32 %v859, %v1083
      %v1085 = vpop.f32.mrf.mxu0
      %1086 = vmatprep.mubr.f32.mxu0 0.0
      %1087 = vmatmul.mubr.f32.gmra.mxu0 %v510
      %v1088 = vpop.f32.mrf.mxu0
      %v1089 = vadd.f32 %v864, %v1088
      %v1090 = vpop.f32.mrf.mxu0
      %1091 = vmatprep.mubr.f32.mxu0 0.0
      %1092 = vmatmul.mubr.f32.gmra.mxu0 %v512
      %v1093 = vpop.f32.mrf.mxu0
      %v1094 = vadd.f32 %v869, %v1093
      %v1095 = vpop.f32.mrf.mxu0
      %1096 = vmatprep.mubr.f32.mxu0 0.0
      %1097 = vmatmul.mubr.f32.gmra.mxu0 %v513
      %v1098 = vpop.f32.mrf.mxu0
      %v1099 = vadd.f32 %v874, %v1098
      %v1100 = vpop.f32.mrf.mxu0
      %1101 = vmatprep.mubr.f32.mxu0 0.0
      %1102 = vmatmul.mubr.f32.gmra.mxu0 %v515
      %v1103 = vpop.f32.mrf.mxu0
      %v1104 = vadd.f32 %v879, %v1103
      %v1105 = vpop.f32.mrf.mxu0
      %1106 = vmatprep.mubr.f32.mxu0 0.0
      %1107 = vmatmul.mubr.f32.gmra.mxu0 %v516
      %v1108 = vpop.f32.mrf.mxu0
      %v1109 = vadd.f32 %v884, %v1108
      %v1110 = vpop.f32.mrf.mxu0
      %1111 = vmatprep.mubr.f32.mxu0 0.0
      %1112 = vmatmul.mubr.f32.gmra.mxu0 %v518
      %v1113 = vpop.f32.mrf.mxu0
      %v1114 = vadd.f32 %v889, %v1113
      %v1115 = vpop.f32.mrf.mxu0
      %1116 = vmatprep.mubr.f32.mxu0 0.0
      %1117 = vmatmul.mubr.f32.gmra.mxu0 %v519
      %v1118 = vpop.f32.mrf.mxu0
      %v1119 = vadd.f32 %v894, %v1118
      %v1120 = vpop.f32.mrf.mxu0
      %1121 = vmatprep.mubr.f32.mxu0 0.0
      %1122 = vmatmul.mubr.f32.gmra.mxu0 %v521
      %v1123 = vpop.f32.mrf.mxu0
      %v1124 = vadd.f32 %v899, %v1123
      %v1125 = vpop.f32.mrf.mxu0
      %1126 = vmatprep.mubr.f32.mxu0 0.0
      %1127 = vmatmul.mubr.f32.gmra.mxu0 %v522
      %v1128 = vpop.f32.mrf.mxu0
      %v1129 = vadd.f32 %v904, %v1128
      %v1130 = vpop.f32.mrf.mxu0
      %1131 = vmatprep.mubr.f32.mxu0 0.0
      %1132 = vmatmul.mubr.f32.gmra.mxu0 %v524
      %v1133 = vpop.f32.mrf.mxu0
      %v1134 = vadd.f32 %v909, %v1133
      %v1135 = vpop.f32.mrf.mxu0
      %1136 = vmatprep.mubr.f32.mxu0 0.0
      %1137 = vmatmul.mubr.f32.gmra.mxu0 %v525
      %v1138 = vpop.f32.mrf.mxu0
      %v1139 = vadd.f32 %v914, %v1138
      %v1140 = vpop.f32.mrf.mxu0
      %1141 = vmatprep.mubr.f32.mxu0 0.0
      %1142 = vmatmul.mubr.f32.gmra.mxu0 %v527
      %v1143 = vpop.f32.mrf.mxu0
      %v1144 = vadd.f32 %v919, %v1143
      %v1145 = vpop.f32.mrf.mxu0
      %1146 = vmatprep.mubr.f32.mxu0 0.0
      %1147 = vmatmul.mubr.f32.gmra.mxu0 %v528
      %v1148 = vpop.f32.mrf.mxu0
      %v1149 = vadd.f32 %v924, %v1148
      %v1150 = vpop.f32.mrf.mxu0
      %1151 = vmatprep.mubr.f32.mxu0 0.0
      %1152 = vmatmul.mubr.f32.gmra.mxu0 %v530
      %v1153 = vpop.f32.mrf.mxu0
      %v1154 = vadd.f32 %v929, %v1153
      %v1155 = vpop.f32.mrf.mxu0
      %1156 = vmatprep.mubr.f32.mxu0 0.0
      %1157 = vmatmul.mubr.f32.gmra.mxu0 %v531
      %v1158 = vpop.f32.mrf.mxu0
      %v1159 = vadd.f32 %v934, %v1158
      %v1160 = vpop.f32.mrf.mxu0
      %1161 = vmatprep.mubr.f32.mxu0 0.0
      %1162 = vmatmul.mubr.f32.gmra.mxu0 %v533
      %v1163 = vpop.f32.mrf.mxu0
      %v1164 = vadd.f32 %v939, %v1163
      %v1165 = vpop.f32.mrf.mxu0
      %1166 = vmatprep.mubr.f32.mxu0 0.0
      %1167 = vmatmul.mubr.f32.gmra.mxu0 %v534
      %v1168 = vpop.f32.mrf.mxu0
      %v1169 = vadd.f32 %v944, %v1168
      %v1170 = vpop.f32.mrf.mxu0
      %1171 = vmatprep.mubr.f32.mxu0 0.0
      %1172 = vmatmul.mubr.f32.gmra.mxu0 %v536
      %v1173 = vpop.f32.mrf.mxu0
      %v1174 = vadd.f32 %v949, %v1173
      %v1175 = vpop.f32.mrf.mxu0
      %1176 = vmatprep.mubr.f32.mxu0 0.0
      %1177 = vmatmul.mubr.f32.gmra.mxu0 %v537
      %v1178 = vpop.f32.mrf.mxu0
      %v1179 = vadd.f32 %v954, %v1178
      %v1180 = vpop.f32.mrf.mxu0
      %1181 = vmatprep.mubr.f32.mxu0 0.0
      %1182 = vmatmul.mubr.f32.gmra.mxu0 %v539
      %v1183 = vpop.f32.mrf.mxu0
      %v1184 = vadd.f32 %v959, %v1183
      %v1185 = vpop.f32.mrf.mxu0
      %1186 = vmatprep.mubr.f32.mxu0 0.0
      %1187 = vmatmul.mubr.f32.gmra.mxu0 %v540
      %v1188 = vpop.f32.mrf.mxu0
      %v1189 = vadd.f32 %v964, %v1188
      %v1190 = vpop.f32.mrf.mxu0
      %1191 = vdwg.mxu0
      %vm1192 = vcmask 1045504
      %v1193 = vrot.slane %v494, 2
      %v1194 = vrot.slane %v495, 2
      %v1195 = vsel %vm1192, %v1193, %v1194
      %v1196 = vrot.slane %v496, 2
      %v1197 = vsel %vm1192, %v1194, %v1196
      %v1198 = vrot.slane %v497, 2
      %v1199 = vrot.slane %v498, 2
      %v1200 = vsel %vm1192, %v1198, %v1199
      %v1201 = vrot.slane %v499, 2
      %v1202 = vsel %vm1192, %v1199, %v1201
      %v1203 = vrot.slane %v500, 2
      %v1204 = vrot.slane %v501, 2
      %v1205 = vsel %vm1192, %v1203, %v1204
      %v1206 = vrot.slane %v502, 2
      %v1207 = vsel %vm1192, %v1204, %v1206
      %v1208 = vrot.slane %v503, 2
      %v1209 = vrot.slane %v504, 2
      %v1210 = vsel %vm1192, %v1208, %v1209
      %v1211 = vrot.slane %v505, 2
      %v1212 = vsel %vm1192, %v1209, %v1211
      %v1213 = vrot.slane %v506, 2
      %v1214 = vrot.slane %v507, 2
      %v1215 = vsel %vm1192, %v1213, %v1214
      %v1216 = vrot.slane %v508, 2
      %v1217 = vsel %vm1192, %v1214, %v1216
      %v1218 = vrot.slane %v509, 2
      %v1219 = vrot.slane %v510, 2
      %v1220 = vsel %vm1192, %v1218, %v1219
      %v1221 = vrot.slane %v511, 2
      %v1222 = vsel %vm1192, %v1219, %v1221
      %v1223 = vrot.slane %v512, 2
      %v1224 = vrot.slane %v513, 2
      %v1225 = vsel %vm1192, %v1223, %v1224
      %v1226 = vrot.slane %v514, 2
      %v1227 = vsel %vm1192, %v1224, %v1226
      %v1228 = vrot.slane %v515, 2
      %v1229 = vrot.slane %v516, 2
      %v1230 = vsel %vm1192, %v1228, %v1229
      %v1231 = vrot.slane %v517, 2
      %v1232 = vsel %vm1192, %v1229, %v1231
      %v1233 = vrot.slane %v518, 2
      %v1234 = vrot.slane %v519, 2
      %v1235 = vsel %vm1192, %v1233, %v1234
      %v1236 = vrot.slane %v520, 2
      %v1237 = vsel %vm1192, %v1234, %v1236
      %v1238 = vrot.slane %v521, 2
      %v1239 = vrot.slane %v522, 2
      %v1240 = vsel %vm1192, %v1238, %v1239
      %v1241 = vrot.slane %v523, 2
      %v1242 = vsel %vm1192, %v1239, %v1241
      %v1243 = vrot.slane %v524, 2
      %v1244 = vrot.slane %v525, 2
      %v1245 = vsel %vm1192, %v1243, %v1244
      %v1246 = vrot.slane %v526, 2
      %v1247 = vsel %vm1192, %v1244, %v1246
      %v1248 = vrot.slane %v527, 2
      %v1249 = vrot.slane %v528, 2
      %v1250 = vsel %vm1192, %v1248, %v1249
      %v1251 = vrot.slane %v529, 2
      %v1252 = vsel %vm1192, %v1249, %v1251
      %v1253 = vrot.slane %v530, 2
      %v1254 = vrot.slane %v531, 2
      %v1255 = vsel %vm1192, %v1253, %v1254
      %v1256 = vrot.slane %v532, 2
      %v1257 = vsel %vm1192, %v1254, %v1256
      %v1258 = vrot.slane %v533, 2
      %v1259 = vrot.slane %v534, 2
      %v1260 = vsel %vm1192, %v1258, %v1259
      %v1261 = vrot.slane %v535, 2
      %v1262 = vsel %vm1192, %v1259, %v1261
      %v1263 = vrot.slane %v536, 2
      %v1264 = vrot.slane %v537, 2
      %v1265 = vsel %vm1192, %v1263, %v1264
      %v1266 = vrot.slane %v538, 2
      %v1267 = vsel %vm1192, %v1264, %v1266
      %v1268 = vrot.slane %v539, 2
      %v1269 = vrot.slane %v540, 2
      %v1270 = vsel %vm1192, %v1268, %v1269
      %v1271 = vrot.slane %v541, 2
      %v1272 = vsel %vm1192, %v1269, %v1271
      %s1305 = scalar_lea.vmem %s4, 256
      %v1306 = vld [vmem:[%s1305] sm:$0xff]
      %v1307 = vld [vmem:[%s1305 + $0x8] sm:$0xff]
      %v1308 = vld [vmem:[%s1305 + $0x10] sm:$0xff]
      %v1309 = vld [vmem:[%s1305 + $0x18] sm:$0xff]
      %v1310 = vld [vmem:[%s1305 + $0x20] sm:$0xff]
      %v1311 = vld [vmem:[%s1305 + $0x28] sm:$0xff]
      %v1312 = vld [vmem:[%s1305 + $0x30] sm:$0xff]
      %v1313 = vld [vmem:[%s1305 + $0x38] sm:$0xff]
      %v1314 = vld [vmem:[%s1305 + $0x40] sm:$0xff]
      %v1315 = vld [vmem:[%s1305 + $0x48] sm:$0xff]
      %v1316 = vld [vmem:[%s1305 + $0x50] sm:$0xff]
      %v1317 = vld [vmem:[%s1305 + $0x58] sm:$0xff]
      %v1318 = vld [vmem:[%s1305 + $0x60] sm:$0xff]
      %v1319 = vld [vmem:[%s1305 + $0x68] sm:$0xff]
      %v1320 = vld [vmem:[%s1305 + $0x70] sm:$0xff]
      %v1321 = vld [vmem:[%s1305 + $0x78] sm:$0xff]
      %1322 = vmatprep.subr.mxu0 0.0
      %1323 = vmatpush1.msra.mxu0 %v1321
      %1324 = vmatprep.subr.mxu0 0.0
      %1325 = vmatpush1.msra.mxu0 %v1320
      %1326 = vmatprep.subr.mxu0 0.0
      %1327 = vmatpush1.msra.mxu0 %v1319
      %1328 = vmatprep.subr.mxu0 0.0
      %1329 = vmatpush1.msra.mxu0 %v1318
      %1330 = vmatprep.subr.mxu0 0.0
      %1331 = vmatpush1.msra.mxu0 %v1317
      %1332 = vmatprep.subr.mxu0 0.0
      %1333 = vmatpush1.msra.mxu0 %v1316
      %1334 = vmatprep.subr.mxu0 0.0
      %1335 = vmatpush1.msra.mxu0 %v1315
      %1336 = vmatprep.subr.mxu0 0.0
      %1337 = vmatpush1.msra.mxu0 %v1314
      %1338 = vmatprep.subr.mxu0 0.0
      %1339 = vmatpush1.msra.mxu0 %v1313
      %1340 = vmatprep.subr.mxu0 0.0
      %1341 = vmatpush1.msra.mxu0 %v1312
      %1342 = vmatprep.subr.mxu0 0.0
      %1343 = vmatpush1.msra.mxu0 %v1311
      %1344 = vmatprep.subr.mxu0 0.0
      %1345 = vmatpush1.msra.mxu0 %v1310
      %1346 = vmatprep.subr.mxu0 0.0
      %1347 = vmatpush1.msra.mxu0 %v1309
      %1348 = vmatprep.subr.mxu0 0.0
      %1349 = vmatpush1.msra.mxu0 %v1308
      %1350 = vmatprep.subr.mxu0 0.0
      %1351 = vmatpush1.msra.mxu0 %v1307
      %1352 = vmatprep.subr.mxu0 0.0
      %1353 = vmatpush1.msra.mxu0 %v1306
      %1354 = vmatprep.subr.mxu0 0.0
      %1355 = vmatpush2.msra.mxu0 0.0
      %1356 = vmatprep.subr.mxu0 0.0
      %1357 = vmatpush2.msra.mxu0 0.0
      %1358 = vmatprep.subr.mxu0 0.0
      %1359 = vmatpush2.msra.mxu0 0.0
      %1360 = vmatprep.subr.mxu0 0.0
      %1361 = vmatpush2.msra.mxu0 0.0
      %1362 = vmatprep.subr.mxu0 0.0
      %1363 = vmatpush2.msra.mxu0 0.0
      %1364 = vmatprep.subr.mxu0 0.0
      %1365 = vmatpush2.msra.mxu0 0.0
      %1366 = vmatprep.subr.mxu0 0.0
      %1367 = vmatpush2.msra.mxu0 0.0
      %1368 = vmatprep.subr.mxu0 0.0
      %1369 = vmatpush2.msra.mxu0 0.0
      %1370 = vmatprep.subr.mxu0 0.0
      %1371 = vmatpush2.msra.mxu0 0.0
      %1372 = vmatprep.subr.mxu0 0.0
      %1373 = vmatpush2.msra.mxu0 0.0
      %1374 = vmatprep.subr.mxu0 0.0
      %1375 = vmatpush2.msra.mxu0 0.0
      %1376 = vmatprep.subr.mxu0 0.0
      %1377 = vmatpush2.msra.mxu0 0.0
      %1378 = vmatprep.subr.mxu0 0.0
      %1379 = vmatpush2.msra.mxu0 0.0
      %1380 = vmatprep.subr.mxu0 0.0
      %1381 = vmatpush2.msra.mxu0 0.0
      %1382 = vmatprep.subr.mxu0 0.0
      %1383 = vmatpush2.msra.mxu0 0.0
      %1384 = vmatprep.subr.mxu0 0.0
      %1385 = vmatpush2.msra.mxu0 0.0
      %1386 = vmatprep.mubr.f32.mxu0 0.0
      %1387 = vmatmul.mubr.f32.gmra.mxu0 %v1195
      %v1388 = vpop.f32.mrf.mxu0
      %v1389 = vadd.f32 0.0, %v1388
      %v1390 = vpop.f32.mrf.mxu0
      %1391 = vmatprep.mubr.f32.mxu0 0.0
      %1392 = vmatmul.mubr.f32.gmra.mxu0 %v1197
      %v1393 = vpop.f32.mrf.mxu0
      %v1394 = vadd.f32 0.0, %v1393
      %v1395 = vpop.f32.mrf.mxu0
      %1396 = vmatprep.mubr.f32.mxu0 0.0
      %1397 = vmatmul.mubr.f32.gmra.mxu0 %v1200
      %v1398 = vpop.f32.mrf.mxu0
      %v1399 = vadd.f32 0.0, %v1398
      %v1400 = vpop.f32.mrf.mxu0
      %1401 = vmatprep.mubr.f32.mxu0 0.0
      %1402 = vmatmul.mubr.f32.gmra.mxu0 %v1202
      %v1403 = vpop.f32.mrf.mxu0
      %v1404 = vadd.f32 0.0, %v1403
      %v1405 = vpop.f32.mrf.mxu0
      %1406 = vmatprep.mubr.f32.mxu0 0.0
      %1407 = vmatmul.mubr.f32.gmra.mxu0 %v1205
      %v1408 = vpop.f32.mrf.mxu0
      %v1409 = vadd.f32 0.0, %v1408
      %v1410 = vpop.f32.mrf.mxu0
      %1411 = vmatprep.mubr.f32.mxu0 0.0
      %1412 = vmatmul.mubr.f32.gmra.mxu0 %v1207
      %v1413 = vpop.f32.mrf.mxu0
      %v1414 = vadd.f32 0.0, %v1413
      %v1415 = vpop.f32.mrf.mxu0
      %1416 = vmatprep.mubr.f32.mxu0 0.0
      %1417 = vmatmul.mubr.f32.gmra.mxu0 %v1210
      %v1418 = vpop.f32.mrf.mxu0
      %v1419 = vadd.f32 0.0, %v1418
      %v1420 = vpop.f32.mrf.mxu0
      %1421 = vmatprep.mubr.f32.mxu0 0.0
      %1422 = vmatmul.mubr.f32.gmra.mxu0 %v1212
      %v1423 = vpop.f32.mrf.mxu0
      %v1424 = vadd.f32 0.0, %v1423
      %v1425 = vpop.f32.mrf.mxu0
      %1426 = vmatprep.mubr.f32.mxu0 0.0
      %1427 = vmatmul.mubr.f32.gmra.mxu0 %v1215
      %v1428 = vpop.f32.mrf.mxu0
      %v1429 = vadd.f32 0.0, %v1428
      %v1430 = vpop.f32.mrf.mxu0
      %1431 = vmatprep.mubr.f32.mxu0 0.0
      %1432 = vmatmul.mubr.f32.gmra.mxu0 %v1217
      %v1433 = vpop.f32.mrf.mxu0
      %v1434 = vadd.f32 0.0, %v1433
      %v1435 = vpop.f32.mrf.mxu0
      %1436 = vmatprep.mubr.f32.mxu0 0.0
      %1437 = vmatmul.mubr.f32.gmra.mxu0 %v1220
      %v1438 = vpop.f32.mrf.mxu0
      %v1439 = vadd.f32 0.0, %v1438
      %v1440 = vpop.f32.mrf.mxu0
      %1441 = vmatprep.mubr.f32.mxu0 0.0
      %1442 = vmatmul.mubr.f32.gmra.mxu0 %v1222
      %v1443 = vpop.f32.mrf.mxu0
      %v1444 = vadd.f32 0.0, %v1443
      %v1445 = vpop.f32.mrf.mxu0
      %1446 = vmatprep.mubr.f32.mxu0 0.0
      %1447 = vmatmul.mubr.f32.gmra.mxu0 %v1225
      %v1448 = vpop.f32.mrf.mxu0
      %v1449 = vadd.f32 0.0, %v1448
      %v1450 = vpop.f32.mrf.mxu0
      %1451 = vmatprep.mubr.f32.mxu0 0.0
      %1452 = vmatmul.mubr.f32.gmra.mxu0 %v1227
      %v1453 = vpop.f32.mrf.mxu0
      %v1454 = vadd.f32 0.0, %v1453
      %v1455 = vpop.f32.mrf.mxu0
      %1456 = vmatprep.mubr.f32.mxu0 0.0
      %1457 = vmatmul.mubr.f32.gmra.mxu0 %v1230
      %v1458 = vpop.f32.mrf.mxu0
      %v1459 = vadd.f32 0.0, %v1458
      %v1460 = vpop.f32.mrf.mxu0
      %1461 = vmatprep.mubr.f32.mxu0 0.0
      %1462 = vmatmul.mubr.f32.gmra.mxu0 %v1232
      %v1463 = vpop.f32.mrf.mxu0
      %v1464 = vadd.f32 0.0, %v1463
      %v1465 = vpop.f32.mrf.mxu0
      %1466 = vmatprep.mubr.f32.mxu0 0.0
      %1467 = vmatmul.mubr.f32.gmra.mxu0 %v1235
      %v1468 = vpop.f32.mrf.mxu0
      %v1469 = vadd.f32 0.0, %v1468
      %v1470 = vpop.f32.mrf.mxu0
      %1471 = vmatprep.mubr.f32.mxu0 0.0
      %1472 = vmatmul.mubr.f32.gmra.mxu0 %v1237
      %v1473 = vpop.f32.mrf.mxu0
      %v1474 = vadd.f32 0.0, %v1473
      %v1475 = vpop.f32.mrf.mxu0
      %1476 = vmatprep.mubr.f32.mxu0 0.0
      %1477 = vmatmul.mubr.f32.gmra.mxu0 %v1240
      %v1478 = vpop.f32.mrf.mxu0
      %v1479 = vadd.f32 0.0, %v1478
      %v1480 = vpop.f32.mrf.mxu0
      %1481 = vmatprep.mubr.f32.mxu0 0.0
      %1482 = vmatmul.mubr.f32.gmra.mxu0 %v1242
      %v1483 = vpop.f32.mrf.mxu0
      %v1484 = vadd.f32 0.0, %v1483
      %v1485 = vpop.f32.mrf.mxu0
      %1486 = vmatprep.mubr.f32.mxu0 0.0
      %1487 = vmatmul.mubr.f32.gmra.mxu0 %v1245
      %v1488 = vpop.f32.mrf.mxu0
      %v1489 = vadd.f32 0.0, %v1488
      %v1490 = vpop.f32.mrf.mxu0
      %1491 = vmatprep.mubr.f32.mxu0 0.0
      %1492 = vmatmul.mubr.f32.gmra.mxu0 %v1247
      %v1493 = vpop.f32.mrf.mxu0
      %v1494 = vadd.f32 0.0, %v1493
      %v1495 = vpop.f32.mrf.mxu0
      %1496 = vmatprep.mubr.f32.mxu0 0.0
      %1497 = vmatmul.mubr.f32.gmra.mxu0 %v1250
      %v1498 = vpop.f32.mrf.mxu0
      %v1499 = vadd.f32 0.0, %v1498
      %v1500 = vpop.f32.mrf.mxu0
      %1501 = vmatprep.mubr.f32.mxu0 0.0
      %1502 = vmatmul.mubr.f32.gmra.mxu0 %v1252
      %v1503 = vpop.f32.mrf.mxu0
      %v1504 = vadd.f32 0.0, %v1503
      %v1505 = vpop.f32.mrf.mxu0
      %1506 = vmatprep.mubr.f32.mxu0 0.0
      %1507 = vmatmul.mubr.f32.gmra.mxu0 %v1255
      %v1508 = vpop.f32.mrf.mxu0
      %v1509 = vadd.f32 0.0, %v1508
      %v1510 = vpop.f32.mrf.mxu0
      %1511 = vmatprep.mubr.f32.mxu0 0.0
      %1512 = vmatmul.mubr.f32.gmra.mxu0 %v1257
      %v1513 = vpop.f32.mrf.mxu0
      %v1514 = vadd.f32 0.0, %v1513
      %v1515 = vpop.f32.mrf.mxu0
      %1516 = vmatprep.mubr.f32.mxu0 0.0
      %1517 = vmatmul.mubr.f32.gmra.mxu0 %v1260
      %v1518 = vpop.f32.mrf.mxu0
      %v1519 = vadd.f32 0.0, %v1518
      %v1520 = vpop.f32.mrf.mxu0
      %1521 = vmatprep.mubr.f32.mxu0 0.0
      %1522 = vmatmul.mubr.f32.gmra.mxu0 %v1262
      %v1523 = vpop.f32.mrf.mxu0
      %v1524 = vadd.f32 0.0, %v1523
      %v1525 = vpop.f32.mrf.mxu0
      %1526 = vmatprep.mubr.f32.mxu0 0.0
      %1527 = vmatmul.mubr.f32.gmra.mxu0 %v1265
      %v1528 = vpop.f32.mrf.mxu0
      %v1529 = vadd.f32 0.0, %v1528
      %v1530 = vpop.f32.mrf.mxu0
      %1531 = vmatprep.mubr.f32.mxu0 0.0
      %1532 = vmatmul.mubr.f32.gmra.mxu0 %v1267
      %v1533 = vpop.f32.mrf.mxu0
      %v1534 = vadd.f32 0.0, %v1533
      %v1535 = vpop.f32.mrf.mxu0
      %1536 = vmatprep.mubr.f32.mxu0 0.0
      %1537 = vmatmul.mubr.f32.gmra.mxu0 %v1270
      %v1538 = vpop.f32.mrf.mxu0
      %v1539 = vadd.f32 0.0, %v1538
      %v1540 = vpop.f32.mrf.mxu0
      %1541 = vmatprep.mubr.f32.mxu0 0.0
      %1542 = vmatmul.mubr.f32.gmra.mxu0 %v1272
      %v1543 = vpop.f32.mrf.mxu0
      %v1544 = vadd.f32 0.0, %v1543
      %v1545 = vpop.f32.mrf.mxu0
      %1546 = vdwg.mxu0
      %v1547 = vadd.f32 %v1034, %v1389
      %v1548 = vadd.f32 %v1039, %v1394
      %v1549 = vadd.f32 %v1044, %v1399
      %v1550 = vadd.f32 %v1049, %v1404
      %v1551 = vadd.f32 %v1054, %v1409
      %v1552 = vadd.f32 %v1059, %v1414
      %v1553 = vadd.f32 %v1064, %v1419
      %v1554 = vadd.f32 %v1069, %v1424
      %v1555 = vadd.f32 %v1074, %v1429
      %v1556 = vadd.f32 %v1079, %v1434
      %v1557 = vadd.f32 %v1084, %v1439
      %v1558 = vadd.f32 %v1089, %v1444
      %v1559 = vadd.f32 %v1094, %v1449
      %v1560 = vadd.f32 %v1099, %v1454
      %v1561 = vadd.f32 %v1104, %v1459
      %v1562 = vadd.f32 %v1109, %v1464
      %v1563 = vadd.f32 %v1114, %v1469
      %v1564 = vadd.f32 %v1119, %v1474
      %v1565 = vadd.f32 %v1124, %v1479
      %v1566 = vadd.f32 %v1129, %v1484
      %v1567 = vadd.f32 %v1134, %v1489
      %v1568 = vadd.f32 %v1139, %v1494
      %v1569 = vadd.f32 %v1144, %v1499
      %v1570 = vadd.f32 %v1149, %v1504
      %v1571 = vadd.f32 %v1154, %v1509
      %v1572 = vadd.f32 %v1159, %v1514
      %v1573 = vadd.f32 %v1164, %v1519
      %v1574 = vadd.f32 %v1169, %v1524
      %v1575 = vadd.f32 %v1174, %v1529
      %v1576 = vadd.f32 %v1179, %v1534
      %v1577 = vadd.f32 %v1184, %v1539
      %v1578 = vadd.f32 %v1189, %v1544
      %s1579 = scalar_lea.vmem %s4, 384
      %v1580 = vld [vmem:[%s1579] sm:$0xff]
      %v1581 = vld [vmem:[%s1579 + $0x8] sm:$0xff]
      %v1582 = vld [vmem:[%s1579 + $0x10] sm:$0xff]
      %v1583 = vld [vmem:[%s1579 + $0x18] sm:$0xff]
      %v1584 = vld [vmem:[%s1579 + $0x20] sm:$0xff]
      %v1585 = vld [vmem:[%s1579 + $0x28] sm:$0xff]
      %v1586 = vld [vmem:[%s1579 + $0x30] sm:$0xff]
      %v1587 = vld [vmem:[%s1579 + $0x38] sm:$0xff]
      %v1588 = vld [vmem:[%s1579 + $0x40] sm:$0xff]
      %v1589 = vld [vmem:[%s1579 + $0x48] sm:$0xff]
      %v1590 = vld [vmem:[%s1579 + $0x50] sm:$0xff]
      %v1591 = vld [vmem:[%s1579 + $0x58] sm:$0xff]
      %v1592 = vld [vmem:[%s1579 + $0x60] sm:$0xff]
      %v1593 = vld [vmem:[%s1579 + $0x68] sm:$0xff]
      %v1594 = vld [vmem:[%s1579 + $0x70] sm:$0xff]
      %v1595 = vld [vmem:[%s1579 + $0x78] sm:$0xff]
      %1596 = vmatprep.subr.mxu0 0.0
      %1597 = vmatpush1.msra.mxu0 %v1595
      %1598 = vmatprep.subr.mxu0 0.0
      %1599 = vmatpush1.msra.mxu0 %v1594
      %1600 = vmatprep.subr.mxu0 0.0
      %1601 = vmatpush1.msra.mxu0 %v1593
      %1602 = vmatprep.subr.mxu0 0.0
      %1603 = vmatpush1.msra.mxu0 %v1592
      %1604 = vmatprep.subr.mxu0 0.0
      %1605 = vmatpush1.msra.mxu0 %v1591
      %1606 = vmatprep.subr.mxu0 0.0
      %1607 = vmatpush1.msra.mxu0 %v1590
      %1608 = vmatprep.subr.mxu0 0.0
      %1609 = vmatpush1.msra.mxu0 %v1589
      %1610 = vmatprep.subr.mxu0 0.0
      %1611 = vmatpush1.msra.mxu0 %v1588
      %1612 = vmatprep.subr.mxu0 0.0
      %1613 = vmatpush1.msra.mxu0 %v1587
      %1614 = vmatprep.subr.mxu0 0.0
      %1615 = vmatpush1.msra.mxu0 %v1586
      %1616 = vmatprep.subr.mxu0 0.0
      %1617 = vmatpush1.msra.mxu0 %v1585
      %1618 = vmatprep.subr.mxu0 0.0
      %1619 = vmatpush1.msra.mxu0 %v1584
      %1620 = vmatprep.subr.mxu0 0.0
      %1621 = vmatpush1.msra.mxu0 %v1583
      %1622 = vmatprep.subr.mxu0 0.0
      %1623 = vmatpush1.msra.mxu0 %v1582
      %1624 = vmatprep.subr.mxu0 0.0
      %1625 = vmatpush1.msra.mxu0 %v1581
      %1626 = vmatprep.subr.mxu0 0.0
      %1627 = vmatpush1.msra.mxu0 %v1580
      %1628 = vmatprep.subr.mxu0 0.0
      %1629 = vmatpush2.msra.mxu0 0.0
      %1630 = vmatprep.subr.mxu0 0.0
      %1631 = vmatpush2.msra.mxu0 0.0
      %1632 = vmatprep.subr.mxu0 0.0
      %1633 = vmatpush2.msra.mxu0 0.0
      %1634 = vmatprep.subr.mxu0 0.0
      %1635 = vmatpush2.msra.mxu0 0.0
      %1636 = vmatprep.subr.mxu0 0.0
      %1637 = vmatpush2.msra.mxu0 0.0
      %1638 = vmatprep.subr.mxu0 0.0
      %1639 = vmatpush2.msra.mxu0 0.0
      %1640 = vmatprep.subr.mxu0 0.0
      %1641 = vmatpush2.msra.mxu0 0.0
      %1642 = vmatprep.subr.mxu0 0.0
      %1643 = vmatpush2.msra.mxu0 0.0
      %1644 = vmatprep.subr.mxu0 0.0
      %1645 = vmatpush2.msra.mxu0 0.0
      %1646 = vmatprep.subr.mxu0 0.0
      %1647 = vmatpush2.msra.mxu0 0.0
      %1648 = vmatprep.subr.mxu0 0.0
      %1649 = vmatpush2.msra.mxu0 0.0
      %1650 = vmatprep.subr.mxu0 0.0
      %1651 = vmatpush2.msra.mxu0 0.0
      %1652 = vmatprep.subr.mxu0 0.0
      %1653 = vmatpush2.msra.mxu0 0.0
      %1654 = vmatprep.subr.mxu0 0.0
      %1655 = vmatpush2.msra.mxu0 0.0
      %1656 = vmatprep.subr.mxu0 0.0
      %1657 = vmatpush2.msra.mxu0 0.0
      %1658 = vmatprep.subr.mxu0 0.0
      %1659 = vmatpush2.msra.mxu0 0.0
      %1660 = vmatprep.mubr.f32.mxu0 0.0
      %1661 = vmatmul.mubr.f32.gmra.mxu0 %v497
      %v1662 = vpop.f32.mrf.mxu0
      %v1663 = vadd.f32 0.0, %v1662
      %v1664 = vpop.f32.mrf.mxu0
      %1665 = vmatprep.mubr.f32.mxu0 0.0
      %1666 = vmatmul.mubr.f32.gmra.mxu0 %v498
      %v1667 = vpop.f32.mrf.mxu0
      %v1668 = vadd.f32 0.0, %v1667
      %v1669 = vpop.f32.mrf.mxu0
      %1670 = vmatprep.mubr.f32.mxu0 0.0
      %1671 = vmatmul.mubr.f32.gmra.mxu0 %v500
      %v1672 = vpop.f32.mrf.mxu0
      %v1673 = vadd.f32 0.0, %v1672
      %v1674 = vpop.f32.mrf.mxu0
      %1675 = vmatprep.mubr.f32.mxu0 0.0
      %1676 = vmatmul.mubr.f32.gmra.mxu0 %v501
      %v1677 = vpop.f32.mrf.mxu0
      %v1678 = vadd.f32 0.0, %v1677
      %v1679 = vpop.f32.mrf.mxu0
      %1680 = vmatprep.mubr.f32.mxu0 0.0
      %1681 = vmatmul.mubr.f32.gmra.mxu0 %v503
      %v1682 = vpop.f32.mrf.mxu0
      %v1683 = vadd.f32 0.0, %v1682
      %v1684 = vpop.f32.mrf.mxu0
      %1685 = vmatprep.mubr.f32.mxu0 0.0
      %1686 = vmatmul.mubr.f32.gmra.mxu0 %v504
      %v1687 = vpop.f32.mrf.mxu0
      %v1688 = vadd.f32 0.0, %v1687
      %v1689 = vpop.f32.mrf.mxu0
      %1690 = vmatprep.mubr.f32.mxu0 0.0
      %1691 = vmatmul.mubr.f32.gmra.mxu0 %v506
      %v1692 = vpop.f32.mrf.mxu0
      %v1693 = vadd.f32 0.0, %v1692
      %v1694 = vpop.f32.mrf.mxu0
      %1695 = vmatprep.mubr.f32.mxu0 0.0
      %1696 = vmatmul.mubr.f32.gmra.mxu0 %v507
      %v1697 = vpop.f32.mrf.mxu0
      %v1698 = vadd.f32 0.0, %v1697
      %v1699 = vpop.f32.mrf.mxu0
      %1700 = vmatprep.mubr.f32.mxu0 0.0
      %1701 = vmatmul.mubr.f32.gmra.mxu0 %v509
      %v1702 = vpop.f32.mrf.mxu0
      %v1703 = vadd.f32 0.0, %v1702
      %v1704 = vpop.f32.mrf.mxu0
      %1705 = vmatprep.mubr.f32.mxu0 0.0
      %1706 = vmatmul.mubr.f32.gmra.mxu0 %v510
      %v1707 = vpop.f32.mrf.mxu0
      %v1708 = vadd.f32 0.0, %v1707
      %v1709 = vpop.f32.mrf.mxu0
      %1710 = vmatprep.mubr.f32.mxu0 0.0
      %1711 = vmatmul.mubr.f32.gmra.mxu0 %v512
      %v1712 = vpop.f32.mrf.mxu0
      %v1713 = vadd.f32 0.0, %v1712
      %v1714 = vpop.f32.mrf.mxu0
      %1715 = vmatprep.mubr.f32.mxu0 0.0
      %1716 = vmatmul.mubr.f32.gmra.mxu0 %v513
      %v1717 = vpop.f32.mrf.mxu0
      %v1718 = vadd.f32 0.0, %v1717
      %v1719 = vpop.f32.mrf.mxu0
      %1720 = vmatprep.mubr.f32.mxu0 0.0
      %1721 = vmatmul.mubr.f32.gmra.mxu0 %v515
      %v1722 = vpop.f32.mrf.mxu0
      %v1723 = vadd.f32 0.0, %v1722
      %v1724 = vpop.f32.mrf.mxu0
      %1725 = vmatprep.mubr.f32.mxu0 0.0
      %1726 = vmatmul.mubr.f32.gmra.mxu0 %v516
      %v1727 = vpop.f32.mrf.mxu0
      %v1728 = vadd.f32 0.0, %v1727
      %v1729 = vpop.f32.mrf.mxu0
      %1730 = vmatprep.mubr.f32.mxu0 0.0
      %1731 = vmatmul.mubr.f32.gmra.mxu0 %v518
      %v1732 = vpop.f32.mrf.mxu0
      %v1733 = vadd.f32 0.0, %v1732
      %v1734 = vpop.f32.mrf.mxu0
      %1735 = vmatprep.mubr.f32.mxu0 0.0
      %1736 = vmatmul.mubr.f32.gmra.mxu0 %v519
      %v1737 = vpop.f32.mrf.mxu0
      %v1738 = vadd.f32 0.0, %v1737
      %v1739 = vpop.f32.mrf.mxu0
      %1740 = vmatprep.mubr.f32.mxu0 0.0
      %1741 = vmatmul.mubr.f32.gmra.mxu0 %v521
      %v1742 = vpop.f32.mrf.mxu0
      %v1743 = vadd.f32 0.0, %v1742
      %v1744 = vpop.f32.mrf.mxu0
      %1745 = vmatprep.mubr.f32.mxu0 0.0
      %1746 = vmatmul.mubr.f32.gmra.mxu0 %v522
      %v1747 = vpop.f32.mrf.mxu0
      %v1748 = vadd.f32 0.0, %v1747
      %v1749 = vpop.f32.mrf.mxu0
      %1750 = vmatprep.mubr.f32.mxu0 0.0
      %1751 = vmatmul.mubr.f32.gmra.mxu0 %v524
      %v1752 = vpop.f32.mrf.mxu0
      %v1753 = vadd.f32 0.0, %v1752
      %v1754 = vpop.f32.mrf.mxu0
      %1755 = vmatprep.mubr.f32.mxu0 0.0
      %1756 = vmatmul.mubr.f32.gmra.mxu0 %v525
      %v1757 = vpop.f32.mrf.mxu0
      %v1758 = vadd.f32 0.0, %v1757
      %v1759 = vpop.f32.mrf.mxu0
      %1760 = vmatprep.mubr.f32.mxu0 0.0
      %1761 = vmatmul.mubr.f32.gmra.mxu0 %v527
      %v1762 = vpop.f32.mrf.mxu0
      %v1763 = vadd.f32 0.0, %v1762
      %v1764 = vpop.f32.mrf.mxu0
      %1765 = vmatprep.mubr.f32.mxu0 0.0
      %1766 = vmatmul.mubr.f32.gmra.mxu0 %v528
      %v1767 = vpop.f32.mrf.mxu0
      %v1768 = vadd.f32 0.0, %v1767
      %v1769 = vpop.f32.mrf.mxu0
      %1770 = vmatprep.mubr.f32.mxu0 0.0
      %1771 = vmatmul.mubr.f32.gmra.mxu0 %v530
      %v1772 = vpop.f32.mrf.mxu0
      %v1773 = vadd.f32 0.0, %v1772
      %v1774 = vpop.f32.mrf.mxu0
      %1775 = vmatprep.mubr.f32.mxu0 0.0
      %1776 = vmatmul.mubr.f32.gmra.mxu0 %v531
      %v1777 = vpop.f32.mrf.mxu0
      %v1778 = vadd.f32 0.0, %v1777
      %v1779 = vpop.f32.mrf.mxu0
      %1780 = vmatprep.mubr.f32.mxu0 0.0
      %1781 = vmatmul.mubr.f32.gmra.mxu0 %v533
      %v1782 = vpop.f32.mrf.mxu0
      %v1783 = vadd.f32 0.0, %v1782
      %v1784 = vpop.f32.mrf.mxu0
      %1785 = vmatprep.mubr.f32.mxu0 0.0
      %1786 = vmatmul.mubr.f32.gmra.mxu0 %v534
      %v1787 = vpop.f32.mrf.mxu0
      %v1788 = vadd.f32 0.0, %v1787
      %v1789 = vpop.f32.mrf.mxu0
      %1790 = vmatprep.mubr.f32.mxu0 0.0
      %1791 = vmatmul.mubr.f32.gmra.mxu0 %v536
      %v1792 = vpop.f32.mrf.mxu0
      %v1793 = vadd.f32 0.0, %v1792
      %v1794 = vpop.f32.mrf.mxu0
      %1795 = vmatprep.mubr.f32.mxu0 0.0
      %1796 = vmatmul.mubr.f32.gmra.mxu0 %v537
      %v1797 = vpop.f32.mrf.mxu0
      %v1798 = vadd.f32 0.0, %v1797
      %v1799 = vpop.f32.mrf.mxu0
      %1800 = vmatprep.mubr.f32.mxu0 0.0
      %1801 = vmatmul.mubr.f32.gmra.mxu0 %v539
      %v1802 = vpop.f32.mrf.mxu0
      %v1803 = vadd.f32 0.0, %v1802
      %v1804 = vpop.f32.mrf.mxu0
      %1805 = vmatprep.mubr.f32.mxu0 0.0
      %1806 = vmatmul.mubr.f32.gmra.mxu0 %v540
      %v1807 = vpop.f32.mrf.mxu0
      %v1808 = vadd.f32 0.0, %v1807
      %v1809 = vpop.f32.mrf.mxu0
      %1810 = vmatprep.mubr.f32.mxu0 0.0
      %1811 = vmatmul.mubr.f32.gmra.mxu0 %v542
      %v1812 = vpop.f32.mrf.mxu0
      %v1813 = vadd.f32 0.0, %v1812
      %v1814 = vpop.f32.mrf.mxu0
      %1815 = vmatprep.mubr.f32.mxu0 0.0
      %1816 = vmatmul.mubr.f32.gmra.mxu0 %v543
      %v1817 = vpop.f32.mrf.mxu0
      %v1818 = vadd.f32 0.0, %v1817
      %v1819 = vpop.f32.mrf.mxu0
      %1820 = vdwg.mxu0
      %v1821 = vadd.f32 %v1547, %v1663
      %v1822 = vadd.f32 %v1548, %v1668
      %v1823 = vadd.f32 %v1549, %v1673
      %v1824 = vadd.f32 %v1550, %v1678
      %v1825 = vadd.f32 %v1551, %v1683
      %v1826 = vadd.f32 %v1552, %v1688
      %v1827 = vadd.f32 %v1553, %v1693
      %v1828 = vadd.f32 %v1554, %v1698
      %v1829 = vadd.f32 %v1555, %v1703
      %v1830 = vadd.f32 %v1556, %v1708
      %v1831 = vadd.f32 %v1557, %v1713
      %v1832 = vadd.f32 %v1558, %v1718
      %v1833 = vadd.f32 %v1559, %v1723
      %v1834 = vadd.f32 %v1560, %v1728
      %v1835 = vadd.f32 %v1561, %v1733
      %v1836 = vadd.f32 %v1562, %v1738
      %v1837 = vadd.f32 %v1563, %v1743
      %v1838 = vadd.f32 %v1564, %v1748
      %v1839 = vadd.f32 %v1565, %v1753
      %v1840 = vadd.f32 %v1566, %v1758
      %v1841 = vadd.f32 %v1567, %v1763
      %v1842 = vadd.f32 %v1568, %v1768
      %v1843 = vadd.f32 %v1569, %v1773
      %v1844 = vadd.f32 %v1570, %v1778
      %v1845 = vadd.f32 %v1571, %v1783
      %v1846 = vadd.f32 %v1572, %v1788
      %v1847 = vadd.f32 %v1573, %v1793
      %v1848 = vadd.f32 %v1574, %v1798
      %v1849 = vadd.f32 %v1575, %v1803
      %v1850 = vadd.f32 %v1576, %v1808
      %v1851 = vadd.f32 %v1577, %v1813
      %v1852 = vadd.f32 %v1578, %v1818
      %v1856 = vrot.slane %v542, 1
      %v1857 = vrot.slane %v543, 1
      %v1858 = vsel %vm612, %v1856, %v1857
      %v1859 = vrot.slane %v544, 1
      %v1860 = vsel %vm612, %v1857, %v1859
      %s1863 = scalar_lea.vmem %s4, 512
      %v1864 = vld [vmem:[%s1863] sm:$0xff]
      %v1865 = vld [vmem:[%s1863 + $0x8] sm:$0xff]
      %v1866 = vld [vmem:[%s1863 + $0x10] sm:$0xff]
      %v1867 = vld [vmem:[%s1863 + $0x18] sm:$0xff]
      %v1868 = vld [vmem:[%s1863 + $0x20] sm:$0xff]
      %v1869 = vld [vmem:[%s1863 + $0x28] sm:$0xff]
      %v1870 = vld [vmem:[%s1863 + $0x30] sm:$0xff]
      %v1871 = vld [vmem:[%s1863 + $0x38] sm:$0xff]
      %v1872 = vld [vmem:[%s1863 + $0x40] sm:$0xff]
      %v1873 = vld [vmem:[%s1863 + $0x48] sm:$0xff]
      %v1874 = vld [vmem:[%s1863 + $0x50] sm:$0xff]
      %v1875 = vld [vmem:[%s1863 + $0x58] sm:$0xff]
      %v1876 = vld [vmem:[%s1863 + $0x60] sm:$0xff]
      %v1877 = vld [vmem:[%s1863 + $0x68] sm:$0xff]
      %v1878 = vld [vmem:[%s1863 + $0x70] sm:$0xff]
      %v1879 = vld [vmem:[%s1863 + $0x78] sm:$0xff]
      %1880 = vmatprep.subr.mxu0 0.0
      %1881 = vmatpush1.msra.mxu0 %v1879
      %1882 = vmatprep.subr.mxu0 0.0
      %1883 = vmatpush1.msra.mxu0 %v1878
      %1884 = vmatprep.subr.mxu0 0.0
      %1885 = vmatpush1.msra.mxu0 %v1877
      %1886 = vmatprep.subr.mxu0 0.0
      %1887 = vmatpush1.msra.mxu0 %v1876
      %1888 = vmatprep.subr.mxu0 0.0
      %1889 = vmatpush1.msra.mxu0 %v1875
      %1890 = vmatprep.subr.mxu0 0.0
      %1891 = vmatpush1.msra.mxu0 %v1874
      %1892 = vmatprep.subr.mxu0 0.0
      %1893 = vmatpush1.msra.mxu0 %v1873
      %1894 = vmatprep.subr.mxu0 0.0
      %1895 = vmatpush1.msra.mxu0 %v1872
      %1896 = vmatprep.subr.mxu0 0.0
      %1897 = vmatpush1.msra.mxu0 %v1871
      %1898 = vmatprep.subr.mxu0 0.0
      %1899 = vmatpush1.msra.mxu0 %v1870
      %1900 = vmatprep.subr.mxu0 0.0
      %1901 = vmatpush1.msra.mxu0 %v1869
      %1902 = vmatprep.subr.mxu0 0.0
      %1903 = vmatpush1.msra.mxu0 %v1868
      %1904 = vmatprep.subr.mxu0 0.0
      %1905 = vmatpush1.msra.mxu0 %v1867
      %1906 = vmatprep.subr.mxu0 0.0
      %1907 = vmatpush1.msra.mxu0 %v1866
      %1908 = vmatprep.subr.mxu0 0.0
      %1909 = vmatpush1.msra.mxu0 %v1865
      %1910 = vmatprep.subr.mxu0 0.0
      %1911 = vmatpush1.msra.mxu0 %v1864
      %1912 = vmatprep.subr.mxu0 0.0
      %1913 = vmatpush2.msra.mxu0 0.0
      %1914 = vmatprep.subr.mxu0 0.0
      %1915 = vmatpush2.msra.mxu0 0.0
      %1916 = vmatprep.subr.mxu0 0.0
      %1917 = vmatpush2.msra.mxu0 0.0
      %1918 = vmatprep.subr.mxu0 0.0
      %1919 = vmatpush2.msra.mxu0 0.0
      %1920 = vmatprep.subr.mxu0 0.0
      %1921 = vmatpush2.msra.mxu0 0.0
      %1922 = vmatprep.subr.mxu0 0.0
      %1923 = vmatpush2.msra.mxu0 0.0
      %1924 = vmatprep.subr.mxu0 0.0
      %1925 = vmatpush2.msra.mxu0 0.0
      %1926 = vmatprep.subr.mxu0 0.0
      %1927 = vmatpush2.msra.mxu0 0.0
      %1928 = vmatprep.subr.mxu0 0.0
      %1929 = vmatpush2.msra.mxu0 0.0
      %1930 = vmatprep.subr.mxu0 0.0
      %1931 = vmatpush2.msra.mxu0 0.0
      %1932 = vmatprep.subr.mxu0 0.0
      %1933 = vmatpush2.msra.mxu0 0.0
      %1934 = vmatprep.subr.mxu0 0.0
      %1935 = vmatpush2.msra.mxu0 0.0
      %1936 = vmatprep.subr.mxu0 0.0
      %1937 = vmatpush2.msra.mxu0 0.0
      %1938 = vmatprep.subr.mxu0 0.0
      %1939 = vmatpush2.msra.mxu0 0.0
      %1940 = vmatprep.subr.mxu0 0.0
      %1941 = vmatpush2.msra.mxu0 0.0
      %1942 = vmatprep.subr.mxu0 0.0
      %1943 = vmatpush2.msra.mxu0 0.0
      %1944 = vmatprep.mubr.f32.mxu0 0.0
      %1945 = vmatmul.mubr.f32.gmra.mxu0 %v620
      %v1946 = vpop.f32.mrf.mxu0
      %v1947 = vadd.f32 0.0, %v1946
      %v1948 = vpop.f32.mrf.mxu0
      %1949 = vmatprep.mubr.f32.mxu0 0.0
      %1950 = vmatmul.mubr.f32.gmra.mxu0 %v622
      %v1951 = vpop.f32.mrf.mxu0
      %v1952 = vadd.f32 0.0, %v1951
      %v1953 = vpop.f32.mrf.mxu0
      %1954 = vmatprep.mubr.f32.mxu0 0.0
      %1955 = vmatmul.mubr.f32.gmra.mxu0 %v625
      %v1956 = vpop.f32.mrf.mxu0
      %v1957 = vadd.f32 0.0, %v1956
      %v1958 = vpop.f32.mrf.mxu0
      %1959 = vmatprep.mubr.f32.mxu0 0.0
      %1960 = vmatmul.mubr.f32.gmra.mxu0 %v627
      %v1961 = vpop.f32.mrf.mxu0
      %v1962 = vadd.f32 0.0, %v1961
      %v1963 = vpop.f32.mrf.mxu0
      %1964 = vmatprep.mubr.f32.mxu0 0.0
      %1965 = vmatmul.mubr.f32.gmra.mxu0 %v630
      %v1966 = vpop.f32.mrf.mxu0
      %v1967 = vadd.f32 0.0, %v1966
      %v1968 = vpop.f32.mrf.mxu0
      %1969 = vmatprep.mubr.f32.mxu0 0.0
      %1970 = vmatmul.mubr.f32.gmra.mxu0 %v632
      %v1971 = vpop.f32.mrf.mxu0
      %v1972 = vadd.f32 0.0, %v1971
      %v1973 = vpop.f32.mrf.mxu0
      %1974 = vmatprep.mubr.f32.mxu0 0.0
      %1975 = vmatmul.mubr.f32.gmra.mxu0 %v635
      %v1976 = vpop.f32.mrf.mxu0
      %v1977 = vadd.f32 0.0, %v1976
      %v1978 = vpop.f32.mrf.mxu0
      %1979 = vmatprep.mubr.f32.mxu0 0.0
      %1980 = vmatmul.mubr.f32.gmra.mxu0 %v637
      %v1981 = vpop.f32.mrf.mxu0
      %v1982 = vadd.f32 0.0, %v1981
      %v1983 = vpop.f32.mrf.mxu0
      %1984 = vmatprep.mubr.f32.mxu0 0.0
      %1985 = vmatmul.mubr.f32.gmra.mxu0 %v640
      %v1986 = vpop.f32.mrf.mxu0
      %v1987 = vadd.f32 0.0, %v1986
      %v1988 = vpop.f32.mrf.mxu0
      %1989 = vmatprep.mubr.f32.mxu0 0.0
      %1990 = vmatmul.mubr.f32.gmra.mxu0 %v642
      %v1991 = vpop.f32.mrf.mxu0
      %v1992 = vadd.f32 0.0, %v1991
      %v1993 = vpop.f32.mrf.mxu0
      %1994 = vmatprep.mubr.f32.mxu0 0.0
      %1995 = vmatmul.mubr.f32.gmra.mxu0 %v645
      %v1996 = vpop.f32.mrf.mxu0
      %v1997 = vadd.f32 0.0, %v1996
      %v1998 = vpop.f32.mrf.mxu0
      %1999 = vmatprep.mubr.f32.mxu0 0.0
      %2000 = vmatmul.mubr.f32.gmra.mxu0 %v647
      %v2001 = vpop.f32.mrf.mxu0
      %v2002 = vadd.f32 0.0, %v2001
      %v2003 = vpop.f32.mrf.mxu0
      %2004 = vmatprep.mubr.f32.mxu0 0.0
      %2005 = vmatmul.mubr.f32.gmra.mxu0 %v650
      %v2006 = vpop.f32.mrf.mxu0
      %v2007 = vadd.f32 0.0, %v2006
      %v2008 = vpop.f32.mrf.mxu0
      %2009 = vmatprep.mubr.f32.mxu0 0.0
      %2010 = vmatmul.mubr.f32.gmra.mxu0 %v652
      %v2011 = vpop.f32.mrf.mxu0
      %v2012 = vadd.f32 0.0, %v2011
      %v2013 = vpop.f32.mrf.mxu0
      %2014 = vmatprep.mubr.f32.mxu0 0.0
      %2015 = vmatmul.mubr.f32.gmra.mxu0 %v655
      %v2016 = vpop.f32.mrf.mxu0
      %v2017 = vadd.f32 0.0, %v2016
      %v2018 = vpop.f32.mrf.mxu0
      %2019 = vmatprep.mubr.f32.mxu0 0.0
      %2020 = vmatmul.mubr.f32.gmra.mxu0 %v657
      %v2021 = vpop.f32.mrf.mxu0
      %v2022 = vadd.f32 0.0, %v2021
      %v2023 = vpop.f32.mrf.mxu0
      %2024 = vmatprep.mubr.f32.mxu0 0.0
      %2025 = vmatmul.mubr.f32.gmra.mxu0 %v660
      %v2026 = vpop.f32.mrf.mxu0
      %v2027 = vadd.f32 0.0, %v2026
      %v2028 = vpop.f32.mrf.mxu0
      %2029 = vmatprep.mubr.f32.mxu0 0.0
      %2030 = vmatmul.mubr.f32.gmra.mxu0 %v662
      %v2031 = vpop.f32.mrf.mxu0
      %v2032 = vadd.f32 0.0, %v2031
      %v2033 = vpop.f32.mrf.mxu0
      %2034 = vmatprep.mubr.f32.mxu0 0.0
      %2035 = vmatmul.mubr.f32.gmra.mxu0 %v665
      %v2036 = vpop.f32.mrf.mxu0
      %v2037 = vadd.f32 0.0, %v2036
      %v2038 = vpop.f32.mrf.mxu0
      %2039 = vmatprep.mubr.f32.mxu0 0.0
      %2040 = vmatmul.mubr.f32.gmra.mxu0 %v667
      %v2041 = vpop.f32.mrf.mxu0
      %v2042 = vadd.f32 0.0, %v2041
      %v2043 = vpop.f32.mrf.mxu0
      %2044 = vmatprep.mubr.f32.mxu0 0.0
      %2045 = vmatmul.mubr.f32.gmra.mxu0 %v670
      %v2046 = vpop.f32.mrf.mxu0
      %v2047 = vadd.f32 0.0, %v2046
      %v2048 = vpop.f32.mrf.mxu0
      %2049 = vmatprep.mubr.f32.mxu0 0.0
      %2050 = vmatmul.mubr.f32.gmra.mxu0 %v672
      %v2051 = vpop.f32.mrf.mxu0
      %v2052 = vadd.f32 0.0, %v2051
      %v2053 = vpop.f32.mrf.mxu0
      %2054 = vmatprep.mubr.f32.mxu0 0.0
      %2055 = vmatmul.mubr.f32.gmra.mxu0 %v675
      %v2056 = vpop.f32.mrf.mxu0
      %v2057 = vadd.f32 0.0, %v2056
      %v2058 = vpop.f32.mrf.mxu0
      %2059 = vmatprep.mubr.f32.mxu0 0.0
      %2060 = vmatmul.mubr.f32.gmra.mxu0 %v677
      %v2061 = vpop.f32.mrf.mxu0
      %v2062 = vadd.f32 0.0, %v2061
      %v2063 = vpop.f32.mrf.mxu0
      %2064 = vmatprep.mubr.f32.mxu0 0.0
      %2065 = vmatmul.mubr.f32.gmra.mxu0 %v680
      %v2066 = vpop.f32.mrf.mxu0
      %v2067 = vadd.f32 0.0, %v2066
      %v2068 = vpop.f32.mrf.mxu0
      %2069 = vmatprep.mubr.f32.mxu0 0.0
      %2070 = vmatmul.mubr.f32.gmra.mxu0 %v682
      %v2071 = vpop.f32.mrf.mxu0
      %v2072 = vadd.f32 0.0, %v2071
      %v2073 = vpop.f32.mrf.mxu0
      %2074 = vmatprep.mubr.f32.mxu0 0.0
      %2075 = vmatmul.mubr.f32.gmra.mxu0 %v685
      %v2076 = vpop.f32.mrf.mxu0
      %v2077 = vadd.f32 0.0, %v2076
      %v2078 = vpop.f32.mrf.mxu0
      %2079 = vmatprep.mubr.f32.mxu0 0.0
      %2080 = vmatmul.mubr.f32.gmra.mxu0 %v687
      %v2081 = vpop.f32.mrf.mxu0
      %v2082 = vadd.f32 0.0, %v2081
      %v2083 = vpop.f32.mrf.mxu0
      %2084 = vmatprep.mubr.f32.mxu0 0.0
      %2085 = vmatmul.mubr.f32.gmra.mxu0 %v690
      %v2086 = vpop.f32.mrf.mxu0
      %v2087 = vadd.f32 0.0, %v2086
      %v2088 = vpop.f32.mrf.mxu0
      %2089 = vmatprep.mubr.f32.mxu0 0.0
      %2090 = vmatmul.mubr.f32.gmra.mxu0 %v692
      %v2091 = vpop.f32.mrf.mxu0
      %v2092 = vadd.f32 0.0, %v2091
      %v2093 = vpop.f32.mrf.mxu0
      %2094 = vmatprep.mubr.f32.mxu0 0.0
      %2095 = vmatmul.mubr.f32.gmra.mxu0 %v1858
      %v2096 = vpop.f32.mrf.mxu0
      %v2097 = vadd.f32 0.0, %v2096
      %v2098 = vpop.f32.mrf.mxu0
      %2099 = vmatprep.mubr.f32.mxu0 0.0
      %2100 = vmatmul.mubr.f32.gmra.mxu0 %v1860
      %v2101 = vpop.f32.mrf.mxu0
      %v2102 = vadd.f32 0.0, %v2101
      %v2103 = vpop.f32.mrf.mxu0
      %2104 = vdwg.mxu0
      %v2105 = vadd.f32 %v1821, %v1947
      %v2106 = vadd.f32 %v1822, %v1952
      %v2107 = vadd.f32 %v1823, %v1957
      %v2108 = vadd.f32 %v1824, %v1962
      %v2109 = vadd.f32 %v1825, %v1967
      %v2110 = vadd.f32 %v1826, %v1972
      %v2111 = vadd.f32 %v1827, %v1977
      %v2112 = vadd.f32 %v1828, %v1982
      %v2113 = vadd.f32 %v1829, %v1987
      %v2114 = vadd.f32 %v1830, %v1992
      %v2115 = vadd.f32 %v1831, %v1997
      %v2116 = vadd.f32 %v1832, %v2002
      %v2117 = vadd.f32 %v1833, %v2007
      %v2118 = vadd.f32 %v1834, %v2012
      %v2119 = vadd.f32 %v1835, %v2017
      %v2120 = vadd.f32 %v1836, %v2022
      %v2121 = vadd.f32 %v1837, %v2027
      %v2122 = vadd.f32 %v1838, %v2032
      %v2123 = vadd.f32 %v1839, %v2037
      %v2124 = vadd.f32 %v1840, %v2042
      %v2125 = vadd.f32 %v1841, %v2047
      %v2126 = vadd.f32 %v1842, %v2052
      %v2127 = vadd.f32 %v1843, %v2057
      %v2128 = vadd.f32 %v1844, %v2062
      %v2129 = vadd.f32 %v1845, %v2067
      %v2130 = vadd.f32 %v1846, %v2072
      %v2131 = vadd.f32 %v1847, %v2077
      %v2132 = vadd.f32 %v1848, %v2082
      %v2133 = vadd.f32 %v1849, %v2087
      %v2134 = vadd.f32 %v1850, %v2092
      %v2135 = vadd.f32 %v1851, %v2097
      %v2136 = vadd.f32 %v1852, %v2102
      %v2137 = vrot.slane %v542, 2
      %v2138 = vrot.slane %v543, 2
      %v2139 = vsel %vm1192, %v2137, %v2138
      %v2140 = vrot.slane %v544, 2
      %v2141 = vsel %vm1192, %v2138, %v2140
      %s2144 = scalar_lea.vmem %s4, 640
      %v2145 = vld [vmem:[%s2144] sm:$0xff]
      %v2146 = vld [vmem:[%s2144 + $0x8] sm:$0xff]
      %v2147 = vld [vmem:[%s2144 + $0x10] sm:$0xff]
      %v2148 = vld [vmem:[%s2144 + $0x18] sm:$0xff]
      %v2149 = vld [vmem:[%s2144 + $0x20] sm:$0xff]
      %v2150 = vld [vmem:[%s2144 + $0x28] sm:$0xff]
      %v2151 = vld [vmem:[%s2144 + $0x30] sm:$0xff]
      %v2152 = vld [vmem:[%s2144 + $0x38] sm:$0xff]
      %v2153 = vld [vmem:[%s2144 + $0x40] sm:$0xff]
      %v2154 = vld [vmem:[%s2144 + $0x48] sm:$0xff]
      %v2155 = vld [vmem:[%s2144 + $0x50] sm:$0xff]
      %v2156 = vld [vmem:[%s2144 + $0x58] sm:$0xff]
      %v2157 = vld [vmem:[%s2144 + $0x60] sm:$0xff]
      %v2158 = vld [vmem:[%s2144 + $0x68] sm:$0xff]
      %v2159 = vld [vmem:[%s2144 + $0x70] sm:$0xff]
      %v2160 = vld [vmem:[%s2144 + $0x78] sm:$0xff]
      %2161 = vmatprep.subr.mxu0 0.0
      %2162 = vmatpush1.msra.mxu0 %v2160
      %2163 = vmatprep.subr.mxu0 0.0
      %2164 = vmatpush1.msra.mxu0 %v2159
      %2165 = vmatprep.subr.mxu0 0.0
      %2166 = vmatpush1.msra.mxu0 %v2158
      %2167 = vmatprep.subr.mxu0 0.0
      %2168 = vmatpush1.msra.mxu0 %v2157
      %2169 = vmatprep.subr.mxu0 0.0
      %2170 = vmatpush1.msra.mxu0 %v2156
      %2171 = vmatprep.subr.mxu0 0.0
      %2172 = vmatpush1.msra.mxu0 %v2155
      %2173 = vmatprep.subr.mxu0 0.0
      %2174 = vmatpush1.msra.mxu0 %v2154
      %2175 = vmatprep.subr.mxu0 0.0
      %2176 = vmatpush1.msra.mxu0 %v2153
      %2177 = vmatprep.subr.mxu0 0.0
      %2178 = vmatpush1.msra.mxu0 %v2152
      %2179 = vmatprep.subr.mxu0 0.0
      %2180 = vmatpush1.msra.mxu0 %v2151
      %2181 = vmatprep.subr.mxu0 0.0
      %2182 = vmatpush1.msra.mxu0 %v2150
      %2183 = vmatprep.subr.mxu0 0.0
      %2184 = vmatpush1.msra.mxu0 %v2149
      %2185 = vmatprep.subr.mxu0 0.0
      %2186 = vmatpush1.msra.mxu0 %v2148
      %2187 = vmatprep.subr.mxu0 0.0
      %2188 = vmatpush1.msra.mxu0 %v2147
      %2189 = vmatprep.subr.mxu0 0.0
      %2190 = vmatpush1.msra.mxu0 %v2146
      %2191 = vmatprep.subr.mxu0 0.0
      %2192 = vmatpush1.msra.mxu0 %v2145
      %2193 = vmatprep.subr.mxu0 0.0
      %2194 = vmatpush2.msra.mxu0 0.0
      %2195 = vmatprep.subr.mxu0 0.0
      %2196 = vmatpush2.msra.mxu0 0.0
      %2197 = vmatprep.subr.mxu0 0.0
      %2198 = vmatpush2.msra.mxu0 0.0
      %2199 = vmatprep.subr.mxu0 0.0
      %2200 = vmatpush2.msra.mxu0 0.0
      %2201 = vmatprep.subr.mxu0 0.0
      %2202 = vmatpush2.msra.mxu0 0.0
      %2203 = vmatprep.subr.mxu0 0.0
      %2204 = vmatpush2.msra.mxu0 0.0
      %2205 = vmatprep.subr.mxu0 0.0
      %2206 = vmatpush2.msra.mxu0 0.0
      %2207 = vmatprep.subr.mxu0 0.0
      %2208 = vmatpush2.msra.mxu0 0.0
      %2209 = vmatprep.subr.mxu0 0.0
      %2210 = vmatpush2.msra.mxu0 0.0
      %2211 = vmatprep.subr.mxu0 0.0
      %2212 = vmatpush2.msra.mxu0 0.0
      %2213 = vmatprep.subr.mxu0 0.0
      %2214 = vmatpush2.msra.mxu0 0.0
      %2215 = vmatprep.subr.mxu0 0.0
      %2216 = vmatpush2.msra.mxu0 0.0
      %2217 = vmatprep.subr.mxu0 0.0
      %2218 = vmatpush2.msra.mxu0 0.0
      %2219 = vmatprep.subr.mxu0 0.0
      %2220 = vmatpush2.msra.mxu0 0.0
      %2221 = vmatprep.subr.mxu0 0.0
      %2222 = vmatpush2.msra.mxu0 0.0
      %2223 = vmatprep.subr.mxu0 0.0
      %2224 = vmatpush2.msra.mxu0 0.0
      %2225 = vmatprep.mubr.f32.mxu0 0.0
      %2226 = vmatmul.mubr.f32.gmra.mxu0 %v1200
      %v2227 = vpop.f32.mrf.mxu0
      %v2228 = vadd.f32 0.0, %v2227
      %v2229 = vpop.f32.mrf.mxu0
      %2230 = vmatprep.mubr.f32.mxu0 0.0
      %2231 = vmatmul.mubr.f32.gmra.mxu0 %v1202
      %v2232 = vpop.f32.mrf.mxu0
      %v2233 = vadd.f32 0.0, %v2232
      %v2234 = vpop.f32.mrf.mxu0
      %2235 = vmatprep.mubr.f32.mxu0 0.0
      %2236 = vmatmul.mubr.f32.gmra.mxu0 %v1205
      %v2237 = vpop.f32.mrf.mxu0
      %v2238 = vadd.f32 0.0, %v2237
      %v2239 = vpop.f32.mrf.mxu0
      %2240 = vmatprep.mubr.f32.mxu0 0.0
      %2241 = vmatmul.mubr.f32.gmra.mxu0 %v1207
      %v2242 = vpop.f32.mrf.mxu0
      %v2243 = vadd.f32 0.0, %v2242
      %v2244 = vpop.f32.mrf.mxu0
      %2245 = vmatprep.mubr.f32.mxu0 0.0
      %2246 = vmatmul.mubr.f32.gmra.mxu0 %v1210
      %v2247 = vpop.f32.mrf.mxu0
      %v2248 = vadd.f32 0.0, %v2247
      %v2249 = vpop.f32.mrf.mxu0
      %2250 = vmatprep.mubr.f32.mxu0 0.0
      %2251 = vmatmul.mubr.f32.gmra.mxu0 %v1212
      %v2252 = vpop.f32.mrf.mxu0
      %v2253 = vadd.f32 0.0, %v2252
      %v2254 = vpop.f32.mrf.mxu0
      %2255 = vmatprep.mubr.f32.mxu0 0.0
      %2256 = vmatmul.mubr.f32.gmra.mxu0 %v1215
      %v2257 = vpop.f32.mrf.mxu0
      %v2258 = vadd.f32 0.0, %v2257
      %v2259 = vpop.f32.mrf.mxu0
      %2260 = vmatprep.mubr.f32.mxu0 0.0
      %2261 = vmatmul.mubr.f32.gmra.mxu0 %v1217
      %v2262 = vpop.f32.mrf.mxu0
      %v2263 = vadd.f32 0.0, %v2262
      %v2264 = vpop.f32.mrf.mxu0
      %2265 = vmatprep.mubr.f32.mxu0 0.0
      %2266 = vmatmul.mubr.f32.gmra.mxu0 %v1220
      %v2267 = vpop.f32.mrf.mxu0
      %v2268 = vadd.f32 0.0, %v2267
      %v2269 = vpop.f32.mrf.mxu0
      %2270 = vmatprep.mubr.f32.mxu0 0.0
      %2271 = vmatmul.mubr.f32.gmra.mxu0 %v1222
      %v2272 = vpop.f32.mrf.mxu0
      %v2273 = vadd.f32 0.0, %v2272
      %v2274 = vpop.f32.mrf.mxu0
      %2275 = vmatprep.mubr.f32.mxu0 0.0
      %2276 = vmatmul.mubr.f32.gmra.mxu0 %v1225
      %v2277 = vpop.f32.mrf.mxu0
      %v2278 = vadd.f32 0.0, %v2277
      %v2279 = vpop.f32.mrf.mxu0
      %2280 = vmatprep.mubr.f32.mxu0 0.0
      %2281 = vmatmul.mubr.f32.gmra.mxu0 %v1227
      %v2282 = vpop.f32.mrf.mxu0
      %v2283 = vadd.f32 0.0, %v2282
      %v2284 = vpop.f32.mrf.mxu0
      %2285 = vmatprep.mubr.f32.mxu0 0.0
      %2286 = vmatmul.mubr.f32.gmra.mxu0 %v1230
      %v2287 = vpop.f32.mrf.mxu0
      %v2288 = vadd.f32 0.0, %v2287
      %v2289 = vpop.f32.mrf.mxu0
      %2290 = vmatprep.mubr.f32.mxu0 0.0
      %2291 = vmatmul.mubr.f32.gmra.mxu0 %v1232
      %v2292 = vpop.f32.mrf.mxu0
      %v2293 = vadd.f32 0.0, %v2292
      %v2294 = vpop.f32.mrf.mxu0
      %2295 = vmatprep.mubr.f32.mxu0 0.0
      %2296 = vmatmul.mubr.f32.gmra.mxu0 %v1235
      %v2297 = vpop.f32.mrf.mxu0
      %v2298 = vadd.f32 0.0, %v2297
      %v2299 = vpop.f32.mrf.mxu0
      %2300 = vmatprep.mubr.f32.mxu0 0.0
      %2301 = vmatmul.mubr.f32.gmra.mxu0 %v1237
      %v2302 = vpop.f32.mrf.mxu0
      %v2303 = vadd.f32 0.0, %v2302
      %v2304 = vpop.f32.mrf.mxu0
      %2305 = vmatprep.mubr.f32.mxu0 0.0
      %2306 = vmatmul.mubr.f32.gmra.mxu0 %v1240
      %v2307 = vpop.f32.mrf.mxu0
      %v2308 = vadd.f32 0.0, %v2307
      %v2309 = vpop.f32.mrf.mxu0
      %2310 = vmatprep.mubr.f32.mxu0 0.0
      %2311 = vmatmul.mubr.f32.gmra.mxu0 %v1242
      %v2312 = vpop.f32.mrf.mxu0
      %v2313 = vadd.f32 0.0, %v2312
      %v2314 = vpop.f32.mrf.mxu0
      %2315 = vmatprep.mubr.f32.mxu0 0.0
      %2316 = vmatmul.mubr.f32.gmra.mxu0 %v1245
      %v2317 = vpop.f32.mrf.mxu0
      %v2318 = vadd.f32 0.0, %v2317
      %v2319 = vpop.f32.mrf.mxu0
      %2320 = vmatprep.mubr.f32.mxu0 0.0
      %2321 = vmatmul.mubr.f32.gmra.mxu0 %v1247
      %v2322 = vpop.f32.mrf.mxu0
      %v2323 = vadd.f32 0.0, %v2322
      %v2324 = vpop.f32.mrf.mxu0
      %2325 = vmatprep.mubr.f32.mxu0 0.0
      %2326 = vmatmul.mubr.f32.gmra.mxu0 %v1250
      %v2327 = vpop.f32.mrf.mxu0
      %v2328 = vadd.f32 0.0, %v2327
      %v2329 = vpop.f32.mrf.mxu0
      %2330 = vmatprep.mubr.f32.mxu0 0.0
      %2331 = vmatmul.mubr.f32.gmra.mxu0 %v1252
      %v2332 = vpop.f32.mrf.mxu0
      %v2333 = vadd.f32 0.0, %v2332
      %v2334 = vpop.f32.mrf.mxu0
      %2335 = vmatprep.mubr.f32.mxu0 0.0
      %2336 = vmatmul.mubr.f32.gmra.mxu0 %v1255
      %v2337 = vpop.f32.mrf.mxu0
      %v2338 = vadd.f32 0.0, %v2337
      %v2339 = vpop.f32.mrf.mxu0
      %2340 = vmatprep.mubr.f32.mxu0 0.0
      %2341 = vmatmul.mubr.f32.gmra.mxu0 %v1257
      %v2342 = vpop.f32.mrf.mxu0
      %v2343 = vadd.f32 0.0, %v2342
      %v2344 = vpop.f32.mrf.mxu0
      %2345 = vmatprep.mubr.f32.mxu0 0.0
      %2346 = vmatmul.mubr.f32.gmra.mxu0 %v1260
      %v2347 = vpop.f32.mrf.mxu0
      %v2348 = vadd.f32 0.0, %v2347
      %v2349 = vpop.f32.mrf.mxu0
      %2350 = vmatprep.mubr.f32.mxu0 0.0
      %2351 = vmatmul.mubr.f32.gmra.mxu0 %v1262
      %v2352 = vpop.f32.mrf.mxu0
      %v2353 = vadd.f32 0.0, %v2352
      %v2354 = vpop.f32.mrf.mxu0
      %2355 = vmatprep.mubr.f32.mxu0 0.0
      %2356 = vmatmul.mubr.f32.gmra.mxu0 %v1265
      %v2357 = vpop.f32.mrf.mxu0
      %v2358 = vadd.f32 0.0, %v2357
      %v2359 = vpop.f32.mrf.mxu0
      %2360 = vmatprep.mubr.f32.mxu0 0.0
      %2361 = vmatmul.mubr.f32.gmra.mxu0 %v1267
      %v2362 = vpop.f32.mrf.mxu0
      %v2363 = vadd.f32 0.0, %v2362
      %v2364 = vpop.f32.mrf.mxu0
      %2365 = vmatprep.mubr.f32.mxu0 0.0
      %2366 = vmatmul.mubr.f32.gmra.mxu0 %v1270
      %v2367 = vpop.f32.mrf.mxu0
      %v2368 = vadd.f32 0.0, %v2367
      %v2369 = vpop.f32.mrf.mxu0
      %2370 = vmatprep.mubr.f32.mxu0 0.0
      %2371 = vmatmul.mubr.f32.gmra.mxu0 %v1272
      %v2372 = vpop.f32.mrf.mxu0
      %v2373 = vadd.f32 0.0, %v2372
      %v2374 = vpop.f32.mrf.mxu0
      %2375 = vmatprep.mubr.f32.mxu0 0.0
      %2376 = vmatmul.mubr.f32.gmra.mxu0 %v2139
      %v2377 = vpop.f32.mrf.mxu0
      %v2378 = vadd.f32 0.0, %v2377
      %v2379 = vpop.f32.mrf.mxu0
      %2380 = vmatprep.mubr.f32.mxu0 0.0
      %2381 = vmatmul.mubr.f32.gmra.mxu0 %v2141
      %v2382 = vpop.f32.mrf.mxu0
      %v2383 = vadd.f32 0.0, %v2382
      %v2384 = vpop.f32.mrf.mxu0
      %2385 = vdwg.mxu0
      %v2386 = vadd.f32 %v2105, %v2228
      %v2387 = vadd.f32 %v2106, %v2233
      %v2388 = vadd.f32 %v2107, %v2238
      %v2389 = vadd.f32 %v2108, %v2243
      %v2390 = vadd.f32 %v2109, %v2248
      %v2391 = vadd.f32 %v2110, %v2253
      %v2392 = vadd.f32 %v2111, %v2258
      %v2393 = vadd.f32 %v2112, %v2263
      %v2394 = vadd.f32 %v2113, %v2268
      %v2395 = vadd.f32 %v2114, %v2273
      %v2396 = vadd.f32 %v2115, %v2278
      %v2397 = vadd.f32 %v2116, %v2283
      %v2398 = vadd.f32 %v2117, %v2288
      %v2399 = vadd.f32 %v2118, %v2293
      %v2400 = vadd.f32 %v2119, %v2298
      %v2401 = vadd.f32 %v2120, %v2303
      %v2402 = vadd.f32 %v2121, %v2308
      %v2403 = vadd.f32 %v2122, %v2313
      %v2404 = vadd.f32 %v2123, %v2318
      %v2405 = vadd.f32 %v2124, %v2323
      %v2406 = vadd.f32 %v2125, %v2328
      %v2407 = vadd.f32 %v2126, %v2333
      %v2408 = vadd.f32 %v2127, %v2338
      %v2409 = vadd.f32 %v2128, %v2343
      %v2410 = vadd.f32 %v2129, %v2348
      %v2411 = vadd.f32 %v2130, %v2353
      %v2412 = vadd.f32 %v2131, %v2358
      %v2413 = vadd.f32 %v2132, %v2363
      %v2414 = vadd.f32 %v2133, %v2368
      %v2415 = vadd.f32 %v2134, %v2373
      %v2416 = vadd.f32 %v2135, %v2378
      %v2417 = vadd.f32 %v2136, %v2383
      %s2418 = scalar_lea.vmem %s4, 768
      %v2419 = vld [vmem:[%s2418] sm:$0xff]
      %v2420 = vld [vmem:[%s2418 + $0x8] sm:$0xff]
      %v2421 = vld [vmem:[%s2418 + $0x10] sm:$0xff]
      %v2422 = vld [vmem:[%s2418 + $0x18] sm:$0xff]
      %v2423 = vld [vmem:[%s2418 + $0x20] sm:$0xff]
      %v2424 = vld [vmem:[%s2418 + $0x28] sm:$0xff]
      %v2425 = vld [vmem:[%s2418 + $0x30] sm:$0xff]
      %v2426 = vld [vmem:[%s2418 + $0x38] sm:$0xff]
      %v2427 = vld [vmem:[%s2418 + $0x40] sm:$0xff]
      %v2428 = vld [vmem:[%s2418 + $0x48] sm:$0xff]
      %v2429 = vld [vmem:[%s2418 + $0x50] sm:$0xff]
      %v2430 = vld [vmem:[%s2418 + $0x58] sm:$0xff]
      %v2431 = vld [vmem:[%s2418 + $0x60] sm:$0xff]
      %v2432 = vld [vmem:[%s2418 + $0x68] sm:$0xff]
      %v2433 = vld [vmem:[%s2418 + $0x70] sm:$0xff]
      %v2434 = vld [vmem:[%s2418 + $0x78] sm:$0xff]
      %2435 = vmatprep.subr.mxu0 0.0
      %2436 = vmatpush1.msra.mxu0 %v2434
      %2437 = vmatprep.subr.mxu0 0.0
      %2438 = vmatpush1.msra.mxu0 %v2433
      %2439 = vmatprep.subr.mxu0 0.0
      %2440 = vmatpush1.msra.mxu0 %v2432
      %2441 = vmatprep.subr.mxu0 0.0
      %2442 = vmatpush1.msra.mxu0 %v2431
      %2443 = vmatprep.subr.mxu0 0.0
      %2444 = vmatpush1.msra.mxu0 %v2430
      %2445 = vmatprep.subr.mxu0 0.0
      %2446 = vmatpush1.msra.mxu0 %v2429
      %2447 = vmatprep.subr.mxu0 0.0
      %2448 = vmatpush1.msra.mxu0 %v2428
      %2449 = vmatprep.subr.mxu0 0.0
      %2450 = vmatpush1.msra.mxu0 %v2427
      %2451 = vmatprep.subr.mxu0 0.0
      %2452 = vmatpush1.msra.mxu0 %v2426
      %2453 = vmatprep.subr.mxu0 0.0
      %2454 = vmatpush1.msra.mxu0 %v2425
      %2455 = vmatprep.subr.mxu0 0.0
      %2456 = vmatpush1.msra.mxu0 %v2424
      %2457 = vmatprep.subr.mxu0 0.0
      %2458 = vmatpush1.msra.mxu0 %v2423
      %2459 = vmatprep.subr.mxu0 0.0
      %2460 = vmatpush1.msra.mxu0 %v2422
      %2461 = vmatprep.subr.mxu0 0.0
      %2462 = vmatpush1.msra.mxu0 %v2421
      %2463 = vmatprep.subr.mxu0 0.0
      %2464 = vmatpush1.msra.mxu0 %v2420
      %2465 = vmatprep.subr.mxu0 0.0
      %2466 = vmatpush1.msra.mxu0 %v2419
      %2467 = vmatprep.subr.mxu0 0.0
      %2468 = vmatpush2.msra.mxu0 0.0
      %2469 = vmatprep.subr.mxu0 0.0
      %2470 = vmatpush2.msra.mxu0 0.0
      %2471 = vmatprep.subr.mxu0 0.0
      %2472 = vmatpush2.msra.mxu0 0.0
      %2473 = vmatprep.subr.mxu0 0.0
      %2474 = vmatpush2.msra.mxu0 0.0
      %2475 = vmatprep.subr.mxu0 0.0
      %2476 = vmatpush2.msra.mxu0 0.0
      %2477 = vmatprep.subr.mxu0 0.0
      %2478 = vmatpush2.msra.mxu0 0.0
      %2479 = vmatprep.subr.mxu0 0.0
      %2480 = vmatpush2.msra.mxu0 0.0
      %2481 = vmatprep.subr.mxu0 0.0
      %2482 = vmatpush2.msra.mxu0 0.0
      %2483 = vmatprep.subr.mxu0 0.0
      %2484 = vmatpush2.msra.mxu0 0.0
      %2485 = vmatprep.subr.mxu0 0.0
      %2486 = vmatpush2.msra.mxu0 0.0
      %2487 = vmatprep.subr.mxu0 0.0
      %2488 = vmatpush2.msra.mxu0 0.0
      %2489 = vmatprep.subr.mxu0 0.0
      %2490 = vmatpush2.msra.mxu0 0.0
      %2491 = vmatprep.subr.mxu0 0.0
      %2492 = vmatpush2.msra.mxu0 0.0
      %2493 = vmatprep.subr.mxu0 0.0
      %2494 = vmatpush2.msra.mxu0 0.0
      %2495 = vmatprep.subr.mxu0 0.0
      %2496 = vmatpush2.msra.mxu0 0.0
      %2497 = vmatprep.subr.mxu0 0.0
      %2498 = vmatpush2.msra.mxu0 0.0
      %2499 = vmatprep.mubr.f32.mxu0 0.0
      %2500 = vmatmul.mubr.f32.gmra.mxu0 %v500
      %v2501 = vpop.f32.mrf.mxu0
      %v2502 = vadd.f32 0.0, %v2501
      %v2503 = vpop.f32.mrf.mxu0
      %2504 = vmatprep.mubr.f32.mxu0 0.0
      %2505 = vmatmul.mubr.f32.gmra.mxu0 %v501
      %v2506 = vpop.f32.mrf.mxu0
      %v2507 = vadd.f32 0.0, %v2506
      %v2508 = vpop.f32.mrf.mxu0
      %2509 = vmatprep.mubr.f32.mxu0 0.0
      %2510 = vmatmul.mubr.f32.gmra.mxu0 %v503
      %v2511 = vpop.f32.mrf.mxu0
      %v2512 = vadd.f32 0.0, %v2511
      %v2513 = vpop.f32.mrf.mxu0
      %2514 = vmatprep.mubr.f32.mxu0 0.0
      %2515 = vmatmul.mubr.f32.gmra.mxu0 %v504
      %v2516 = vpop.f32.mrf.mxu0
      %v2517 = vadd.f32 0.0, %v2516
      %v2518 = vpop.f32.mrf.mxu0
      %2519 = vmatprep.mubr.f32.mxu0 0.0
      %2520 = vmatmul.mubr.f32.gmra.mxu0 %v506
      %v2521 = vpop.f32.mrf.mxu0
      %v2522 = vadd.f32 0.0, %v2521
      %v2523 = vpop.f32.mrf.mxu0
      %2524 = vmatprep.mubr.f32.mxu0 0.0
      %2525 = vmatmul.mubr.f32.gmra.mxu0 %v507
      %v2526 = vpop.f32.mrf.mxu0
      %v2527 = vadd.f32 0.0, %v2526
      %v2528 = vpop.f32.mrf.mxu0
      %2529 = vmatprep.mubr.f32.mxu0 0.0
      %2530 = vmatmul.mubr.f32.gmra.mxu0 %v509
      %v2531 = vpop.f32.mrf.mxu0
      %v2532 = vadd.f32 0.0, %v2531
      %v2533 = vpop.f32.mrf.mxu0
      %2534 = vmatprep.mubr.f32.mxu0 0.0
      %2535 = vmatmul.mubr.f32.gmra.mxu0 %v510
      %v2536 = vpop.f32.mrf.mxu0
      %v2537 = vadd.f32 0.0, %v2536
      %v2538 = vpop.f32.mrf.mxu0
      %2539 = vmatprep.mubr.f32.mxu0 0.0
      %2540 = vmatmul.mubr.f32.gmra.mxu0 %v512
      %v2541 = vpop.f32.mrf.mxu0
      %v2542 = vadd.f32 0.0, %v2541
      %v2543 = vpop.f32.mrf.mxu0
      %2544 = vmatprep.mubr.f32.mxu0 0.0
      %2545 = vmatmul.mubr.f32.gmra.mxu0 %v513
      %v2546 = vpop.f32.mrf.mxu0
      %v2547 = vadd.f32 0.0, %v2546
      %v2548 = vpop.f32.mrf.mxu0
      %2549 = vmatprep.mubr.f32.mxu0 0.0
      %2550 = vmatmul.mubr.f32.gmra.mxu0 %v515
      %v2551 = vpop.f32.mrf.mxu0
      %v2552 = vadd.f32 0.0, %v2551
      %v2553 = vpop.f32.mrf.mxu0
      %2554 = vmatprep.mubr.f32.mxu0 0.0
      %2555 = vmatmul.mubr.f32.gmra.mxu0 %v516
      %v2556 = vpop.f32.mrf.mxu0
      %v2557 = vadd.f32 0.0, %v2556
      %v2558 = vpop.f32.mrf.mxu0
      %2559 = vmatprep.mubr.f32.mxu0 0.0
      %2560 = vmatmul.mubr.f32.gmra.mxu0 %v518
      %v2561 = vpop.f32.mrf.mxu0
      %v2562 = vadd.f32 0.0, %v2561
      %v2563 = vpop.f32.mrf.mxu0
      %2564 = vmatprep.mubr.f32.mxu0 0.0
      %2565 = vmatmul.mubr.f32.gmra.mxu0 %v519
      %v2566 = vpop.f32.mrf.mxu0
      %v2567 = vadd.f32 0.0, %v2566
      %v2568 = vpop.f32.mrf.mxu0
      %2569 = vmatprep.mubr.f32.mxu0 0.0
      %2570 = vmatmul.mubr.f32.gmra.mxu0 %v521
      %v2571 = vpop.f32.mrf.mxu0
      %v2572 = vadd.f32 0.0, %v2571
      %v2573 = vpop.f32.mrf.mxu0
      %2574 = vmatprep.mubr.f32.mxu0 0.0
      %2575 = vmatmul.mubr.f32.gmra.mxu0 %v522
      %v2576 = vpop.f32.mrf.mxu0
      %v2577 = vadd.f32 0.0, %v2576
      %v2578 = vpop.f32.mrf.mxu0
      %2579 = vmatprep.mubr.f32.mxu0 0.0
      %2580 = vmatmul.mubr.f32.gmra.mxu0 %v524
      %v2581 = vpop.f32.mrf.mxu0
      %v2582 = vadd.f32 0.0, %v2581
      %v2583 = vpop.f32.mrf.mxu0
      %2584 = vmatprep.mubr.f32.mxu0 0.0
      %2585 = vmatmul.mubr.f32.gmra.mxu0 %v525
      %v2586 = vpop.f32.mrf.mxu0
      %v2587 = vadd.f32 0.0, %v2586
      %v2588 = vpop.f32.mrf.mxu0
      %2589 = vmatprep.mubr.f32.mxu0 0.0
      %2590 = vmatmul.mubr.f32.gmra.mxu0 %v527
      %v2591 = vpop.f32.mrf.mxu0
      %v2592 = vadd.f32 0.0, %v2591
      %v2593 = vpop.f32.mrf.mxu0
      %2594 = vmatprep.mubr.f32.mxu0 0.0
      %2595 = vmatmul.mubr.f32.gmra.mxu0 %v528
      %v2596 = vpop.f32.mrf.mxu0
      %v2597 = vadd.f32 0.0, %v2596
      %v2598 = vpop.f32.mrf.mxu0
      %2599 = vmatprep.mubr.f32.mxu0 0.0
      %2600 = vmatmul.mubr.f32.gmra.mxu0 %v530
      %v2601 = vpop.f32.mrf.mxu0
      %v2602 = vadd.f32 0.0, %v2601
      %v2603 = vpop.f32.mrf.mxu0
      %2604 = vmatprep.mubr.f32.mxu0 0.0
      %2605 = vmatmul.mubr.f32.gmra.mxu0 %v531
      %v2606 = vpop.f32.mrf.mxu0
      %v2607 = vadd.f32 0.0, %v2606
      %v2608 = vpop.f32.mrf.mxu0
      %2609 = vmatprep.mubr.f32.mxu0 0.0
      %2610 = vmatmul.mubr.f32.gmra.mxu0 %v533
      %v2611 = vpop.f32.mrf.mxu0
      %v2612 = vadd.f32 0.0, %v2611
      %v2613 = vpop.f32.mrf.mxu0
      %2614 = vmatprep.mubr.f32.mxu0 0.0
      %2615 = vmatmul.mubr.f32.gmra.mxu0 %v534
      %v2616 = vpop.f32.mrf.mxu0
      %v2617 = vadd.f32 0.0, %v2616
      %v2618 = vpop.f32.mrf.mxu0
      %2619 = vmatprep.mubr.f32.mxu0 0.0
      %2620 = vmatmul.mubr.f32.gmra.mxu0 %v536
      %v2621 = vpop.f32.mrf.mxu0
      %v2622 = vadd.f32 0.0, %v2621
      %v2623 = vpop.f32.mrf.mxu0
      %2624 = vmatprep.mubr.f32.mxu0 0.0
      %2625 = vmatmul.mubr.f32.gmra.mxu0 %v537
      %v2626 = vpop.f32.mrf.mxu0
      %v2627 = vadd.f32 0.0, %v2626
      %v2628 = vpop.f32.mrf.mxu0
      %2629 = vmatprep.mubr.f32.mxu0 0.0
      %2630 = vmatmul.mubr.f32.gmra.mxu0 %v539
      %v2631 = vpop.f32.mrf.mxu0
      %v2632 = vadd.f32 0.0, %v2631
      %v2633 = vpop.f32.mrf.mxu0
      %2634 = vmatprep.mubr.f32.mxu0 0.0
      %2635 = vmatmul.mubr.f32.gmra.mxu0 %v540
      %v2636 = vpop.f32.mrf.mxu0
      %v2637 = vadd.f32 0.0, %v2636
      %v2638 = vpop.f32.mrf.mxu0
      %2639 = vmatprep.mubr.f32.mxu0 0.0
      %2640 = vmatmul.mubr.f32.gmra.mxu0 %v542
      %v2641 = vpop.f32.mrf.mxu0
      %v2642 = vadd.f32 0.0, %v2641
      %v2643 = vpop.f32.mrf.mxu0
      %2644 = vmatprep.mubr.f32.mxu0 0.0
      %2645 = vmatmul.mubr.f32.gmra.mxu0 %v543
      %v2646 = vpop.f32.mrf.mxu0
      %v2647 = vadd.f32 0.0, %v2646
      %v2648 = vpop.f32.mrf.mxu0
      %2649 = vmatprep.mubr.f32.mxu0 0.0
      %2650 = vmatmul.mubr.f32.gmra.mxu0 %v545
      %v2651 = vpop.f32.mrf.mxu0
      %v2652 = vadd.f32 0.0, %v2651
      %v2653 = vpop.f32.mrf.mxu0
      %2654 = vmatprep.mubr.f32.mxu0 0.0
      %2655 = vmatmul.mubr.f32.gmra.mxu0 %v546
      %v2656 = vpop.f32.mrf.mxu0
      %v2657 = vadd.f32 0.0, %v2656
      %v2658 = vpop.f32.mrf.mxu0
      %2659 = vdwg.mxu0
      %v2660 = vadd.f32 %v2386, %v2502
      %v2661 = vadd.f32 %v2387, %v2507
      %v2662 = vadd.f32 %v2388, %v2512
      %v2663 = vadd.f32 %v2389, %v2517
      %v2664 = vadd.f32 %v2390, %v2522
      %v2665 = vadd.f32 %v2391, %v2527
      %v2666 = vadd.f32 %v2392, %v2532
      %v2667 = vadd.f32 %v2393, %v2537
      %v2668 = vadd.f32 %v2394, %v2542
      %v2669 = vadd.f32 %v2395, %v2547
      %v2670 = vadd.f32 %v2396, %v2552
      %v2671 = vadd.f32 %v2397, %v2557
      %v2672 = vadd.f32 %v2398, %v2562
      %v2673 = vadd.f32 %v2399, %v2567
      %v2674 = vadd.f32 %v2400, %v2572
      %v2675 = vadd.f32 %v2401, %v2577
      %v2676 = vadd.f32 %v2402, %v2582
      %v2677 = vadd.f32 %v2403, %v2587
      %v2678 = vadd.f32 %v2404, %v2592
      %v2679 = vadd.f32 %v2405, %v2597
      %v2680 = vadd.f32 %v2406, %v2602
      %v2681 = vadd.f32 %v2407, %v2607
      %v2682 = vadd.f32 %v2408, %v2612
      %v2683 = vadd.f32 %v2409, %v2617
      %v2684 = vadd.f32 %v2410, %v2622
      %v2685 = vadd.f32 %v2411, %v2627
      %v2686 = vadd.f32 %v2412, %v2632
      %v2687 = vadd.f32 %v2413, %v2637
      %v2688 = vadd.f32 %v2414, %v2642
      %v2689 = vadd.f32 %v2415, %v2647
      %v2690 = vadd.f32 %v2416, %v2652
      %v2691 = vadd.f32 %v2417, %v2657
      %v2695 = vrot.slane %v545, 1
      %v2696 = vrot.slane %v546, 1
      %v2697 = vsel %vm612, %v2695, %v2696
      %v2698 = vrot.slane %v547, 1
      %v2699 = vsel %vm612, %v2696, %v2698
      %s2702 = scalar_lea.vmem %s4, 896
      %v2703 = vld [vmem:[%s2702] sm:$0xff]
      %v2704 = vld [vmem:[%s2702 + $0x8] sm:$0xff]
      %v2705 = vld [vmem:[%s2702 + $0x10] sm:$0xff]
      %v2706 = vld [vmem:[%s2702 + $0x18] sm:$0xff]
      %v2707 = vld [vmem:[%s2702 + $0x20] sm:$0xff]
      %v2708 = vld [vmem:[%s2702 + $0x28] sm:$0xff]
      %v2709 = vld [vmem:[%s2702 + $0x30] sm:$0xff]
      %v2710 = vld [vmem:[%s2702 + $0x38] sm:$0xff]
      %v2711 = vld [vmem:[%s2702 + $0x40] sm:$0xff]
      %v2712 = vld [vmem:[%s2702 + $0x48] sm:$0xff]
      %v2713 = vld [vmem:[%s2702 + $0x50] sm:$0xff]
      %v2714 = vld [vmem:[%s2702 + $0x58] sm:$0xff]
      %v2715 = vld [vmem:[%s2702 + $0x60] sm:$0xff]
      %v2716 = vld [vmem:[%s2702 + $0x68] sm:$0xff]
      %v2717 = vld [vmem:[%s2702 + $0x70] sm:$0xff]
      %v2718 = vld [vmem:[%s2702 + $0x78] sm:$0xff]
      %2719 = vmatprep.subr.mxu0 0.0
      %2720 = vmatpush1.msra.mxu0 %v2718
      %2721 = vmatprep.subr.mxu0 0.0
      %2722 = vmatpush1.msra.mxu0 %v2717
      %2723 = vmatprep.subr.mxu0 0.0
      %2724 = vmatpush1.msra.mxu0 %v2716
      %2725 = vmatprep.subr.mxu0 0.0
      %2726 = vmatpush1.msra.mxu0 %v2715
      %2727 = vmatprep.subr.mxu0 0.0
      %2728 = vmatpush1.msra.mxu0 %v2714
      %2729 = vmatprep.subr.mxu0 0.0
      %2730 = vmatpush1.msra.mxu0 %v2713
      %2731 = vmatprep.subr.mxu0 0.0
      %2732 = vmatpush1.msra.mxu0 %v2712
      %2733 = vmatprep.subr.mxu0 0.0
      %2734 = vmatpush1.msra.mxu0 %v2711
      %2735 = vmatprep.subr.mxu0 0.0
      %2736 = vmatpush1.msra.mxu0 %v2710
      %2737 = vmatprep.subr.mxu0 0.0
      %2738 = vmatpush1.msra.mxu0 %v2709
      %2739 = vmatprep.subr.mxu0 0.0
      %2740 = vmatpush1.msra.mxu0 %v2708
      %2741 = vmatprep.subr.mxu0 0.0
      %2742 = vmatpush1.msra.mxu0 %v2707
      %2743 = vmatprep.subr.mxu0 0.0
      %2744 = vmatpush1.msra.mxu0 %v2706
      %2745 = vmatprep.subr.mxu0 0.0
      %2746 = vmatpush1.msra.mxu0 %v2705
      %2747 = vmatprep.subr.mxu0 0.0
      %2748 = vmatpush1.msra.mxu0 %v2704
      %2749 = vmatprep.subr.mxu0 0.0
      %2750 = vmatpush1.msra.mxu0 %v2703
      %2751 = vmatprep.subr.mxu0 0.0
      %2752 = vmatpush2.msra.mxu0 0.0
      %2753 = vmatprep.subr.mxu0 0.0
      %2754 = vmatpush2.msra.mxu0 0.0
      %2755 = vmatprep.subr.mxu0 0.0
      %2756 = vmatpush2.msra.mxu0 0.0
      %2757 = vmatprep.subr.mxu0 0.0
      %2758 = vmatpush2.msra.mxu0 0.0
      %2759 = vmatprep.subr.mxu0 0.0
      %2760 = vmatpush2.msra.mxu0 0.0
      %2761 = vmatprep.subr.mxu0 0.0
      %2762 = vmatpush2.msra.mxu0 0.0
      %2763 = vmatprep.subr.mxu0 0.0
      %2764 = vmatpush2.msra.mxu0 0.0
      %2765 = vmatprep.subr.mxu0 0.0
      %2766 = vmatpush2.msra.mxu0 0.0
      %2767 = vmatprep.subr.mxu0 0.0
      %2768 = vmatpush2.msra.mxu0 0.0
      %2769 = vmatprep.subr.mxu0 0.0
      %2770 = vmatpush2.msra.mxu0 0.0
      %2771 = vmatprep.subr.mxu0 0.0
      %2772 = vmatpush2.msra.mxu0 0.0
      %2773 = vmatprep.subr.mxu0 0.0
      %2774 = vmatpush2.msra.mxu0 0.0
      %2775 = vmatprep.subr.mxu0 0.0
      %2776 = vmatpush2.msra.mxu0 0.0
      %2777 = vmatprep.subr.mxu0 0.0
      %2778 = vmatpush2.msra.mxu0 0.0
      %2779 = vmatprep.subr.mxu0 0.0
      %2780 = vmatpush2.msra.mxu0 0.0
      %2781 = vmatprep.subr.mxu0 0.0
      %2782 = vmatpush2.msra.mxu0 0.0
      %2783 = vmatprep.mubr.f32.mxu0 0.0
      %2784 = vmatmul.mubr.f32.gmra.mxu0 %v625
      %v2785 = vpop.f32.mrf.mxu0
      %v2786 = vadd.f32 0.0, %v2785
      %v2787 = vpop.f32.mrf.mxu0
      %2788 = vmatprep.mubr.f32.mxu0 0.0
      %2789 = vmatmul.mubr.f32.gmra.mxu0 %v627
      %v2790 = vpop.f32.mrf.mxu0
      %v2791 = vadd.f32 0.0, %v2790
      %v2792 = vpop.f32.mrf.mxu0
      %2793 = vmatprep.mubr.f32.mxu0 0.0
      %2794 = vmatmul.mubr.f32.gmra.mxu0 %v630
      %v2795 = vpop.f32.mrf.mxu0
      %v2796 = vadd.f32 0.0, %v2795
      %v2797 = vpop.f32.mrf.mxu0
      %2798 = vmatprep.mubr.f32.mxu0 0.0
      %2799 = vmatmul.mubr.f32.gmra.mxu0 %v632
      %v2800 = vpop.f32.mrf.mxu0
      %v2801 = vadd.f32 0.0, %v2800
      %v2802 = vpop.f32.mrf.mxu0
      %2803 = vmatprep.mubr.f32.mxu0 0.0
      %2804 = vmatmul.mubr.f32.gmra.mxu0 %v635
      %v2805 = vpop.f32.mrf.mxu0
      %v2806 = vadd.f32 0.0, %v2805
      %v2807 = vpop.f32.mrf.mxu0
      %2808 = vmatprep.mubr.f32.mxu0 0.0
      %2809 = vmatmul.mubr.f32.gmra.mxu0 %v637
      %v2810 = vpop.f32.mrf.mxu0
      %v2811 = vadd.f32 0.0, %v2810
      %v2812 = vpop.f32.mrf.mxu0
      %2813 = vmatprep.mubr.f32.mxu0 0.0
      %2814 = vmatmul.mubr.f32.gmra.mxu0 %v640
      %v2815 = vpop.f32.mrf.mxu0
      %v2816 = vadd.f32 0.0, %v2815
      %v2817 = vpop.f32.mrf.mxu0
      %2818 = vmatprep.mubr.f32.mxu0 0.0
      %2819 = vmatmul.mubr.f32.gmra.mxu0 %v642
      %v2820 = vpop.f32.mrf.mxu0
      %v2821 = vadd.f32 0.0, %v2820
      %v2822 = vpop.f32.mrf.mxu0
      %2823 = vmatprep.mubr.f32.mxu0 0.0
      %2824 = vmatmul.mubr.f32.gmra.mxu0 %v645
      %v2825 = vpop.f32.mrf.mxu0
      %v2826 = vadd.f32 0.0, %v2825
      %v2827 = vpop.f32.mrf.mxu0
      %2828 = vmatprep.mubr.f32.mxu0 0.0
      %2829 = vmatmul.mubr.f32.gmra.mxu0 %v647
      %v2830 = vpop.f32.mrf.mxu0
      %v2831 = vadd.f32 0.0, %v2830
      %v2832 = vpop.f32.mrf.mxu0
      %2833 = vmatprep.mubr.f32.mxu0 0.0
      %2834 = vmatmul.mubr.f32.gmra.mxu0 %v650
      %v2835 = vpop.f32.mrf.mxu0
      %v2836 = vadd.f32 0.0, %v2835
      %v2837 = vpop.f32.mrf.mxu0
      %2838 = vmatprep.mubr.f32.mxu0 0.0
      %2839 = vmatmul.mubr.f32.gmra.mxu0 %v652
      %v2840 = vpop.f32.mrf.mxu0
      %v2841 = vadd.f32 0.0, %v2840
      %v2842 = vpop.f32.mrf.mxu0
      %2843 = vmatprep.mubr.f32.mxu0 0.0
      %2844 = vmatmul.mubr.f32.gmra.mxu0 %v655
      %v2845 = vpop.f32.mrf.mxu0
      %v2846 = vadd.f32 0.0, %v2845
      %v2847 = vpop.f32.mrf.mxu0
      %2848 = vmatprep.mubr.f32.mxu0 0.0
      %2849 = vmatmul.mubr.f32.gmra.mxu0 %v657
      %v2850 = vpop.f32.mrf.mxu0
      %v2851 = vadd.f32 0.0, %v2850
      %v2852 = vpop.f32.mrf.mxu0
      %2853 = vmatprep.mubr.f32.mxu0 0.0
      %2854 = vmatmul.mubr.f32.gmra.mxu0 %v660
      %v2855 = vpop.f32.mrf.mxu0
      %v2856 = vadd.f32 0.0, %v2855
      %v2857 = vpop.f32.mrf.mxu0
      %2858 = vmatprep.mubr.f32.mxu0 0.0
      %2859 = vmatmul.mubr.f32.gmra.mxu0 %v662
      %v2860 = vpop.f32.mrf.mxu0
      %v2861 = vadd.f32 0.0, %v2860
      %v2862 = vpop.f32.mrf.mxu0
      %2863 = vmatprep.mubr.f32.mxu0 0.0
      %2864 = vmatmul.mubr.f32.gmra.mxu0 %v665
      %v2865 = vpop.f32.mrf.mxu0
      %v2866 = vadd.f32 0.0, %v2865
      %v2867 = vpop.f32.mrf.mxu0
      %2868 = vmatprep.mubr.f32.mxu0 0.0
      %2869 = vmatmul.mubr.f32.gmra.mxu0 %v667
      %v2870 = vpop.f32.mrf.mxu0
      %v2871 = vadd.f32 0.0, %v2870
      %v2872 = vpop.f32.mrf.mxu0
      %2873 = vmatprep.mubr.f32.mxu0 0.0
      %2874 = vmatmul.mubr.f32.gmra.mxu0 %v670
      %v2875 = vpop.f32.mrf.mxu0
      %v2876 = vadd.f32 0.0, %v2875
      %v2877 = vpop.f32.mrf.mxu0
      %2878 = vmatprep.mubr.f32.mxu0 0.0
      %2879 = vmatmul.mubr.f32.gmra.mxu0 %v672
      %v2880 = vpop.f32.mrf.mxu0
      %v2881 = vadd.f32 0.0, %v2880
      %v2882 = vpop.f32.mrf.mxu0
      %2883 = vmatprep.mubr.f32.mxu0 0.0
      %2884 = vmatmul.mubr.f32.gmra.mxu0 %v675
      %v2885 = vpop.f32.mrf.mxu0
      %v2886 = vadd.f32 0.0, %v2885
      %v2887 = vpop.f32.mrf.mxu0
      %2888 = vmatprep.mubr.f32.mxu0 0.0
      %2889 = vmatmul.mubr.f32.gmra.mxu0 %v677
      %v2890 = vpop.f32.mrf.mxu0
      %v2891 = vadd.f32 0.0, %v2890
      %v2892 = vpop.f32.mrf.mxu0
      %2893 = vmatprep.mubr.f32.mxu0 0.0
      %2894 = vmatmul.mubr.f32.gmra.mxu0 %v680
      %v2895 = vpop.f32.mrf.mxu0
      %v2896 = vadd.f32 0.0, %v2895
      %v2897 = vpop.f32.mrf.mxu0
      %2898 = vmatprep.mubr.f32.mxu0 0.0
      %2899 = vmatmul.mubr.f32.gmra.mxu0 %v682
      %v2900 = vpop.f32.mrf.mxu0
      %v2901 = vadd.f32 0.0, %v2900
      %v2902 = vpop.f32.mrf.mxu0
      %2903 = vmatprep.mubr.f32.mxu0 0.0
      %2904 = vmatmul.mubr.f32.gmra.mxu0 %v685
      %v2905 = vpop.f32.mrf.mxu0
      %v2906 = vadd.f32 0.0, %v2905
      %v2907 = vpop.f32.mrf.mxu0
      %2908 = vmatprep.mubr.f32.mxu0 0.0
      %2909 = vmatmul.mubr.f32.gmra.mxu0 %v687
      %v2910 = vpop.f32.mrf.mxu0
      %v2911 = vadd.f32 0.0, %v2910
      %v2912 = vpop.f32.mrf.mxu0
      %2913 = vmatprep.mubr.f32.mxu0 0.0
      %2914 = vmatmul.mubr.f32.gmra.mxu0 %v690
      %v2915 = vpop.f32.mrf.mxu0
      %v2916 = vadd.f32 0.0, %v2915
      %v2917 = vpop.f32.mrf.mxu0
      %2918 = vmatprep.mubr.f32.mxu0 0.0
      %2919 = vmatmul.mubr.f32.gmra.mxu0 %v692
      %v2920 = vpop.f32.mrf.mxu0
      %v2921 = vadd.f32 0.0, %v2920
      %v2922 = vpop.f32.mrf.mxu0
      %2923 = vmatprep.mubr.f32.mxu0 0.0
      %2924 = vmatmul.mubr.f32.gmra.mxu0 %v1858
      %v2925 = vpop.f32.mrf.mxu0
      %v2926 = vadd.f32 0.0, %v2925
      %v2927 = vpop.f32.mrf.mxu0
      %2928 = vmatprep.mubr.f32.mxu0 0.0
      %2929 = vmatmul.mubr.f32.gmra.mxu0 %v1860
      %v2930 = vpop.f32.mrf.mxu0
      %v2931 = vadd.f32 0.0, %v2930
      %v2932 = vpop.f32.mrf.mxu0
      %2933 = vmatprep.mubr.f32.mxu0 0.0
      %2934 = vmatmul.mubr.f32.gmra.mxu0 %v2697
      %v2935 = vpop.f32.mrf.mxu0
      %v2936 = vadd.f32 0.0, %v2935
      %v2937 = vpop.f32.mrf.mxu0
      %2938 = vmatprep.mubr.f32.mxu0 0.0
      %2939 = vmatmul.mubr.f32.gmra.mxu0 %v2699
      %v2940 = vpop.f32.mrf.mxu0
      %v2941 = vadd.f32 0.0, %v2940
      %v2942 = vpop.f32.mrf.mxu0
      %2943 = vdwg.mxu0
      %v2944 = vadd.f32 %v2660, %v2786
      %v2945 = vadd.f32 %v2661, %v2791
      %v2946 = vadd.f32 %v2662, %v2796
      %v2947 = vadd.f32 %v2663, %v2801
      %v2948 = vadd.f32 %v2664, %v2806
      %v2949 = vadd.f32 %v2665, %v2811
      %v2950 = vadd.f32 %v2666, %v2816
      %v2951 = vadd.f32 %v2667, %v2821
      %v2952 = vadd.f32 %v2668, %v2826
      %v2953 = vadd.f32 %v2669, %v2831
      %v2954 = vadd.f32 %v2670, %v2836
      %v2955 = vadd.f32 %v2671, %v2841
      %v2956 = vadd.f32 %v2672, %v2846
      %v2957 = vadd.f32 %v2673, %v2851
      %v2958 = vadd.f32 %v2674, %v2856
      %v2959 = vadd.f32 %v2675, %v2861
      %v2960 = vadd.f32 %v2676, %v2866
      %v2961 = vadd.f32 %v2677, %v2871
      %v2962 = vadd.f32 %v2678, %v2876
      %v2963 = vadd.f32 %v2679, %v2881
      %v2964 = vadd.f32 %v2680, %v2886
      %v2965 = vadd.f32 %v2681, %v2891
      %v2966 = vadd.f32 %v2682, %v2896
      %v2967 = vadd.f32 %v2683, %v2901
      %v2968 = vadd.f32 %v2684, %v2906
      %v2969 = vadd.f32 %v2685, %v2911
      %v2970 = vadd.f32 %v2686, %v2916
      %v2971 = vadd.f32 %v2687, %v2921
      %v2972 = vadd.f32 %v2688, %v2926
      %v2973 = vadd.f32 %v2689, %v2931
      %v2974 = vadd.f32 %v2690, %v2936
      %v2975 = vadd.f32 %v2691, %v2941
      %v2976 = vrot.slane %v545, 2
      %v2977 = vrot.slane %v546, 2
      %v2978 = vsel %vm1192, %v2976, %v2977
      %v2979 = vrot.slane %v547, 2
      %v2980 = vsel %vm1192, %v2977, %v2979
      %s2983 = scalar_lea.vmem %s4, 1024
      %v2984 = vld [vmem:[%s2983] sm:$0xff]
      %v2985 = vld [vmem:[%s2983 + $0x8] sm:$0xff]
      %v2986 = vld [vmem:[%s2983 + $0x10] sm:$0xff]
      %v2987 = vld [vmem:[%s2983 + $0x18] sm:$0xff]
      %v2988 = vld [vmem:[%s2983 + $0x20] sm:$0xff]
      %v2989 = vld [vmem:[%s2983 + $0x28] sm:$0xff]
      %v2990 = vld [vmem:[%s2983 + $0x30] sm:$0xff]
      %v2991 = vld [vmem:[%s2983 + $0x38] sm:$0xff]
      %v2992 = vld [vmem:[%s2983 + $0x40] sm:$0xff]
      %v2993 = vld [vmem:[%s2983 + $0x48] sm:$0xff]
      %v2994 = vld [vmem:[%s2983 + $0x50] sm:$0xff]
      %v2995 = vld [vmem:[%s2983 + $0x58] sm:$0xff]
      %v2996 = vld [vmem:[%s2983 + $0x60] sm:$0xff]
      %v2997 = vld [vmem:[%s2983 + $0x68] sm:$0xff]
      %v2998 = vld [vmem:[%s2983 + $0x70] sm:$0xff]
      %v2999 = vld [vmem:[%s2983 + $0x78] sm:$0xff]
      %3000 = vmatprep.subr.mxu0 0.0
      %3001 = vmatpush1.msra.mxu0 %v2999
      %3002 = vmatprep.subr.mxu0 0.0
      %3003 = vmatpush1.msra.mxu0 %v2998
      %3004 = vmatprep.subr.mxu0 0.0
      %3005 = vmatpush1.msra.mxu0 %v2997
      %3006 = vmatprep.subr.mxu0 0.0
      %3007 = vmatpush1.msra.mxu0 %v2996
      %3008 = vmatprep.subr.mxu0 0.0
      %3009 = vmatpush1.msra.mxu0 %v2995
      %3010 = vmatprep.subr.mxu0 0.0
      %3011 = vmatpush1.msra.mxu0 %v2994
      %3012 = vmatprep.subr.mxu0 0.0
      %3013 = vmatpush1.msra.mxu0 %v2993
      %3014 = vmatprep.subr.mxu0 0.0
      %3015 = vmatpush1.msra.mxu0 %v2992
      %3016 = vmatprep.subr.mxu0 0.0
      %3017 = vmatpush1.msra.mxu0 %v2991
      %3018 = vmatprep.subr.mxu0 0.0
      %3019 = vmatpush1.msra.mxu0 %v2990
      %3020 = vmatprep.subr.mxu0 0.0
      %3021 = vmatpush1.msra.mxu0 %v2989
      %3022 = vmatprep.subr.mxu0 0.0
      %3023 = vmatpush1.msra.mxu0 %v2988
      %3024 = vmatprep.subr.mxu0 0.0
      %3025 = vmatpush1.msra.mxu0 %v2987
      %3026 = vmatprep.subr.mxu0 0.0
      %3027 = vmatpush1.msra.mxu0 %v2986
      %3028 = vmatprep.subr.mxu0 0.0
      %3029 = vmatpush1.msra.mxu0 %v2985
      %3030 = vmatprep.subr.mxu0 0.0
      %3031 = vmatpush1.msra.mxu0 %v2984
      %3032 = vmatprep.subr.mxu0 0.0
      %3033 = vmatpush2.msra.mxu0 0.0
      %3034 = vmatprep.subr.mxu0 0.0
      %3035 = vmatpush2.msra.mxu0 0.0
      %3036 = vmatprep.subr.mxu0 0.0
      %3037 = vmatpush2.msra.mxu0 0.0
      %3038 = vmatprep.subr.mxu0 0.0
      %3039 = vmatpush2.msra.mxu0 0.0
      %3040 = vmatprep.subr.mxu0 0.0
      %3041 = vmatpush2.msra.mxu0 0.0
      %3042 = vmatprep.subr.mxu0 0.0
      %3043 = vmatpush2.msra.mxu0 0.0
      %3044 = vmatprep.subr.mxu0 0.0
      %3045 = vmatpush2.msra.mxu0 0.0
      %3046 = vmatprep.subr.mxu0 0.0
      %3047 = vmatpush2.msra.mxu0 0.0
      %3048 = vmatprep.subr.mxu0 0.0
      %3049 = vmatpush2.msra.mxu0 0.0
      %3050 = vmatprep.subr.mxu0 0.0
      %3051 = vmatpush2.msra.mxu0 0.0
      %3052 = vmatprep.subr.mxu0 0.0
      %3053 = vmatpush2.msra.mxu0 0.0
      %3054 = vmatprep.subr.mxu0 0.0
      %3055 = vmatpush2.msra.mxu0 0.0
      %3056 = vmatprep.subr.mxu0 0.0
      %3057 = vmatpush2.msra.mxu0 0.0
      %3058 = vmatprep.subr.mxu0 0.0
      %3059 = vmatpush2.msra.mxu0 0.0
      %3060 = vmatprep.subr.mxu0 0.0
      %3061 = vmatpush2.msra.mxu0 0.0
      %3062 = vmatprep.subr.mxu0 0.0
      %3063 = vmatpush2.msra.mxu0 0.0
      %3064 = vmatprep.mubr.f32.mxu0 0.0
      %3065 = vmatmul.mubr.f32.gmra.mxu0 %v1205
      %v3066 = vpop.f32.mrf.mxu0
      %v3067 = vadd.f32 0.0, %v3066
      %v3068 = vpop.f32.mrf.mxu0
      %3069 = vmatprep.mubr.f32.mxu0 0.0
      %3070 = vmatmul.mubr.f32.gmra.mxu0 %v1207
      %v3071 = vpop.f32.mrf.mxu0
      %v3072 = vadd.f32 0.0, %v3071
      %v3073 = vpop.f32.mrf.mxu0
      %3074 = vmatprep.mubr.f32.mxu0 0.0
      %3075 = vmatmul.mubr.f32.gmra.mxu0 %v1210
      %v3076 = vpop.f32.mrf.mxu0
      %v3077 = vadd.f32 0.0, %v3076
      %v3078 = vpop.f32.mrf.mxu0
      %3079 = vmatprep.mubr.f32.mxu0 0.0
      %3080 = vmatmul.mubr.f32.gmra.mxu0 %v1212
      %v3081 = vpop.f32.mrf.mxu0
      %v3082 = vadd.f32 0.0, %v3081
      %v3083 = vpop.f32.mrf.mxu0
      %3084 = vmatprep.mubr.f32.mxu0 0.0
      %3085 = vmatmul.mubr.f32.gmra.mxu0 %v1215
      %v3086 = vpop.f32.mrf.mxu0
      %v3087 = vadd.f32 0.0, %v3086
      %v3088 = vpop.f32.mrf.mxu0
      %3089 = vmatprep.mubr.f32.mxu0 0.0
      %3090 = vmatmul.mubr.f32.gmra.mxu0 %v1217
      %v3091 = vpop.f32.mrf.mxu0
      %v3092 = vadd.f32 0.0, %v3091
      %v3093 = vpop.f32.mrf.mxu0
      %3094 = vmatprep.mubr.f32.mxu0 0.0
      %3095 = vmatmul.mubr.f32.gmra.mxu0 %v1220
      %v3096 = vpop.f32.mrf.mxu0
      %v3097 = vadd.f32 0.0, %v3096
      %v3098 = vpop.f32.mrf.mxu0
      %3099 = vmatprep.mubr.f32.mxu0 0.0
      %3100 = vmatmul.mubr.f32.gmra.mxu0 %v1222
      %v3101 = vpop.f32.mrf.mxu0
      %v3102 = vadd.f32 0.0, %v3101
      %v3103 = vpop.f32.mrf.mxu0
      %3104 = vmatprep.mubr.f32.mxu0 0.0
      %3105 = vmatmul.mubr.f32.gmra.mxu0 %v1225
      %v3106 = vpop.f32.mrf.mxu0
      %v3107 = vadd.f32 0.0, %v3106
      %v3108 = vpop.f32.mrf.mxu0
      %3109 = vmatprep.mubr.f32.mxu0 0.0
      %3110 = vmatmul.mubr.f32.gmra.mxu0 %v1227
      %v3111 = vpop.f32.mrf.mxu0
      %v3112 = vadd.f32 0.0, %v3111
      %v3113 = vpop.f32.mrf.mxu0
      %3114 = vmatprep.mubr.f32.mxu0 0.0
      %3115 = vmatmul.mubr.f32.gmra.mxu0 %v1230
      %v3116 = vpop.f32.mrf.mxu0
      %v3117 = vadd.f32 0.0, %v3116
      %v3118 = vpop.f32.mrf.mxu0
      %3119 = vmatprep.mubr.f32.mxu0 0.0
      %3120 = vmatmul.mubr.f32.gmra.mxu0 %v1232
      %v3121 = vpop.f32.mrf.mxu0
      %v3122 = vadd.f32 0.0, %v3121
      %v3123 = vpop.f32.mrf.mxu0
      %3124 = vmatprep.mubr.f32.mxu0 0.0
      %3125 = vmatmul.mubr.f32.gmra.mxu0 %v1235
      %v3126 = vpop.f32.mrf.mxu0
      %v3127 = vadd.f32 0.0, %v3126
      %v3128 = vpop.f32.mrf.mxu0
      %3129 = vmatprep.mubr.f32.mxu0 0.0
      %3130 = vmatmul.mubr.f32.gmra.mxu0 %v1237
      %v3131 = vpop.f32.mrf.mxu0
      %v3132 = vadd.f32 0.0, %v3131
      %v3133 = vpop.f32.mrf.mxu0
      %3134 = vmatprep.mubr.f32.mxu0 0.0
      %3135 = vmatmul.mubr.f32.gmra.mxu0 %v1240
      %v3136 = vpop.f32.mrf.mxu0
      %v3137 = vadd.f32 0.0, %v3136
      %v3138 = vpop.f32.mrf.mxu0
      %3139 = vmatprep.mubr.f32.mxu0 0.0
      %3140 = vmatmul.mubr.f32.gmra.mxu0 %v1242
      %v3141 = vpop.f32.mrf.mxu0
      %v3142 = vadd.f32 0.0, %v3141
      %v3143 = vpop.f32.mrf.mxu0
      %3144 = vmatprep.mubr.f32.mxu0 0.0
      %3145 = vmatmul.mubr.f32.gmra.mxu0 %v1245
      %v3146 = vpop.f32.mrf.mxu0
      %v3147 = vadd.f32 0.0, %v3146
      %v3148 = vpop.f32.mrf.mxu0
      %3149 = vmatprep.mubr.f32.mxu0 0.0
      %3150 = vmatmul.mubr.f32.gmra.mxu0 %v1247
      %v3151 = vpop.f32.mrf.mxu0
      %v3152 = vadd.f32 0.0, %v3151
      %v3153 = vpop.f32.mrf.mxu0
      %3154 = vmatprep.mubr.f32.mxu0 0.0
      %3155 = vmatmul.mubr.f32.gmra.mxu0 %v1250
      %v3156 = vpop.f32.mrf.mxu0
      %v3157 = vadd.f32 0.0, %v3156
      %v3158 = vpop.f32.mrf.mxu0
      %3159 = vmatprep.mubr.f32.mxu0 0.0
      %3160 = vmatmul.mubr.f32.gmra.mxu0 %v1252
      %v3161 = vpop.f32.mrf.mxu0
      %v3162 = vadd.f32 0.0, %v3161
      %v3163 = vpop.f32.mrf.mxu0
      %3164 = vmatprep.mubr.f32.mxu0 0.0
      %3165 = vmatmul.mubr.f32.gmra.mxu0 %v1255
      %v3166 = vpop.f32.mrf.mxu0
      %v3167 = vadd.f32 0.0, %v3166
      %v3168 = vpop.f32.mrf.mxu0
      %3169 = vmatprep.mubr.f32.mxu0 0.0
      %3170 = vmatmul.mubr.f32.gmra.mxu0 %v1257
      %v3171 = vpop.f32.mrf.mxu0
      %v3172 = vadd.f32 0.0, %v3171
      %v3173 = vpop.f32.mrf.mxu0
      %3174 = vmatprep.mubr.f32.mxu0 0.0
      %3175 = vmatmul.mubr.f32.gmra.mxu0 %v1260
      %v3176 = vpop.f32.mrf.mxu0
      %v3177 = vadd.f32 0.0, %v3176
      %v3178 = vpop.f32.mrf.mxu0
      %3179 = vmatprep.mubr.f32.mxu0 0.0
      %3180 = vmatmul.mubr.f32.gmra.mxu0 %v1262
      %v3181 = vpop.f32.mrf.mxu0
      %v3182 = vadd.f32 0.0, %v3181
      %v3183 = vpop.f32.mrf.mxu0
      %3184 = vmatprep.mubr.f32.mxu0 0.0
      %3185 = vmatmul.mubr.f32.gmra.mxu0 %v1265
      %v3186 = vpop.f32.mrf.mxu0
      %v3187 = vadd.f32 0.0, %v3186
      %v3188 = vpop.f32.mrf.mxu0
      %3189 = vmatprep.mubr.f32.mxu0 0.0
      %3190 = vmatmul.mubr.f32.gmra.mxu0 %v1267
      %v3191 = vpop.f32.mrf.mxu0
      %v3192 = vadd.f32 0.0, %v3191
      %v3193 = vpop.f32.mrf.mxu0
      %3194 = vmatprep.mubr.f32.mxu0 0.0
      %3195 = vmatmul.mubr.f32.gmra.mxu0 %v1270
      %v3196 = vpop.f32.mrf.mxu0
      %v3197 = vadd.f32 0.0, %v3196
      %v3198 = vpop.f32.mrf.mxu0
      %3199 = vmatprep.mubr.f32.mxu0 0.0
      %3200 = vmatmul.mubr.f32.gmra.mxu0 %v1272
      %v3201 = vpop.f32.mrf.mxu0
      %v3202 = vadd.f32 0.0, %v3201
      %v3203 = vpop.f32.mrf.mxu0
      %3204 = vmatprep.mubr.f32.mxu0 0.0
      %3205 = vmatmul.mubr.f32.gmra.mxu0 %v2139
      %v3206 = vpop.f32.mrf.mxu0
      %v3207 = vadd.f32 0.0, %v3206
      %v3208 = vpop.f32.mrf.mxu0
      %3209 = vmatprep.mubr.f32.mxu0 0.0
      %3210 = vmatmul.mubr.f32.gmra.mxu0 %v2141
      %v3211 = vpop.f32.mrf.mxu0
      %v3212 = vadd.f32 0.0, %v3211
      %v3213 = vpop.f32.mrf.mxu0
      %3214 = vmatprep.mubr.f32.mxu0 0.0
      %3215 = vmatmul.mubr.f32.gmra.mxu0 %v2978
      %v3216 = vpop.f32.mrf.mxu0
      %v3217 = vadd.f32 0.0, %v3216
      %v3218 = vpop.f32.mrf.mxu0
      %3219 = vmatprep.mubr.f32.mxu0 0.0
      %3220 = vmatmul.mubr.f32.gmra.mxu0 %v2980
      %v3221 = vpop.f32.mrf.mxu0
      %v3222 = vadd.f32 0.0, %v3221
      %v3223 = vpop.f32.mrf.mxu0
      %3224 = vdwg.mxu0
      %v3225 = vadd.f32 %v2944, %v3067
      %v3226 = vadd.f32 %v2945, %v3072
      %v3227 = vadd.f32 %v2946, %v3077
      %v3228 = vadd.f32 %v2947, %v3082
      %v3229 = vadd.f32 %v2948, %v3087
      %v3230 = vadd.f32 %v2949, %v3092
      %v3231 = vadd.f32 %v2950, %v3097
      %v3232 = vadd.f32 %v2951, %v3102
      %v3233 = vadd.f32 %v2952, %v3107
      %v3234 = vadd.f32 %v2953, %v3112
      %v3235 = vadd.f32 %v2954, %v3117
      %v3236 = vadd.f32 %v2955, %v3122
      %v3237 = vadd.f32 %v2956, %v3127
      %v3238 = vadd.f32 %v2957, %v3132
      %v3239 = vadd.f32 %v2958, %v3137
      %v3240 = vadd.f32 %v2959, %v3142
      %v3241 = vadd.f32 %v2960, %v3147
      %v3242 = vadd.f32 %v2961, %v3152
      %v3243 = vadd.f32 %v2962, %v3157
      %v3244 = vadd.f32 %v2963, %v3162
      %v3245 = vadd.f32 %v2964, %v3167
      %v3246 = vadd.f32 %v2965, %v3172
      %v3247 = vadd.f32 %v2966, %v3177
      %v3248 = vadd.f32 %v2967, %v3182
      %v3249 = vadd.f32 %v2968, %v3187
      %v3250 = vadd.f32 %v2969, %v3192
      %v3251 = vadd.f32 %v2970, %v3197
      %v3252 = vadd.f32 %v2971, %v3202
      %v3253 = vadd.f32 %v2972, %v3207
      %v3254 = vadd.f32 %v2973, %v3212
      %v3255 = vadd.f32 %v2974, %v3217
      %v3256 = vadd.f32 %v2975, %v3222
      %3257 = vst [vmem:[%s249] sm:$0xff] %v3225
      %3258 = vst [vmem:[%s249 + $0x8] sm:$0xff] %v3226
      %3259 = vst [vmem:[%s249 + $0x10] sm:$0xff] %v3227
      %3260 = vst [vmem:[%s249 + $0x18] sm:$0xff] %v3228
      %3261 = vst [vmem:[%s249 + $0x20] sm:$0xff] %v3229
      %3262 = vst [vmem:[%s249 + $0x28] sm:$0xff] %v3230
      %3263 = vst [vmem:[%s249 + $0x30] sm:$0xff] %v3231
      %3264 = vst [vmem:[%s249 + $0x38] sm:$0xff] %v3232
      %3265 = vst [vmem:[%s249 + $0x40] sm:$0xff] %v3233
      %3266 = vst [vmem:[%s249 + $0x48] sm:$0xff] %v3234
      %3267 = vst [vmem:[%s249 + $0x50] sm:$0xff] %v3235
      %3268 = vst [vmem:[%s249 + $0x58] sm:$0xff] %v3236
      %3269 = vst [vmem:[%s249 + $0x60] sm:$0xff] %v3237
      %3270 = vst [vmem:[%s249 + $0x68] sm:$0xff] %v3238
      %3271 = vst [vmem:[%s249 + $0x70] sm:$0xff] %v3239
      %3272 = vst [vmem:[%s249 + $0x78] sm:$0xff] %v3240
      %3273 = vst [vmem:[%s249 + $0x80] sm:$0xff] %v3241
      %3274 = vst [vmem:[%s249 + $0x88] sm:$0xff] %v3242
      %3275 = vst [vmem:[%s249 + $0x90] sm:$0xff] %v3243
      %3276 = vst [vmem:[%s249 + $0x98] sm:$0xff] %v3244
      %3277 = vst [vmem:[%s249 + $0xa0] sm:$0xff] %v3245
      %3278 = vst [vmem:[%s249 + $0xa8] sm:$0xff] %v3246
      %3279 = vst [vmem:[%s249 + $0xb0] sm:$0xff] %v3247
      %3280 = vst [vmem:[%s249 + $0xb8] sm:$0xff] %v3248
      %3281 = vst [vmem:[%s249 + $0xc0] sm:$0xff] %v3249
      %3282 = vst [vmem:[%s249 + $0xc8] sm:$0xff] %v3250
      %3283 = vst [vmem:[%s249 + $0xd0] sm:$0xff] %v3251
      %3284 = vst [vmem:[%s249 + $0xd8] sm:$0xff] %v3252
      %3285 = vst [vmem:[%s249 + $0xe0] sm:$0xff] %v3253
      %3286 = vst [vmem:[%s249 + $0xe8] sm:$0xff] %v3254
      %3287 = vst [vmem:[%s249 + $0xf0] sm:$0xff] %v3255
      %3288 = vst [vmem:[%s249 + $0xf8] sm:$0xff] %v3256
      %v3289 = vld [vmem:[%s6] sm:$0x1]
      %v3290 = vadd.f32 %v3225, %v3226
      %v3291 = vadd.f32 %v3290, %v3227
      %v3292 = vadd.f32 %v3291, %v3228
      %v3293 = vadd.f32 %v3292, %v3229
      %v3294 = vadd.f32 %v3293, %v3230
      %v3295 = vadd.f32 %v3294, %v3231
      %v3296 = vadd.f32 %v3295, %v3232
      %v3297 = vadd.f32 %v3296, %v3233
      %v3298 = vadd.f32 %v3297, %v3234
      %v3299 = vadd.f32 %v3298, %v3235
      %v3300 = vadd.f32 %v3299, %v3236
      %v3301 = vadd.f32 %v3300, %v3237
      %v3302 = vadd.f32 %v3301, %v3238
      %v3303 = vadd.f32 %v3302, %v3239
      %v3304 = vadd.f32 %v3303, %v3240
      %v3305 = vadd.f32 %v3304, %v3241
      %v3306 = vadd.f32 %v3305, %v3242
      %v3307 = vadd.f32 %v3306, %v3243
      %v3308 = vadd.f32 %v3307, %v3244
      %v3309 = vadd.f32 %v3308, %v3245
      %v3310 = vadd.f32 %v3309, %v3246
      %v3311 = vadd.f32 %v3310, %v3247
      %v3312 = vadd.f32 %v3311, %v3248
      %v3313 = vadd.f32 %v3312, %v3249
      %v3314 = vadd.f32 %v3313, %v3250
      %v3315 = vadd.f32 %v3314, %v3251
      %v3316 = vadd.f32 %v3315, %v3252
      %v3317 = vadd.f32 %v3316, %v3253
      %v3318 = vadd.f32 %v3317, %v3254
      %v3319 = vadd.f32 %v3318, %v3255
      %v3320 = vadd.f32 %v3319, %v3256
      %v3321 = vrot.slane %v3320, 4
      %v3322 = vadd.f32 %v3320, %v3321
      %v3323 = vrot.slane %v3322, 2
      %v3324 = vadd.f32 %v3322, %v3323
      %v3325 = vrot.slane %v3324, 1
      %v3326 = vadd.f32 %v3324, %v3325
      %v3327 = vadd.f32 %v3289, %v3326
      %3328 = vst [vmem:[%s6] sm:$0x1] %v3327
      %v3329 = vld [vmem:[%s6 + $0x1] sm:$0x1]
      %v3330 = vmul.f32 %v3225, %v3225
      %v3331 = vmul.f32 %v3226, %v3226
      %v3332 = vmul.f32 %v3227, %v3227
      %v3333 = vmul.f32 %v3228, %v3228
      %v3334 = vmul.f32 %v3229, %v3229
      %v3335 = vmul.f32 %v3230, %v3230
      %v3336 = vmul.f32 %v3231, %v3231
      %v3337 = vmul.f32 %v3232, %v3232
      %v3338 = vmul.f32 %v3233, %v3233
      %v3339 = vmul.f32 %v3234, %v3234
      %v3340 = vmul.f32 %v3235, %v3235
      %v3341 = vmul.f32 %v3236, %v3236
      %v3342 = vmul.f32 %v3237, %v3237
      %v3343 = vmul.f32 %v3238, %v3238
      %v3344 = vmul.f32 %v3239, %v3239
      %v3345 = vmul.f32 %v3240, %v3240
      %v3346 = vmul.f32 %v3241, %v3241
      %v3347 = vmul.f32 %v3242, %v3242
      %v3348 = vmul.f32 %v3243, %v3243
      %v3349 = vmul.f32 %v3244, %v3244
      %v3350 = vmul.f32 %v3245, %v3245
      %v3351 = vmul.f32 %v3246, %v3246
      %v3352 = vmul.f32 %v3247, %v3247
      %v3353 = vmul.f32 %v3248, %v3248
      %v3354 = vmul.f32 %v3249, %v3249
      %v3355 = vmul.f32 %v3250, %v3250
      %v3356 = vmul.f32 %v3251, %v3251
      %v3357 = vmul.f32 %v3252, %v3252
      %v3358 = vmul.f32 %v3253, %v3253
      %v3359 = vmul.f32 %v3254, %v3254
      %v3360 = vmul.f32 %v3255, %v3255
      %v3361 = vmul.f32 %v3256, %v3256
      %v3362 = vadd.f32 %v3330, %v3331
      %v3363 = vadd.f32 %v3362, %v3332
      %v3364 = vadd.f32 %v3363, %v3333
      %v3365 = vadd.f32 %v3364, %v3334
      %v3366 = vadd.f32 %v3365, %v3335
      %v3367 = vadd.f32 %v3366, %v3336
      %v3368 = vadd.f32 %v3367, %v3337
      %v3369 = vadd.f32 %v3368, %v3338
      %v3370 = vadd.f32 %v3369, %v3339
      %v3371 = vadd.f32 %v3370, %v3340
      %v3372 = vadd.f32 %v3371, %v3341
      %v3373 = vadd.f32 %v3372, %v3342
      %v3374 = vadd.f32 %v3373, %v3343
      %v3375 = vadd.f32 %v3374, %v3344
      %v3376 = vadd.f32 %v3375, %v3345
      %v3377 = vadd.f32 %v3376, %v3346
      %v3378 = vadd.f32 %v3377, %v3347
      %v3379 = vadd.f32 %v3378, %v3348
      %v3380 = vadd.f32 %v3379, %v3349
      %v3381 = vadd.f32 %v3380, %v3350
      %v3382 = vadd.f32 %v3381, %v3351
      %v3383 = vadd.f32 %v3382, %v3352
      %v3384 = vadd.f32 %v3383, %v3353
      %v3385 = vadd.f32 %v3384, %v3354
      %v3386 = vadd.f32 %v3385, %v3355
      %v3387 = vadd.f32 %v3386, %v3356
      %v3388 = vadd.f32 %v3387, %v3357
      %v3389 = vadd.f32 %v3388, %v3358
      %v3390 = vadd.f32 %v3389, %v3359
      %v3391 = vadd.f32 %v3390, %v3360
      %v3392 = vadd.f32 %v3391, %v3361
      %v3393 = vrot.slane %v3392, 4
      %v3394 = vadd.f32 %v3392, %v3393
      %v3395 = vrot.slane %v3394, 2
      %v3396 = vadd.f32 %v3394, %v3395
      %v3397 = vrot.slane %v3396, 1
      %v3398 = vadd.f32 %v3396, %v3397
      %v3399 = vadd.f32 %v3329, %v3398
      %3400 = vst [vmem:[%s6 + $0x1] sm:$0x1] %v3399
      %p3401 = scmp.lt.s32.totalorder %s18, 1
      %s3402 = scalar_select %p3401, %s18, 1
      %s3403 = smul.addr %s3402, 32
      %s3404 = smul.addr %s3403, 8
      %s3405 = scalar_lea.vmem %s5, %s3404
      // Predicated region
      $region45: #{bottleneck_forward.5} parent=39 // pred_check
        %p3406 = pneg %p146
      $region46: #{bottleneck_forward.5} parent=39 // pred_check_branch
        %3408 = sbr.rel (%p3406) target = $region48
      $region47: #{bottleneck_forward.5} parent=39 // pred_region
        _
      $region48: #{bottleneck_forward.5} parent=39 // pred_fallthru
        _
      // Predicated region
      $region49: #{bottleneck_forward.5} parent=39 // pred_check
        %p3409 = pneg %p167
      $region50: #{bottleneck_forward.5} parent=39 // pred_check_branch
        %3411 = sbr.rel (%p3409) target = $region52
      $region51: #{bottleneck_forward.5} parent=39 // pred_region
        _
      $region52: #{bottleneck_forward.5} parent=39 // pred_fallthru
        _
      // Predicated region
      $region53: #{bottleneck_forward.5} parent=39 // pred_check
        %p3412 = pneg %p167
      $region54: #{bottleneck_forward.5} parent=39 // pred_check_branch
        %3414 = sbr.rel (%p3412) target = $region56
      $region55: #{bottleneck_forward.5} parent=39 // pred_region
        _
      $region56: #{bottleneck_forward.5} parent=39 // pred_fallthru
        _
    $region40: #{bottleneck_forward.5} parent=5 // pred_fallthru
      _
    %p3415 = scmp.le.s32.totalorder 2, %s13
    // Predicated region
    $region57: #{bottleneck_forward.5} parent=5 // pred_check
      %p3416 = pneg %p3415
    $region58: #{bottleneck_forward.5} parent=5 // pred_check_branch
      %3418 = sbr.rel (%p3416) target = $region60
    $region59: #{bottleneck_forward.5} parent=5 // pred_region
      %s3419 = ssub.s32 %s13, 2
      // Predicated region
      $region61: #{bottleneck_forward.5} parent=59 // pred_check
        %p3420 = pneg %p152
      $region62: #{bottleneck_forward.5} parent=59 // pred_check_branch
        %3422 = sbr.rel (%p3420) target = $region64
      $region63: #{bottleneck_forward.5} parent=59 // pred_region
        %p3423 = scmp.lt.s32.totalorder %s19, 1
        %s3424 = scalar_select %p3423, %s19, 1
        %s3425 = smul.addr %s3424, 32
        %s3426 = smul.addr %s3425, 8
        %s3427 = scalar_lea.vmem %s5, %s3426
      $region64: #{bottleneck_forward.5} parent=59 // pred_fallthru
        _
    $region60: #{bottleneck_forward.5} parent=5 // pred_fallthru
      _
  $region6: #{bottleneck_forward.5} parent=0 // loop_footer
    %s17 = sadd.s32 1, %s13
  $region7: #{bottleneck_forward.5} parent=0 // loop_footer_branch
    %12 = sbr.rel target = $region3
  $region8: #{bottleneck_forward.5} parent=0 // loop_exit
    _

</llo_original>
